<compile_context>
chip_gen: v6e
topology: v6e:2x2x1
jax: 0.10.0
libtpu: 0.0.40
codegen_flags: <defaults>
</compile_context>

<pallas_src>
import functools
import math

import jax
import jax.numpy as jnp
from jax import lax
from jax.experimental import pallas as pl
from jax.experimental.pallas import tpu as pltpu

# Contract the last dim of both operands ("x @ W^T" with W in torch (out,in) layout).
_NT = (((1,), (1,)), ((), ()))


def _make_dot(mxu_dtype):
    prec = lax.Precision.HIGHEST if mxu_dtype == jnp.float32 else lax.Precision.DEFAULT

    def dot(a, b, dims=_NT):
        return lax.dot_general(a.astype(mxu_dtype), b.astype(mxu_dtype), dims,
                               precision=prec, preferred_element_type=jnp.float32)

    return dot


def _mha_context_t_kernel(x_ref, w_qk_ref, w_v_ref, ctxt_ref, *,
                          n_heads, d_k, mxu_dtype, approx_softmax):
    """Fused Q/K projection + transposed V projection + per-head attention.

    Output is the per-head context stacked pre-transposed as (D, N) = (H*d_k, N):
    element [h*d_k + c, m] = context[h, m, c].  Its row-major flattening equals the
    module's `context.transpose(1, 2).reshape(-1, H*d_v)`, so the wrapper only needs a
    zero-copy reshape.  The single store is full-width with the sequence on the lane
    axis (lane-dense for realistic N).
    """
    dot = _make_dot(mxu_dtype)
    D = n_heads * d_k
    x = x_ref[...]

    qk = dot(x, w_qk_ref[...])          # (N, 2D): [:, :D] = Q2d, [:, D:] = K2d
    v_t = dot(w_v_ref[...], x)          # (D, N):  V2d already transposed, no relayout

    inv_scale = 1.0 / math.sqrt(d_k)
    ctx_t = []
    for h in range(n_heads):            # static loop; H is small
        sl = slice(h * d_k, (h + 1) * d_k)
        q_h = qk[:, sl]                                   # (N, d_k)
        k_h = qk[:, D + h * d_k:D + (h + 1) * d_k]        # (N, d_k)
        v_h_t = v_t[sl, :]                                # (d_k, N)

        s = dot(q_h, k_h) * inv_scale                     # (N, N) scores
        m = jnp.max(s, axis=-1, keepdims=True)
        e = jnp.exp(s - m)
        den = jnp.sum(e, axis=-1, keepdims=True)
        if approx_softmax:
            p = e * pl.reciprocal(den, approx=True)       # EUP slot, ~free
        else:
            p = e / den                                   # exact (f32 check path)

        # context[h]^T = V_h^T @ P^T : contract the key axis (last dim of both).
        ctx_t.append(dot(v_h_t, p))                       # (d_k, N)

    ctxt_ref[...] = jnp.concatenate(ctx_t, axis=0).astype(ctxt_ref.dtype)


def _ffn_layernorm_kernel(ctx_ref, x_ref, w_fc_ref, w_l1_ref, b_l1_ref,
                          g1_ref, b1_ref, g2_ref, b2_ref, o_ref, *, eps, mxu_dtype):
    """fc + residual + LayerNorm1 + Linear(l1) + residual + LayerNorm2 on a row tile."""
    dot = _make_dot(mxu_dtype)

    def layer_norm(v, g, b):
        mu = jnp.mean(v, axis=-1, keepdims=True)
        c = v - mu
        var = jnp.mean(c * c, axis=-1, keepdims=True)
        return c * lax.rsqrt(var + eps) * g + b

    x = x_ref[...].astype(jnp.float32)
    attn_out = dot(ctx_ref[...], w_fc_ref[...])                    # (tm, D)
    h1 = layer_norm(attn_out + x, g1_ref[...], b1_ref[...])
    ff = dot(h1, w_l1_ref[...]) + b_l1_ref[...]
    h2 = layer_norm(ff + h1, g2_ref[...], b2_ref[...])
    o_ref[...] = h2.astype(o_ref.dtype)


def prepare_params(params, *, mxu_dtype=jnp.float32):
    """One-time packing of torch-layout parameters (outside the per-call hot path).

    No transposes are materialized: the kernels contract torch (out, in) weights
    directly.  Only Wq/Wk are concatenated row-wise so Q and K share one MXU matmul.
    """
    D = params["w_q"].shape[0]
    row = lambda a: a.reshape(1, D).astype(jnp.float32)
    return {
        "w_qk": jnp.concatenate([params["w_q"], params["w_k"]], axis=0).astype(mxu_dtype),
        "w_v": params["w_v"].astype(mxu_dtype),
        "w_fc": params["w_fc"].astype(mxu_dtype),
        "w_l1": params["w_l1"].astype(mxu_dtype),
        "b_l1": row(params["b_l1"]),
        "ln1_w": row(params["ln1_w"]), "ln1_b": row(params["ln1_b"]),
        "ln2_w": row(params["ln2_w"]), "ln2_b": row(params["ln2_b"]),
    }


@functools.partial(jax.jit, static_argnames=("n_heads", "mxu_dtype"))
def encoder_layer(x, prep, *, n_heads, mxu_dtype=jnp.float32):
    """Pallas TPU forward of EncoderLayer.  x: (N, D); prep from prepare_params()."""
    N, D = x.shape
    assert D % n_heads == 0, (D, n_heads)
    d_k = D // n_heads
    bpe = jnp.dtype(mxu_dtype).itemsize
    approx_softmax = mxu_dtype != jnp.float32
    vmem = pl.BlockSpec(memory_space=pltpu.MemorySpace.VMEM)

    # ---- Kernel 1: whole-sequence attention, VMEM resident. ----
    est1 = (N * D * 4 + 3 * D * D * bpe + N * 2 * D * 4 + 2 * D * N * 4
            + 3 * N * N * 4 + D * N * bpe)
    if est1 > 48 * 1024 * 1024:
        # TODO(synk): flash-style KV tiling + head/query "parallel" grid for long sequences.
        raise NotImplementedError("sequence too long for the VMEM-resident attention kernel")
    ctx_t = pl.pallas_call(
        functools.partial(_mha_context_t_kernel, n_heads=n_heads, d_k=d_k,
                          mxu_dtype=mxu_dtype, approx_softmax=approx_softmax),
        out_shape=jax.ShapeDtypeStruct((D, N), mxu_dtype),
        in_specs=[vmem, vmem, vmem],
        out_specs=vmem,
        compiler_params=pltpu.CompilerParams(
            vmem_limit_bytes=int(min(max(4 * est1, 16 * 2**20), 64 * 2**20))),
    )(x, prep["w_qk"], prep["w_v"])

    # The module's `context.transpose(1, 2).reshape(-1, H*d_v)`: with the (D, N)
    # stacked-transposed context this is a row-major flat reshape -> zero-copy bitcast.
    ctx2d = ctx_t.reshape(N, D)

    # ---- Kernel 2: fc + residual + LN1 + l1 + residual + LN2, row-tiled. ----
    if N > 256:
        tm = next((t for t in (256, 128, 64, 32, 16, 8) if N % t == 0), N)
    else:
        tm = N
    grid = (N // tm,)
    est2 = (2 * (tm * D * 4 + tm * D * bpe + tm * D * 4)        # double-buffered row tiles
            + 2 * D * D * bpe + 5 * D * 4 + 6 * tm * D * 4)     # weights, vectors, temps
    out = pl.pallas_call(
        functools.partial(_ffn_layernorm_kernel, eps=1e-5, mxu_dtype=mxu_dtype),
        out_shape=jax.ShapeDtypeStruct((N, D), x.dtype),
        grid=grid,
        in_specs=[pl.BlockSpec((tm, D), lambda i: (i, 0)),
                  pl.BlockSpec((tm, D), lambda i: (i, 0)),
                  pl.BlockSpec((D, D), lambda i: (0, 0)),
                  pl.BlockSpec((D, D), lambda i: (0, 0))]
                 + [pl.BlockSpec((1, D), lambda i: (0, 0))] * 5,
        out_specs=pl.BlockSpec((tm, D), lambda i: (i, 0)),
        compiler_params=pltpu.CompilerParams(
            dimension_semantics=("parallel",),
            vmem_limit_bytes=int(min(max(4 * est2, 16 * 2**20), 64 * 2**20))),
    )(ctx2d, x, prep["w_fc"], prep["w_l1"], prep["b_l1"],
      prep["ln1_w"], prep["ln1_b"], prep["ln2_w"], prep["ln2_b"])
    return out


def _reference(x, params, *, n_heads, mxu_dtype=jnp.float32):
    """Pure-JAX mirror of the PyTorch EncoderLayer.forward (same op order).

    With mxu_dtype=bf16 the matmul operands are quantized the same way the kernel
    does, so the fast path can be checked with a tight-ish tolerance too.
    """
    N, D = x.shape
    d_k = D // n_heads
    f32 = jnp.float32
    prec = lax.Precision.HIGHEST if mxu_dtype == jnp.float32 else lax.Precision.DEFAULT

    def mm(a, b):
        return jnp.dot(a.astype(mxu_dtype), b.astype(mxu_dtype),
                       precision=prec, preferred_element_type=f32)

    q = mm(x, params["w_q"].T).reshape(N, n_heads, d_k).transpose(1, 0, 2)
    k = mm(x, params["w_k"].T).reshape(N, n_heads, d_k).transpose(1, 0, 2)
    v = mm(x, params["w_v"].T).reshape(N, n_heads, d_k).transpose(1, 0, 2)
    s = jnp.einsum("hnd,hmd->hnm", q.astype(mxu_dtype), k.astype(mxu_dtype),
                   precision=prec, preferred_element_type=f32) / math.sqrt(d_k)
    p = jax.nn.softmax(s, axis=-1)
    ctx = jnp.einsum("hnm,hmd->hnd", p.astype(mxu_dtype), v.astype(mxu_dtype),
                     precision=prec, preferred_element_type=f32)
    ctx2d = jnp.transpose(ctx, (0, 2, 1)).reshape(N, n_heads * d_k)   # as in torch
    attn_out = mm(ctx2d, params["w_fc"].T)

    def ln(val, g, b, eps=1e-5):
        mu = val.mean(-1, keepdims=True)
        var = ((val - mu) ** 2).mean(-1, keepdims=True)
        return (val - mu) / jnp.sqrt(var + eps) * g + b

    x1 = ln(attn_out + x, params["ln1_w"], params["ln1_b"])
    ff = mm(x1, params["w_l1"].T) + params["b_l1"]
    return ln(ff + x1, params["ln2_w"], params["ln2_b"])


if __name__ == "__main__":
    key = jax.random.PRNGKey(0)
    ks = jax.random.split(key, 11)

    seq, input_dim, n_heads = 8, 32, 4          # small shapes consistent with the module
    x = jax.random.normal(ks[0], (seq, input_dim), dtype=jnp.float32)
    w_scale = 1.0 / math.sqrt(input_dim)
    params = {
        "w_q": jax.random.normal(ks[1], (input_dim, input_dim), jnp.float32) * w_scale,
        "w_k": jax.random.normal(ks[2], (input_dim, input_dim), jnp.float32) * w_scale,
        "w_v": jax.random.normal(ks[3], (input_dim, input_dim), jnp.float32) * w_scale,
        "w_fc": jax.random.normal(ks[4], (input_dim, input_dim), jnp.float32) * w_scale,
        "w_l1": jax.random.normal(ks[5], (input_dim, input_dim), jnp.float32) * w_scale,
        "b_l1": 0.1 * jax.random.normal(ks[6], (input_dim,), jnp.float32),
        "ln1_w": 1.0 + 0.1 * jax.random.normal(ks[7], (input_dim,), jnp.float32),
        "ln1_b": 0.1 * jax.random.normal(ks[8], (input_dim,), jnp.float32),
        "ln2_w": 1.0 + 0.1 * jax.random.normal(ks[9], (input_dim,), jnp.float32),
        "ln2_b": 0.1 * jax.random.normal(ks[10], (input_dim,), jnp.float32),
    }

    # f32 MXU path (HIGHEST precision): tight check against the f32 reference.
    prep_f32 = prepare_params(params, mxu_dtype=jnp.float32)
    out_f32 = encoder_layer(x, prep_f32, n_heads=n_heads, mxu_dtype=jnp.float32)
    jax.block_until_ready(out_f32)
    ref_f32 = _reference(x, params, n_heads=n_heads, mxu_dtype=jnp.float32)
    assert out_f32.shape == ref_f32.shape, (out_f32.shape, ref_f32.shape)
    err32 = float(jnp.max(jnp.abs(out_f32 - ref_f32)))
    assert jnp.allclose(out_f32, ref_f32, atol=5e-4, rtol=5e-4), err32

    # bf16 MXU fast path (f32 accumulation + EUP approx reciprocal), checked against a
    # reference whose matmul operands are bf16-quantized the same way.
    prep_bf16 = prepare_params(params, mxu_dtype=jnp.bfloat16)
    out_bf16 = encoder_layer(x, prep_bf16, n_heads=n_heads, mxu_dtype=jnp.bfloat16)
    jax.block_until_ready(out_bf16)
    ref_bf16 = _reference(x, params, n_heads=n_heads, mxu_dtype=jnp.bfloat16)
    err16 = float(jnp.max(jnp.abs(out_bf16 - ref_bf16)))
    assert jnp.allclose(out_bf16, ref_bf16, atol=3e-2, rtol=3e-2), err16

    print("KERNEL_OK")
</pallas_src>

<mosaic_0001>
module attributes {stable_mosaic.version = 11 : i64} {
  func.func @_ffn_layernorm_kernel(%arg0: i32, %arg1: memref<8x32xf32, #tpu.memory_space<vmem>>, %arg2: memref<8x32xf32, #tpu.memory_space<vmem>>, %arg3: memref<32x32xf32, #tpu.memory_space<vmem>>, %arg4: memref<32x32xf32, #tpu.memory_space<vmem>>, %arg5: memref<1x32xf32, #tpu.memory_space<vmem>>, %arg6: memref<1x32xf32, #tpu.memory_space<vmem>>, %arg7: memref<1x32xf32, #tpu.memory_space<vmem>>, %arg8: memref<1x32xf32, #tpu.memory_space<vmem>>, %arg9: memref<1x32xf32, #tpu.memory_space<vmem>>, %arg10: memref<8x32xf32, #tpu.memory_space<vmem>>) attributes {dimension_semantics = [#tpu.dimension_semantics<parallel>], iteration_bounds = array<i64: 1>, scalar_prefetch = 0 : i64, scratch_operands = 0 : i64, tpu.core_type = #tpu.core_type<tc>, window_params = [{transform_indices = @transform_0, window_bounds = array<i64: 8, 32>}, {transform_indices = @transform_1, window_bounds = array<i64: 8, 32>}, {pipeline_mode = #tpu.pipeline_mode<synchronous>, transform_indices = @transform_2, window_bounds = array<i64: 32, 32>}, {pipeline_mode = #tpu.pipeline_mode<synchronous>, transform_indices = @transform_3, window_bounds = array<i64: 32, 32>}, {pipeline_mode = #tpu.pipeline_mode<synchronous>, transform_indices = @transform_4, window_bounds = array<i64: 1, 32>}, {pipeline_mode = #tpu.pipeline_mode<synchronous>, transform_indices = @transform_5, window_bounds = array<i64: 1, 32>}, {pipeline_mode = #tpu.pipeline_mode<synchronous>, transform_indices = @transform_6, window_bounds = array<i64: 1, 32>}, {pipeline_mode = #tpu.pipeline_mode<synchronous>, transform_indices = @transform_7, window_bounds = array<i64: 1, 32>}, {pipeline_mode = #tpu.pipeline_mode<synchronous>, transform_indices = @transform_8, window_bounds = array<i64: 1, 32>}, {transform_indices = @transform_9, window_bounds = array<i64: 8, 32>}]} {
    %c0 = arith.constant 0 : index
    %c0_0 = arith.constant 0 : index
    %0 = vector.load %arg2[%c0, %c0_0] : memref<8x32xf32, #tpu.memory_space<vmem>>, vector<8x32xf32>
    %c0_1 = arith.constant 0 : index
    %c0_2 = arith.constant 0 : index
    %1 = vector.load %arg1[%c0_1, %c0_2] : memref<8x32xf32, #tpu.memory_space<vmem>>, vector<8x32xf32>
    %c0_3 = arith.constant 0 : index
    %c0_4 = arith.constant 0 : index
    %2 = vector.load %arg3[%c0_3, %c0_4] : memref<32x32xf32, #tpu.memory_space<vmem>>, vector<32x32xf32>
    %cst = arith.constant dense<0.000000e+00> : vector<8x32xf32>
    %3 = tpu.matmul %1, %2, %cst {dimension_numbers = #tpu.dot_dimension_numbers<[1], [1], [0], [0], [0, 0, 1, 0], [], []>, precision = #tpu.contract_precision<fp32>} : vector<8x32xf32>, vector<32x32xf32>, vector<8x32xf32> -> vector<8x32xf32>
    %4 = arith.addf %3, %0 : vector<8x32xf32>
    %c0_5 = arith.constant 0 : index
    %c0_6 = arith.constant 0 : index
    %5 = vector.load %arg6[%c0_5, %c0_6] : memref<1x32xf32, #tpu.memory_space<vmem>>, vector<1x32xf32>
    %c0_7 = arith.constant 0 : index
    %c0_8 = arith.constant 0 : index
    %6 = vector.load %arg7[%c0_7, %c0_8] : memref<1x32xf32, #tpu.memory_space<vmem>>, vector<1x32xf32>
    %cst_9 = arith.constant dense<0.000000e+00> : vector<8xf32>
    %7 = vector.multi_reduction <add>, %4, %cst_9 [1] : vector<8x32xf32> to vector<8xf32>
    %8 = vector.shape_cast %7 : vector<8xf32> to vector<8x1xf32>
    %cst_10 = arith.constant 3.200000e+01 : f32
    %9 = vector.broadcast %cst_10 : f32 to vector<8x1xf32>
    %10 = arith.divf %8, %9 : vector<8x1xf32>
    %11 = vector.broadcast %10 : vector<8x1xf32> to vector<8x32xf32>
    %12 = arith.subf %4, %11 : vector<8x32xf32>
    %13 = arith.mulf %12, %12 : vector<8x32xf32>
    %cst_11 = arith.constant dense<0.000000e+00> : vector<8xf32>
    %14 = vector.multi_reduction <add>, %13, %cst_11 [1] : vector<8x32xf32> to vector<8xf32>
    %15 = vector.shape_cast %14 : vector<8xf32> to vector<8x1xf32>
    %cst_12 = arith.constant 3.200000e+01 : f32
    %16 = vector.broadcast %cst_12 : f32 to vector<8x1xf32>
    %17 = arith.divf %15, %16 : vector<8x1xf32>
    %cst_13 = arith.constant 9.99999974E-6 : f32
    %18 = vector.broadcast %cst_13 : f32 to vector<8x1xf32>
    %19 = arith.addf %17, %18 : vector<8x1xf32>
    %20 = math.rsqrt %19 : vector<8x1xf32>
    %21 = vector.broadcast %20 : vector<8x1xf32> to vector<8x32xf32>
    %22 = arith.mulf %12, %21 : vector<8x32xf32>
    %23 = vector.broadcast %5 : vector<1x32xf32> to vector<8x32xf32>
    %24 = arith.mulf %22, %23 : vector<8x32xf32>
    %25 = vector.broadcast %6 : vector<1x32xf32> to vector<8x32xf32>
    %26 = arith.addf %24, %25 : vector<8x32xf32>
    %c0_14 = arith.constant 0 : index
    %c0_15 = arith.constant 0 : index
    %27 = vector.load %arg4[%c0_14, %c0_15] : memref<32x32xf32, #tpu.memory_space<vmem>>, vector<32x32xf32>
    %cst_16 = arith.constant dense<0.000000e+00> : vector<8x32xf32>
    %28 = tpu.matmul %26, %27, %cst_16 {dimension_numbers = #tpu.dot_dimension_numbers<[1], [1], [0], [0], [0, 0, 1, 0], [], []>, precision = #tpu.contract_precision<fp32>} : vector<8x32xf32>, vector<32x32xf32>, vector<8x32xf32> -> vector<8x32xf32>
    %c0_17 = arith.constant 0 : index
    %c0_18 = arith.constant 0 : index
    %29 = vector.load %arg5[%c0_17, %c0_18] : memref<1x32xf32, #tpu.memory_space<vmem>>, vector<1x32xf32>
    %30 = vector.broadcast %29 : vector<1x32xf32> to vector<8x32xf32>
    %31 = arith.addf %28, %30 : vector<8x32xf32>
    %32 = arith.addf %31, %26 : vector<8x32xf32>
    %c0_19 = arith.constant 0 : index
    %c0_20 = arith.constant 0 : index
    %33 = vector.load %arg8[%c0_19, %c0_20] : memref<1x32xf32, #tpu.memory_space<vmem>>, vector<1x32xf32>
    %c0_21 = arith.constant 0 : index
    %c0_22 = arith.constant 0 : index
    %34 = vector.load %arg9[%c0_21, %c0_22] : memref<1x32xf32, #tpu.memory_space<vmem>>, vector<1x32xf32>
    %cst_23 = arith.constant dense<0.000000e+00> : vector<8xf32>
    %35 = vector.multi_reduction <add>, %32, %cst_23 [1] : vector<8x32xf32> to vector<8xf32>
    %36 = vector.shape_cast %35 : vector<8xf32> to vector<8x1xf32>
    %cst_24 = arith.constant 3.200000e+01 : f32
    %37 = vector.broadcast %cst_24 : f32 to vector<8x1xf32>
    %38 = arith.divf %36, %37 : vector<8x1xf32>
    %39 = vector.broadcast %38 : vector<8x1xf32> to vector<8x32xf32>
    %40 = arith.subf %32, %39 : vector<8x32xf32>
    %41 = arith.mulf %40, %40 : vector<8x32xf32>
    %cst_25 = arith.constant dense<0.000000e+00> : vector<8xf32>
    %42 = vector.multi_reduction <add>, %41, %cst_25 [1] : vector<8x32xf32> to vector<8xf32>
    %43 = vector.shape_cast %42 : vector<8xf32> to vector<8x1xf32>
    %cst_26 = arith.constant 3.200000e+01 : f32
    %44 = vector.broadcast %cst_26 : f32 to vector<8x1xf32>
    %45 = arith.divf %43, %44 : vector<8x1xf32>
    %cst_27 = arith.constant 9.99999974E-6 : f32
    %46 = vector.broadcast %cst_27 : f32 to vector<8x1xf32>
    %47 = arith.addf %45, %46 : vector<8x1xf32>
    %48 = math.rsqrt %47 : vector<8x1xf32>
    %49 = vector.broadcast %48 : vector<8x1xf32> to vector<8x32xf32>
    %50 = arith.mulf %40, %49 : vector<8x32xf32>
    %51 = vector.broadcast %33 : vector<1x32xf32> to vector<8x32xf32>
    %52 = arith.mulf %50, %51 : vector<8x32xf32>
    %53 = vector.broadcast %34 : vector<1x32xf32> to vector<8x32xf32>
    %54 = arith.addf %52, %53 : vector<8x32xf32>
    %c0_28 = arith.constant 0 : index
    %c0_29 = arith.constant 0 : index
    %55 = vector.load %arg10[%c0_28, %c0_29] : memref<8x32xf32, #tpu.memory_space<vmem>>, vector<8x32xf32>
    tpu.vector_store %arg10[%c0_28, %c0_29], %54 {strides = array<i32>} : memref<8x32xf32, #tpu.memory_space<vmem>>, vector<8x32xf32>,
    return
  }
  func.func @transform_0(%arg0: i32) -> (i32, i32) {
    %c0_i32 = arith.constant 0 : i32
    %c0_i32_0 = arith.constant 0 : i32
    return %arg0, %c0_i32 : i32, i32
  }
  func.func @transform_1(%arg0: i32) -> (i32, i32) {
    %c0_i32 = arith.constant 0 : i32
    %c0_i32_0 = arith.constant 0 : i32
    return %arg0, %c0_i32 : i32, i32
  }
  func.func @transform_2(%arg0: i32) -> (i32, i32) {
    %c0_i32 = arith.constant 0 : i32
    %c0_i32_0 = arith.constant 0 : i32
    %c0_i32_1 = arith.constant 0 : i32
    return %c0_i32, %c0_i32_0 : i32, i32
  }
  func.func @transform_3(%arg0: i32) -> (i32, i32) {
    %c0_i32 = arith.constant 0 : i32
    %c0_i32_0 = arith.constant 0 : i32
    %c0_i32_1 = arith.constant 0 : i32
    return %c0_i32, %c0_i32_0 : i32, i32
  }
  func.func @transform_4(%arg0: i32) -> (i32, i32) {
    %c0_i32 = arith.constant 0 : i32
    %c0_i32_0 = arith.constant 0 : i32
    %c0_i32_1 = arith.constant 0 : i32
    return %c0_i32, %c0_i32_0 : i32, i32
  }
  func.func @transform_5(%arg0: i32) -> (i32, i32) {
    %c0_i32 = arith.constant 0 : i32
    %c0_i32_0 = arith.constant 0 : i32
    %c0_i32_1 = arith.constant 0 : i32
    return %c0_i32, %c0_i32_0 : i32, i32
  }
  func.func @transform_6(%arg0: i32) -> (i32, i32) {
    %c0_i32 = arith.constant 0 : i32
    %c0_i32_0 = arith.constant 0 : i32
    %c0_i32_1 = arith.constant 0 : i32
    return %c0_i32, %c0_i32_0 : i32, i32
  }
  func.func @transform_7(%arg0: i32) -> (i32, i32) {
    %c0_i32 = arith.constant 0 : i32
    %c0_i32_0 = arith.constant 0 : i32
    %c0_i32_1 = arith.constant 0 : i32
    return %c0_i32, %c0_i32_0 : i32, i32
  }
  func.func @transform_8(%arg0: i32) -> (i32, i32) {
    %c0_i32 = arith.constant 0 : i32
    %c0_i32_0 = arith.constant 0 : i32
    %c0_i32_1 = arith.constant 0 : i32
    return %c0_i32, %c0_i32_0 : i32, i32
  }
  func.func @transform_9(%arg0: i32) -> (i32, i32) {
    %c0_i32 = arith.constant 0 : i32
    %c0_i32_0 = arith.constant 0 : i32
    return %arg0, %c0_i32 : i32, i32
  }
}

module attributes {stable_mosaic.version = 11 : i64} {
  func.func @_mha_context_t_kernel(%arg0: memref<8x32xf32, #tpu.memory_space<vmem>>, %arg1: memref<64x32xf32, #tpu.memory_space<vmem>>, %arg2: memref<32x32xf32, #tpu.memory_space<vmem>>, %arg3: memref<32x8xf32, #tpu.memory_space<vmem>>) attributes {dimension_semantics = [], scalar_prefetch = 0 : i64, scratch_operands = 0 : i64, tpu.core_type = #tpu.core_type<tc>} {
    %c0 = arith.constant 0 : index
    %c0_0 = arith.constant 0 : index
    %0 = vector.load %arg0[%c0, %c0_0] : memref<8x32xf32, #tpu.memory_space<vmem>>, vector<8x32xf32>
    %c0_1 = arith.constant 0 : index
    %c0_2 = arith.constant 0 : index
    %1 = vector.load %arg1[%c0_1, %c0_2] : memref<64x32xf32, #tpu.memory_space<vmem>>, vector<64x32xf32>
    %cst = arith.constant dense<0.000000e+00> : vector<8x64xf32>
    %2 = tpu.matmul %0, %1, %cst {dimension_numbers = #tpu.dot_dimension_numbers<[1], [1], [0], [0], [0, 0, 1, 0], [], []>, precision = #tpu.contract_precision<fp32>} : vector<8x32xf32>, vector<64x32xf32>, vector<8x64xf32> -> vector<8x64xf32>
    %c0_3 = arith.constant 0 : index
    %c0_4 = arith.constant 0 : index
    %3 = vector.load %arg2[%c0_3, %c0_4] : memref<32x32xf32, #tpu.memory_space<vmem>>, vector<32x32xf32>
    %cst_5 = arith.constant dense<0.000000e+00> : vector<32x8xf32>
    %4 = tpu.matmul %3, %0, %cst_5 {dimension_numbers = #tpu.dot_dimension_numbers<[1], [1], [0], [0], [0, 0, 1, 0], [], []>, precision = #tpu.contract_precision<fp32>} : vector<32x32xf32>, vector<8x32xf32>, vector<32x8xf32> -> vector<32x8xf32>
    %5 = vector.extract_strided_slice %2 {offsets = [0, 0], sizes = [8, 8], strides = [1, 1]} : vector<8x64xf32> to vector<8x8xf32>
    %6 = vector.extract_strided_slice %2 {offsets = [0, 32], sizes = [8, 8], strides = [1, 1]} : vector<8x64xf32> to vector<8x8xf32>
    %7 = vector.extract_strided_slice %4 {offsets = [0, 0], sizes = [8, 8], strides = [1, 1]} : vector<32x8xf32> to vector<8x8xf32>
    %cst_6 = arith.constant dense<0.000000e+00> : vector<8x8xf32>
    %8 = tpu.matmul %5, %6, %cst_6 {dimension_numbers = #tpu.dot_dimension_numbers<[1], [1], [0], [0], [0, 0, 1, 0], [], []>, precision = #tpu.contract_precision<fp32>} : vector<8x8xf32>, vector<8x8xf32>, vector<8x8xf32> -> vector<8x8xf32>
    %cst_7 = arith.constant 0.353553385 : f32
    %9 = vector.broadcast %cst_7 : f32 to vector<8x8xf32>
    %10 = arith.mulf %8, %9 : vector<8x8xf32>
    %cst_8 = arith.constant dense<0xFF800000> : vector<8xf32>
    %11 = vector.multi_reduction <maximumf>, %10, %cst_8 [1] : vector<8x8xf32> to vector<8xf32>
    %12 = vector.shape_cast %11 : vector<8xf32> to vector<8x1xf32>
    %13 = vector.broadcast %12 : vector<8x1xf32> to vector<8x8xf32>
    %14 = arith.subf %10, %13 : vector<8x8xf32>
    %15 = math.exp %14 : vector<8x8xf32>
    %cst_9 = arith.constant dense<0.000000e+00> : vector<8xf32>
    %16 = vector.multi_reduction <add>, %15, %cst_9 [1] : vector<8x8xf32> to vector<8xf32>
    %17 = vector.shape_cast %16 : vector<8xf32> to vector<8x1xf32>
    %18 = vector.broadcast %17 : vector<8x1xf32> to vector<8x8xf32>
    %19 = arith.divf %15, %18 : vector<8x8xf32>
    %cst_10 = arith.constant dense<0.000000e+00> : vector<8x8xf32>
    %20 = tpu.matmul %7, %19, %cst_10 {dimension_numbers = #tpu.dot_dimension_numbers<[1], [1], [0], [0], [0, 0, 1, 0], [], []>, precision = #tpu.contract_precision<fp32>} : vector<8x8xf32>, vector<8x8xf32>, vector<8x8xf32> -> vector<8x8xf32>
    %21 = vector.extract_strided_slice %2 {offsets = [0, 8], sizes = [8, 8], strides = [1, 1]} : vector<8x64xf32> to vector<8x8xf32>
    %22 = vector.extract_strided_slice %2 {offsets = [0, 40], sizes = [8, 8], strides = [1, 1]} : vector<8x64xf32> to vector<8x8xf32>
    %23 = vector.extract_strided_slice %4 {offsets = [8, 0], sizes = [8, 8], strides = [1, 1]} : vector<32x8xf32> to vector<8x8xf32>
    %cst_11 = arith.constant dense<0.000000e+00> : vector<8x8xf32>
    %24 = tpu.matmul %21, %22, %cst_11 {dimension_numbers = #tpu.dot_dimension_numbers<[1], [1], [0], [0], [0, 0, 1, 0], [], []>, precision = #tpu.contract_precision<fp32>} : vector<8x8xf32>, vector<8x8xf32>, vector<8x8xf32> -> vector<8x8xf32>
    %cst_12 = arith.constant 0.353553385 : f32
    %25 = vector.broadcast %cst_12 : f32 to vector<8x8xf32>
    %26 = arith.mulf %24, %25 : vector<8x8xf32>
    %cst_13 = arith.constant dense<0xFF800000> : vector<8xf32>
    %27 = vector.multi_reduction <maximumf>, %26, %cst_13 [1] : vector<8x8xf32> to vector<8xf32>
    %28 = vector.shape_cast %27 : vector<8xf32> to vector<8x1xf32>
    %29 = vector.broadcast %28 : vector<8x1xf32> to vector<8x8xf32>
    %30 = arith.subf %26, %29 : vector<8x8xf32>
    %31 = math.exp %30 : vector<8x8xf32>
    %cst_14 = arith.constant dense<0.000000e+00> : vector<8xf32>
    %32 = vector.multi_reduction <add>, %31, %cst_14 [1] : vector<8x8xf32> to vector<8xf32>
    %33 = vector.shape_cast %32 : vector<8xf32> to vector<8x1xf32>
    %34 = vector.broadcast %33 : vector<8x1xf32> to vector<8x8xf32>
    %35 = arith.divf %31, %34 : vector<8x8xf32>
    %cst_15 = arith.constant dense<0.000000e+00> : vector<8x8xf32>
    %36 = tpu.matmul %23, %35, %cst_15 {dimension_numbers = #tpu.dot_dimension_numbers<[1], [1], [0], [0], [0, 0, 1, 0], [], []>, precision = #tpu.contract_precision<fp32>} : vector<8x8xf32>, vector<8x8xf32>, vector<8x8xf32> -> vector<8x8xf32>
    %37 = vector.extract_strided_slice %2 {offsets = [0, 16], sizes = [8, 8], strides = [1, 1]} : vector<8x64xf32> to vector<8x8xf32>
    %38 = vector.extract_strided_slice %2 {offsets = [0, 48], sizes = [8, 8], strides = [1, 1]} : vector<8x64xf32> to vector<8x8xf32>
    %39 = vector.extract_strided_slice %4 {offsets = [16, 0], sizes = [8, 8], strides = [1, 1]} : vector<32x8xf32> to vector<8x8xf32>
    %cst_16 = arith.constant dense<0.000000e+00> : vector<8x8xf32>
    %40 = tpu.matmul %37, %38, %cst_16 {dimension_numbers = #tpu.dot_dimension_numbers<[1], [1], [0], [0], [0, 0, 1, 0], [], []>, precision = #tpu.contract_precision<fp32>} : vector<8x8xf32>, vector<8x8xf32>, vector<8x8xf32> -> vector<8x8xf32>
    %cst_17 = arith.constant 0.353553385 : f32
    %41 = vector.broadcast %cst_17 : f32 to vector<8x8xf32>
    %42 = arith.mulf %40, %41 : vector<8x8xf32>
    %cst_18 = arith.constant dense<0xFF800000> : vector<8xf32>
    %43 = vector.multi_reduction <maximumf>, %42, %cst_18 [1] : vector<8x8xf32> to vector<8xf32>
    %44 = vector.shape_cast %43 : vector<8xf32> to vector<8x1xf32>
    %45 = vector.broadcast %44 : vector<8x1xf32> to vector<8x8xf32>
    %46 = arith.subf %42, %45 : vector<8x8xf32>
    %47 = math.exp %46 : vector<8x8xf32>
    %cst_19 = arith.constant dense<0.000000e+00> : vector<8xf32>
    %48 = vector.multi_reduction <add>, %47, %cst_19 [1] : vector<8x8xf32> to vector<8xf32>
    %49 = vector.shape_cast %48 : vector<8xf32> to vector<8x1xf32>
    %50 = vector.broadcast %49 : vector<8x1xf32> to vector<8x8xf32>
    %51 = arith.divf %47, %50 : vector<8x8xf32>
    %cst_20 = arith.constant dense<0.000000e+00> : vector<8x8xf32>
    %52 = tpu.matmul %39, %51, %cst_20 {dimension_numbers = #tpu.dot_dimension_numbers<[1], [1], [0], [0], [0, 0, 1, 0], [], []>, precision = #tpu.contract_precision<fp32>} : vector<8x8xf32>, vector<8x8xf32>, vector<8x8xf32> -> vector<8x8xf32>
    %53 = vector.extract_strided_slice %2 {offsets = [0, 24], sizes = [8, 8], strides = [1, 1]} : vector<8x64xf32> to vector<8x8xf32>
    %54 = vector.extract_strided_slice %2 {offsets = [0, 56], sizes = [8, 8], strides = [1, 1]} : vector<8x64xf32> to vector<8x8xf32>
    %55 = vector.extract_strided_slice %4 {offsets = [24, 0], sizes = [8, 8], strides = [1, 1]} : vector<32x8xf32> to vector<8x8xf32>
    %cst_21 = arith.constant dense<0.000000e+00> : vector<8x8xf32>
    %56 = tpu.matmul %53, %54, %cst_21 {dimension_numbers = #tpu.dot_dimension_numbers<[1], [1], [0], [0], [0, 0, 1, 0], [], []>, precision = #tpu.contract_precision<fp32>} : vector<8x8xf32>, vector<8x8xf32>, vector<8x8xf32> -> vector<8x8xf32>
    %cst_22 = arith.constant 0.353553385 : f32
    %57 = vector.broadcast %cst_22 : f32 to vector<8x8xf32>
    %58 = arith.mulf %56, %57 : vector<8x8xf32>
    %cst_23 = arith.constant dense<0xFF800000> : vector<8xf32>
    %59 = vector.multi_reduction <maximumf>, %58, %cst_23 [1] : vector<8x8xf32> to vector<8xf32>
    %60 = vector.shape_cast %59 : vector<8xf32> to vector<8x1xf32>
    %61 = vector.broadcast %60 : vector<8x1xf32> to vector<8x8xf32>
    %62 = arith.subf %58, %61 : vector<8x8xf32>
    %63 = math.exp %62 : vector<8x8xf32>
    %cst_24 = arith.constant dense<0.000000e+00> : vector<8xf32>
    %64 = vector.multi_reduction <add>, %63, %cst_24 [1] : vector<8x8xf32> to vector<8xf32>
    %65 = vector.shape_cast %64 : vector<8xf32> to vector<8x1xf32>
    %66 = vector.broadcast %65 : vector<8x1xf32> to vector<8x8xf32>
    %67 = arith.divf %63, %66 : vector<8x8xf32>
    %cst_25 = arith.constant dense<0.000000e+00> : vector<8x8xf32>
    %68 = tpu.matmul %55, %67, %cst_25 {dimension_numbers = #tpu.dot_dimension_numbers<[1], [1], [0], [0], [0, 0, 1, 0], [], []>, precision = #tpu.contract_precision<fp32>} : vector<8x8xf32>, vector<8x8xf32>, vector<8x8xf32> -> vector<8x8xf32>
    %69 = tpu.concatenate %20, %36, %52, %68 in 0 : vector<8x8xf32>, vector<8x8xf32>, vector<8x8xf32>, vector<8x8xf32> -> vector<32x8xf32>
    %c0_26 = arith.constant 0 : index
    %c0_27 = arith.constant 0 : index
    %70 = vector.load %arg3[%c0_26, %c0_27] : memref<32x8xf32, #tpu.memory_space<vmem>>, vector<32x8xf32>
    tpu.vector_store %arg3[%c0_26, %c0_27], %69 {strides = array<i32>} : memref<32x8xf32, #tpu.memory_space<vmem>>, vector<32x8xf32>,
    return
  }
}

</mosaic_0001>

<llo_original>
// kernel: encoder_layer.3
$region0: #{encoder_layer.3}
  #allocation0 [shape = 'u32[]', space=smem, size = 0x4, offset = 0x4, fixed_abs, tag = 'smem constant byte address 0x4 - core index']
  #allocation1 [shape = 'u32[144,128]{1,0:T(1,128)}', space=vmem, size = 0x12000, scoped, tag = 'internal scratch']
  %s0 = inlined_call_operand.vmem [shape: f32[8,32], index: 0, kind: input, shape index: {}]
  %s1 = inlined_call_operand.vmem [shape: f32[8,32], index: 1, kind: input, shape index: {}]
  %s2 = inlined_call_operand.vmem [shape: f32[32,32], index: 2, kind: input, shape index: {}]
  %s3 = inlined_call_operand.vmem [shape: f32[32,32], index: 3, kind: input, shape index: {}]
  %s4 = inlined_call_operand.vmem [shape: f32[1,32], index: 4, kind: input, shape index: {}]
  %s5 = inlined_call_operand.vmem [shape: f32[1,32], index: 5, kind: input, shape index: {}]
  %s6 = inlined_call_operand.vmem [shape: f32[1,32], index: 6, kind: input, shape index: {}]
  %s7 = inlined_call_operand.vmem [shape: f32[1,32], index: 7, kind: input, shape index: {}]
  %s8 = inlined_call_operand.vmem [shape: f32[1,32], index: 8, kind: input, shape index: {}]
  %s9 = inlined_call_operand.hbm [shape: f32[8,32], index: 9, kind: output, shape index: {}]
  %s10 = sld [smem:[#allocation0]]
  $region46: #{encoder_layer.3} parent=0
    _
  %s12 = ssub.s32 1, %s10
  %s13 = scalar_select 0, %s12, %s10
  $region1: #{encoder_layer.3} parent=0
    #allocation2 [shape = 'u8[4096]{0}', space=vmem, size = 0x1000, scoped, tag = 'output window, operand 0, single buffered']
    #allocation3 [shape = 's32[1]{0}', space=sflag, size = 0x4, scoped, tag = 'scoped memory for encoder_layer.3']
    %14 = vsyncpa [#allocation3], 0
    // Predicated region
    $region2: #{encoder_layer.3} parent=1 // pred_check
      _
    $region3: #{encoder_layer.3} parent=1 // pred_check_branch
      %16 = sbr.rel (0) target = $region5
    $region4: #{encoder_layer.3} parent=1 // pred_region
      _
    $region5: #{encoder_layer.3} parent=1 // pred_fallthru
      _
    // Predicated region
    $region6: #{encoder_layer.3} parent=1 // pred_check
      _
    $region7: #{encoder_layer.3} parent=1 // pred_check_branch
      %18 = sbr.rel (0) target = $region9
    $region8: #{encoder_layer.3} parent=1 // pred_region
      _
    $region9: #{encoder_layer.3} parent=1 // pred_fallthru
      _
    // Predicated region
    $region10: #{encoder_layer.3} parent=1 // pred_check
      _
    $region11: #{encoder_layer.3} parent=1 // pred_check_branch
      %20 = sbr.rel (0) target = $region13
    $region12: #{encoder_layer.3} parent=1 // pred_region
      _
    $region13: #{encoder_layer.3} parent=1 // pred_fallthru
      _
    // Predicated region
    $region14: #{encoder_layer.3} parent=1 // pred_check
      _
    $region15: #{encoder_layer.3} parent=1 // pred_check_branch
      %22 = sbr.rel (0) target = $region17
    $region16: #{encoder_layer.3} parent=1 // pred_region
      _
    $region17: #{encoder_layer.3} parent=1 // pred_fallthru
      _
    // Predicated region
    $region18: #{encoder_layer.3} parent=1 // pred_check
      _
    $region19: #{encoder_layer.3} parent=1 // pred_check_branch
      %24 = sbr.rel (0) target = $region21
    $region20: #{encoder_layer.3} parent=1 // pred_region
      _
    $region21: #{encoder_layer.3} parent=1 // pred_fallthru
      _
    // Predicated region
    $region22: #{encoder_layer.3} parent=1 // pred_check
      _
    $region23: #{encoder_layer.3} parent=1 // pred_check_branch
      %26 = sbr.rel (0) target = $region25
    $region24: #{encoder_layer.3} parent=1 // pred_region
      _
    $region25: #{encoder_layer.3} parent=1 // pred_fallthru
      _
    // Predicated region
    $region26: #{encoder_layer.3} parent=1 // pred_check
      _
    $region27: #{encoder_layer.3} parent=1 // pred_check_branch
      %28 = sbr.rel (0) target = $region29
    $region28: #{encoder_layer.3} parent=1 // pred_region
      _
    $region29: #{encoder_layer.3} parent=1 // pred_fallthru
      _
    // Predicated region
    $region30: #{encoder_layer.3} parent=1 // pred_check
      _
    $region31: #{encoder_layer.3} parent=1 // pred_check_branch
      %30 = sbr.rel (0) target = $region33
    $region32: #{encoder_layer.3} parent=1 // pred_region
      _
    $region33: #{encoder_layer.3} parent=1 // pred_fallthru
      _
    // Predicated region
    $region34: #{encoder_layer.3} parent=1 // pred_check
      _
    $region35: #{encoder_layer.3} parent=1 // pred_check_branch
      %32 = sbr.rel (0) target = $region37
    $region36: #{encoder_layer.3} parent=1 // pred_region
      _
    $region37: #{encoder_layer.3} parent=1 // pred_fallthru
      _
    %v33 = vld [vmem:[%s1] sm:$0xff]
    %v34 = vld [vmem:[%s0] sm:$0xff]
    %v35 = vld [vmem:[%s2] sm:$0xff]
    %v36 = vld [vmem:[%s2 + $0x8] sm:$0xff]
    %v37 = vld [vmem:[%s2 + $0x10] sm:$0xff]
    %v38 = vld [vmem:[%s2 + $0x18] sm:$0xff]
    %vm39 = vcmask 261120
    %v41 = vsel %vm39, %v34, 0
    %v44 = vsel %vm39, %v35, 0
    %v47 = vsel %vm39, %v36, 0
    %v50 = vsel %vm39, %v37, 0
    %v53 = vsel %vm39, %v38, 0
    %55 = vmatprep.subr.mxu0 0.0
    %56 = vmatpush1.xpose.msra.mxu0 0.0
    %57 = vmatprep.subr.mxu0 0.0
    %58 = vmatpush1.xpose.msra.mxu0 0.0
    %59 = vmatprep.subr.mxu0 0.0
    %60 = vmatpush1.xpose.msra.mxu0 0.0
    %61 = vmatprep.subr.mxu0 0.0
    %62 = vmatpush1.xpose.msra.mxu0 0.0
    %63 = vmatprep.subr.mxu0 0.0
    %64 = vmatpush1.xpose.msra.mxu0 0.0
    %65 = vmatprep.subr.mxu0 0.0
    %66 = vmatpush1.xpose.msra.mxu0 0.0
    %67 = vmatprep.subr.mxu0 0.0
    %68 = vmatpush1.xpose.msra.mxu0 0.0
    %69 = vmatprep.subr.mxu0 0.0
    %70 = vmatpush1.xpose.msra.mxu0 0.0
    %71 = vmatprep.subr.mxu0 0.0
    %72 = vmatpush1.xpose.msra.mxu0 0.0
    %73 = vmatprep.subr.mxu0 0.0
    %74 = vmatpush1.xpose.msra.mxu0 0.0
    %75 = vmatprep.subr.mxu0 0.0
    %76 = vmatpush1.xpose.msra.mxu0 0.0
    %77 = vmatprep.subr.mxu0 0.0
    %78 = vmatpush1.xpose.msra.mxu0 0.0
    %79 = vmatprep.subr.mxu0 0.0
    %v80 = vand.u32 %v53, 4294901760
    %81 = vmatpush1.xpose.msra.mxu0 %v80
    %82 = vmatprep.subr.mxu0 0.0
    %v83 = vand.u32 %v50, 4294901760
    %84 = vmatpush1.xpose.msra.mxu0 %v83
    %85 = vmatprep.subr.mxu0 0.0
    %v86 = vand.u32 %v47, 4294901760
    %87 = vmatpush1.xpose.msra.mxu0 %v86
    %88 = vmatprep.subr.mxu0 0.0
    %v89 = vand.u32 %v44, 4294901760
    %90 = vmatpush1.xpose.msra.mxu0 %v89
    %91 = vmatprep.subr.mxu0 0.0
    %92 = vmatpush2.xpose.msra.mxu0 0.0
    %93 = vmatprep.subr.mxu0 0.0
    %94 = vmatpush2.xpose.msra.mxu0 0.0
    %95 = vmatprep.subr.mxu0 0.0
    %96 = vmatpush2.xpose.msra.mxu0 0.0
    %97 = vmatprep.subr.mxu0 0.0
    %98 = vmatpush2.xpose.msra.mxu0 0.0
    %99 = vmatprep.subr.mxu0 0.0
    %100 = vmatpush2.xpose.msra.mxu0 0.0
    %101 = vmatprep.subr.mxu0 0.0
    %102 = vmatpush2.xpose.msra.mxu0 0.0
    %103 = vmatprep.subr.mxu0 0.0
    %104 = vmatpush2.xpose.msra.mxu0 0.0
    %105 = vmatprep.subr.mxu0 0.0
    %106 = vmatpush2.xpose.msra.mxu0 0.0
    %107 = vmatprep.subr.mxu0 0.0
    %108 = vmatpush2.xpose.msra.mxu0 0.0
    %109 = vmatprep.subr.mxu0 0.0
    %110 = vmatpush2.xpose.msra.mxu0 0.0
    %111 = vmatprep.subr.mxu0 0.0
    %112 = vmatpush2.xpose.msra.mxu0 0.0
    %113 = vmatprep.subr.mxu0 0.0
    %114 = vmatpush2.xpose.msra.mxu0 0.0
    %115 = vmatprep.subr.mxu0 0.0
    %116 = vmatpush2.xpose.msra.mxu0 0.0
    %117 = vmatprep.subr.mxu0 0.0
    %118 = vmatpush2.xpose.msra.mxu0 0.0
    %119 = vmatprep.subr.mxu0 0.0
    %120 = vmatpush2.xpose.msra.mxu0 0.0
    %121 = vmatprep.subr.mxu0 0.0
    %122 = vmatpush2.xpose.msra.mxu0 0.0
    %123 = vmatprep.mubr.f32.mxu0 0.0
    %v124 = vand.u32 %v41, 4294901760
    %v125 = vsub.f32 %v41, %v124
    %v126 = vand.u32 %v125, 4294901760
    %v127 = vsub.f32 %v125, %v126
    %v128 = vand.u32 %v127, 4294901760
    %129 = vmatmul.mubr.f32.gmra.mxu0 %v128
    %v130 = vpop.f32.mrf.mxu0
    %v131 = vadd.f32 %v33, %v130
    %v132 = vpop.f32.mrf.mxu0
    %133 = vdwg.mxu0
    %134 = vmatprep.subr.mxu0 0.0
    %135 = vmatpush1.xpose.msra.mxu0 0.0
    %136 = vmatprep.subr.mxu0 0.0
    %137 = vmatpush1.xpose.msra.mxu0 0.0
    %138 = vmatprep.subr.mxu0 0.0
    %139 = vmatpush1.xpose.msra.mxu0 0.0
    %140 = vmatprep.subr.mxu0 0.0
    %141 = vmatpush1.xpose.msra.mxu0 0.0
    %142 = vmatprep.subr.mxu0 0.0
    %143 = vmatpush1.xpose.msra.mxu0 0.0
    %144 = vmatprep.subr.mxu0 0.0
    %145 = vmatpush1.xpose.msra.mxu0 0.0
    %146 = vmatprep.subr.mxu0 0.0
    %147 = vmatpush1.xpose.msra.mxu0 0.0
    %148 = vmatprep.subr.mxu0 0.0
    %149 = vmatpush1.xpose.msra.mxu0 0.0
    %150 = vmatprep.subr.mxu0 0.0
    %151 = vmatpush1.xpose.msra.mxu0 0.0
    %152 = vmatprep.subr.mxu0 0.0
    %153 = vmatpush1.xpose.msra.mxu0 0.0
    %154 = vmatprep.subr.mxu0 0.0
    %155 = vmatpush1.xpose.msra.mxu0 0.0
    %156 = vmatprep.subr.mxu0 0.0
    %157 = vmatpush1.xpose.msra.mxu0 0.0
    %158 = vmatprep.subr.mxu0 0.0
    %v159 = vand.u32 %v53, 4294901760
    %v160 = vsub.f32 %v53, %v159
    %v161 = vand.u32 %v160, 4294901760
    %v162 = vsub.f32 %v160, %v161
    %v163 = vand.u32 %v162, 4294901760
    %164 = vmatpush1.xpose.msra.mxu0 %v163
    %165 = vmatprep.subr.mxu0 0.0
    %v166 = vand.u32 %v50, 4294901760
    %v167 = vsub.f32 %v50, %v166
    %v168 = vand.u32 %v167, 4294901760
    %v169 = vsub.f32 %v167, %v168
    %v170 = vand.u32 %v169, 4294901760
    %171 = vmatpush1.xpose.msra.mxu0 %v170
    %172 = vmatprep.subr.mxu0 0.0
    %v173 = vand.u32 %v47, 4294901760
    %v174 = vsub.f32 %v47, %v173
    %v175 = vand.u32 %v174, 4294901760
    %v176 = vsub.f32 %v174, %v175
    %v177 = vand.u32 %v176, 4294901760
    %178 = vmatpush1.xpose.msra.mxu0 %v177
    %179 = vmatprep.subr.mxu0 0.0
    %v180 = vand.u32 %v44, 4294901760
    %v181 = vsub.f32 %v44, %v180
    %v182 = vand.u32 %v181, 4294901760
    %v183 = vsub.f32 %v181, %v182
    %v184 = vand.u32 %v183, 4294901760
    %185 = vmatpush1.xpose.msra.mxu0 %v184
    %186 = vmatprep.subr.mxu0 0.0
    %187 = vmatpush2.xpose.msra.mxu0 0.0
    %188 = vmatprep.subr.mxu0 0.0
    %189 = vmatpush2.xpose.msra.mxu0 0.0
    %190 = vmatprep.subr.mxu0 0.0
    %191 = vmatpush2.xpose.msra.mxu0 0.0
    %192 = vmatprep.subr.mxu0 0.0
    %193 = vmatpush2.xpose.msra.mxu0 0.0
    %194 = vmatprep.subr.mxu0 0.0
    %195 = vmatpush2.xpose.msra.mxu0 0.0
    %196 = vmatprep.subr.mxu0 0.0
    %197 = vmatpush2.xpose.msra.mxu0 0.0
    %198 = vmatprep.subr.mxu0 0.0
    %199 = vmatpush2.xpose.msra.mxu0 0.0
    %200 = vmatprep.subr.mxu0 0.0
    %201 = vmatpush2.xpose.msra.mxu0 0.0
    %202 = vmatprep.subr.mxu0 0.0
    %203 = vmatpush2.xpose.msra.mxu0 0.0
    %204 = vmatprep.subr.mxu0 0.0
    %205 = vmatpush2.xpose.msra.mxu0 0.0
    %206 = vmatprep.subr.mxu0 0.0
    %207 = vmatpush2.xpose.msra.mxu0 0.0
    %208 = vmatprep.subr.mxu0 0.0
    %209 = vmatpush2.xpose.msra.mxu0 0.0
    %210 = vmatprep.subr.mxu0 0.0
    %211 = vmatpush2.xpose.msra.mxu0 0.0
    %212 = vmatprep.subr.mxu0 0.0
    %213 = vmatpush2.xpose.msra.mxu0 0.0
    %214 = vmatprep.subr.mxu0 0.0
    %215 = vmatpush2.xpose.msra.mxu0 0.0
    %216 = vmatprep.subr.mxu0 0.0
    %217 = vmatpush2.xpose.msra.mxu0 0.0
    %218 = vmatprep.mubr.f32.mxu0 0.0
    %v219 = vand.u32 %v41, 4294901760
    %220 = vmatmul.mubr.f32.gmra.mxu0 %v219
    %v221 = vpop.f32.mrf.mxu0
    %v222 = vadd.f32 %v131, %v221
    %v223 = vpop.f32.mrf.mxu0
    %224 = vdwg.mxu0
    %225 = vmatprep.subr.mxu0 0.0
    %226 = vmatpush1.xpose.msra.mxu0 0.0
    %227 = vmatprep.subr.mxu0 0.0
    %228 = vmatpush1.xpose.msra.mxu0 0.0
    %229 = vmatprep.subr.mxu0 0.0
    %230 = vmatpush1.xpose.msra.mxu0 0.0
    %231 = vmatprep.subr.mxu0 0.0
    %232 = vmatpush1.xpose.msra.mxu0 0.0
    %233 = vmatprep.subr.mxu0 0.0
    %234 = vmatpush1.xpose.msra.mxu0 0.0
    %235 = vmatprep.subr.mxu0 0.0
    %236 = vmatpush1.xpose.msra.mxu0 0.0
    %237 = vmatprep.subr.mxu0 0.0
    %238 = vmatpush1.xpose.msra.mxu0 0.0
    %239 = vmatprep.subr.mxu0 0.0
    %240 = vmatpush1.xpose.msra.mxu0 0.0
    %241 = vmatprep.subr.mxu0 0.0
    %242 = vmatpush1.xpose.msra.mxu0 0.0
    %243 = vmatprep.subr.mxu0 0.0
    %244 = vmatpush1.xpose.msra.mxu0 0.0
    %245 = vmatprep.subr.mxu0 0.0
    %246 = vmatpush1.xpose.msra.mxu0 0.0
    %247 = vmatprep.subr.mxu0 0.0
    %248 = vmatpush1.xpose.msra.mxu0 0.0
    %249 = vmatprep.subr.mxu0 0.0
    %v250 = vand.u32 %v53, 4294901760
    %v251 = vsub.f32 %v53, %v250
    %252 = vmatpush1.xpose.msra.mxu0 %v251
    %253 = vmatprep.subr.mxu0 0.0
    %v254 = vand.u32 %v50, 4294901760
    %v255 = vsub.f32 %v50, %v254
    %256 = vmatpush1.xpose.msra.mxu0 %v255
    %257 = vmatprep.subr.mxu0 0.0
    %v258 = vand.u32 %v47, 4294901760
    %v259 = vsub.f32 %v47, %v258
    %260 = vmatpush1.xpose.msra.mxu0 %v259
    %261 = vmatprep.subr.mxu0 0.0
    %v262 = vand.u32 %v44, 4294901760
    %v263 = vsub.f32 %v44, %v262
    %264 = vmatpush1.xpose.msra.mxu0 %v263
    %265 = vmatprep.subr.mxu0 0.0
    %266 = vmatpush2.xpose.msra.mxu0 0.0
    %267 = vmatprep.subr.mxu0 0.0
    %268 = vmatpush2.xpose.msra.mxu0 0.0
    %269 = vmatprep.subr.mxu0 0.0
    %270 = vmatpush2.xpose.msra.mxu0 0.0
    %271 = vmatprep.subr.mxu0 0.0
    %272 = vmatpush2.xpose.msra.mxu0 0.0
    %273 = vmatprep.subr.mxu0 0.0
    %274 = vmatpush2.xpose.msra.mxu0 0.0
    %275 = vmatprep.subr.mxu0 0.0
    %276 = vmatpush2.xpose.msra.mxu0 0.0
    %277 = vmatprep.subr.mxu0 0.0
    %278 = vmatpush2.xpose.msra.mxu0 0.0
    %279 = vmatprep.subr.mxu0 0.0
    %280 = vmatpush2.xpose.msra.mxu0 0.0
    %281 = vmatprep.subr.mxu0 0.0
    %282 = vmatpush2.xpose.msra.mxu0 0.0
    %283 = vmatprep.subr.mxu0 0.0
    %284 = vmatpush2.xpose.msra.mxu0 0.0
    %285 = vmatprep.subr.mxu0 0.0
    %286 = vmatpush2.xpose.msra.mxu0 0.0
    %287 = vmatprep.subr.mxu0 0.0
    %288 = vmatpush2.xpose.msra.mxu0 0.0
    %289 = vmatprep.subr.mxu0 0.0
    %290 = vmatpush2.xpose.msra.mxu0 0.0
    %291 = vmatprep.subr.mxu0 0.0
    %292 = vmatpush2.xpose.msra.mxu0 0.0
    %293 = vmatprep.subr.mxu0 0.0
    %294 = vmatpush2.xpose.msra.mxu0 0.0
    %295 = vmatprep.subr.mxu0 0.0
    %296 = vmatpush2.xpose.msra.mxu0 0.0
    %297 = vmatprep.mubr.f32.mxu0 0.0
    %v298 = vand.u32 %v41, 4294901760
    %v299 = vsub.f32 %v41, %v298
    %300 = vmatmul.mubr.f32.gmra.mxu0 %v299
    %v301 = vpop.f32.mrf.mxu0
    %v302 = vadd.f32 %v222, %v301
    %v303 = vpop.f32.mrf.mxu0
    %304 = vdwg.mxu0
    %305 = vmatprep.subr.mxu0 0.0
    %306 = vmatpush1.xpose.msra.mxu0 0.0
    %307 = vmatprep.subr.mxu0 0.0
    %308 = vmatpush1.xpose.msra.mxu0 0.0
    %309 = vmatprep.subr.mxu0 0.0
    %310 = vmatpush1.xpose.msra.mxu0 0.0
    %311 = vmatprep.subr.mxu0 0.0
    %312 = vmatpush1.xpose.msra.mxu0 0.0
    %313 = vmatprep.subr.mxu0 0.0
    %314 = vmatpush1.xpose.msra.mxu0 0.0
    %315 = vmatprep.subr.mxu0 0.0
    %316 = vmatpush1.xpose.msra.mxu0 0.0
    %317 = vmatprep.subr.mxu0 0.0
    %318 = vmatpush1.xpose.msra.mxu0 0.0
    %319 = vmatprep.subr.mxu0 0.0
    %320 = vmatpush1.xpose.msra.mxu0 0.0
    %321 = vmatprep.subr.mxu0 0.0
    %322 = vmatpush1.xpose.msra.mxu0 0.0
    %323 = vmatprep.subr.mxu0 0.0
    %324 = vmatpush1.xpose.msra.mxu0 0.0
    %325 = vmatprep.subr.mxu0 0.0
    %326 = vmatpush1.xpose.msra.mxu0 0.0
    %327 = vmatprep.subr.mxu0 0.0
    %328 = vmatpush1.xpose.msra.mxu0 0.0
    %329 = vmatprep.subr.mxu0 0.0
    %v330 = vand.u32 %v53, 4294901760
    %331 = vmatpush1.xpose.msra.mxu0 %v330
    %332 = vmatprep.subr.mxu0 0.0
    %v333 = vand.u32 %v50, 4294901760
    %334 = vmatpush1.xpose.msra.mxu0 %v333
    %335 = vmatprep.subr.mxu0 0.0
    %v336 = vand.u32 %v47, 4294901760
    %337 = vmatpush1.xpose.msra.mxu0 %v336
    %338 = vmatprep.subr.mxu0 0.0
    %v339 = vand.u32 %v44, 4294901760
    %340 = vmatpush1.xpose.msra.mxu0 %v339
    %341 = vmatprep.subr.mxu0 0.0
    %342 = vmatpush2.xpose.msra.mxu0 0.0
    %343 = vmatprep.subr.mxu0 0.0
    %344 = vmatpush2.xpose.msra.mxu0 0.0
    %345 = vmatprep.subr.mxu0 0.0
    %346 = vmatpush2.xpose.msra.mxu0 0.0
    %347 = vmatprep.subr.mxu0 0.0
    %348 = vmatpush2.xpose.msra.mxu0 0.0
    %349 = vmatprep.subr.mxu0 0.0
    %350 = vmatpush2.xpose.msra.mxu0 0.0
    %351 = vmatprep.subr.mxu0 0.0
    %352 = vmatpush2.xpose.msra.mxu0 0.0
    %353 = vmatprep.subr.mxu0 0.0
    %354 = vmatpush2.xpose.msra.mxu0 0.0
    %355 = vmatprep.subr.mxu0 0.0
    %356 = vmatpush2.xpose.msra.mxu0 0.0
    %357 = vmatprep.subr.mxu0 0.0
    %358 = vmatpush2.xpose.msra.mxu0 0.0
    %359 = vmatprep.subr.mxu0 0.0
    %360 = vmatpush2.xpose.msra.mxu0 0.0
    %361 = vmatprep.subr.mxu0 0.0
    %362 = vmatpush2.xpose.msra.mxu0 0.0
    %363 = vmatprep.subr.mxu0 0.0
    %364 = vmatpush2.xpose.msra.mxu0 0.0
    %365 = vmatprep.subr.mxu0 0.0
    %366 = vmatpush2.xpose.msra.mxu0 0.0
    %367 = vmatprep.subr.mxu0 0.0
    %368 = vmatpush2.xpose.msra.mxu0 0.0
    %369 = vmatprep.subr.mxu0 0.0
    %370 = vmatpush2.xpose.msra.mxu0 0.0
    %371 = vmatprep.subr.mxu0 0.0
    %372 = vmatpush2.xpose.msra.mxu0 0.0
    %373 = vmatprep.mubr.f32.mxu0 0.0
    %v374 = vand.u32 %v41, 4294901760
    %v375 = vsub.f32 %v41, %v374
    %v376 = vand.u32 %v375, 4294901760
    %377 = vmatmul.mubr.f32.gmra.mxu0 %v376
    %v378 = vpop.f32.mrf.mxu0
    %v379 = vadd.f32 %v302, %v378
    %v380 = vpop.f32.mrf.mxu0
    %381 = vdwg.mxu0
    %382 = vmatprep.subr.mxu0 0.0
    %383 = vmatpush1.xpose.msra.mxu0 0.0
    %384 = vmatprep.subr.mxu0 0.0
    %385 = vmatpush1.xpose.msra.mxu0 0.0
    %386 = vmatprep.subr.mxu0 0.0
    %387 = vmatpush1.xpose.msra.mxu0 0.0
    %388 = vmatprep.subr.mxu0 0.0
    %389 = vmatpush1.xpose.msra.mxu0 0.0
    %390 = vmatprep.subr.mxu0 0.0
    %391 = vmatpush1.xpose.msra.mxu0 0.0
    %392 = vmatprep.subr.mxu0 0.0
    %393 = vmatpush1.xpose.msra.mxu0 0.0
    %394 = vmatprep.subr.mxu0 0.0
    %395 = vmatpush1.xpose.msra.mxu0 0.0
    %396 = vmatprep.subr.mxu0 0.0
    %397 = vmatpush1.xpose.msra.mxu0 0.0
    %398 = vmatprep.subr.mxu0 0.0
    %399 = vmatpush1.xpose.msra.mxu0 0.0
    %400 = vmatprep.subr.mxu0 0.0
    %401 = vmatpush1.xpose.msra.mxu0 0.0
    %402 = vmatprep.subr.mxu0 0.0
    %403 = vmatpush1.xpose.msra.mxu0 0.0
    %404 = vmatprep.subr.mxu0 0.0
    %405 = vmatpush1.xpose.msra.mxu0 0.0
    %406 = vmatprep.subr.mxu0 0.0
    %v407 = vand.u32 %v53, 4294901760
    %v408 = vsub.f32 %v53, %v407
    %v409 = vand.u32 %v408, 4294901760
    %410 = vmatpush1.xpose.msra.mxu0 %v409
    %411 = vmatprep.subr.mxu0 0.0
    %v412 = vand.u32 %v50, 4294901760
    %v413 = vsub.f32 %v50, %v412
    %v414 = vand.u32 %v413, 4294901760
    %415 = vmatpush1.xpose.msra.mxu0 %v414
    %416 = vmatprep.subr.mxu0 0.0
    %v417 = vand.u32 %v47, 4294901760
    %v418 = vsub.f32 %v47, %v417
    %v419 = vand.u32 %v418, 4294901760
    %420 = vmatpush1.xpose.msra.mxu0 %v419
    %421 = vmatprep.subr.mxu0 0.0
    %v422 = vand.u32 %v44, 4294901760
    %v423 = vsub.f32 %v44, %v422
    %v424 = vand.u32 %v423, 4294901760
    %425 = vmatpush1.xpose.msra.mxu0 %v424
    %426 = vmatprep.subr.mxu0 0.0
    %427 = vmatpush2.xpose.msra.mxu0 0.0
    %428 = vmatprep.subr.mxu0 0.0
    %429 = vmatpush2.xpose.msra.mxu0 0.0
    %430 = vmatprep.subr.mxu0 0.0
    %431 = vmatpush2.xpose.msra.mxu0 0.0
    %432 = vmatprep.subr.mxu0 0.0
    %433 = vmatpush2.xpose.msra.mxu0 0.0
    %434 = vmatprep.subr.mxu0 0.0
    %435 = vmatpush2.xpose.msra.mxu0 0.0
    %436 = vmatprep.subr.mxu0 0.0
    %437 = vmatpush2.xpose.msra.mxu0 0.0
    %438 = vmatprep.subr.mxu0 0.0
    %439 = vmatpush2.xpose.msra.mxu0 0.0
    %440 = vmatprep.subr.mxu0 0.0
    %441 = vmatpush2.xpose.msra.mxu0 0.0
    %442 = vmatprep.subr.mxu0 0.0
    %443 = vmatpush2.xpose.msra.mxu0 0.0
    %444 = vmatprep.subr.mxu0 0.0
    %445 = vmatpush2.xpose.msra.mxu0 0.0
    %446 = vmatprep.subr.mxu0 0.0
    %447 = vmatpush2.xpose.msra.mxu0 0.0
    %448 = vmatprep.subr.mxu0 0.0
    %449 = vmatpush2.xpose.msra.mxu0 0.0
    %450 = vmatprep.subr.mxu0 0.0
    %451 = vmatpush2.xpose.msra.mxu0 0.0
    %452 = vmatprep.subr.mxu0 0.0
    %453 = vmatpush2.xpose.msra.mxu0 0.0
    %454 = vmatprep.subr.mxu0 0.0
    %455 = vmatpush2.xpose.msra.mxu0 0.0
    %456 = vmatprep.subr.mxu0 0.0
    %457 = vmatpush2.xpose.msra.mxu0 0.0
    %458 = vmatprep.mubr.f32.mxu0 0.0
    %v459 = vand.u32 %v41, 4294901760
    %460 = vmatmul.mubr.f32.gmra.mxu0 %v459
    %v461 = vpop.f32.mrf.mxu0
    %v462 = vadd.f32 %v379, %v461
    %v463 = vpop.f32.mrf.mxu0
    %464 = vdwg.mxu0
    %465 = vmatprep.subr.mxu0 0.0
    %466 = vmatpush1.xpose.msra.mxu0 0.0
    %467 = vmatprep.subr.mxu0 0.0
    %468 = vmatpush1.xpose.msra.mxu0 0.0
    %469 = vmatprep.subr.mxu0 0.0
    %470 = vmatpush1.xpose.msra.mxu0 0.0
    %471 = vmatprep.subr.mxu0 0.0
    %472 = vmatpush1.xpose.msra.mxu0 0.0
    %473 = vmatprep.subr.mxu0 0.0
    %474 = vmatpush1.xpose.msra.mxu0 0.0
    %475 = vmatprep.subr.mxu0 0.0
    %476 = vmatpush1.xpose.msra.mxu0 0.0
    %477 = vmatprep.subr.mxu0 0.0
    %478 = vmatpush1.xpose.msra.mxu0 0.0
    %479 = vmatprep.subr.mxu0 0.0
    %480 = vmatpush1.xpose.msra.mxu0 0.0
    %481 = vmatprep.subr.mxu0 0.0
    %482 = vmatpush1.xpose.msra.mxu0 0.0
    %483 = vmatprep.subr.mxu0 0.0
    %484 = vmatpush1.xpose.msra.mxu0 0.0
    %485 = vmatprep.subr.mxu0 0.0
    %486 = vmatpush1.xpose.msra.mxu0 0.0
    %487 = vmatprep.subr.mxu0 0.0
    %488 = vmatpush1.xpose.msra.mxu0 0.0
    %489 = vmatprep.subr.mxu0 0.0
    %v490 = vand.u32 %v53, 4294901760
    %491 = vmatpush1.xpose.msra.mxu0 %v490
    %492 = vmatprep.subr.mxu0 0.0
    %v493 = vand.u32 %v50, 4294901760
    %494 = vmatpush1.xpose.msra.mxu0 %v493
    %495 = vmatprep.subr.mxu0 0.0
    %v496 = vand.u32 %v47, 4294901760
    %497 = vmatpush1.xpose.msra.mxu0 %v496
    %498 = vmatprep.subr.mxu0 0.0
    %v499 = vand.u32 %v44, 4294901760
    %500 = vmatpush1.xpose.msra.mxu0 %v499
    %501 = vmatprep.subr.mxu0 0.0
    %502 = vmatpush2.xpose.msra.mxu0 0.0
    %503 = vmatprep.subr.mxu0 0.0
    %504 = vmatpush2.xpose.msra.mxu0 0.0
    %505 = vmatprep.subr.mxu0 0.0
    %506 = vmatpush2.xpose.msra.mxu0 0.0
    %507 = vmatprep.subr.mxu0 0.0
    %508 = vmatpush2.xpose.msra.mxu0 0.0
    %509 = vmatprep.subr.mxu0 0.0
    %510 = vmatpush2.xpose.msra.mxu0 0.0
    %511 = vmatprep.subr.mxu0 0.0
    %512 = vmatpush2.xpose.msra.mxu0 0.0
    %513 = vmatprep.subr.mxu0 0.0
    %514 = vmatpush2.xpose.msra.mxu0 0.0
    %515 = vmatprep.subr.mxu0 0.0
    %516 = vmatpush2.xpose.msra.mxu0 0.0
    %517 = vmatprep.subr.mxu0 0.0
    %518 = vmatpush2.xpose.msra.mxu0 0.0
    %519 = vmatprep.subr.mxu0 0.0
    %520 = vmatpush2.xpose.msra.mxu0 0.0
    %521 = vmatprep.subr.mxu0 0.0
    %522 = vmatpush2.xpose.msra.mxu0 0.0
    %523 = vmatprep.subr.mxu0 0.0
    %524 = vmatpush2.xpose.msra.mxu0 0.0
    %525 = vmatprep.subr.mxu0 0.0
    %526 = vmatpush2.xpose.msra.mxu0 0.0
    %527 = vmatprep.subr.mxu0 0.0
    %528 = vmatpush2.xpose.msra.mxu0 0.0
    %529 = vmatprep.subr.mxu0 0.0
    %530 = vmatpush2.xpose.msra.mxu0 0.0
    %531 = vmatprep.subr.mxu0 0.0
    %532 = vmatpush2.xpose.msra.mxu0 0.0
    %533 = vmatprep.mubr.f32.mxu0 0.0
    %v534 = vand.u32 %v41, 4294901760
    %535 = vmatmul.mubr.f32.gmra.mxu0 %v534
    %v536 = vpop.f32.mrf.mxu0
    %v537 = vadd.f32 %v462, %v536
    %v538 = vpop.f32.mrf.mxu0
    %539 = vdwg.mxu0
    %v540 = vld [vmem:[%s5] sm:$0x1]
    %v541 = vld [vmem:[%s6] sm:$0x1]
    %v542 = vsel %vm39, %v537, 0.0
    %543 = vadd.xlane.f32.xlu0 %v542
    %v544 = vpop.xlane.xlu0 %543
    %v545 = vrcp.pop 32.0
    %v546 = vmul.f32 %v544, %v545
    %v547 = vsub.f32 %v537, %v546
    %v548 = vmul.f32 %v547, %v547
    %v549 = vsel %vm39, %v548, 0.0
    %550 = vadd.xlane.f32.xlu0 %v549
    %v551 = vpop.xlane.xlu0 %550
    %v552 = vmul.f32 %v551, %v545
    %v553 = vadd.f32 %v552, 1e-05
    %v554 = vrsqrt.pop %v553
    %v555 = vmul.f32 %v547, %v554
    %v557 = vlaneseq
    %v558 = vshrl.u32 %v557, 7
    %v559 = vsub.s32 0, %v558
    %v560 = vrot.slane %v540, %v559
    %v562 = vmul.f32 %v555, %v560
    %v564 = vlaneseq
    %v565 = vshrl.u32 %v564, 7
    %v566 = vsub.s32 0, %v565
    %v567 = vrot.slane %v541, %v566
    %v569 = vadd.f32 %v562, %v567
    %v570 = vld [vmem:[%s3] sm:$0xff]
    %v571 = vld [vmem:[%s3 + $0x8] sm:$0xff]
    %v572 = vld [vmem:[%s3 + $0x10] sm:$0xff]
    %v573 = vld [vmem:[%s3 + $0x18] sm:$0xff]
    %v574 = vld [vmem:[%s4] sm:$0x1]
    %v576 = vlaneseq
    %v577 = vshrl.u32 %v576, 7
    %v578 = vsub.s32 0, %v577
    %v579 = vrot.slane %v574, %v578
    %v582 = vsel %vm39, %v569, 0
    %v585 = vsel %vm39, %v570, 0
    %v588 = vsel %vm39, %v571, 0
    %v591 = vsel %vm39, %v572, 0
    %v594 = vsel %vm39, %v573, 0
    %596 = vmatprep.subr.mxu0 0.0
    %597 = vmatpush1.xpose.msra.mxu0 0.0
    %598 = vmatprep.subr.mxu0 0.0
    %599 = vmatpush1.xpose.msra.mxu0 0.0
    %600 = vmatprep.subr.mxu0 0.0
    %601 = vmatpush1.xpose.msra.mxu0 0.0
    %602 = vmatprep.subr.mxu0 0.0
    %603 = vmatpush1.xpose.msra.mxu0 0.0
    %604 = vmatprep.subr.mxu0 0.0
    %605 = vmatpush1.xpose.msra.mxu0 0.0
    %606 = vmatprep.subr.mxu0 0.0
    %607 = vmatpush1.xpose.msra.mxu0 0.0
    %608 = vmatprep.subr.mxu0 0.0
    %609 = vmatpush1.xpose.msra.mxu0 0.0
    %610 = vmatprep.subr.mxu0 0.0
    %611 = vmatpush1.xpose.msra.mxu0 0.0
    %612 = vmatprep.subr.mxu0 0.0
    %613 = vmatpush1.xpose.msra.mxu0 0.0
    %614 = vmatprep.subr.mxu0 0.0
    %615 = vmatpush1.xpose.msra.mxu0 0.0
    %616 = vmatprep.subr.mxu0 0.0
    %617 = vmatpush1.xpose.msra.mxu0 0.0
    %618 = vmatprep.subr.mxu0 0.0
    %619 = vmatpush1.xpose.msra.mxu0 0.0
    %620 = vmatprep.subr.mxu0 0.0
    %v621 = vand.u32 %v594, 4294901760
    %622 = vmatpush1.xpose.msra.mxu0 %v621
    %623 = vmatprep.subr.mxu0 0.0
    %v624 = vand.u32 %v591, 4294901760
    %625 = vmatpush1.xpose.msra.mxu0 %v624
    %626 = vmatprep.subr.mxu0 0.0
    %v627 = vand.u32 %v588, 4294901760
    %628 = vmatpush1.xpose.msra.mxu0 %v627
    %629 = vmatprep.subr.mxu0 0.0
    %v630 = vand.u32 %v585, 4294901760
    %631 = vmatpush1.xpose.msra.mxu0 %v630
    %632 = vmatprep.subr.mxu0 0.0
    %633 = vmatpush2.xpose.msra.mxu0 0.0
    %634 = vmatprep.subr.mxu0 0.0
    %635 = vmatpush2.xpose.msra.mxu0 0.0
    %636 = vmatprep.subr.mxu0 0.0
    %637 = vmatpush2.xpose.msra.mxu0 0.0
    %638 = vmatprep.subr.mxu0 0.0
    %639 = vmatpush2.xpose.msra.mxu0 0.0
    %640 = vmatprep.subr.mxu0 0.0
    %641 = vmatpush2.xpose.msra.mxu0 0.0
    %642 = vmatprep.subr.mxu0 0.0
    %643 = vmatpush2.xpose.msra.mxu0 0.0
    %644 = vmatprep.subr.mxu0 0.0
    %645 = vmatpush2.xpose.msra.mxu0 0.0
    %646 = vmatprep.subr.mxu0 0.0
    %647 = vmatpush2.xpose.msra.mxu0 0.0
    %648 = vmatprep.subr.mxu0 0.0
    %649 = vmatpush2.xpose.msra.mxu0 0.0
    %650 = vmatprep.subr.mxu0 0.0
    %651 = vmatpush2.xpose.msra.mxu0 0.0
    %652 = vmatprep.subr.mxu0 0.0
    %653 = vmatpush2.xpose.msra.mxu0 0.0
    %654 = vmatprep.subr.mxu0 0.0
    %655 = vmatpush2.xpose.msra.mxu0 0.0
    %656 = vmatprep.subr.mxu0 0.0
    %657 = vmatpush2.xpose.msra.mxu0 0.0
    %658 = vmatprep.subr.mxu0 0.0
    %659 = vmatpush2.xpose.msra.mxu0 0.0
    %660 = vmatprep.subr.mxu0 0.0
    %661 = vmatpush2.xpose.msra.mxu0 0.0
    %662 = vmatprep.subr.mxu0 0.0
    %663 = vmatpush2.xpose.msra.mxu0 0.0
    %664 = vmatprep.mubr.f32.mxu0 0.0
    %v665 = vand.u32 %v582, 4294901760
    %v666 = vsub.f32 %v582, %v665
    %v667 = vand.u32 %v666, 4294901760
    %v668 = vsub.f32 %v666, %v667
    %v669 = vand.u32 %v668, 4294901760
    %670 = vmatmul.mubr.f32.gmra.mxu0 %v669
    %v671 = vpop.f32.mrf.mxu0
    %v672 = vadd.f32 %v579, %v671
    %v673 = vpop.f32.mrf.mxu0
    %674 = vdwg.mxu0
    %675 = vmatprep.subr.mxu0 0.0
    %676 = vmatpush1.xpose.msra.mxu0 0.0
    %677 = vmatprep.subr.mxu0 0.0
    %678 = vmatpush1.xpose.msra.mxu0 0.0
    %679 = vmatprep.subr.mxu0 0.0
    %680 = vmatpush1.xpose.msra.mxu0 0.0
    %681 = vmatprep.subr.mxu0 0.0
    %682 = vmatpush1.xpose.msra.mxu0 0.0
    %683 = vmatprep.subr.mxu0 0.0
    %684 = vmatpush1.xpose.msra.mxu0 0.0
    %685 = vmatprep.subr.mxu0 0.0
    %686 = vmatpush1.xpose.msra.mxu0 0.0
    %687 = vmatprep.subr.mxu0 0.0
    %688 = vmatpush1.xpose.msra.mxu0 0.0
    %689 = vmatprep.subr.mxu0 0.0
    %690 = vmatpush1.xpose.msra.mxu0 0.0
    %691 = vmatprep.subr.mxu0 0.0
    %692 = vmatpush1.xpose.msra.mxu0 0.0
    %693 = vmatprep.subr.mxu0 0.0
    %694 = vmatpush1.xpose.msra.mxu0 0.0
    %695 = vmatprep.subr.mxu0 0.0
    %696 = vmatpush1.xpose.msra.mxu0 0.0
    %697 = vmatprep.subr.mxu0 0.0
    %698 = vmatpush1.xpose.msra.mxu0 0.0
    %699 = vmatprep.subr.mxu0 0.0
    %v700 = vand.u32 %v594, 4294901760
    %v701 = vsub.f32 %v594, %v700
    %v702 = vand.u32 %v701, 4294901760
    %v703 = vsub.f32 %v701, %v702
    %v704 = vand.u32 %v703, 4294901760
    %705 = vmatpush1.xpose.msra.mxu0 %v704
    %706 = vmatprep.subr.mxu0 0.0
    %v707 = vand.u32 %v591, 4294901760
    %v708 = vsub.f32 %v591, %v707
    %v709 = vand.u32 %v708, 4294901760
    %v710 = vsub.f32 %v708, %v709
    %v711 = vand.u32 %v710, 4294901760
    %712 = vmatpush1.xpose.msra.mxu0 %v711
    %713 = vmatprep.subr.mxu0 0.0
    %v714 = vand.u32 %v588, 4294901760
    %v715 = vsub.f32 %v588, %v714
    %v716 = vand.u32 %v715, 4294901760
    %v717 = vsub.f32 %v715, %v716
    %v718 = vand.u32 %v717, 4294901760
    %719 = vmatpush1.xpose.msra.mxu0 %v718
    %720 = vmatprep.subr.mxu0 0.0
    %v721 = vand.u32 %v585, 4294901760
    %v722 = vsub.f32 %v585, %v721
    %v723 = vand.u32 %v722, 4294901760
    %v724 = vsub.f32 %v722, %v723
    %v725 = vand.u32 %v724, 4294901760
    %726 = vmatpush1.xpose.msra.mxu0 %v725
    %727 = vmatprep.subr.mxu0 0.0
    %728 = vmatpush2.xpose.msra.mxu0 0.0
    %729 = vmatprep.subr.mxu0 0.0
    %730 = vmatpush2.xpose.msra.mxu0 0.0
    %731 = vmatprep.subr.mxu0 0.0
    %732 = vmatpush2.xpose.msra.mxu0 0.0
    %733 = vmatprep.subr.mxu0 0.0
    %734 = vmatpush2.xpose.msra.mxu0 0.0
    %735 = vmatprep.subr.mxu0 0.0
    %736 = vmatpush2.xpose.msra.mxu0 0.0
    %737 = vmatprep.subr.mxu0 0.0
    %738 = vmatpush2.xpose.msra.mxu0 0.0
    %739 = vmatprep.subr.mxu0 0.0
    %740 = vmatpush2.xpose.msra.mxu0 0.0
    %741 = vmatprep.subr.mxu0 0.0
    %742 = vmatpush2.xpose.msra.mxu0 0.0
    %743 = vmatprep.subr.mxu0 0.0
    %744 = vmatpush2.xpose.msra.mxu0 0.0
    %745 = vmatprep.subr.mxu0 0.0
    %746 = vmatpush2.xpose.msra.mxu0 0.0
    %747 = vmatprep.subr.mxu0 0.0
    %748 = vmatpush2.xpose.msra.mxu0 0.0
    %749 = vmatprep.subr.mxu0 0.0
    %750 = vmatpush2.xpose.msra.mxu0 0.0
    %751 = vmatprep.subr.mxu0 0.0
    %752 = vmatpush2.xpose.msra.mxu0 0.0
    %753 = vmatprep.subr.mxu0 0.0
    %754 = vmatpush2.xpose.msra.mxu0 0.0
    %755 = vmatprep.subr.mxu0 0.0
    %756 = vmatpush2.xpose.msra.mxu0 0.0
    %757 = vmatprep.subr.mxu0 0.0
    %758 = vmatpush2.xpose.msra.mxu0 0.0
    %759 = vmatprep.mubr.f32.mxu0 0.0
    %v760 = vand.u32 %v582, 4294901760
    %761 = vmatmul.mubr.f32.gmra.mxu0 %v760
    %v762 = vpop.f32.mrf.mxu0
    %v763 = vadd.f32 %v672, %v762
    %v764 = vpop.f32.mrf.mxu0
    %765 = vdwg.mxu0
    %766 = vmatprep.subr.mxu0 0.0
    %767 = vmatpush1.xpose.msra.mxu0 0.0
    %768 = vmatprep.subr.mxu0 0.0
    %769 = vmatpush1.xpose.msra.mxu0 0.0
    %770 = vmatprep.subr.mxu0 0.0
    %771 = vmatpush1.xpose.msra.mxu0 0.0
    %772 = vmatprep.subr.mxu0 0.0
    %773 = vmatpush1.xpose.msra.mxu0 0.0
    %774 = vmatprep.subr.mxu0 0.0
    %775 = vmatpush1.xpose.msra.mxu0 0.0
    %776 = vmatprep.subr.mxu0 0.0
    %777 = vmatpush1.xpose.msra.mxu0 0.0
    %778 = vmatprep.subr.mxu0 0.0
    %779 = vmatpush1.xpose.msra.mxu0 0.0
    %780 = vmatprep.subr.mxu0 0.0
    %781 = vmatpush1.xpose.msra.mxu0 0.0
    %782 = vmatprep.subr.mxu0 0.0
    %783 = vmatpush1.xpose.msra.mxu0 0.0
    %784 = vmatprep.subr.mxu0 0.0
    %785 = vmatpush1.xpose.msra.mxu0 0.0
    %786 = vmatprep.subr.mxu0 0.0
    %787 = vmatpush1.xpose.msra.mxu0 0.0
    %788 = vmatprep.subr.mxu0 0.0
    %789 = vmatpush1.xpose.msra.mxu0 0.0
    %790 = vmatprep.subr.mxu0 0.0
    %v791 = vand.u32 %v594, 4294901760
    %v792 = vsub.f32 %v594, %v791
    %793 = vmatpush1.xpose.msra.mxu0 %v792
    %794 = vmatprep.subr.mxu0 0.0
    %v795 = vand.u32 %v591, 4294901760
    %v796 = vsub.f32 %v591, %v795
    %797 = vmatpush1.xpose.msra.mxu0 %v796
    %798 = vmatprep.subr.mxu0 0.0
    %v799 = vand.u32 %v588, 4294901760
    %v800 = vsub.f32 %v588, %v799
    %801 = vmatpush1.xpose.msra.mxu0 %v800
    %802 = vmatprep.subr.mxu0 0.0
    %v803 = vand.u32 %v585, 4294901760
    %v804 = vsub.f32 %v585, %v803
    %805 = vmatpush1.xpose.msra.mxu0 %v804
    %806 = vmatprep.subr.mxu0 0.0
    %807 = vmatpush2.xpose.msra.mxu0 0.0
    %808 = vmatprep.subr.mxu0 0.0
    %809 = vmatpush2.xpose.msra.mxu0 0.0
    %810 = vmatprep.subr.mxu0 0.0
    %811 = vmatpush2.xpose.msra.mxu0 0.0
    %812 = vmatprep.subr.mxu0 0.0
    %813 = vmatpush2.xpose.msra.mxu0 0.0
    %814 = vmatprep.subr.mxu0 0.0
    %815 = vmatpush2.xpose.msra.mxu0 0.0
    %816 = vmatprep.subr.mxu0 0.0
    %817 = vmatpush2.xpose.msra.mxu0 0.0
    %818 = vmatprep.subr.mxu0 0.0
    %819 = vmatpush2.xpose.msra.mxu0 0.0
    %820 = vmatprep.subr.mxu0 0.0
    %821 = vmatpush2.xpose.msra.mxu0 0.0
    %822 = vmatprep.subr.mxu0 0.0
    %823 = vmatpush2.xpose.msra.mxu0 0.0
    %824 = vmatprep.subr.mxu0 0.0
    %825 = vmatpush2.xpose.msra.mxu0 0.0
    %826 = vmatprep.subr.mxu0 0.0
    %827 = vmatpush2.xpose.msra.mxu0 0.0
    %828 = vmatprep.subr.mxu0 0.0
    %829 = vmatpush2.xpose.msra.mxu0 0.0
    %830 = vmatprep.subr.mxu0 0.0
    %831 = vmatpush2.xpose.msra.mxu0 0.0
    %832 = vmatprep.subr.mxu0 0.0
    %833 = vmatpush2.xpose.msra.mxu0 0.0
    %834 = vmatprep.subr.mxu0 0.0
    %835 = vmatpush2.xpose.msra.mxu0 0.0
    %836 = vmatprep.subr.mxu0 0.0
    %837 = vmatpush2.xpose.msra.mxu0 0.0
    %838 = vmatprep.mubr.f32.mxu0 0.0
    %v839 = vand.u32 %v582, 4294901760
    %v840 = vsub.f32 %v582, %v839
    %841 = vmatmul.mubr.f32.gmra.mxu0 %v840
    %v842 = vpop.f32.mrf.mxu0
    %v843 = vadd.f32 %v763, %v842
    %v844 = vpop.f32.mrf.mxu0
    %845 = vdwg.mxu0
    %846 = vmatprep.subr.mxu0 0.0
    %847 = vmatpush1.xpose.msra.mxu0 0.0
    %848 = vmatprep.subr.mxu0 0.0
    %849 = vmatpush1.xpose.msra.mxu0 0.0
    %850 = vmatprep.subr.mxu0 0.0
    %851 = vmatpush1.xpose.msra.mxu0 0.0
    %852 = vmatprep.subr.mxu0 0.0
    %853 = vmatpush1.xpose.msra.mxu0 0.0
    %854 = vmatprep.subr.mxu0 0.0
    %855 = vmatpush1.xpose.msra.mxu0 0.0
    %856 = vmatprep.subr.mxu0 0.0
    %857 = vmatpush1.xpose.msra.mxu0 0.0
    %858 = vmatprep.subr.mxu0 0.0
    %859 = vmatpush1.xpose.msra.mxu0 0.0
    %860 = vmatprep.subr.mxu0 0.0
    %861 = vmatpush1.xpose.msra.mxu0 0.0
    %862 = vmatprep.subr.mxu0 0.0
    %863 = vmatpush1.xpose.msra.mxu0 0.0
    %864 = vmatprep.subr.mxu0 0.0
    %865 = vmatpush1.xpose.msra.mxu0 0.0
    %866 = vmatprep.subr.mxu0 0.0
    %867 = vmatpush1.xpose.msra.mxu0 0.0
    %868 = vmatprep.subr.mxu0 0.0
    %869 = vmatpush1.xpose.msra.mxu0 0.0
    %870 = vmatprep.subr.mxu0 0.0
    %v871 = vand.u32 %v594, 4294901760
    %872 = vmatpush1.xpose.msra.mxu0 %v871
    %873 = vmatprep.subr.mxu0 0.0
    %v874 = vand.u32 %v591, 4294901760
    %875 = vmatpush1.xpose.msra.mxu0 %v874
    %876 = vmatprep.subr.mxu0 0.0
    %v877 = vand.u32 %v588, 4294901760
    %878 = vmatpush1.xpose.msra.mxu0 %v877
    %879 = vmatprep.subr.mxu0 0.0
    %v880 = vand.u32 %v585, 4294901760
    %881 = vmatpush1.xpose.msra.mxu0 %v880
    %882 = vmatprep.subr.mxu0 0.0
    %883 = vmatpush2.xpose.msra.mxu0 0.0
    %884 = vmatprep.subr.mxu0 0.0
    %885 = vmatpush2.xpose.msra.mxu0 0.0
    %886 = vmatprep.subr.mxu0 0.0
    %887 = vmatpush2.xpose.msra.mxu0 0.0
    %888 = vmatprep.subr.mxu0 0.0
    %889 = vmatpush2.xpose.msra.mxu0 0.0
    %890 = vmatprep.subr.mxu0 0.0
    %891 = vmatpush2.xpose.msra.mxu0 0.0
    %892 = vmatprep.subr.mxu0 0.0
    %893 = vmatpush2.xpose.msra.mxu0 0.0
    %894 = vmatprep.subr.mxu0 0.0
    %895 = vmatpush2.xpose.msra.mxu0 0.0
    %896 = vmatprep.subr.mxu0 0.0
    %897 = vmatpush2.xpose.msra.mxu0 0.0
    %898 = vmatprep.subr.mxu0 0.0
    %899 = vmatpush2.xpose.msra.mxu0 0.0
    %900 = vmatprep.subr.mxu0 0.0
    %901 = vmatpush2.xpose.msra.mxu0 0.0
    %902 = vmatprep.subr.mxu0 0.0
    %903 = vmatpush2.xpose.msra.mxu0 0.0
    %904 = vmatprep.subr.mxu0 0.0
    %905 = vmatpush2.xpose.msra.mxu0 0.0
    %906 = vmatprep.subr.mxu0 0.0
    %907 = vmatpush2.xpose.msra.mxu0 0.0
    %908 = vmatprep.subr.mxu0 0.0
    %909 = vmatpush2.xpose.msra.mxu0 0.0
    %910 = vmatprep.subr.mxu0 0.0
    %911 = vmatpush2.xpose.msra.mxu0 0.0
    %912 = vmatprep.subr.mxu0 0.0
    %913 = vmatpush2.xpose.msra.mxu0 0.0
    %914 = vmatprep.mubr.f32.mxu0 0.0
    %v915 = vand.u32 %v582, 4294901760
    %v916 = vsub.f32 %v582, %v915
    %v917 = vand.u32 %v916, 4294901760
    %918 = vmatmul.mubr.f32.gmra.mxu0 %v917
    %v919 = vpop.f32.mrf.mxu0
    %v920 = vadd.f32 %v843, %v919
    %v921 = vpop.f32.mrf.mxu0
    %922 = vdwg.mxu0
    %923 = vmatprep.subr.mxu0 0.0
    %924 = vmatpush1.xpose.msra.mxu0 0.0
    %925 = vmatprep.subr.mxu0 0.0
    %926 = vmatpush1.xpose.msra.mxu0 0.0
    %927 = vmatprep.subr.mxu0 0.0
    %928 = vmatpush1.xpose.msra.mxu0 0.0
    %929 = vmatprep.subr.mxu0 0.0
    %930 = vmatpush1.xpose.msra.mxu0 0.0
    %931 = vmatprep.subr.mxu0 0.0
    %932 = vmatpush1.xpose.msra.mxu0 0.0
    %933 = vmatprep.subr.mxu0 0.0
    %934 = vmatpush1.xpose.msra.mxu0 0.0
    %935 = vmatprep.subr.mxu0 0.0
    %936 = vmatpush1.xpose.msra.mxu0 0.0
    %937 = vmatprep.subr.mxu0 0.0
    %938 = vmatpush1.xpose.msra.mxu0 0.0
    %939 = vmatprep.subr.mxu0 0.0
    %940 = vmatpush1.xpose.msra.mxu0 0.0
    %941 = vmatprep.subr.mxu0 0.0
    %942 = vmatpush1.xpose.msra.mxu0 0.0
    %943 = vmatprep.subr.mxu0 0.0
    %944 = vmatpush1.xpose.msra.mxu0 0.0
    %945 = vmatprep.subr.mxu0 0.0
    %946 = vmatpush1.xpose.msra.mxu0 0.0
    %947 = vmatprep.subr.mxu0 0.0
    %v948 = vand.u32 %v594, 4294901760
    %v949 = vsub.f32 %v594, %v948
    %v950 = vand.u32 %v949, 4294901760
    %951 = vmatpush1.xpose.msra.mxu0 %v950
    %952 = vmatprep.subr.mxu0 0.0
    %v953 = vand.u32 %v591, 4294901760
    %v954 = vsub.f32 %v591, %v953
    %v955 = vand.u32 %v954, 4294901760
    %956 = vmatpush1.xpose.msra.mxu0 %v955
    %957 = vmatprep.subr.mxu0 0.0
    %v958 = vand.u32 %v588, 4294901760
    %v959 = vsub.f32 %v588, %v958
    %v960 = vand.u32 %v959, 4294901760
    %961 = vmatpush1.xpose.msra.mxu0 %v960
    %962 = vmatprep.subr.mxu0 0.0
    %v963 = vand.u32 %v585, 4294901760
    %v964 = vsub.f32 %v585, %v963
    %v965 = vand.u32 %v964, 4294901760
    %966 = vmatpush1.xpose.msra.mxu0 %v965
    %967 = vmatprep.subr.mxu0 0.0
    %968 = vmatpush2.xpose.msra.mxu0 0.0
    %969 = vmatprep.subr.mxu0 0.0
    %970 = vmatpush2.xpose.msra.mxu0 0.0
    %971 = vmatprep.subr.mxu0 0.0
    %972 = vmatpush2.xpose.msra.mxu0 0.0
    %973 = vmatprep.subr.mxu0 0.0
    %974 = vmatpush2.xpose.msra.mxu0 0.0
    %975 = vmatprep.subr.mxu0 0.0
    %976 = vmatpush2.xpose.msra.mxu0 0.0
    %977 = vmatprep.subr.mxu0 0.0
    %978 = vmatpush2.xpose.msra.mxu0 0.0
    %979 = vmatprep.subr.mxu0 0.0
    %980 = vmatpush2.xpose.msra.mxu0 0.0
    %981 = vmatprep.subr.mxu0 0.0
    %982 = vmatpush2.xpose.msra.mxu0 0.0
    %983 = vmatprep.subr.mxu0 0.0
    %984 = vmatpush2.xpose.msra.mxu0 0.0
    %985 = vmatprep.subr.mxu0 0.0
    %986 = vmatpush2.xpose.msra.mxu0 0.0
    %987 = vmatprep.subr.mxu0 0.0
    %988 = vmatpush2.xpose.msra.mxu0 0.0
    %989 = vmatprep.subr.mxu0 0.0
    %990 = vmatpush2.xpose.msra.mxu0 0.0
    %991 = vmatprep.subr.mxu0 0.0
    %992 = vmatpush2.xpose.msra.mxu0 0.0
    %993 = vmatprep.subr.mxu0 0.0
    %994 = vmatpush2.xpose.msra.mxu0 0.0
    %995 = vmatprep.subr.mxu0 0.0
    %996 = vmatpush2.xpose.msra.mxu0 0.0
    %997 = vmatprep.subr.mxu0 0.0
    %998 = vmatpush2.xpose.msra.mxu0 0.0
    %999 = vmatprep.mubr.f32.mxu0 0.0
    %v1000 = vand.u32 %v582, 4294901760
    %1001 = vmatmul.mubr.f32.gmra.mxu0 %v1000
    %v1002 = vpop.f32.mrf.mxu0
    %v1003 = vadd.f32 %v920, %v1002
    %v1004 = vpop.f32.mrf.mxu0
    %1005 = vdwg.mxu0
    %1006 = vmatprep.subr.mxu0 0.0
    %1007 = vmatpush1.xpose.msra.mxu0 0.0
    %1008 = vmatprep.subr.mxu0 0.0
    %1009 = vmatpush1.xpose.msra.mxu0 0.0
    %1010 = vmatprep.subr.mxu0 0.0
    %1011 = vmatpush1.xpose.msra.mxu0 0.0
    %1012 = vmatprep.subr.mxu0 0.0
    %1013 = vmatpush1.xpose.msra.mxu0 0.0
    %1014 = vmatprep.subr.mxu0 0.0
    %1015 = vmatpush1.xpose.msra.mxu0 0.0
    %1016 = vmatprep.subr.mxu0 0.0
    %1017 = vmatpush1.xpose.msra.mxu0 0.0
    %1018 = vmatprep.subr.mxu0 0.0
    %1019 = vmatpush1.xpose.msra.mxu0 0.0
    %1020 = vmatprep.subr.mxu0 0.0
    %1021 = vmatpush1.xpose.msra.mxu0 0.0
    %1022 = vmatprep.subr.mxu0 0.0
    %1023 = vmatpush1.xpose.msra.mxu0 0.0
    %1024 = vmatprep.subr.mxu0 0.0
    %1025 = vmatpush1.xpose.msra.mxu0 0.0
    %1026 = vmatprep.subr.mxu0 0.0
    %1027 = vmatpush1.xpose.msra.mxu0 0.0
    %1028 = vmatprep.subr.mxu0 0.0
    %1029 = vmatpush1.xpose.msra.mxu0 0.0
    %1030 = vmatprep.subr.mxu0 0.0
    %v1031 = vand.u32 %v594, 4294901760
    %1032 = vmatpush1.xpose.msra.mxu0 %v1031
    %1033 = vmatprep.subr.mxu0 0.0
    %v1034 = vand.u32 %v591, 4294901760
    %1035 = vmatpush1.xpose.msra.mxu0 %v1034
    %1036 = vmatprep.subr.mxu0 0.0
    %v1037 = vand.u32 %v588, 4294901760
    %1038 = vmatpush1.xpose.msra.mxu0 %v1037
    %1039 = vmatprep.subr.mxu0 0.0
    %v1040 = vand.u32 %v585, 4294901760
    %1041 = vmatpush1.xpose.msra.mxu0 %v1040
    %1042 = vmatprep.subr.mxu0 0.0
    %1043 = vmatpush2.xpose.msra.mxu0 0.0
    %1044 = vmatprep.subr.mxu0 0.0
    %1045 = vmatpush2.xpose.msra.mxu0 0.0
    %1046 = vmatprep.subr.mxu0 0.0
    %1047 = vmatpush2.xpose.msra.mxu0 0.0
    %1048 = vmatprep.subr.mxu0 0.0
    %1049 = vmatpush2.xpose.msra.mxu0 0.0
    %1050 = vmatprep.subr.mxu0 0.0
    %1051 = vmatpush2.xpose.msra.mxu0 0.0
    %1052 = vmatprep.subr.mxu0 0.0
    %1053 = vmatpush2.xpose.msra.mxu0 0.0
    %1054 = vmatprep.subr.mxu0 0.0
    %1055 = vmatpush2.xpose.msra.mxu0 0.0
    %1056 = vmatprep.subr.mxu0 0.0
    %1057 = vmatpush2.xpose.msra.mxu0 0.0
    %1058 = vmatprep.subr.mxu0 0.0
    %1059 = vmatpush2.xpose.msra.mxu0 0.0
    %1060 = vmatprep.subr.mxu0 0.0
    %1061 = vmatpush2.xpose.msra.mxu0 0.0
    %1062 = vmatprep.subr.mxu0 0.0
    %1063 = vmatpush2.xpose.msra.mxu0 0.0
    %1064 = vmatprep.subr.mxu0 0.0
    %1065 = vmatpush2.xpose.msra.mxu0 0.0
    %1066 = vmatprep.subr.mxu0 0.0
    %1067 = vmatpush2.xpose.msra.mxu0 0.0
    %1068 = vmatprep.subr.mxu0 0.0
    %1069 = vmatpush2.xpose.msra.mxu0 0.0
    %1070 = vmatprep.subr.mxu0 0.0
    %1071 = vmatpush2.xpose.msra.mxu0 0.0
    %1072 = vmatprep.subr.mxu0 0.0
    %1073 = vmatpush2.xpose.msra.mxu0 0.0
    %1074 = vmatprep.mubr.f32.mxu0 0.0
    %v1075 = vand.u32 %v582, 4294901760
    %1076 = vmatmul.mubr.f32.gmra.mxu0 %v1075
    %v1077 = vpop.f32.mrf.mxu0
    %v1078 = vadd.f32 %v1003, %v1077
    %v1079 = vpop.f32.mrf.mxu0
    %1080 = vdwg.mxu0
    %v1081 = vadd.f32 %v1078, %v569
    %v1082 = vld [vmem:[%s7] sm:$0x1]
    %v1083 = vld [vmem:[%s8] sm:$0x1]
    %v1084 = vsel %vm39, %v1081, 0.0
    %1085 = vadd.xlane.f32.xlu0 %v1084
    %v1086 = vpop.xlane.xlu0 %1085
    %v1087 = vmul.f32 %v1086, %v545
    %v1088 = vsub.f32 %v1081, %v1087
    %v1089 = vmul.f32 %v1088, %v1088
    %v1090 = vsel %vm39, %v1089, 0.0
    %1091 = vadd.xlane.f32.xlu0 %v1090
    %v1092 = vpop.xlane.xlu0 %1091
    %v1093 = vmul.f32 %v1092, %v545
    %v1094 = vadd.f32 %v1093, 1e-05
    %v1095 = vrsqrt.pop %v1094
    %v1096 = vmul.f32 %v1088, %v1095
    %v1098 = vlaneseq
    %v1099 = vshrl.u32 %v1098, 7
    %v1100 = vsub.s32 0, %v1099
    %v1101 = vrot.slane %v1082, %v1100
    %v1103 = vmul.f32 %v1096, %v1101
    %v1105 = vlaneseq
    %v1106 = vshrl.u32 %v1105, 7
    %v1107 = vsub.s32 0, %v1106
    %v1108 = vrot.slane %v1083, %v1107
    %v1110 = vadd.f32 %v1103, %v1108
    %1111 = vst.msk [vmem:[#allocation2] sm:$0xff] %vm39, %v1110
    // Predicated region
    $region38: #{encoder_layer.3} parent=1 // pred_check
      _
    $region39: #{encoder_layer.3} parent=1 // pred_check_branch
      %1113 = sbr.rel (0) target = $region41
    $region40: #{encoder_layer.3} parent=1 // pred_region
      %s1115 = ssub.s32 128, 128
      %1116 = vsyncadd [#allocation3], %s1115
      %s1118 = sshll.u32 [#allocation2], 4
      %s1119 = int_to_ptr.vmem [resolvable:$true] %s1118
      %1121 = dma.vmem_to_hbm [thread:$0]  %s1119, 128, %s9, [#allocation3]
    $region41: #{encoder_layer.3} parent=1 // pred_fallthru
      _
    // Predicated region
    $region42: #{encoder_layer.3} parent=1 // pred_check
      _
    $region43: #{encoder_layer.3} parent=1 // pred_check_branch
      %1123 = sbr.rel (0) target = $region45
    $region44: #{encoder_layer.3} parent=1 // pred_region
      %1124 = dma.done [#allocation3], 128
    $region45: #{encoder_layer.3} parent=1 // pred_fallthru
      _
    %1125 = vsyncpa [#allocation3], 1

// kernel: encoder_layer.2
$region0: #{encoder_layer.2}
  #allocation0 [shape = 'u32[]', space=smem, size = 0x4, offset = 0x4, fixed_abs, tag = 'smem constant byte address 0x4 - core index']
  #allocation1 [shape = 'u32[144,128]{1,0:T(1,128)}', space=vmem, size = 0x12000, scoped, tag = 'internal scratch']
  %s0 = inlined_call_operand.vmem [shape: f32[8,32], index: 0, kind: input, shape index: {}]
  %s1 = inlined_call_operand.vmem [shape: f32[64,32], index: 1, kind: input, shape index: {}]
  %s2 = inlined_call_operand.vmem [shape: f32[32,32], index: 2, kind: input, shape index: {}]
  %s3 = inlined_call_operand.vmem [shape: f32[32,8], index: 3, kind: output, shape index: {}]
  %s4 = sld [smem:[#allocation0]]
  $region22: #{encoder_layer.2} parent=0
    _
  %s6 = ssub.s32 1, %s4
  %s7 = scalar_select 0, %s6, %s4
  // Predicated region
  $region2: #{encoder_layer.2} parent=0 // pred_check
    _
  $region3: #{encoder_layer.2} parent=0 // pred_check_branch
    %9 = sbr.rel (0) target = $region5
  $region4: #{encoder_layer.2} parent=0 // pred_region
    _
  $region5: #{encoder_layer.2} parent=0 // pred_fallthru
    _
  // Predicated region
  $region6: #{encoder_layer.2} parent=0 // pred_check
    _
  $region7: #{encoder_layer.2} parent=0 // pred_check_branch
    %11 = sbr.rel (0) target = $region9
  $region8: #{encoder_layer.2} parent=0 // pred_region
    _
  $region9: #{encoder_layer.2} parent=0 // pred_fallthru
    _
  // Predicated region
  $region10: #{encoder_layer.2} parent=0 // pred_check
    _
  $region11: #{encoder_layer.2} parent=0 // pred_check_branch
    %13 = sbr.rel (0) target = $region13
  $region12: #{encoder_layer.2} parent=0 // pred_region
    _
  $region13: #{encoder_layer.2} parent=0 // pred_fallthru
    _
  %v14 = vld [vmem:[%s0] sm:$0xff]
  %v15 = vld [vmem:[%s1] sm:$0xff]
  %v16 = vld [vmem:[%s1 + $0x8] sm:$0xff]
  %v17 = vld [vmem:[%s1 + $0x10] sm:$0xff]
  %v18 = vld [vmem:[%s1 + $0x18] sm:$0xff]
  %v19 = vld [vmem:[%s1 + $0x20] sm:$0xff]
  %v20 = vld [vmem:[%s1 + $0x28] sm:$0xff]
  %v21 = vld [vmem:[%s1 + $0x30] sm:$0xff]
  %v22 = vld [vmem:[%s1 + $0x38] sm:$0xff]
  %vm23 = vcmask 261120
  %v25 = vsel %vm23, %v14, 0
  %v28 = vsel %vm23, %v15, 0
  %v31 = vsel %vm23, %v16, 0
  %v34 = vsel %vm23, %v17, 0
  %v37 = vsel %vm23, %v18, 0
  %v40 = vsel %vm23, %v19, 0
  %v43 = vsel %vm23, %v20, 0
  %v46 = vsel %vm23, %v21, 0
  %v49 = vsel %vm23, %v22, 0
  %51 = vmatprep.subr.mxu0 0.0
  %52 = vmatpush1.xpose.msra.mxu0 0.0
  %53 = vmatprep.subr.mxu0 0.0
  %54 = vmatpush1.xpose.msra.mxu0 0.0
  %55 = vmatprep.subr.mxu0 0.0
  %56 = vmatpush1.xpose.msra.mxu0 0.0
  %57 = vmatprep.subr.mxu0 0.0
  %58 = vmatpush1.xpose.msra.mxu0 0.0
  %59 = vmatprep.subr.mxu0 0.0
  %60 = vmatpush1.xpose.msra.mxu0 0.0
  %61 = vmatprep.subr.mxu0 0.0
  %62 = vmatpush1.xpose.msra.mxu0 0.0
  %63 = vmatprep.subr.mxu0 0.0
  %64 = vmatpush1.xpose.msra.mxu0 0.0
  %65 = vmatprep.subr.mxu0 0.0
  %66 = vmatpush1.xpose.msra.mxu0 0.0
  %67 = vmatprep.subr.mxu0 0.0
  %v68 = vand.u32 %v49, 4294901760
  %69 = vmatpush1.xpose.msra.mxu0 %v68
  %70 = vmatprep.subr.mxu0 0.0
  %v71 = vand.u32 %v46, 4294901760
  %72 = vmatpush1.xpose.msra.mxu0 %v71
  %73 = vmatprep.subr.mxu0 0.0
  %v74 = vand.u32 %v43, 4294901760
  %75 = vmatpush1.xpose.msra.mxu0 %v74
  %76 = vmatprep.subr.mxu0 0.0
  %v77 = vand.u32 %v40, 4294901760
  %78 = vmatpush1.xpose.msra.mxu0 %v77
  %79 = vmatprep.subr.mxu0 0.0
  %v80 = vand.u32 %v37, 4294901760
  %81 = vmatpush1.xpose.msra.mxu0 %v80
  %82 = vmatprep.subr.mxu0 0.0
  %v83 = vand.u32 %v34, 4294901760
  %84 = vmatpush1.xpose.msra.mxu0 %v83
  %85 = vmatprep.subr.mxu0 0.0
  %v86 = vand.u32 %v31, 4294901760
  %87 = vmatpush1.xpose.msra.mxu0 %v86
  %88 = vmatprep.subr.mxu0 0.0
  %v89 = vand.u32 %v28, 4294901760
  %90 = vmatpush1.xpose.msra.mxu0 %v89
  %91 = vmatprep.subr.mxu0 0.0
  %92 = vmatpush2.xpose.msra.mxu0 0.0
  %93 = vmatprep.subr.mxu0 0.0
  %94 = vmatpush2.xpose.msra.mxu0 0.0
  %95 = vmatprep.subr.mxu0 0.0
  %96 = vmatpush2.xpose.msra.mxu0 0.0
  %97 = vmatprep.subr.mxu0 0.0
  %98 = vmatpush2.xpose.msra.mxu0 0.0
  %99 = vmatprep.subr.mxu0 0.0
  %100 = vmatpush2.xpose.msra.mxu0 0.0
  %101 = vmatprep.subr.mxu0 0.0
  %102 = vmatpush2.xpose.msra.mxu0 0.0
  %103 = vmatprep.subr.mxu0 0.0
  %104 = vmatpush2.xpose.msra.mxu0 0.0
  %105 = vmatprep.subr.mxu0 0.0
  %106 = vmatpush2.xpose.msra.mxu0 0.0
  %107 = vmatprep.subr.mxu0 0.0
  %108 = vmatpush2.xpose.msra.mxu0 0.0
  %109 = vmatprep.subr.mxu0 0.0
  %110 = vmatpush2.xpose.msra.mxu0 0.0
  %111 = vmatprep.subr.mxu0 0.0
  %112 = vmatpush2.xpose.msra.mxu0 0.0
  %113 = vmatprep.subr.mxu0 0.0
  %114 = vmatpush2.xpose.msra.mxu0 0.0
  %115 = vmatprep.subr.mxu0 0.0
  %116 = vmatpush2.xpose.msra.mxu0 0.0
  %117 = vmatprep.subr.mxu0 0.0
  %118 = vmatpush2.xpose.msra.mxu0 0.0
  %119 = vmatprep.subr.mxu0 0.0
  %120 = vmatpush2.xpose.msra.mxu0 0.0
  %121 = vmatprep.subr.mxu0 0.0
  %122 = vmatpush2.xpose.msra.mxu0 0.0
  %123 = vmatprep.mubr.f32.mxu0 0.0
  %v124 = vand.u32 %v25, 4294901760
  %v125 = vsub.f32 %v25, %v124
  %v126 = vand.u32 %v125, 4294901760
  %v127 = vsub.f32 %v125, %v126
  %v128 = vand.u32 %v127, 4294901760
  %129 = vmatmul.mubr.f32.gmra.mxu0 %v128
  %v130 = vpop.f32.mrf.mxu0
  %v131 = vadd.f32 0.0, %v130
  %v132 = vpop.f32.mrf.mxu0
  %133 = vdwg.mxu0
  %134 = vmatprep.subr.mxu0 0.0
  %135 = vmatpush1.xpose.msra.mxu0 0.0
  %136 = vmatprep.subr.mxu0 0.0
  %137 = vmatpush1.xpose.msra.mxu0 0.0
  %138 = vmatprep.subr.mxu0 0.0
  %139 = vmatpush1.xpose.msra.mxu0 0.0
  %140 = vmatprep.subr.mxu0 0.0
  %141 = vmatpush1.xpose.msra.mxu0 0.0
  %142 = vmatprep.subr.mxu0 0.0
  %143 = vmatpush1.xpose.msra.mxu0 0.0
  %144 = vmatprep.subr.mxu0 0.0
  %145 = vmatpush1.xpose.msra.mxu0 0.0
  %146 = vmatprep.subr.mxu0 0.0
  %147 = vmatpush1.xpose.msra.mxu0 0.0
  %148 = vmatprep.subr.mxu0 0.0
  %149 = vmatpush1.xpose.msra.mxu0 0.0
  %150 = vmatprep.subr.mxu0 0.0
  %v151 = vand.u32 %v49, 4294901760
  %v152 = vsub.f32 %v49, %v151
  %v153 = vand.u32 %v152, 4294901760
  %v154 = vsub.f32 %v152, %v153
  %v155 = vand.u32 %v154, 4294901760
  %156 = vmatpush1.xpose.msra.mxu0 %v155
  %157 = vmatprep.subr.mxu0 0.0
  %v158 = vand.u32 %v46, 4294901760
  %v159 = vsub.f32 %v46, %v158
  %v160 = vand.u32 %v159, 4294901760
  %v161 = vsub.f32 %v159, %v160
  %v162 = vand.u32 %v161, 4294901760
  %163 = vmatpush1.xpose.msra.mxu0 %v162
  %164 = vmatprep.subr.mxu0 0.0
  %v165 = vand.u32 %v43, 4294901760
  %v166 = vsub.f32 %v43, %v165
  %v167 = vand.u32 %v166, 4294901760
  %v168 = vsub.f32 %v166, %v167
  %v169 = vand.u32 %v168, 4294901760
  %170 = vmatpush1.xpose.msra.mxu0 %v169
  %171 = vmatprep.subr.mxu0 0.0
  %v172 = vand.u32 %v40, 4294901760
  %v173 = vsub.f32 %v40, %v172
  %v174 = vand.u32 %v173, 4294901760
  %v175 = vsub.f32 %v173, %v174
  %v176 = vand.u32 %v175, 4294901760
  %177 = vmatpush1.xpose.msra.mxu0 %v176
  %178 = vmatprep.subr.mxu0 0.0
  %v179 = vand.u32 %v37, 4294901760
  %v180 = vsub.f32 %v37, %v179
  %v181 = vand.u32 %v180, 4294901760
  %v182 = vsub.f32 %v180, %v181
  %v183 = vand.u32 %v182, 4294901760
  %184 = vmatpush1.xpose.msra.mxu0 %v183
  %185 = vmatprep.subr.mxu0 0.0
  %v186 = vand.u32 %v34, 4294901760
  %v187 = vsub.f32 %v34, %v186
  %v188 = vand.u32 %v187, 4294901760
  %v189 = vsub.f32 %v187, %v188
  %v190 = vand.u32 %v189, 4294901760
  %191 = vmatpush1.xpose.msra.mxu0 %v190
  %192 = vmatprep.subr.mxu0 0.0
  %v193 = vand.u32 %v31, 4294901760
  %v194 = vsub.f32 %v31, %v193
  %v195 = vand.u32 %v194, 4294901760
  %v196 = vsub.f32 %v194, %v195
  %v197 = vand.u32 %v196, 4294901760
  %198 = vmatpush1.xpose.msra.mxu0 %v197
  %199 = vmatprep.subr.mxu0 0.0
  %v200 = vand.u32 %v28, 4294901760
  %v201 = vsub.f32 %v28, %v200
  %v202 = vand.u32 %v201, 4294901760
  %v203 = vsub.f32 %v201, %v202
  %v204 = vand.u32 %v203, 4294901760
  %205 = vmatpush1.xpose.msra.mxu0 %v204
  %206 = vmatprep.subr.mxu0 0.0
  %207 = vmatpush2.xpose.msra.mxu0 0.0
  %208 = vmatprep.subr.mxu0 0.0
  %209 = vmatpush2.xpose.msra.mxu0 0.0
  %210 = vmatprep.subr.mxu0 0.0
  %211 = vmatpush2.xpose.msra.mxu0 0.0
  %212 = vmatprep.subr.mxu0 0.0
  %213 = vmatpush2.xpose.msra.mxu0 0.0
  %214 = vmatprep.subr.mxu0 0.0
  %215 = vmatpush2.xpose.msra.mxu0 0.0
  %216 = vmatprep.subr.mxu0 0.0
  %217 = vmatpush2.xpose.msra.mxu0 0.0
  %218 = vmatprep.subr.mxu0 0.0
  %219 = vmatpush2.xpose.msra.mxu0 0.0
  %220 = vmatprep.subr.mxu0 0.0
  %221 = vmatpush2.xpose.msra.mxu0 0.0
  %222 = vmatprep.subr.mxu0 0.0
  %223 = vmatpush2.xpose.msra.mxu0 0.0
  %224 = vmatprep.subr.mxu0 0.0
  %225 = vmatpush2.xpose.msra.mxu0 0.0
  %226 = vmatprep.subr.mxu0 0.0
  %227 = vmatpush2.xpose.msra.mxu0 0.0
  %228 = vmatprep.subr.mxu0 0.0
  %229 = vmatpush2.xpose.msra.mxu0 0.0
  %230 = vmatprep.subr.mxu0 0.0
  %231 = vmatpush2.xpose.msra.mxu0 0.0
  %232 = vmatprep.subr.mxu0 0.0
  %233 = vmatpush2.xpose.msra.mxu0 0.0
  %234 = vmatprep.subr.mxu0 0.0
  %235 = vmatpush2.xpose.msra.mxu0 0.0
  %236 = vmatprep.subr.mxu0 0.0
  %237 = vmatpush2.xpose.msra.mxu0 0.0
  %238 = vmatprep.mubr.f32.mxu0 0.0
  %v239 = vand.u32 %v25, 4294901760
  %240 = vmatmul.mubr.f32.gmra.mxu0 %v239
  %v241 = vpop.f32.mrf.mxu0
  %v242 = vadd.f32 %v131, %v241
  %v243 = vpop.f32.mrf.mxu0
  %244 = vdwg.mxu0
  %245 = vmatprep.subr.mxu0 0.0
  %246 = vmatpush1.xpose.msra.mxu0 0.0
  %247 = vmatprep.subr.mxu0 0.0
  %248 = vmatpush1.xpose.msra.mxu0 0.0
  %249 = vmatprep.subr.mxu0 0.0
  %250 = vmatpush1.xpose.msra.mxu0 0.0
  %251 = vmatprep.subr.mxu0 0.0
  %252 = vmatpush1.xpose.msra.mxu0 0.0
  %253 = vmatprep.subr.mxu0 0.0
  %254 = vmatpush1.xpose.msra.mxu0 0.0
  %255 = vmatprep.subr.mxu0 0.0
  %256 = vmatpush1.xpose.msra.mxu0 0.0
  %257 = vmatprep.subr.mxu0 0.0
  %258 = vmatpush1.xpose.msra.mxu0 0.0
  %259 = vmatprep.subr.mxu0 0.0
  %260 = vmatpush1.xpose.msra.mxu0 0.0
  %261 = vmatprep.subr.mxu0 0.0
  %v262 = vand.u32 %v49, 4294901760
  %v263 = vsub.f32 %v49, %v262
  %264 = vmatpush1.xpose.msra.mxu0 %v263
  %265 = vmatprep.subr.mxu0 0.0
  %v266 = vand.u32 %v46, 4294901760
  %v267 = vsub.f32 %v46, %v266
  %268 = vmatpush1.xpose.msra.mxu0 %v267
  %269 = vmatprep.subr.mxu0 0.0
  %v270 = vand.u32 %v43, 4294901760
  %v271 = vsub.f32 %v43, %v270
  %272 = vmatpush1.xpose.msra.mxu0 %v271
  %273 = vmatprep.subr.mxu0 0.0
  %v274 = vand.u32 %v40, 4294901760
  %v275 = vsub.f32 %v40, %v274
  %276 = vmatpush1.xpose.msra.mxu0 %v275
  %277 = vmatprep.subr.mxu0 0.0
  %v278 = vand.u32 %v37, 4294901760
  %v279 = vsub.f32 %v37, %v278
  %280 = vmatpush1.xpose.msra.mxu0 %v279
  %281 = vmatprep.subr.mxu0 0.0
  %v282 = vand.u32 %v34, 4294901760
  %v283 = vsub.f32 %v34, %v282
  %284 = vmatpush1.xpose.msra.mxu0 %v283
  %285 = vmatprep.subr.mxu0 0.0
  %v286 = vand.u32 %v31, 4294901760
  %v287 = vsub.f32 %v31, %v286
  %288 = vmatpush1.xpose.msra.mxu0 %v287
  %289 = vmatprep.subr.mxu0 0.0
  %v290 = vand.u32 %v28, 4294901760
  %v291 = vsub.f32 %v28, %v290
  %292 = vmatpush1.xpose.msra.mxu0 %v291
  %293 = vmatprep.subr.mxu0 0.0
  %294 = vmatpush2.xpose.msra.mxu0 0.0
  %295 = vmatprep.subr.mxu0 0.0
  %296 = vmatpush2.xpose.msra.mxu0 0.0
  %297 = vmatprep.subr.mxu0 0.0
  %298 = vmatpush2.xpose.msra.mxu0 0.0
  %299 = vmatprep.subr.mxu0 0.0
  %300 = vmatpush2.xpose.msra.mxu0 0.0
  %301 = vmatprep.subr.mxu0 0.0
  %302 = vmatpush2.xpose.msra.mxu0 0.0
  %303 = vmatprep.subr.mxu0 0.0
  %304 = vmatpush2.xpose.msra.mxu0 0.0
  %305 = vmatprep.subr.mxu0 0.0
  %306 = vmatpush2.xpose.msra.mxu0 0.0
  %307 = vmatprep.subr.mxu0 0.0
  %308 = vmatpush2.xpose.msra.mxu0 0.0
  %309 = vmatprep.subr.mxu0 0.0
  %310 = vmatpush2.xpose.msra.mxu0 0.0
  %311 = vmatprep.subr.mxu0 0.0
  %312 = vmatpush2.xpose.msra.mxu0 0.0
  %313 = vmatprep.subr.mxu0 0.0
  %314 = vmatpush2.xpose.msra.mxu0 0.0
  %315 = vmatprep.subr.mxu0 0.0
  %316 = vmatpush2.xpose.msra.mxu0 0.0
  %317 = vmatprep.subr.mxu0 0.0
  %318 = vmatpush2.xpose.msra.mxu0 0.0
  %319 = vmatprep.subr.mxu0 0.0
  %320 = vmatpush2.xpose.msra.mxu0 0.0
  %321 = vmatprep.subr.mxu0 0.0
  %322 = vmatpush2.xpose.msra.mxu0 0.0
  %323 = vmatprep.subr.mxu0 0.0
  %324 = vmatpush2.xpose.msra.mxu0 0.0
  %325 = vmatprep.mubr.f32.mxu0 0.0
  %v326 = vand.u32 %v25, 4294901760
  %v327 = vsub.f32 %v25, %v326
  %328 = vmatmul.mubr.f32.gmra.mxu0 %v327
  %v329 = vpop.f32.mrf.mxu0
  %v330 = vadd.f32 %v242, %v329
  %v331 = vpop.f32.mrf.mxu0
  %332 = vdwg.mxu0
  %333 = vmatprep.subr.mxu0 0.0
  %334 = vmatpush1.xpose.msra.mxu0 0.0
  %335 = vmatprep.subr.mxu0 0.0
  %336 = vmatpush1.xpose.msra.mxu0 0.0
  %337 = vmatprep.subr.mxu0 0.0
  %338 = vmatpush1.xpose.msra.mxu0 0.0
  %339 = vmatprep.subr.mxu0 0.0
  %340 = vmatpush1.xpose.msra.mxu0 0.0
  %341 = vmatprep.subr.mxu0 0.0
  %342 = vmatpush1.xpose.msra.mxu0 0.0
  %343 = vmatprep.subr.mxu0 0.0
  %344 = vmatpush1.xpose.msra.mxu0 0.0
  %345 = vmatprep.subr.mxu0 0.0
  %346 = vmatpush1.xpose.msra.mxu0 0.0
  %347 = vmatprep.subr.mxu0 0.0
  %348 = vmatpush1.xpose.msra.mxu0 0.0
  %349 = vmatprep.subr.mxu0 0.0
  %v350 = vand.u32 %v49, 4294901760
  %351 = vmatpush1.xpose.msra.mxu0 %v350
  %352 = vmatprep.subr.mxu0 0.0
  %v353 = vand.u32 %v46, 4294901760
  %354 = vmatpush1.xpose.msra.mxu0 %v353
  %355 = vmatprep.subr.mxu0 0.0
  %v356 = vand.u32 %v43, 4294901760
  %357 = vmatpush1.xpose.msra.mxu0 %v356
  %358 = vmatprep.subr.mxu0 0.0
  %v359 = vand.u32 %v40, 4294901760
  %360 = vmatpush1.xpose.msra.mxu0 %v359
  %361 = vmatprep.subr.mxu0 0.0
  %v362 = vand.u32 %v37, 4294901760
  %363 = vmatpush1.xpose.msra.mxu0 %v362
  %364 = vmatprep.subr.mxu0 0.0
  %v365 = vand.u32 %v34, 4294901760
  %366 = vmatpush1.xpose.msra.mxu0 %v365
  %367 = vmatprep.subr.mxu0 0.0
  %v368 = vand.u32 %v31, 4294901760
  %369 = vmatpush1.xpose.msra.mxu0 %v368
  %370 = vmatprep.subr.mxu0 0.0
  %v371 = vand.u32 %v28, 4294901760
  %372 = vmatpush1.xpose.msra.mxu0 %v371
  %373 = vmatprep.subr.mxu0 0.0
  %374 = vmatpush2.xpose.msra.mxu0 0.0
  %375 = vmatprep.subr.mxu0 0.0
  %376 = vmatpush2.xpose.msra.mxu0 0.0
  %377 = vmatprep.subr.mxu0 0.0
  %378 = vmatpush2.xpose.msra.mxu0 0.0
  %379 = vmatprep.subr.mxu0 0.0
  %380 = vmatpush2.xpose.msra.mxu0 0.0
  %381 = vmatprep.subr.mxu0 0.0
  %382 = vmatpush2.xpose.msra.mxu0 0.0
  %383 = vmatprep.subr.mxu0 0.0
  %384 = vmatpush2.xpose.msra.mxu0 0.0
  %385 = vmatprep.subr.mxu0 0.0
  %386 = vmatpush2.xpose.msra.mxu0 0.0
  %387 = vmatprep.subr.mxu0 0.0
  %388 = vmatpush2.xpose.msra.mxu0 0.0
  %389 = vmatprep.subr.mxu0 0.0
  %390 = vmatpush2.xpose.msra.mxu0 0.0
  %391 = vmatprep.subr.mxu0 0.0
  %392 = vmatpush2.xpose.msra.mxu0 0.0
  %393 = vmatprep.subr.mxu0 0.0
  %394 = vmatpush2.xpose.msra.mxu0 0.0
  %395 = vmatprep.subr.mxu0 0.0
  %396 = vmatpush2.xpose.msra.mxu0 0.0
  %397 = vmatprep.subr.mxu0 0.0
  %398 = vmatpush2.xpose.msra.mxu0 0.0
  %399 = vmatprep.subr.mxu0 0.0
  %400 = vmatpush2.xpose.msra.mxu0 0.0
  %401 = vmatprep.subr.mxu0 0.0
  %402 = vmatpush2.xpose.msra.mxu0 0.0
  %403 = vmatprep.subr.mxu0 0.0
  %404 = vmatpush2.xpose.msra.mxu0 0.0
  %405 = vmatprep.mubr.f32.mxu0 0.0
  %v406 = vand.u32 %v25, 4294901760
  %v407 = vsub.f32 %v25, %v406
  %v408 = vand.u32 %v407, 4294901760
  %409 = vmatmul.mubr.f32.gmra.mxu0 %v408
  %v410 = vpop.f32.mrf.mxu0
  %v411 = vadd.f32 %v330, %v410
  %v412 = vpop.f32.mrf.mxu0
  %413 = vdwg.mxu0
  %414 = vmatprep.subr.mxu0 0.0
  %415 = vmatpush1.xpose.msra.mxu0 0.0
  %416 = vmatprep.subr.mxu0 0.0
  %417 = vmatpush1.xpose.msra.mxu0 0.0
  %418 = vmatprep.subr.mxu0 0.0
  %419 = vmatpush1.xpose.msra.mxu0 0.0
  %420 = vmatprep.subr.mxu0 0.0
  %421 = vmatpush1.xpose.msra.mxu0 0.0
  %422 = vmatprep.subr.mxu0 0.0
  %423 = vmatpush1.xpose.msra.mxu0 0.0
  %424 = vmatprep.subr.mxu0 0.0
  %425 = vmatpush1.xpose.msra.mxu0 0.0
  %426 = vmatprep.subr.mxu0 0.0
  %427 = vmatpush1.xpose.msra.mxu0 0.0
  %428 = vmatprep.subr.mxu0 0.0
  %429 = vmatpush1.xpose.msra.mxu0 0.0
  %430 = vmatprep.subr.mxu0 0.0
  %v431 = vand.u32 %v49, 4294901760
  %v432 = vsub.f32 %v49, %v431
  %v433 = vand.u32 %v432, 4294901760
  %434 = vmatpush1.xpose.msra.mxu0 %v433
  %435 = vmatprep.subr.mxu0 0.0
  %v436 = vand.u32 %v46, 4294901760
  %v437 = vsub.f32 %v46, %v436
  %v438 = vand.u32 %v437, 4294901760
  %439 = vmatpush1.xpose.msra.mxu0 %v438
  %440 = vmatprep.subr.mxu0 0.0
  %v441 = vand.u32 %v43, 4294901760
  %v442 = vsub.f32 %v43, %v441
  %v443 = vand.u32 %v442, 4294901760
  %444 = vmatpush1.xpose.msra.mxu0 %v443
  %445 = vmatprep.subr.mxu0 0.0
  %v446 = vand.u32 %v40, 4294901760
  %v447 = vsub.f32 %v40, %v446
  %v448 = vand.u32 %v447, 4294901760
  %449 = vmatpush1.xpose.msra.mxu0 %v448
  %450 = vmatprep.subr.mxu0 0.0
  %v451 = vand.u32 %v37, 4294901760
  %v452 = vsub.f32 %v37, %v451
  %v453 = vand.u32 %v452, 4294901760
  %454 = vmatpush1.xpose.msra.mxu0 %v453
  %455 = vmatprep.subr.mxu0 0.0
  %v456 = vand.u32 %v34, 4294901760
  %v457 = vsub.f32 %v34, %v456
  %v458 = vand.u32 %v457, 4294901760
  %459 = vmatpush1.xpose.msra.mxu0 %v458
  %460 = vmatprep.subr.mxu0 0.0
  %v461 = vand.u32 %v31, 4294901760
  %v462 = vsub.f32 %v31, %v461
  %v463 = vand.u32 %v462, 4294901760
  %464 = vmatpush1.xpose.msra.mxu0 %v463
  %465 = vmatprep.subr.mxu0 0.0
  %v466 = vand.u32 %v28, 4294901760
  %v467 = vsub.f32 %v28, %v466
  %v468 = vand.u32 %v467, 4294901760
  %469 = vmatpush1.xpose.msra.mxu0 %v468
  %470 = vmatprep.subr.mxu0 0.0
  %471 = vmatpush2.xpose.msra.mxu0 0.0
  %472 = vmatprep.subr.mxu0 0.0
  %473 = vmatpush2.xpose.msra.mxu0 0.0
  %474 = vmatprep.subr.mxu0 0.0
  %475 = vmatpush2.xpose.msra.mxu0 0.0
  %476 = vmatprep.subr.mxu0 0.0
  %477 = vmatpush2.xpose.msra.mxu0 0.0
  %478 = vmatprep.subr.mxu0 0.0
  %479 = vmatpush2.xpose.msra.mxu0 0.0
  %480 = vmatprep.subr.mxu0 0.0
  %481 = vmatpush2.xpose.msra.mxu0 0.0
  %482 = vmatprep.subr.mxu0 0.0
  %483 = vmatpush2.xpose.msra.mxu0 0.0
  %484 = vmatprep.subr.mxu0 0.0
  %485 = vmatpush2.xpose.msra.mxu0 0.0
  %486 = vmatprep.subr.mxu0 0.0
  %487 = vmatpush2.xpose.msra.mxu0 0.0
  %488 = vmatprep.subr.mxu0 0.0
  %489 = vmatpush2.xpose.msra.mxu0 0.0
  %490 = vmatprep.subr.mxu0 0.0
  %491 = vmatpush2.xpose.msra.mxu0 0.0
  %492 = vmatprep.subr.mxu0 0.0
  %493 = vmatpush2.xpose.msra.mxu0 0.0
  %494 = vmatprep.subr.mxu0 0.0
  %495 = vmatpush2.xpose.msra.mxu0 0.0
  %496 = vmatprep.subr.mxu0 0.0
  %497 = vmatpush2.xpose.msra.mxu0 0.0
  %498 = vmatprep.subr.mxu0 0.0
  %499 = vmatpush2.xpose.msra.mxu0 0.0
  %500 = vmatprep.subr.mxu0 0.0
  %501 = vmatpush2.xpose.msra.mxu0 0.0
  %502 = vmatprep.mubr.f32.mxu0 0.0
  %v503 = vand.u32 %v25, 4294901760
  %504 = vmatmul.mubr.f32.gmra.mxu0 %v503
  %v505 = vpop.f32.mrf.mxu0
  %v506 = vadd.f32 %v411, %v505
  %v507 = vpop.f32.mrf.mxu0
  %508 = vdwg.mxu0
  %509 = vmatprep.subr.mxu0 0.0
  %510 = vmatpush1.xpose.msra.mxu0 0.0
  %511 = vmatprep.subr.mxu0 0.0
  %512 = vmatpush1.xpose.msra.mxu0 0.0
  %513 = vmatprep.subr.mxu0 0.0
  %514 = vmatpush1.xpose.msra.mxu0 0.0
  %515 = vmatprep.subr.mxu0 0.0
  %516 = vmatpush1.xpose.msra.mxu0 0.0
  %517 = vmatprep.subr.mxu0 0.0
  %518 = vmatpush1.xpose.msra.mxu0 0.0
  %519 = vmatprep.subr.mxu0 0.0
  %520 = vmatpush1.xpose.msra.mxu0 0.0
  %521 = vmatprep.subr.mxu0 0.0
  %522 = vmatpush1.xpose.msra.mxu0 0.0
  %523 = vmatprep.subr.mxu0 0.0
  %524 = vmatpush1.xpose.msra.mxu0 0.0
  %525 = vmatprep.subr.mxu0 0.0
  %v526 = vand.u32 %v49, 4294901760
  %527 = vmatpush1.xpose.msra.mxu0 %v526
  %528 = vmatprep.subr.mxu0 0.0
  %v529 = vand.u32 %v46, 4294901760
  %530 = vmatpush1.xpose.msra.mxu0 %v529
  %531 = vmatprep.subr.mxu0 0.0
  %v532 = vand.u32 %v43, 4294901760
  %533 = vmatpush1.xpose.msra.mxu0 %v532
  %534 = vmatprep.subr.mxu0 0.0
  %v535 = vand.u32 %v40, 4294901760
  %536 = vmatpush1.xpose.msra.mxu0 %v535
  %537 = vmatprep.subr.mxu0 0.0
  %v538 = vand.u32 %v37, 4294901760
  %539 = vmatpush1.xpose.msra.mxu0 %v538
  %540 = vmatprep.subr.mxu0 0.0
  %v541 = vand.u32 %v34, 4294901760
  %542 = vmatpush1.xpose.msra.mxu0 %v541
  %543 = vmatprep.subr.mxu0 0.0
  %v544 = vand.u32 %v31, 4294901760
  %545 = vmatpush1.xpose.msra.mxu0 %v544
  %546 = vmatprep.subr.mxu0 0.0
  %v547 = vand.u32 %v28, 4294901760
  %548 = vmatpush1.xpose.msra.mxu0 %v547
  %549 = vmatprep.subr.mxu0 0.0
  %550 = vmatpush2.xpose.msra.mxu0 0.0
  %551 = vmatprep.subr.mxu0 0.0
  %552 = vmatpush2.xpose.msra.mxu0 0.0
  %553 = vmatprep.subr.mxu0 0.0
  %554 = vmatpush2.xpose.msra.mxu0 0.0
  %555 = vmatprep.subr.mxu0 0.0
  %556 = vmatpush2.xpose.msra.mxu0 0.0
  %557 = vmatprep.subr.mxu0 0.0
  %558 = vmatpush2.xpose.msra.mxu0 0.0
  %559 = vmatprep.subr.mxu0 0.0
  %560 = vmatpush2.xpose.msra.mxu0 0.0
  %561 = vmatprep.subr.mxu0 0.0
  %562 = vmatpush2.xpose.msra.mxu0 0.0
  %563 = vmatprep.subr.mxu0 0.0
  %564 = vmatpush2.xpose.msra.mxu0 0.0
  %565 = vmatprep.subr.mxu0 0.0
  %566 = vmatpush2.xpose.msra.mxu0 0.0
  %567 = vmatprep.subr.mxu0 0.0
  %568 = vmatpush2.xpose.msra.mxu0 0.0
  %569 = vmatprep.subr.mxu0 0.0
  %570 = vmatpush2.xpose.msra.mxu0 0.0
  %571 = vmatprep.subr.mxu0 0.0
  %572 = vmatpush2.xpose.msra.mxu0 0.0
  %573 = vmatprep.subr.mxu0 0.0
  %574 = vmatpush2.xpose.msra.mxu0 0.0
  %575 = vmatprep.subr.mxu0 0.0
  %576 = vmatpush2.xpose.msra.mxu0 0.0
  %577 = vmatprep.subr.mxu0 0.0
  %578 = vmatpush2.xpose.msra.mxu0 0.0
  %579 = vmatprep.subr.mxu0 0.0
  %580 = vmatpush2.xpose.msra.mxu0 0.0
  %581 = vmatprep.mubr.f32.mxu0 0.0
  %v582 = vand.u32 %v25, 4294901760
  %583 = vmatmul.mubr.f32.gmra.mxu0 %v582
  %v584 = vpop.f32.mrf.mxu0
  %v585 = vadd.f32 %v506, %v584
  %v586 = vpop.f32.mrf.mxu0
  %587 = vdwg.mxu0
  %v588 = vld [vmem:[%s2] sm:$0xff]
  %v589 = vld [vmem:[%s2 + $0x8] sm:$0xff]
  %v590 = vld [vmem:[%s2 + $0x10] sm:$0xff]
  %v591 = vld [vmem:[%s2 + $0x18] sm:$0xff]
  %v593 = vsel %vm23, %v588, 0
  %v596 = vsel %vm23, %v589, 0
  %v599 = vsel %vm23, %v590, 0
  %v602 = vsel %vm23, %v591, 0
  %604 = vmatprep.subr.mxu0 0.0
  %605 = vmatpush1.xpose.msra.mxu0 0.0
  %606 = vmatprep.subr.mxu0 0.0
  %607 = vmatpush1.xpose.msra.mxu0 0.0
  %608 = vmatprep.subr.mxu0 0.0
  %609 = vmatpush1.xpose.msra.mxu0 0.0
  %610 = vmatprep.subr.mxu0 0.0
  %611 = vmatpush1.xpose.msra.mxu0 0.0
  %612 = vmatprep.subr.mxu0 0.0
  %613 = vmatpush1.xpose.msra.mxu0 0.0
  %614 = vmatprep.subr.mxu0 0.0
  %615 = vmatpush1.xpose.msra.mxu0 0.0
  %616 = vmatprep.subr.mxu0 0.0
  %617 = vmatpush1.xpose.msra.mxu0 0.0
  %618 = vmatprep.subr.mxu0 0.0
  %619 = vmatpush1.xpose.msra.mxu0 0.0
  %620 = vmatprep.subr.mxu0 0.0
  %621 = vmatpush1.xpose.msra.mxu0 0.0
  %622 = vmatprep.subr.mxu0 0.0
  %623 = vmatpush1.xpose.msra.mxu0 0.0
  %624 = vmatprep.subr.mxu0 0.0
  %625 = vmatpush1.xpose.msra.mxu0 0.0
  %626 = vmatprep.subr.mxu0 0.0
  %627 = vmatpush1.xpose.msra.mxu0 0.0
  %628 = vmatprep.subr.mxu0 0.0
  %629 = vmatpush1.xpose.msra.mxu0 0.0
  %630 = vmatprep.subr.mxu0 0.0
  %631 = vmatpush1.xpose.msra.mxu0 0.0
  %632 = vmatprep.subr.mxu0 0.0
  %633 = vmatpush1.xpose.msra.mxu0 0.0
  %634 = vmatprep.subr.mxu0 0.0
  %v635 = vand.u32 %v25, 4294901760
  %636 = vmatpush1.xpose.msra.mxu0 %v635
  %637 = vmatprep.subr.mxu0 0.0
  %638 = vmatpush2.xpose.msra.mxu0 0.0
  %639 = vmatprep.subr.mxu0 0.0
  %640 = vmatpush2.xpose.msra.mxu0 0.0
  %641 = vmatprep.subr.mxu0 0.0
  %642 = vmatpush2.xpose.msra.mxu0 0.0
  %643 = vmatprep.subr.mxu0 0.0
  %644 = vmatpush2.xpose.msra.mxu0 0.0
  %645 = vmatprep.subr.mxu0 0.0
  %646 = vmatpush2.xpose.msra.mxu0 0.0
  %647 = vmatprep.subr.mxu0 0.0
  %648 = vmatpush2.xpose.msra.mxu0 0.0
  %649 = vmatprep.subr.mxu0 0.0
  %650 = vmatpush2.xpose.msra.mxu0 0.0
  %651 = vmatprep.subr.mxu0 0.0
  %652 = vmatpush2.xpose.msra.mxu0 0.0
  %653 = vmatprep.subr.mxu0 0.0
  %654 = vmatpush2.xpose.msra.mxu0 0.0
  %655 = vmatprep.subr.mxu0 0.0
  %656 = vmatpush2.xpose.msra.mxu0 0.0
  %657 = vmatprep.subr.mxu0 0.0
  %658 = vmatpush2.xpose.msra.mxu0 0.0
  %659 = vmatprep.subr.mxu0 0.0
  %660 = vmatpush2.xpose.msra.mxu0 0.0
  %661 = vmatprep.subr.mxu0 0.0
  %662 = vmatpush2.xpose.msra.mxu0 0.0
  %663 = vmatprep.subr.mxu0 0.0
  %664 = vmatpush2.xpose.msra.mxu0 0.0
  %665 = vmatprep.subr.mxu0 0.0
  %666 = vmatpush2.xpose.msra.mxu0 0.0
  %667 = vmatprep.subr.mxu0 0.0
  %668 = vmatpush2.xpose.msra.mxu0 0.0
  %669 = vmatprep.mubr.f32.mxu0 0.0
  %v670 = vand.u32 %v593, 4294901760
  %v671 = vsub.f32 %v593, %v670
  %v672 = vand.u32 %v671, 4294901760
  %v673 = vsub.f32 %v671, %v672
  %v674 = vand.u32 %v673, 4294901760
  %675 = vmatmul.mubr.f32.gmra.mxu0 %v674
  %v676 = vpop.f32.mrf.mxu0
  %v677 = vadd.f32 0.0, %v676
  %v678 = vpop.f32.mrf.mxu0
  %679 = vmatprep.mubr.f32.mxu0 0.0
  %v680 = vand.u32 %v596, 4294901760
  %v681 = vsub.f32 %v596, %v680
  %v682 = vand.u32 %v681, 4294901760
  %v683 = vsub.f32 %v681, %v682
  %v684 = vand.u32 %v683, 4294901760
  %685 = vmatmul.mubr.f32.gmra.mxu0 %v684
  %v686 = vpop.f32.mrf.mxu0
  %v687 = vadd.f32 0.0, %v686
  %v688 = vpop.f32.mrf.mxu0
  %689 = vmatprep.mubr.f32.mxu0 0.0
  %v690 = vand.u32 %v599, 4294901760
  %v691 = vsub.f32 %v599, %v690
  %v692 = vand.u32 %v691, 4294901760
  %v693 = vsub.f32 %v691, %v692
  %v694 = vand.u32 %v693, 4294901760
  %695 = vmatmul.mubr.f32.gmra.mxu0 %v694
  %v696 = vpop.f32.mrf.mxu0
  %v697 = vadd.f32 0.0, %v696
  %v698 = vpop.f32.mrf.mxu0
  %699 = vmatprep.mubr.f32.mxu0 0.0
  %v700 = vand.u32 %v602, 4294901760
  %v701 = vsub.f32 %v602, %v700
  %v702 = vand.u32 %v701, 4294901760
  %v703 = vsub.f32 %v701, %v702
  %v704 = vand.u32 %v703, 4294901760
  %705 = vmatmul.mubr.f32.gmra.mxu0 %v704
  %v706 = vpop.f32.mrf.mxu0
  %v707 = vadd.f32 0.0, %v706
  %v708 = vpop.f32.mrf.mxu0
  %709 = vdwg.mxu0
  %710 = vmatprep.subr.mxu0 0.0
  %711 = vmatpush1.xpose.msra.mxu0 0.0
  %712 = vmatprep.subr.mxu0 0.0
  %713 = vmatpush1.xpose.msra.mxu0 0.0
  %714 = vmatprep.subr.mxu0 0.0
  %715 = vmatpush1.xpose.msra.mxu0 0.0
  %716 = vmatprep.subr.mxu0 0.0
  %717 = vmatpush1.xpose.msra.mxu0 0.0
  %718 = vmatprep.subr.mxu0 0.0
  %719 = vmatpush1.xpose.msra.mxu0 0.0
  %720 = vmatprep.subr.mxu0 0.0
  %721 = vmatpush1.xpose.msra.mxu0 0.0
  %722 = vmatprep.subr.mxu0 0.0
  %723 = vmatpush1.xpose.msra.mxu0 0.0
  %724 = vmatprep.subr.mxu0 0.0
  %725 = vmatpush1.xpose.msra.mxu0 0.0
  %726 = vmatprep.subr.mxu0 0.0
  %727 = vmatpush1.xpose.msra.mxu0 0.0
  %728 = vmatprep.subr.mxu0 0.0
  %729 = vmatpush1.xpose.msra.mxu0 0.0
  %730 = vmatprep.subr.mxu0 0.0
  %731 = vmatpush1.xpose.msra.mxu0 0.0
  %732 = vmatprep.subr.mxu0 0.0
  %733 = vmatpush1.xpose.msra.mxu0 0.0
  %734 = vmatprep.subr.mxu0 0.0
  %735 = vmatpush1.xpose.msra.mxu0 0.0
  %736 = vmatprep.subr.mxu0 0.0
  %737 = vmatpush1.xpose.msra.mxu0 0.0
  %738 = vmatprep.subr.mxu0 0.0
  %739 = vmatpush1.xpose.msra.mxu0 0.0
  %740 = vmatprep.subr.mxu0 0.0
  %v741 = vand.u32 %v25, 4294901760
  %v742 = vsub.f32 %v25, %v741
  %v743 = vand.u32 %v742, 4294901760
  %v744 = vsub.f32 %v742, %v743
  %v745 = vand.u32 %v744, 4294901760
  %746 = vmatpush1.xpose.msra.mxu0 %v745
  %747 = vmatprep.subr.mxu0 0.0
  %748 = vmatpush2.xpose.msra.mxu0 0.0
  %749 = vmatprep.subr.mxu0 0.0
  %750 = vmatpush2.xpose.msra.mxu0 0.0
  %751 = vmatprep.subr.mxu0 0.0
  %752 = vmatpush2.xpose.msra.mxu0 0.0
  %753 = vmatprep.subr.mxu0 0.0
  %754 = vmatpush2.xpose.msra.mxu0 0.0
  %755 = vmatprep.subr.mxu0 0.0
  %756 = vmatpush2.xpose.msra.mxu0 0.0
  %757 = vmatprep.subr.mxu0 0.0
  %758 = vmatpush2.xpose.msra.mxu0 0.0
  %759 = vmatprep.subr.mxu0 0.0
  %760 = vmatpush2.xpose.msra.mxu0 0.0
  %761 = vmatprep.subr.mxu0 0.0
  %762 = vmatpush2.xpose.msra.mxu0 0.0
  %763 = vmatprep.subr.mxu0 0.0
  %764 = vmatpush2.xpose.msra.mxu0 0.0
  %765 = vmatprep.subr.mxu0 0.0
  %766 = vmatpush2.xpose.msra.mxu0 0.0
  %767 = vmatprep.subr.mxu0 0.0
  %768 = vmatpush2.xpose.msra.mxu0 0.0
  %769 = vmatprep.subr.mxu0 0.0
  %770 = vmatpush2.xpose.msra.mxu0 0.0
  %771 = vmatprep.subr.mxu0 0.0
  %772 = vmatpush2.xpose.msra.mxu0 0.0
  %773 = vmatprep.subr.mxu0 0.0
  %774 = vmatpush2.xpose.msra.mxu0 0.0
  %775 = vmatprep.subr.mxu0 0.0
  %776 = vmatpush2.xpose.msra.mxu0 0.0
  %777 = vmatprep.subr.mxu0 0.0
  %778 = vmatpush2.xpose.msra.mxu0 0.0
  %779 = vmatprep.mubr.f32.mxu0 0.0
  %v780 = vand.u32 %v593, 4294901760
  %781 = vmatmul.mubr.f32.gmra.mxu0 %v780
  %v782 = vpop.f32.mrf.mxu0
  %v783 = vadd.f32 %v677, %v782
  %v784 = vpop.f32.mrf.mxu0
  %785 = vmatprep.mubr.f32.mxu0 0.0
  %v786 = vand.u32 %v596, 4294901760
  %787 = vmatmul.mubr.f32.gmra.mxu0 %v786
  %v788 = vpop.f32.mrf.mxu0
  %v789 = vadd.f32 %v687, %v788
  %v790 = vpop.f32.mrf.mxu0
  %791 = vmatprep.mubr.f32.mxu0 0.0
  %v792 = vand.u32 %v599, 4294901760
  %793 = vmatmul.mubr.f32.gmra.mxu0 %v792
  %v794 = vpop.f32.mrf.mxu0
  %v795 = vadd.f32 %v697, %v794
  %v796 = vpop.f32.mrf.mxu0
  %797 = vmatprep.mubr.f32.mxu0 0.0
  %v798 = vand.u32 %v602, 4294901760
  %799 = vmatmul.mubr.f32.gmra.mxu0 %v798
  %v800 = vpop.f32.mrf.mxu0
  %v801 = vadd.f32 %v707, %v800
  %v802 = vpop.f32.mrf.mxu0
  %803 = vdwg.mxu0
  %804 = vmatprep.subr.mxu0 0.0
  %805 = vmatpush1.xpose.msra.mxu0 0.0
  %806 = vmatprep.subr.mxu0 0.0
  %807 = vmatpush1.xpose.msra.mxu0 0.0
  %808 = vmatprep.subr.mxu0 0.0
  %809 = vmatpush1.xpose.msra.mxu0 0.0
  %810 = vmatprep.subr.mxu0 0.0
  %811 = vmatpush1.xpose.msra.mxu0 0.0
  %812 = vmatprep.subr.mxu0 0.0
  %813 = vmatpush1.xpose.msra.mxu0 0.0
  %814 = vmatprep.subr.mxu0 0.0
  %815 = vmatpush1.xpose.msra.mxu0 0.0
  %816 = vmatprep.subr.mxu0 0.0
  %817 = vmatpush1.xpose.msra.mxu0 0.0
  %818 = vmatprep.subr.mxu0 0.0
  %819 = vmatpush1.xpose.msra.mxu0 0.0
  %820 = vmatprep.subr.mxu0 0.0
  %821 = vmatpush1.xpose.msra.mxu0 0.0
  %822 = vmatprep.subr.mxu0 0.0
  %823 = vmatpush1.xpose.msra.mxu0 0.0
  %824 = vmatprep.subr.mxu0 0.0
  %825 = vmatpush1.xpose.msra.mxu0 0.0
  %826 = vmatprep.subr.mxu0 0.0
  %827 = vmatpush1.xpose.msra.mxu0 0.0
  %828 = vmatprep.subr.mxu0 0.0
  %829 = vmatpush1.xpose.msra.mxu0 0.0
  %830 = vmatprep.subr.mxu0 0.0
  %831 = vmatpush1.xpose.msra.mxu0 0.0
  %832 = vmatprep.subr.mxu0 0.0
  %833 = vmatpush1.xpose.msra.mxu0 0.0
  %834 = vmatprep.subr.mxu0 0.0
  %v835 = vand.u32 %v25, 4294901760
  %v836 = vsub.f32 %v25, %v835
  %837 = vmatpush1.xpose.msra.mxu0 %v836
  %838 = vmatprep.subr.mxu0 0.0
  %839 = vmatpush2.xpose.msra.mxu0 0.0
  %840 = vmatprep.subr.mxu0 0.0
  %841 = vmatpush2.xpose.msra.mxu0 0.0
  %842 = vmatprep.subr.mxu0 0.0
  %843 = vmatpush2.xpose.msra.mxu0 0.0
  %844 = vmatprep.subr.mxu0 0.0
  %845 = vmatpush2.xpose.msra.mxu0 0.0
  %846 = vmatprep.subr.mxu0 0.0
  %847 = vmatpush2.xpose.msra.mxu0 0.0
  %848 = vmatprep.subr.mxu0 0.0
  %849 = vmatpush2.xpose.msra.mxu0 0.0
  %850 = vmatprep.subr.mxu0 0.0
  %851 = vmatpush2.xpose.msra.mxu0 0.0
  %852 = vmatprep.subr.mxu0 0.0
  %853 = vmatpush2.xpose.msra.mxu0 0.0
  %854 = vmatprep.subr.mxu0 0.0
  %855 = vmatpush2.xpose.msra.mxu0 0.0
  %856 = vmatprep.subr.mxu0 0.0
  %857 = vmatpush2.xpose.msra.mxu0 0.0
  %858 = vmatprep.subr.mxu0 0.0
  %859 = vmatpush2.xpose.msra.mxu0 0.0
  %860 = vmatprep.subr.mxu0 0.0
  %861 = vmatpush2.xpose.msra.mxu0 0.0
  %862 = vmatprep.subr.mxu0 0.0
  %863 = vmatpush2.xpose.msra.mxu0 0.0
  %864 = vmatprep.subr.mxu0 0.0
  %865 = vmatpush2.xpose.msra.mxu0 0.0
  %866 = vmatprep.subr.mxu0 0.0
  %867 = vmatpush2.xpose.msra.mxu0 0.0
  %868 = vmatprep.subr.mxu0 0.0
  %869 = vmatpush2.xpose.msra.mxu0 0.0
  %870 = vmatprep.mubr.f32.mxu0 0.0
  %v871 = vand.u32 %v593, 4294901760
  %v872 = vsub.f32 %v593, %v871
  %873 = vmatmul.mubr.f32.gmra.mxu0 %v872
  %v874 = vpop.f32.mrf.mxu0
  %v875 = vadd.f32 %v783, %v874
  %v876 = vpop.f32.mrf.mxu0
  %877 = vmatprep.mubr.f32.mxu0 0.0
  %v878 = vand.u32 %v596, 4294901760
  %v879 = vsub.f32 %v596, %v878
  %880 = vmatmul.mubr.f32.gmra.mxu0 %v879
  %v881 = vpop.f32.mrf.mxu0
  %v882 = vadd.f32 %v789, %v881
  %v883 = vpop.f32.mrf.mxu0
  %884 = vmatprep.mubr.f32.mxu0 0.0
  %v885 = vand.u32 %v599, 4294901760
  %v886 = vsub.f32 %v599, %v885
  %887 = vmatmul.mubr.f32.gmra.mxu0 %v886
  %v888 = vpop.f32.mrf.mxu0
  %v889 = vadd.f32 %v795, %v888
  %v890 = vpop.f32.mrf.mxu0
  %891 = vmatprep.mubr.f32.mxu0 0.0
  %v892 = vand.u32 %v602, 4294901760
  %v893 = vsub.f32 %v602, %v892
  %894 = vmatmul.mubr.f32.gmra.mxu0 %v893
  %v895 = vpop.f32.mrf.mxu0
  %v896 = vadd.f32 %v801, %v895
  %v897 = vpop.f32.mrf.mxu0
  %898 = vdwg.mxu0
  %899 = vmatprep.subr.mxu0 0.0
  %900 = vmatpush1.xpose.msra.mxu0 0.0
  %901 = vmatprep.subr.mxu0 0.0
  %902 = vmatpush1.xpose.msra.mxu0 0.0
  %903 = vmatprep.subr.mxu0 0.0
  %904 = vmatpush1.xpose.msra.mxu0 0.0
  %905 = vmatprep.subr.mxu0 0.0
  %906 = vmatpush1.xpose.msra.mxu0 0.0
  %907 = vmatprep.subr.mxu0 0.0
  %908 = vmatpush1.xpose.msra.mxu0 0.0
  %909 = vmatprep.subr.mxu0 0.0
  %910 = vmatpush1.xpose.msra.mxu0 0.0
  %911 = vmatprep.subr.mxu0 0.0
  %912 = vmatpush1.xpose.msra.mxu0 0.0
  %913 = vmatprep.subr.mxu0 0.0
  %914 = vmatpush1.xpose.msra.mxu0 0.0
  %915 = vmatprep.subr.mxu0 0.0
  %916 = vmatpush1.xpose.msra.mxu0 0.0
  %917 = vmatprep.subr.mxu0 0.0
  %918 = vmatpush1.xpose.msra.mxu0 0.0
  %919 = vmatprep.subr.mxu0 0.0
  %920 = vmatpush1.xpose.msra.mxu0 0.0
  %921 = vmatprep.subr.mxu0 0.0
  %922 = vmatpush1.xpose.msra.mxu0 0.0
  %923 = vmatprep.subr.mxu0 0.0
  %924 = vmatpush1.xpose.msra.mxu0 0.0
  %925 = vmatprep.subr.mxu0 0.0
  %926 = vmatpush1.xpose.msra.mxu0 0.0
  %927 = vmatprep.subr.mxu0 0.0
  %928 = vmatpush1.xpose.msra.mxu0 0.0
  %929 = vmatprep.subr.mxu0 0.0
  %v930 = vand.u32 %v25, 4294901760
  %931 = vmatpush1.xpose.msra.mxu0 %v930
  %932 = vmatprep.subr.mxu0 0.0
  %933 = vmatpush2.xpose.msra.mxu0 0.0
  %934 = vmatprep.subr.mxu0 0.0
  %935 = vmatpush2.xpose.msra.mxu0 0.0
  %936 = vmatprep.subr.mxu0 0.0
  %937 = vmatpush2.xpose.msra.mxu0 0.0
  %938 = vmatprep.subr.mxu0 0.0
  %939 = vmatpush2.xpose.msra.mxu0 0.0
  %940 = vmatprep.subr.mxu0 0.0
  %941 = vmatpush2.xpose.msra.mxu0 0.0
  %942 = vmatprep.subr.mxu0 0.0
  %943 = vmatpush2.xpose.msra.mxu0 0.0
  %944 = vmatprep.subr.mxu0 0.0
  %945 = vmatpush2.xpose.msra.mxu0 0.0
  %946 = vmatprep.subr.mxu0 0.0
  %947 = vmatpush2.xpose.msra.mxu0 0.0
  %948 = vmatprep.subr.mxu0 0.0
  %949 = vmatpush2.xpose.msra.mxu0 0.0
  %950 = vmatprep.subr.mxu0 0.0
  %951 = vmatpush2.xpose.msra.mxu0 0.0
  %952 = vmatprep.subr.mxu0 0.0
  %953 = vmatpush2.xpose.msra.mxu0 0.0
  %954 = vmatprep.subr.mxu0 0.0
  %955 = vmatpush2.xpose.msra.mxu0 0.0
  %956 = vmatprep.subr.mxu0 0.0
  %957 = vmatpush2.xpose.msra.mxu0 0.0
  %958 = vmatprep.subr.mxu0 0.0
  %959 = vmatpush2.xpose.msra.mxu0 0.0
  %960 = vmatprep.subr.mxu0 0.0
  %961 = vmatpush2.xpose.msra.mxu0 0.0
  %962 = vmatprep.subr.mxu0 0.0
  %963 = vmatpush2.xpose.msra.mxu0 0.0
  %964 = vmatprep.mubr.f32.mxu0 0.0
  %v965 = vand.u32 %v593, 4294901760
  %v966 = vsub.f32 %v593, %v965
  %v967 = vand.u32 %v966, 4294901760
  %968 = vmatmul.mubr.f32.gmra.mxu0 %v967
  %v969 = vpop.f32.mrf.mxu0
  %v970 = vadd.f32 %v875, %v969
  %v971 = vpop.f32.mrf.mxu0
  %972 = vmatprep.mubr.f32.mxu0 0.0
  %v973 = vand.u32 %v596, 4294901760
  %v974 = vsub.f32 %v596, %v973
  %v975 = vand.u32 %v974, 4294901760
  %976 = vmatmul.mubr.f32.gmra.mxu0 %v975
  %v977 = vpop.f32.mrf.mxu0
  %v978 = vadd.f32 %v882, %v977
  %v979 = vpop.f32.mrf.mxu0
  %980 = vmatprep.mubr.f32.mxu0 0.0
  %v981 = vand.u32 %v599, 4294901760
  %v982 = vsub.f32 %v599, %v981
  %v983 = vand.u32 %v982, 4294901760
  %984 = vmatmul.mubr.f32.gmra.mxu0 %v983
  %v985 = vpop.f32.mrf.mxu0
  %v986 = vadd.f32 %v889, %v985
  %v987 = vpop.f32.mrf.mxu0
  %988 = vmatprep.mubr.f32.mxu0 0.0
  %v989 = vand.u32 %v602, 4294901760
  %v990 = vsub.f32 %v602, %v989
  %v991 = vand.u32 %v990, 4294901760
  %992 = vmatmul.mubr.f32.gmra.mxu0 %v991
  %v993 = vpop.f32.mrf.mxu0
  %v994 = vadd.f32 %v896, %v993
  %v995 = vpop.f32.mrf.mxu0
  %996 = vdwg.mxu0
  %997 = vmatprep.subr.mxu0 0.0
  %998 = vmatpush1.xpose.msra.mxu0 0.0
  %999 = vmatprep.subr.mxu0 0.0
  %1000 = vmatpush1.xpose.msra.mxu0 0.0
  %1001 = vmatprep.subr.mxu0 0.0
  %1002 = vmatpush1.xpose.msra.mxu0 0.0
  %1003 = vmatprep.subr.mxu0 0.0
  %1004 = vmatpush1.xpose.msra.mxu0 0.0
  %1005 = vmatprep.subr.mxu0 0.0
  %1006 = vmatpush1.xpose.msra.mxu0 0.0
  %1007 = vmatprep.subr.mxu0 0.0
  %1008 = vmatpush1.xpose.msra.mxu0 0.0
  %1009 = vmatprep.subr.mxu0 0.0
  %1010 = vmatpush1.xpose.msra.mxu0 0.0
  %1011 = vmatprep.subr.mxu0 0.0
  %1012 = vmatpush1.xpose.msra.mxu0 0.0
  %1013 = vmatprep.subr.mxu0 0.0
  %1014 = vmatpush1.xpose.msra.mxu0 0.0
  %1015 = vmatprep.subr.mxu0 0.0
  %1016 = vmatpush1.xpose.msra.mxu0 0.0
  %1017 = vmatprep.subr.mxu0 0.0
  %1018 = vmatpush1.xpose.msra.mxu0 0.0
  %1019 = vmatprep.subr.mxu0 0.0
  %1020 = vmatpush1.xpose.msra.mxu0 0.0
  %1021 = vmatprep.subr.mxu0 0.0
  %1022 = vmatpush1.xpose.msra.mxu0 0.0
  %1023 = vmatprep.subr.mxu0 0.0
  %1024 = vmatpush1.xpose.msra.mxu0 0.0
  %1025 = vmatprep.subr.mxu0 0.0
  %1026 = vmatpush1.xpose.msra.mxu0 0.0
  %1027 = vmatprep.subr.mxu0 0.0
  %v1028 = vand.u32 %v25, 4294901760
  %v1029 = vsub.f32 %v25, %v1028
  %v1030 = vand.u32 %v1029, 4294901760
  %1031 = vmatpush1.xpose.msra.mxu0 %v1030
  %1032 = vmatprep.subr.mxu0 0.0
  %1033 = vmatpush2.xpose.msra.mxu0 0.0
  %1034 = vmatprep.subr.mxu0 0.0
  %1035 = vmatpush2.xpose.msra.mxu0 0.0
  %1036 = vmatprep.subr.mxu0 0.0
  %1037 = vmatpush2.xpose.msra.mxu0 0.0
  %1038 = vmatprep.subr.mxu0 0.0
  %1039 = vmatpush2.xpose.msra.mxu0 0.0
  %1040 = vmatprep.subr.mxu0 0.0
  %1041 = vmatpush2.xpose.msra.mxu0 0.0
  %1042 = vmatprep.subr.mxu0 0.0
  %1043 = vmatpush2.xpose.msra.mxu0 0.0
  %1044 = vmatprep.subr.mxu0 0.0
  %1045 = vmatpush2.xpose.msra.mxu0 0.0
  %1046 = vmatprep.subr.mxu0 0.0
  %1047 = vmatpush2.xpose.msra.mxu0 0.0
  %1048 = vmatprep.subr.mxu0 0.0
  %1049 = vmatpush2.xpose.msra.mxu0 0.0
  %1050 = vmatprep.subr.mxu0 0.0
  %1051 = vmatpush2.xpose.msra.mxu0 0.0
  %1052 = vmatprep.subr.mxu0 0.0
  %1053 = vmatpush2.xpose.msra.mxu0 0.0
  %1054 = vmatprep.subr.mxu0 0.0
  %1055 = vmatpush2.xpose.msra.mxu0 0.0
  %1056 = vmatprep.subr.mxu0 0.0
  %1057 = vmatpush2.xpose.msra.mxu0 0.0
  %1058 = vmatprep.subr.mxu0 0.0
  %1059 = vmatpush2.xpose.msra.mxu0 0.0
  %1060 = vmatprep.subr.mxu0 0.0
  %1061 = vmatpush2.xpose.msra.mxu0 0.0
  %1062 = vmatprep.subr.mxu0 0.0
  %1063 = vmatpush2.xpose.msra.mxu0 0.0
  %1064 = vmatprep.mubr.f32.mxu0 0.0
  %v1065 = vand.u32 %v593, 4294901760
  %1066 = vmatmul.mubr.f32.gmra.mxu0 %v1065
  %v1067 = vpop.f32.mrf.mxu0
  %v1068 = vadd.f32 %v970, %v1067
  %v1069 = vpop.f32.mrf.mxu0
  %1070 = vmatprep.mubr.f32.mxu0 0.0
  %v1071 = vand.u32 %v596, 4294901760
  %1072 = vmatmul.mubr.f32.gmra.mxu0 %v1071
  %v1073 = vpop.f32.mrf.mxu0
  %v1074 = vadd.f32 %v978, %v1073
  %v1075 = vpop.f32.mrf.mxu0
  %1076 = vmatprep.mubr.f32.mxu0 0.0
  %v1077 = vand.u32 %v599, 4294901760
  %1078 = vmatmul.mubr.f32.gmra.mxu0 %v1077
  %v1079 = vpop.f32.mrf.mxu0
  %v1080 = vadd.f32 %v986, %v1079
  %v1081 = vpop.f32.mrf.mxu0
  %1082 = vmatprep.mubr.f32.mxu0 0.0
  %v1083 = vand.u32 %v602, 4294901760
  %1084 = vmatmul.mubr.f32.gmra.mxu0 %v1083
  %v1085 = vpop.f32.mrf.mxu0
  %v1086 = vadd.f32 %v994, %v1085
  %v1087 = vpop.f32.mrf.mxu0
  %1088 = vdwg.mxu0
  %1089 = vmatprep.subr.mxu0 0.0
  %1090 = vmatpush1.xpose.msra.mxu0 0.0
  %1091 = vmatprep.subr.mxu0 0.0
  %1092 = vmatpush1.xpose.msra.mxu0 0.0
  %1093 = vmatprep.subr.mxu0 0.0
  %1094 = vmatpush1.xpose.msra.mxu0 0.0
  %1095 = vmatprep.subr.mxu0 0.0
  %1096 = vmatpush1.xpose.msra.mxu0 0.0
  %1097 = vmatprep.subr.mxu0 0.0
  %1098 = vmatpush1.xpose.msra.mxu0 0.0
  %1099 = vmatprep.subr.mxu0 0.0
  %1100 = vmatpush1.xpose.msra.mxu0 0.0
  %1101 = vmatprep.subr.mxu0 0.0
  %1102 = vmatpush1.xpose.msra.mxu0 0.0
  %1103 = vmatprep.subr.mxu0 0.0
  %1104 = vmatpush1.xpose.msra.mxu0 0.0
  %1105 = vmatprep.subr.mxu0 0.0
  %1106 = vmatpush1.xpose.msra.mxu0 0.0
  %1107 = vmatprep.subr.mxu0 0.0
  %1108 = vmatpush1.xpose.msra.mxu0 0.0
  %1109 = vmatprep.subr.mxu0 0.0
  %1110 = vmatpush1.xpose.msra.mxu0 0.0
  %1111 = vmatprep.subr.mxu0 0.0
  %1112 = vmatpush1.xpose.msra.mxu0 0.0
  %1113 = vmatprep.subr.mxu0 0.0
  %1114 = vmatpush1.xpose.msra.mxu0 0.0
  %1115 = vmatprep.subr.mxu0 0.0
  %1116 = vmatpush1.xpose.msra.mxu0 0.0
  %1117 = vmatprep.subr.mxu0 0.0
  %1118 = vmatpush1.xpose.msra.mxu0 0.0
  %1119 = vmatprep.subr.mxu0 0.0
  %v1120 = vand.u32 %v25, 4294901760
  %1121 = vmatpush1.xpose.msra.mxu0 %v1120
  %1122 = vmatprep.subr.mxu0 0.0
  %1123 = vmatpush2.xpose.msra.mxu0 0.0
  %1124 = vmatprep.subr.mxu0 0.0
  %1125 = vmatpush2.xpose.msra.mxu0 0.0
  %1126 = vmatprep.subr.mxu0 0.0
  %1127 = vmatpush2.xpose.msra.mxu0 0.0
  %1128 = vmatprep.subr.mxu0 0.0
  %1129 = vmatpush2.xpose.msra.mxu0 0.0
  %1130 = vmatprep.subr.mxu0 0.0
  %1131 = vmatpush2.xpose.msra.mxu0 0.0
  %1132 = vmatprep.subr.mxu0 0.0
  %1133 = vmatpush2.xpose.msra.mxu0 0.0
  %1134 = vmatprep.subr.mxu0 0.0
  %1135 = vmatpush2.xpose.msra.mxu0 0.0
  %1136 = vmatprep.subr.mxu0 0.0
  %1137 = vmatpush2.xpose.msra.mxu0 0.0
  %1138 = vmatprep.subr.mxu0 0.0
  %1139 = vmatpush2.xpose.msra.mxu0 0.0
  %1140 = vmatprep.subr.mxu0 0.0
  %1141 = vmatpush2.xpose.msra.mxu0 0.0
  %1142 = vmatprep.subr.mxu0 0.0
  %1143 = vmatpush2.xpose.msra.mxu0 0.0
  %1144 = vmatprep.subr.mxu0 0.0
  %1145 = vmatpush2.xpose.msra.mxu0 0.0
  %1146 = vmatprep.subr.mxu0 0.0
  %1147 = vmatpush2.xpose.msra.mxu0 0.0
  %1148 = vmatprep.subr.mxu0 0.0
  %1149 = vmatpush2.xpose.msra.mxu0 0.0
  %1150 = vmatprep.subr.mxu0 0.0
  %1151 = vmatpush2.xpose.msra.mxu0 0.0
  %1152 = vmatprep.subr.mxu0 0.0
  %1153 = vmatpush2.xpose.msra.mxu0 0.0
  %1154 = vmatprep.mubr.f32.mxu0 0.0
  %v1155 = vand.u32 %v593, 4294901760
  %1156 = vmatmul.mubr.f32.gmra.mxu0 %v1155
  %v1157 = vpop.f32.mrf.mxu0
  %v1158 = vadd.f32 %v1068, %v1157
  %v1159 = vpop.f32.mrf.mxu0
  %1160 = vmatprep.mubr.f32.mxu0 0.0
  %v1161 = vand.u32 %v596, 4294901760
  %1162 = vmatmul.mubr.f32.gmra.mxu0 %v1161
  %v1163 = vpop.f32.mrf.mxu0
  %v1164 = vadd.f32 %v1074, %v1163
  %v1165 = vpop.f32.mrf.mxu0
  %1166 = vmatprep.mubr.f32.mxu0 0.0
  %v1167 = vand.u32 %v599, 4294901760
  %1168 = vmatmul.mubr.f32.gmra.mxu0 %v1167
  %v1169 = vpop.f32.mrf.mxu0
  %v1170 = vadd.f32 %v1080, %v1169
  %v1171 = vpop.f32.mrf.mxu0
  %1172 = vmatprep.mubr.f32.mxu0 0.0
  %v1173 = vand.u32 %v602, 4294901760
  %1174 = vmatmul.mubr.f32.gmra.mxu0 %v1173
  %v1175 = vpop.f32.mrf.mxu0
  %v1176 = vadd.f32 %v1086, %v1175
  %v1177 = vpop.f32.mrf.mxu0
  %1178 = vdwg.mxu0
  %1180 = vrot.lane.b32.xlu0 %v585, 96
  %v1181 = vpop.permute.xlu0 %1180
  %vm1182 = vcmask 64512
  %v1183 = vsel %vm1182, %v585, 0
  %v1185 = vsel %vm1182, %v1181, 0
  %1187 = vmatprep.subr.mxu0 0.0
  %1188 = vmatpush1.xpose.msra.mxu0 0.0
  %1189 = vmatprep.subr.mxu0 0.0
  %1190 = vmatpush1.xpose.msra.mxu0 0.0
  %1191 = vmatprep.subr.mxu0 0.0
  %1192 = vmatpush1.xpose.msra.mxu0 0.0
  %1193 = vmatprep.subr.mxu0 0.0
  %1194 = vmatpush1.xpose.msra.mxu0 0.0
  %1195 = vmatprep.subr.mxu0 0.0
  %1196 = vmatpush1.xpose.msra.mxu0 0.0
  %1197 = vmatprep.subr.mxu0 0.0
  %1198 = vmatpush1.xpose.msra.mxu0 0.0
  %1199 = vmatprep.subr.mxu0 0.0
  %1200 = vmatpush1.xpose.msra.mxu0 0.0
  %1201 = vmatprep.subr.mxu0 0.0
  %1202 = vmatpush1.xpose.msra.mxu0 0.0
  %1203 = vmatprep.subr.mxu0 0.0
  %1204 = vmatpush1.xpose.msra.mxu0 0.0
  %1205 = vmatprep.subr.mxu0 0.0
  %1206 = vmatpush1.xpose.msra.mxu0 0.0
  %1207 = vmatprep.subr.mxu0 0.0
  %1208 = vmatpush1.xpose.msra.mxu0 0.0
  %1209 = vmatprep.subr.mxu0 0.0
  %1210 = vmatpush1.xpose.msra.mxu0 0.0
  %1211 = vmatprep.subr.mxu0 0.0
  %1212 = vmatpush1.xpose.msra.mxu0 0.0
  %1213 = vmatprep.subr.mxu0 0.0
  %1214 = vmatpush1.xpose.msra.mxu0 0.0
  %1215 = vmatprep.subr.mxu0 0.0
  %1216 = vmatpush1.xpose.msra.mxu0 0.0
  %1217 = vmatprep.subr.mxu0 0.0
  %v1218 = vand.u32 %v1185, 4294901760
  %1219 = vmatpush1.xpose.msra.mxu0 %v1218
  %1220 = vmatprep.subr.mxu0 0.0
  %1221 = vmatpush2.xpose.msra.mxu0 0.0
  %1222 = vmatprep.subr.mxu0 0.0
  %1223 = vmatpush2.xpose.msra.mxu0 0.0
  %1224 = vmatprep.subr.mxu0 0.0
  %1225 = vmatpush2.xpose.msra.mxu0 0.0
  %1226 = vmatprep.subr.mxu0 0.0
  %1227 = vmatpush2.xpose.msra.mxu0 0.0
  %1228 = vmatprep.subr.mxu0 0.0
  %1229 = vmatpush2.xpose.msra.mxu0 0.0
  %1230 = vmatprep.subr.mxu0 0.0
  %1231 = vmatpush2.xpose.msra.mxu0 0.0
  %1232 = vmatprep.subr.mxu0 0.0
  %1233 = vmatpush2.xpose.msra.mxu0 0.0
  %1234 = vmatprep.subr.mxu0 0.0
  %1235 = vmatpush2.xpose.msra.mxu0 0.0
  %1236 = vmatprep.subr.mxu0 0.0
  %1237 = vmatpush2.xpose.msra.mxu0 0.0
  %1238 = vmatprep.subr.mxu0 0.0
  %1239 = vmatpush2.xpose.msra.mxu0 0.0
  %1240 = vmatprep.subr.mxu0 0.0
  %1241 = vmatpush2.xpose.msra.mxu0 0.0
  %1242 = vmatprep.subr.mxu0 0.0
  %1243 = vmatpush2.xpose.msra.mxu0 0.0
  %1244 = vmatprep.subr.mxu0 0.0
  %1245 = vmatpush2.xpose.msra.mxu0 0.0
  %1246 = vmatprep.subr.mxu0 0.0
  %1247 = vmatpush2.xpose.msra.mxu0 0.0
  %1248 = vmatprep.subr.mxu0 0.0
  %1249 = vmatpush2.xpose.msra.mxu0 0.0
  %1250 = vmatprep.subr.mxu0 0.0
  %1251 = vmatpush2.xpose.msra.mxu0 0.0
  %1252 = vmatprep.mubr.f32.mxu0 0.0
  %v1253 = vand.u32 %v1183, 4294901760
  %v1254 = vsub.f32 %v1183, %v1253
  %v1255 = vand.u32 %v1254, 4294901760
  %v1256 = vsub.f32 %v1254, %v1255
  %v1257 = vand.u32 %v1256, 4294901760
  %1258 = vmatmul.mubr.f32.gmra.mxu0 %v1257
  %v1259 = vpop.f32.mrf.mxu0
  %v1260 = vadd.f32 0.0, %v1259
  %v1261 = vpop.f32.mrf.mxu0
  %1262 = vdwg.mxu0
  %1263 = vmatprep.subr.mxu0 0.0
  %1264 = vmatpush1.xpose.msra.mxu0 0.0
  %1265 = vmatprep.subr.mxu0 0.0
  %1266 = vmatpush1.xpose.msra.mxu0 0.0
  %1267 = vmatprep.subr.mxu0 0.0
  %1268 = vmatpush1.xpose.msra.mxu0 0.0
  %1269 = vmatprep.subr.mxu0 0.0
  %1270 = vmatpush1.xpose.msra.mxu0 0.0
  %1271 = vmatprep.subr.mxu0 0.0
  %1272 = vmatpush1.xpose.msra.mxu0 0.0
  %1273 = vmatprep.subr.mxu0 0.0
  %1274 = vmatpush1.xpose.msra.mxu0 0.0
  %1275 = vmatprep.subr.mxu0 0.0
  %1276 = vmatpush1.xpose.msra.mxu0 0.0
  %1277 = vmatprep.subr.mxu0 0.0
  %1278 = vmatpush1.xpose.msra.mxu0 0.0
  %1279 = vmatprep.subr.mxu0 0.0
  %1280 = vmatpush1.xpose.msra.mxu0 0.0
  %1281 = vmatprep.subr.mxu0 0.0
  %1282 = vmatpush1.xpose.msra.mxu0 0.0
  %1283 = vmatprep.subr.mxu0 0.0
  %1284 = vmatpush1.xpose.msra.mxu0 0.0
  %1285 = vmatprep.subr.mxu0 0.0
  %1286 = vmatpush1.xpose.msra.mxu0 0.0
  %1287 = vmatprep.subr.mxu0 0.0
  %1288 = vmatpush1.xpose.msra.mxu0 0.0
  %1289 = vmatprep.subr.mxu0 0.0
  %1290 = vmatpush1.xpose.msra.mxu0 0.0
  %1291 = vmatprep.subr.mxu0 0.0
  %1292 = vmatpush1.xpose.msra.mxu0 0.0
  %1293 = vmatprep.subr.mxu0 0.0
  %v1294 = vand.u32 %v1185, 4294901760
  %v1295 = vsub.f32 %v1185, %v1294
  %v1296 = vand.u32 %v1295, 4294901760
  %v1297 = vsub.f32 %v1295, %v1296
  %v1298 = vand.u32 %v1297, 4294901760
  %1299 = vmatpush1.xpose.msra.mxu0 %v1298
  %1300 = vmatprep.subr.mxu0 0.0
  %1301 = vmatpush2.xpose.msra.mxu0 0.0
  %1302 = vmatprep.subr.mxu0 0.0
  %1303 = vmatpush2.xpose.msra.mxu0 0.0
  %1304 = vmatprep.subr.mxu0 0.0
  %1305 = vmatpush2.xpose.msra.mxu0 0.0
  %1306 = vmatprep.subr.mxu0 0.0
  %1307 = vmatpush2.xpose.msra.mxu0 0.0
  %1308 = vmatprep.subr.mxu0 0.0
  %1309 = vmatpush2.xpose.msra.mxu0 0.0
  %1310 = vmatprep.subr.mxu0 0.0
  %1311 = vmatpush2.xpose.msra.mxu0 0.0
  %1312 = vmatprep.subr.mxu0 0.0
  %1313 = vmatpush2.xpose.msra.mxu0 0.0
  %1314 = vmatprep.subr.mxu0 0.0
  %1315 = vmatpush2.xpose.msra.mxu0 0.0
  %1316 = vmatprep.subr.mxu0 0.0
  %1317 = vmatpush2.xpose.msra.mxu0 0.0
  %1318 = vmatprep.subr.mxu0 0.0
  %1319 = vmatpush2.xpose.msra.mxu0 0.0
  %1320 = vmatprep.subr.mxu0 0.0
  %1321 = vmatpush2.xpose.msra.mxu0 0.0
  %1322 = vmatprep.subr.mxu0 0.0
  %1323 = vmatpush2.xpose.msra.mxu0 0.0
  %1324 = vmatprep.subr.mxu0 0.0
  %1325 = vmatpush2.xpose.msra.mxu0 0.0
  %1326 = vmatprep.subr.mxu0 0.0
  %1327 = vmatpush2.xpose.msra.mxu0 0.0
  %1328 = vmatprep.subr.mxu0 0.0
  %1329 = vmatpush2.xpose.msra.mxu0 0.0
  %1330 = vmatprep.subr.mxu0 0.0
  %1331 = vmatpush2.xpose.msra.mxu0 0.0
  %1332 = vmatprep.mubr.f32.mxu0 0.0
  %v1333 = vand.u32 %v1183, 4294901760
  %1334 = vmatmul.mubr.f32.gmra.mxu0 %v1333
  %v1335 = vpop.f32.mrf.mxu0
  %v1336 = vadd.f32 %v1260, %v1335
  %v1337 = vpop.f32.mrf.mxu0
  %1338 = vdwg.mxu0
  %1339 = vmatprep.subr.mxu0 0.0
  %1340 = vmatpush1.xpose.msra.mxu0 0.0
  %1341 = vmatprep.subr.mxu0 0.0
  %1342 = vmatpush1.xpose.msra.mxu0 0.0
  %1343 = vmatprep.subr.mxu0 0.0
  %1344 = vmatpush1.xpose.msra.mxu0 0.0
  %1345 = vmatprep.subr.mxu0 0.0
  %1346 = vmatpush1.xpose.msra.mxu0 0.0
  %1347 = vmatprep.subr.mxu0 0.0
  %1348 = vmatpush1.xpose.msra.mxu0 0.0
  %1349 = vmatprep.subr.mxu0 0.0
  %1350 = vmatpush1.xpose.msra.mxu0 0.0
  %1351 = vmatprep.subr.mxu0 0.0
  %1352 = vmatpush1.xpose.msra.mxu0 0.0
  %1353 = vmatprep.subr.mxu0 0.0
  %1354 = vmatpush1.xpose.msra.mxu0 0.0
  %1355 = vmatprep.subr.mxu0 0.0
  %1356 = vmatpush1.xpose.msra.mxu0 0.0
  %1357 = vmatprep.subr.mxu0 0.0
  %1358 = vmatpush1.xpose.msra.mxu0 0.0
  %1359 = vmatprep.subr.mxu0 0.0
  %1360 = vmatpush1.xpose.msra.mxu0 0.0
  %1361 = vmatprep.subr.mxu0 0.0
  %1362 = vmatpush1.xpose.msra.mxu0 0.0
  %1363 = vmatprep.subr.mxu0 0.0
  %1364 = vmatpush1.xpose.msra.mxu0 0.0
  %1365 = vmatprep.subr.mxu0 0.0
  %1366 = vmatpush1.xpose.msra.mxu0 0.0
  %1367 = vmatprep.subr.mxu0 0.0
  %1368 = vmatpush1.xpose.msra.mxu0 0.0
  %1369 = vmatprep.subr.mxu0 0.0
  %v1370 = vand.u32 %v1185, 4294901760
  %v1371 = vsub.f32 %v1185, %v1370
  %1372 = vmatpush1.xpose.msra.mxu0 %v1371
  %1373 = vmatprep.subr.mxu0 0.0
  %1374 = vmatpush2.xpose.msra.mxu0 0.0
  %1375 = vmatprep.subr.mxu0 0.0
  %1376 = vmatpush2.xpose.msra.mxu0 0.0
  %1377 = vmatprep.subr.mxu0 0.0
  %1378 = vmatpush2.xpose.msra.mxu0 0.0
  %1379 = vmatprep.subr.mxu0 0.0
  %1380 = vmatpush2.xpose.msra.mxu0 0.0
  %1381 = vmatprep.subr.mxu0 0.0
  %1382 = vmatpush2.xpose.msra.mxu0 0.0
  %1383 = vmatprep.subr.mxu0 0.0
  %1384 = vmatpush2.xpose.msra.mxu0 0.0
  %1385 = vmatprep.subr.mxu0 0.0
  %1386 = vmatpush2.xpose.msra.mxu0 0.0
  %1387 = vmatprep.subr.mxu0 0.0
  %1388 = vmatpush2.xpose.msra.mxu0 0.0
  %1389 = vmatprep.subr.mxu0 0.0
  %1390 = vmatpush2.xpose.msra.mxu0 0.0
  %1391 = vmatprep.subr.mxu0 0.0
  %1392 = vmatpush2.xpose.msra.mxu0 0.0
  %1393 = vmatprep.subr.mxu0 0.0
  %1394 = vmatpush2.xpose.msra.mxu0 0.0
  %1395 = vmatprep.subr.mxu0 0.0
  %1396 = vmatpush2.xpose.msra.mxu0 0.0
  %1397 = vmatprep.subr.mxu0 0.0
  %1398 = vmatpush2.xpose.msra.mxu0 0.0
  %1399 = vmatprep.subr.mxu0 0.0
  %1400 = vmatpush2.xpose.msra.mxu0 0.0
  %1401 = vmatprep.subr.mxu0 0.0
  %1402 = vmatpush2.xpose.msra.mxu0 0.0
  %1403 = vmatprep.subr.mxu0 0.0
  %1404 = vmatpush2.xpose.msra.mxu0 0.0
  %1405 = vmatprep.mubr.f32.mxu0 0.0
  %v1406 = vand.u32 %v1183, 4294901760
  %v1407 = vsub.f32 %v1183, %v1406
  %1408 = vmatmul.mubr.f32.gmra.mxu0 %v1407
  %v1409 = vpop.f32.mrf.mxu0
  %v1410 = vadd.f32 %v1336, %v1409
  %v1411 = vpop.f32.mrf.mxu0
  %1412 = vdwg.mxu0
  %1413 = vmatprep.subr.mxu0 0.0
  %1414 = vmatpush1.xpose.msra.mxu0 0.0
  %1415 = vmatprep.subr.mxu0 0.0
  %1416 = vmatpush1.xpose.msra.mxu0 0.0
  %1417 = vmatprep.subr.mxu0 0.0
  %1418 = vmatpush1.xpose.msra.mxu0 0.0
  %1419 = vmatprep.subr.mxu0 0.0
  %1420 = vmatpush1.xpose.msra.mxu0 0.0
  %1421 = vmatprep.subr.mxu0 0.0
  %1422 = vmatpush1.xpose.msra.mxu0 0.0
  %1423 = vmatprep.subr.mxu0 0.0
  %1424 = vmatpush1.xpose.msra.mxu0 0.0
  %1425 = vmatprep.subr.mxu0 0.0
  %1426 = vmatpush1.xpose.msra.mxu0 0.0
  %1427 = vmatprep.subr.mxu0 0.0
  %1428 = vmatpush1.xpose.msra.mxu0 0.0
  %1429 = vmatprep.subr.mxu0 0.0
  %1430 = vmatpush1.xpose.msra.mxu0 0.0
  %1431 = vmatprep.subr.mxu0 0.0
  %1432 = vmatpush1.xpose.msra.mxu0 0.0
  %1433 = vmatprep.subr.mxu0 0.0
  %1434 = vmatpush1.xpose.msra.mxu0 0.0
  %1435 = vmatprep.subr.mxu0 0.0
  %1436 = vmatpush1.xpose.msra.mxu0 0.0
  %1437 = vmatprep.subr.mxu0 0.0
  %1438 = vmatpush1.xpose.msra.mxu0 0.0
  %1439 = vmatprep.subr.mxu0 0.0
  %1440 = vmatpush1.xpose.msra.mxu0 0.0
  %1441 = vmatprep.subr.mxu0 0.0
  %1442 = vmatpush1.xpose.msra.mxu0 0.0
  %1443 = vmatprep.subr.mxu0 0.0
  %v1444 = vand.u32 %v1185, 4294901760
  %1445 = vmatpush1.xpose.msra.mxu0 %v1444
  %1446 = vmatprep.subr.mxu0 0.0
  %1447 = vmatpush2.xpose.msra.mxu0 0.0
  %1448 = vmatprep.subr.mxu0 0.0
  %1449 = vmatpush2.xpose.msra.mxu0 0.0
  %1450 = vmatprep.subr.mxu0 0.0
  %1451 = vmatpush2.xpose.msra.mxu0 0.0
  %1452 = vmatprep.subr.mxu0 0.0
  %1453 = vmatpush2.xpose.msra.mxu0 0.0
  %1454 = vmatprep.subr.mxu0 0.0
  %1455 = vmatpush2.xpose.msra.mxu0 0.0
  %1456 = vmatprep.subr.mxu0 0.0
  %1457 = vmatpush2.xpose.msra.mxu0 0.0
  %1458 = vmatprep.subr.mxu0 0.0
  %1459 = vmatpush2.xpose.msra.mxu0 0.0
  %1460 = vmatprep.subr.mxu0 0.0
  %1461 = vmatpush2.xpose.msra.mxu0 0.0
  %1462 = vmatprep.subr.mxu0 0.0
  %1463 = vmatpush2.xpose.msra.mxu0 0.0
  %1464 = vmatprep.subr.mxu0 0.0
  %1465 = vmatpush2.xpose.msra.mxu0 0.0
  %1466 = vmatprep.subr.mxu0 0.0
  %1467 = vmatpush2.xpose.msra.mxu0 0.0
  %1468 = vmatprep.subr.mxu0 0.0
  %1469 = vmatpush2.xpose.msra.mxu0 0.0
  %1470 = vmatprep.subr.mxu0 0.0
  %1471 = vmatpush2.xpose.msra.mxu0 0.0
  %1472 = vmatprep.subr.mxu0 0.0
  %1473 = vmatpush2.xpose.msra.mxu0 0.0
  %1474 = vmatprep.subr.mxu0 0.0
  %1475 = vmatpush2.xpose.msra.mxu0 0.0
  %1476 = vmatprep.subr.mxu0 0.0
  %1477 = vmatpush2.xpose.msra.mxu0 0.0
  %1478 = vmatprep.mubr.f32.mxu0 0.0
  %v1479 = vand.u32 %v1183, 4294901760
  %v1480 = vsub.f32 %v1183, %v1479
  %v1481 = vand.u32 %v1480, 4294901760
  %1482 = vmatmul.mubr.f32.gmra.mxu0 %v1481
  %v1483 = vpop.f32.mrf.mxu0
  %v1484 = vadd.f32 %v1410, %v1483
  %v1485 = vpop.f32.mrf.mxu0
  %1486 = vdwg.mxu0
  %1487 = vmatprep.subr.mxu0 0.0
  %1488 = vmatpush1.xpose.msra.mxu0 0.0
  %1489 = vmatprep.subr.mxu0 0.0
  %1490 = vmatpush1.xpose.msra.mxu0 0.0
  %1491 = vmatprep.subr.mxu0 0.0
  %1492 = vmatpush1.xpose.msra.mxu0 0.0
  %1493 = vmatprep.subr.mxu0 0.0
  %1494 = vmatpush1.xpose.msra.mxu0 0.0
  %1495 = vmatprep.subr.mxu0 0.0
  %1496 = vmatpush1.xpose.msra.mxu0 0.0
  %1497 = vmatprep.subr.mxu0 0.0
  %1498 = vmatpush1.xpose.msra.mxu0 0.0
  %1499 = vmatprep.subr.mxu0 0.0
  %1500 = vmatpush1.xpose.msra.mxu0 0.0
  %1501 = vmatprep.subr.mxu0 0.0
  %1502 = vmatpush1.xpose.msra.mxu0 0.0
  %1503 = vmatprep.subr.mxu0 0.0
  %1504 = vmatpush1.xpose.msra.mxu0 0.0
  %1505 = vmatprep.subr.mxu0 0.0
  %1506 = vmatpush1.xpose.msra.mxu0 0.0
  %1507 = vmatprep.subr.mxu0 0.0
  %1508 = vmatpush1.xpose.msra.mxu0 0.0
  %1509 = vmatprep.subr.mxu0 0.0
  %1510 = vmatpush1.xpose.msra.mxu0 0.0
  %1511 = vmatprep.subr.mxu0 0.0
  %1512 = vmatpush1.xpose.msra.mxu0 0.0
  %1513 = vmatprep.subr.mxu0 0.0
  %1514 = vmatpush1.xpose.msra.mxu0 0.0
  %1515 = vmatprep.subr.mxu0 0.0
  %1516 = vmatpush1.xpose.msra.mxu0 0.0
  %1517 = vmatprep.subr.mxu0 0.0
  %v1518 = vand.u32 %v1185, 4294901760
  %v1519 = vsub.f32 %v1185, %v1518
  %v1520 = vand.u32 %v1519, 4294901760
  %1521 = vmatpush1.xpose.msra.mxu0 %v1520
  %1522 = vmatprep.subr.mxu0 0.0
  %1523 = vmatpush2.xpose.msra.mxu0 0.0
  %1524 = vmatprep.subr.mxu0 0.0
  %1525 = vmatpush2.xpose.msra.mxu0 0.0
  %1526 = vmatprep.subr.mxu0 0.0
  %1527 = vmatpush2.xpose.msra.mxu0 0.0
  %1528 = vmatprep.subr.mxu0 0.0
  %1529 = vmatpush2.xpose.msra.mxu0 0.0
  %1530 = vmatprep.subr.mxu0 0.0
  %1531 = vmatpush2.xpose.msra.mxu0 0.0
  %1532 = vmatprep.subr.mxu0 0.0
  %1533 = vmatpush2.xpose.msra.mxu0 0.0
  %1534 = vmatprep.subr.mxu0 0.0
  %1535 = vmatpush2.xpose.msra.mxu0 0.0
  %1536 = vmatprep.subr.mxu0 0.0
  %1537 = vmatpush2.xpose.msra.mxu0 0.0
  %1538 = vmatprep.subr.mxu0 0.0
  %1539 = vmatpush2.xpose.msra.mxu0 0.0
  %1540 = vmatprep.subr.mxu0 0.0
  %1541 = vmatpush2.xpose.msra.mxu0 0.0
  %1542 = vmatprep.subr.mxu0 0.0
  %1543 = vmatpush2.xpose.msra.mxu0 0.0
  %1544 = vmatprep.subr.mxu0 0.0
  %1545 = vmatpush2.xpose.msra.mxu0 0.0
  %1546 = vmatprep.subr.mxu0 0.0
  %1547 = vmatpush2.xpose.msra.mxu0 0.0
  %1548 = vmatprep.subr.mxu0 0.0
  %1549 = vmatpush2.xpose.msra.mxu0 0.0
  %1550 = vmatprep.subr.mxu0 0.0
  %1551 = vmatpush2.xpose.msra.mxu0 0.0
  %1552 = vmatprep.subr.mxu0 0.0
  %1553 = vmatpush2.xpose.msra.mxu0 0.0
  %1554 = vmatprep.mubr.f32.mxu0 0.0
  %v1555 = vand.u32 %v1183, 4294901760
  %1556 = vmatmul.mubr.f32.gmra.mxu0 %v1555
  %v1557 = vpop.f32.mrf.mxu0
  %v1558 = vadd.f32 %v1484, %v1557
  %v1559 = vpop.f32.mrf.mxu0
  %1560 = vdwg.mxu0
  %1561 = vmatprep.subr.mxu0 0.0
  %1562 = vmatpush1.xpose.msra.mxu0 0.0
  %1563 = vmatprep.subr.mxu0 0.0
  %1564 = vmatpush1.xpose.msra.mxu0 0.0
  %1565 = vmatprep.subr.mxu0 0.0
  %1566 = vmatpush1.xpose.msra.mxu0 0.0
  %1567 = vmatprep.subr.mxu0 0.0
  %1568 = vmatpush1.xpose.msra.mxu0 0.0
  %1569 = vmatprep.subr.mxu0 0.0
  %1570 = vmatpush1.xpose.msra.mxu0 0.0
  %1571 = vmatprep.subr.mxu0 0.0
  %1572 = vmatpush1.xpose.msra.mxu0 0.0
  %1573 = vmatprep.subr.mxu0 0.0
  %1574 = vmatpush1.xpose.msra.mxu0 0.0
  %1575 = vmatprep.subr.mxu0 0.0
  %1576 = vmatpush1.xpose.msra.mxu0 0.0
  %1577 = vmatprep.subr.mxu0 0.0
  %1578 = vmatpush1.xpose.msra.mxu0 0.0
  %1579 = vmatprep.subr.mxu0 0.0
  %1580 = vmatpush1.xpose.msra.mxu0 0.0
  %1581 = vmatprep.subr.mxu0 0.0
  %1582 = vmatpush1.xpose.msra.mxu0 0.0
  %1583 = vmatprep.subr.mxu0 0.0
  %1584 = vmatpush1.xpose.msra.mxu0 0.0
  %1585 = vmatprep.subr.mxu0 0.0
  %1586 = vmatpush1.xpose.msra.mxu0 0.0
  %1587 = vmatprep.subr.mxu0 0.0
  %1588 = vmatpush1.xpose.msra.mxu0 0.0
  %1589 = vmatprep.subr.mxu0 0.0
  %1590 = vmatpush1.xpose.msra.mxu0 0.0
  %1591 = vmatprep.subr.mxu0 0.0
  %v1592 = vand.u32 %v1185, 4294901760
  %1593 = vmatpush1.xpose.msra.mxu0 %v1592
  %1594 = vmatprep.subr.mxu0 0.0
  %1595 = vmatpush2.xpose.msra.mxu0 0.0
  %1596 = vmatprep.subr.mxu0 0.0
  %1597 = vmatpush2.xpose.msra.mxu0 0.0
  %1598 = vmatprep.subr.mxu0 0.0
  %1599 = vmatpush2.xpose.msra.mxu0 0.0
  %1600 = vmatprep.subr.mxu0 0.0
  %1601 = vmatpush2.xpose.msra.mxu0 0.0
  %1602 = vmatprep.subr.mxu0 0.0
  %1603 = vmatpush2.xpose.msra.mxu0 0.0
  %1604 = vmatprep.subr.mxu0 0.0
  %1605 = vmatpush2.xpose.msra.mxu0 0.0
  %1606 = vmatprep.subr.mxu0 0.0
  %1607 = vmatpush2.xpose.msra.mxu0 0.0
  %1608 = vmatprep.subr.mxu0 0.0
  %1609 = vmatpush2.xpose.msra.mxu0 0.0
  %1610 = vmatprep.subr.mxu0 0.0
  %1611 = vmatpush2.xpose.msra.mxu0 0.0
  %1612 = vmatprep.subr.mxu0 0.0
  %1613 = vmatpush2.xpose.msra.mxu0 0.0
  %1614 = vmatprep.subr.mxu0 0.0
  %1615 = vmatpush2.xpose.msra.mxu0 0.0
  %1616 = vmatprep.subr.mxu0 0.0
  %1617 = vmatpush2.xpose.msra.mxu0 0.0
  %1618 = vmatprep.subr.mxu0 0.0
  %1619 = vmatpush2.xpose.msra.mxu0 0.0
  %1620 = vmatprep.subr.mxu0 0.0
  %1621 = vmatpush2.xpose.msra.mxu0 0.0
  %1622 = vmatprep.subr.mxu0 0.0
  %1623 = vmatpush2.xpose.msra.mxu0 0.0
  %1624 = vmatprep.subr.mxu0 0.0
  %1625 = vmatpush2.xpose.msra.mxu0 0.0
  %1626 = vmatprep.mubr.f32.mxu0 0.0
  %v1627 = vand.u32 %v1183, 4294901760
  %1628 = vmatmul.mubr.f32.gmra.mxu0 %v1627
  %v1629 = vpop.f32.mrf.mxu0
  %v1630 = vadd.f32 %v1558, %v1629
  %v1631 = vpop.f32.mrf.mxu0
  %1632 = vdwg.mxu0
  %v1633 = vmul.f32 %v1630, 0.35355338
  %v1634 = vsel %vm1182, %v1633, -inf
  %1635 = vmax.xlane.f32.xlu0 %v1634
  %v1636 = vpop.xlane.xlu0 %1635
  %v1637 = vsub.f32 %v1633, %v1636
  %v1638 = vmul.f32 %v1637, 1.442695
  %v1639 = vpow.pop %v1638
  %v1640 = vsel %vm1182, %v1639, 0.0
  %1641 = vadd.xlane.f32.xlu0 %v1640
  %v1642 = vpop.xlane.xlu0 %1641
  %v1643 = vrcp.pop %v1642
  %v1644 = vmul.f32 %v1639, %v1643
  %v1646 = vsel %vm1182, %v1158, 0
  %v1649 = vsel %vm1182, %v1644, 0
  %1651 = vmatprep.subr.mxu0 0.0
  %1652 = vmatpush1.xpose.msra.mxu0 0.0
  %1653 = vmatprep.subr.mxu0 0.0
  %1654 = vmatpush1.xpose.msra.mxu0 0.0
  %1655 = vmatprep.subr.mxu0 0.0
  %1656 = vmatpush1.xpose.msra.mxu0 0.0
  %1657 = vmatprep.subr.mxu0 0.0
  %1658 = vmatpush1.xpose.msra.mxu0 0.0
  %1659 = vmatprep.subr.mxu0 0.0
  %1660 = vmatpush1.xpose.msra.mxu0 0.0
  %1661 = vmatprep.subr.mxu0 0.0
  %1662 = vmatpush1.xpose.msra.mxu0 0.0
  %1663 = vmatprep.subr.mxu0 0.0
  %1664 = vmatpush1.xpose.msra.mxu0 0.0
  %1665 = vmatprep.subr.mxu0 0.0
  %1666 = vmatpush1.xpose.msra.mxu0 0.0
  %1667 = vmatprep.subr.mxu0 0.0
  %1668 = vmatpush1.xpose.msra.mxu0 0.0
  %1669 = vmatprep.subr.mxu0 0.0
  %1670 = vmatpush1.xpose.msra.mxu0 0.0
  %1671 = vmatprep.subr.mxu0 0.0
  %1672 = vmatpush1.xpose.msra.mxu0 0.0
  %1673 = vmatprep.subr.mxu0 0.0
  %1674 = vmatpush1.xpose.msra.mxu0 0.0
  %1675 = vmatprep.subr.mxu0 0.0
  %1676 = vmatpush1.xpose.msra.mxu0 0.0
  %1677 = vmatprep.subr.mxu0 0.0
  %1678 = vmatpush1.xpose.msra.mxu0 0.0
  %1679 = vmatprep.subr.mxu0 0.0
  %1680 = vmatpush1.xpose.msra.mxu0 0.0
  %1681 = vmatprep.subr.mxu0 0.0
  %v1682 = vand.u32 %v1649, 4294901760
  %1683 = vmatpush1.xpose.msra.mxu0 %v1682
  %1684 = vmatprep.subr.mxu0 0.0
  %1685 = vmatpush2.xpose.msra.mxu0 0.0
  %1686 = vmatprep.subr.mxu0 0.0
  %1687 = vmatpush2.xpose.msra.mxu0 0.0
  %1688 = vmatprep.subr.mxu0 0.0
  %1689 = vmatpush2.xpose.msra.mxu0 0.0
  %1690 = vmatprep.subr.mxu0 0.0
  %1691 = vmatpush2.xpose.msra.mxu0 0.0
  %1692 = vmatprep.subr.mxu0 0.0
  %1693 = vmatpush2.xpose.msra.mxu0 0.0
  %1694 = vmatprep.subr.mxu0 0.0
  %1695 = vmatpush2.xpose.msra.mxu0 0.0
  %1696 = vmatprep.subr.mxu0 0.0
  %1697 = vmatpush2.xpose.msra.mxu0 0.0
  %1698 = vmatprep.subr.mxu0 0.0
  %1699 = vmatpush2.xpose.msra.mxu0 0.0
  %1700 = vmatprep.subr.mxu0 0.0
  %1701 = vmatpush2.xpose.msra.mxu0 0.0
  %1702 = vmatprep.subr.mxu0 0.0
  %1703 = vmatpush2.xpose.msra.mxu0 0.0
  %1704 = vmatprep.subr.mxu0 0.0
  %1705 = vmatpush2.xpose.msra.mxu0 0.0
  %1706 = vmatprep.subr.mxu0 0.0
  %1707 = vmatpush2.xpose.msra.mxu0 0.0
  %1708 = vmatprep.subr.mxu0 0.0
  %1709 = vmatpush2.xpose.msra.mxu0 0.0
  %1710 = vmatprep.subr.mxu0 0.0
  %1711 = vmatpush2.xpose.msra.mxu0 0.0
  %1712 = vmatprep.subr.mxu0 0.0
  %1713 = vmatpush2.xpose.msra.mxu0 0.0
  %1714 = vmatprep.subr.mxu0 0.0
  %1715 = vmatpush2.xpose.msra.mxu0 0.0
  %1716 = vmatprep.mubr.f32.mxu0 0.0
  %v1717 = vand.u32 %v1646, 4294901760
  %v1718 = vsub.f32 %v1646, %v1717
  %v1719 = vand.u32 %v1718, 4294901760
  %v1720 = vsub.f32 %v1718, %v1719
  %v1721 = vand.u32 %v1720, 4294901760
  %1722 = vmatmul.mubr.f32.gmra.mxu0 %v1721
  %v1723 = vpop.f32.mrf.mxu0
  %v1724 = vadd.f32 0.0, %v1723
  %v1725 = vpop.f32.mrf.mxu0
  %1726 = vdwg.mxu0
  %1727 = vmatprep.subr.mxu0 0.0
  %1728 = vmatpush1.xpose.msra.mxu0 0.0
  %1729 = vmatprep.subr.mxu0 0.0
  %1730 = vmatpush1.xpose.msra.mxu0 0.0
  %1731 = vmatprep.subr.mxu0 0.0
  %1732 = vmatpush1.xpose.msra.mxu0 0.0
  %1733 = vmatprep.subr.mxu0 0.0
  %1734 = vmatpush1.xpose.msra.mxu0 0.0
  %1735 = vmatprep.subr.mxu0 0.0
  %1736 = vmatpush1.xpose.msra.mxu0 0.0
  %1737 = vmatprep.subr.mxu0 0.0
  %1738 = vmatpush1.xpose.msra.mxu0 0.0
  %1739 = vmatprep.subr.mxu0 0.0
  %1740 = vmatpush1.xpose.msra.mxu0 0.0
  %1741 = vmatprep.subr.mxu0 0.0
  %1742 = vmatpush1.xpose.msra.mxu0 0.0
  %1743 = vmatprep.subr.mxu0 0.0
  %1744 = vmatpush1.xpose.msra.mxu0 0.0
  %1745 = vmatprep.subr.mxu0 0.0
  %1746 = vmatpush1.xpose.msra.mxu0 0.0
  %1747 = vmatprep.subr.mxu0 0.0
  %1748 = vmatpush1.xpose.msra.mxu0 0.0
  %1749 = vmatprep.subr.mxu0 0.0
  %1750 = vmatpush1.xpose.msra.mxu0 0.0
  %1751 = vmatprep.subr.mxu0 0.0
  %1752 = vmatpush1.xpose.msra.mxu0 0.0
  %1753 = vmatprep.subr.mxu0 0.0
  %1754 = vmatpush1.xpose.msra.mxu0 0.0
  %1755 = vmatprep.subr.mxu0 0.0
  %1756 = vmatpush1.xpose.msra.mxu0 0.0
  %1757 = vmatprep.subr.mxu0 0.0
  %v1758 = vand.u32 %v1649, 4294901760
  %v1759 = vsub.f32 %v1649, %v1758
  %v1760 = vand.u32 %v1759, 4294901760
  %v1761 = vsub.f32 %v1759, %v1760
  %v1762 = vand.u32 %v1761, 4294901760
  %1763 = vmatpush1.xpose.msra.mxu0 %v1762
  %1764 = vmatprep.subr.mxu0 0.0
  %1765 = vmatpush2.xpose.msra.mxu0 0.0
  %1766 = vmatprep.subr.mxu0 0.0
  %1767 = vmatpush2.xpose.msra.mxu0 0.0
  %1768 = vmatprep.subr.mxu0 0.0
  %1769 = vmatpush2.xpose.msra.mxu0 0.0
  %1770 = vmatprep.subr.mxu0 0.0
  %1771 = vmatpush2.xpose.msra.mxu0 0.0
  %1772 = vmatprep.subr.mxu0 0.0
  %1773 = vmatpush2.xpose.msra.mxu0 0.0
  %1774 = vmatprep.subr.mxu0 0.0
  %1775 = vmatpush2.xpose.msra.mxu0 0.0
  %1776 = vmatprep.subr.mxu0 0.0
  %1777 = vmatpush2.xpose.msra.mxu0 0.0
  %1778 = vmatprep.subr.mxu0 0.0
  %1779 = vmatpush2.xpose.msra.mxu0 0.0
  %1780 = vmatprep.subr.mxu0 0.0
  %1781 = vmatpush2.xpose.msra.mxu0 0.0
  %1782 = vmatprep.subr.mxu0 0.0
  %1783 = vmatpush2.xpose.msra.mxu0 0.0
  %1784 = vmatprep.subr.mxu0 0.0
  %1785 = vmatpush2.xpose.msra.mxu0 0.0
  %1786 = vmatprep.subr.mxu0 0.0
  %1787 = vmatpush2.xpose.msra.mxu0 0.0
  %1788 = vmatprep.subr.mxu0 0.0
  %1789 = vmatpush2.xpose.msra.mxu0 0.0
  %1790 = vmatprep.subr.mxu0 0.0
  %1791 = vmatpush2.xpose.msra.mxu0 0.0
  %1792 = vmatprep.subr.mxu0 0.0
  %1793 = vmatpush2.xpose.msra.mxu0 0.0
  %1794 = vmatprep.subr.mxu0 0.0
  %1795 = vmatpush2.xpose.msra.mxu0 0.0
  %1796 = vmatprep.mubr.f32.mxu0 0.0
  %v1797 = vand.u32 %v1646, 4294901760
  %1798 = vmatmul.mubr.f32.gmra.mxu0 %v1797
  %v1799 = vpop.f32.mrf.mxu0
  %v1800 = vadd.f32 %v1724, %v1799
  %v1801 = vpop.f32.mrf.mxu0
  %1802 = vdwg.mxu0
  %1803 = vmatprep.subr.mxu0 0.0
  %1804 = vmatpush1.xpose.msra.mxu0 0.0
  %1805 = vmatprep.subr.mxu0 0.0
  %1806 = vmatpush1.xpose.msra.mxu0 0.0
  %1807 = vmatprep.subr.mxu0 0.0
  %1808 = vmatpush1.xpose.msra.mxu0 0.0
  %1809 = vmatprep.subr.mxu0 0.0
  %1810 = vmatpush1.xpose.msra.mxu0 0.0
  %1811 = vmatprep.subr.mxu0 0.0
  %1812 = vmatpush1.xpose.msra.mxu0 0.0
  %1813 = vmatprep.subr.mxu0 0.0
  %1814 = vmatpush1.xpose.msra.mxu0 0.0
  %1815 = vmatprep.subr.mxu0 0.0
  %1816 = vmatpush1.xpose.msra.mxu0 0.0
  %1817 = vmatprep.subr.mxu0 0.0
  %1818 = vmatpush1.xpose.msra.mxu0 0.0
  %1819 = vmatprep.subr.mxu0 0.0
  %1820 = vmatpush1.xpose.msra.mxu0 0.0
  %1821 = vmatprep.subr.mxu0 0.0
  %1822 = vmatpush1.xpose.msra.mxu0 0.0
  %1823 = vmatprep.subr.mxu0 0.0
  %1824 = vmatpush1.xpose.msra.mxu0 0.0
  %1825 = vmatprep.subr.mxu0 0.0
  %1826 = vmatpush1.xpose.msra.mxu0 0.0
  %1827 = vmatprep.subr.mxu0 0.0
  %1828 = vmatpush1.xpose.msra.mxu0 0.0
  %1829 = vmatprep.subr.mxu0 0.0
  %1830 = vmatpush1.xpose.msra.mxu0 0.0
  %1831 = vmatprep.subr.mxu0 0.0
  %1832 = vmatpush1.xpose.msra.mxu0 0.0
  %1833 = vmatprep.subr.mxu0 0.0
  %v1834 = vand.u32 %v1649, 4294901760
  %v1835 = vsub.f32 %v1649, %v1834
  %1836 = vmatpush1.xpose.msra.mxu0 %v1835
  %1837 = vmatprep.subr.mxu0 0.0
  %1838 = vmatpush2.xpose.msra.mxu0 0.0
  %1839 = vmatprep.subr.mxu0 0.0
  %1840 = vmatpush2.xpose.msra.mxu0 0.0
  %1841 = vmatprep.subr.mxu0 0.0
  %1842 = vmatpush2.xpose.msra.mxu0 0.0
  %1843 = vmatprep.subr.mxu0 0.0
  %1844 = vmatpush2.xpose.msra.mxu0 0.0
  %1845 = vmatprep.subr.mxu0 0.0
  %1846 = vmatpush2.xpose.msra.mxu0 0.0
  %1847 = vmatprep.subr.mxu0 0.0
  %1848 = vmatpush2.xpose.msra.mxu0 0.0
  %1849 = vmatprep.subr.mxu0 0.0
  %1850 = vmatpush2.xpose.msra.mxu0 0.0
  %1851 = vmatprep.subr.mxu0 0.0
  %1852 = vmatpush2.xpose.msra.mxu0 0.0
  %1853 = vmatprep.subr.mxu0 0.0
  %1854 = vmatpush2.xpose.msra.mxu0 0.0
  %1855 = vmatprep.subr.mxu0 0.0
  %1856 = vmatpush2.xpose.msra.mxu0 0.0
  %1857 = vmatprep.subr.mxu0 0.0
  %1858 = vmatpush2.xpose.msra.mxu0 0.0
  %1859 = vmatprep.subr.mxu0 0.0
  %1860 = vmatpush2.xpose.msra.mxu0 0.0
  %1861 = vmatprep.subr.mxu0 0.0
  %1862 = vmatpush2.xpose.msra.mxu0 0.0
  %1863 = vmatprep.subr.mxu0 0.0
  %1864 = vmatpush2.xpose.msra.mxu0 0.0
  %1865 = vmatprep.subr.mxu0 0.0
  %1866 = vmatpush2.xpose.msra.mxu0 0.0
  %1867 = vmatprep.subr.mxu0 0.0
  %1868 = vmatpush2.xpose.msra.mxu0 0.0
  %1869 = vmatprep.mubr.f32.mxu0 0.0
  %v1870 = vand.u32 %v1646, 4294901760
  %v1871 = vsub.f32 %v1646, %v1870
  %1872 = vmatmul.mubr.f32.gmra.mxu0 %v1871
  %v1873 = vpop.f32.mrf.mxu0
  %v1874 = vadd.f32 %v1800, %v1873
  %v1875 = vpop.f32.mrf.mxu0
  %1876 = vdwg.mxu0
  %1877 = vmatprep.subr.mxu0 0.0
  %1878 = vmatpush1.xpose.msra.mxu0 0.0
  %1879 = vmatprep.subr.mxu0 0.0
  %1880 = vmatpush1.xpose.msra.mxu0 0.0
  %1881 = vmatprep.subr.mxu0 0.0
  %1882 = vmatpush1.xpose.msra.mxu0 0.0
  %1883 = vmatprep.subr.mxu0 0.0
  %1884 = vmatpush1.xpose.msra.mxu0 0.0
  %1885 = vmatprep.subr.mxu0 0.0
  %1886 = vmatpush1.xpose.msra.mxu0 0.0
  %1887 = vmatprep.subr.mxu0 0.0
  %1888 = vmatpush1.xpose.msra.mxu0 0.0
  %1889 = vmatprep.subr.mxu0 0.0
  %1890 = vmatpush1.xpose.msra.mxu0 0.0
  %1891 = vmatprep.subr.mxu0 0.0
  %1892 = vmatpush1.xpose.msra.mxu0 0.0
  %1893 = vmatprep.subr.mxu0 0.0
  %1894 = vmatpush1.xpose.msra.mxu0 0.0
  %1895 = vmatprep.subr.mxu0 0.0
  %1896 = vmatpush1.xpose.msra.mxu0 0.0
  %1897 = vmatprep.subr.mxu0 0.0
  %1898 = vmatpush1.xpose.msra.mxu0 0.0
  %1899 = vmatprep.subr.mxu0 0.0
  %1900 = vmatpush1.xpose.msra.mxu0 0.0
  %1901 = vmatprep.subr.mxu0 0.0
  %1902 = vmatpush1.xpose.msra.mxu0 0.0
  %1903 = vmatprep.subr.mxu0 0.0
  %1904 = vmatpush1.xpose.msra.mxu0 0.0
  %1905 = vmatprep.subr.mxu0 0.0
  %1906 = vmatpush1.xpose.msra.mxu0 0.0
  %1907 = vmatprep.subr.mxu0 0.0
  %v1908 = vand.u32 %v1649, 4294901760
  %1909 = vmatpush1.xpose.msra.mxu0 %v1908
  %1910 = vmatprep.subr.mxu0 0.0
  %1911 = vmatpush2.xpose.msra.mxu0 0.0
  %1912 = vmatprep.subr.mxu0 0.0
  %1913 = vmatpush2.xpose.msra.mxu0 0.0
  %1914 = vmatprep.subr.mxu0 0.0
  %1915 = vmatpush2.xpose.msra.mxu0 0.0
  %1916 = vmatprep.subr.mxu0 0.0
  %1917 = vmatpush2.xpose.msra.mxu0 0.0
  %1918 = vmatprep.subr.mxu0 0.0
  %1919 = vmatpush2.xpose.msra.mxu0 0.0
  %1920 = vmatprep.subr.mxu0 0.0
  %1921 = vmatpush2.xpose.msra.mxu0 0.0
  %1922 = vmatprep.subr.mxu0 0.0
  %1923 = vmatpush2.xpose.msra.mxu0 0.0
  %1924 = vmatprep.subr.mxu0 0.0
  %1925 = vmatpush2.xpose.msra.mxu0 0.0
  %1926 = vmatprep.subr.mxu0 0.0
  %1927 = vmatpush2.xpose.msra.mxu0 0.0
  %1928 = vmatprep.subr.mxu0 0.0
  %1929 = vmatpush2.xpose.msra.mxu0 0.0
  %1930 = vmatprep.subr.mxu0 0.0
  %1931 = vmatpush2.xpose.msra.mxu0 0.0
  %1932 = vmatprep.subr.mxu0 0.0
  %1933 = vmatpush2.xpose.msra.mxu0 0.0
  %1934 = vmatprep.subr.mxu0 0.0
  %1935 = vmatpush2.xpose.msra.mxu0 0.0
  %1936 = vmatprep.subr.mxu0 0.0
  %1937 = vmatpush2.xpose.msra.mxu0 0.0
  %1938 = vmatprep.subr.mxu0 0.0
  %1939 = vmatpush2.xpose.msra.mxu0 0.0
  %1940 = vmatprep.subr.mxu0 0.0
  %1941 = vmatpush2.xpose.msra.mxu0 0.0
  %1942 = vmatprep.mubr.f32.mxu0 0.0
  %v1943 = vand.u32 %v1646, 4294901760
  %v1944 = vsub.f32 %v1646, %v1943
  %v1945 = vand.u32 %v1944, 4294901760
  %1946 = vmatmul.mubr.f32.gmra.mxu0 %v1945
  %v1947 = vpop.f32.mrf.mxu0
  %v1948 = vadd.f32 %v1874, %v1947
  %v1949 = vpop.f32.mrf.mxu0
  %1950 = vdwg.mxu0
  %1951 = vmatprep.subr.mxu0 0.0
  %1952 = vmatpush1.xpose.msra.mxu0 0.0
  %1953 = vmatprep.subr.mxu0 0.0
  %1954 = vmatpush1.xpose.msra.mxu0 0.0
  %1955 = vmatprep.subr.mxu0 0.0
  %1956 = vmatpush1.xpose.msra.mxu0 0.0
  %1957 = vmatprep.subr.mxu0 0.0
  %1958 = vmatpush1.xpose.msra.mxu0 0.0
  %1959 = vmatprep.subr.mxu0 0.0
  %1960 = vmatpush1.xpose.msra.mxu0 0.0
  %1961 = vmatprep.subr.mxu0 0.0
  %1962 = vmatpush1.xpose.msra.mxu0 0.0
  %1963 = vmatprep.subr.mxu0 0.0
  %1964 = vmatpush1.xpose.msra.mxu0 0.0
  %1965 = vmatprep.subr.mxu0 0.0
  %1966 = vmatpush1.xpose.msra.mxu0 0.0
  %1967 = vmatprep.subr.mxu0 0.0
  %1968 = vmatpush1.xpose.msra.mxu0 0.0
  %1969 = vmatprep.subr.mxu0 0.0
  %1970 = vmatpush1.xpose.msra.mxu0 0.0
  %1971 = vmatprep.subr.mxu0 0.0
  %1972 = vmatpush1.xpose.msra.mxu0 0.0
  %1973 = vmatprep.subr.mxu0 0.0
  %1974 = vmatpush1.xpose.msra.mxu0 0.0
  %1975 = vmatprep.subr.mxu0 0.0
  %1976 = vmatpush1.xpose.msra.mxu0 0.0
  %1977 = vmatprep.subr.mxu0 0.0
  %1978 = vmatpush1.xpose.msra.mxu0 0.0
  %1979 = vmatprep.subr.mxu0 0.0
  %1980 = vmatpush1.xpose.msra.mxu0 0.0
  %1981 = vmatprep.subr.mxu0 0.0
  %v1982 = vand.u32 %v1649, 4294901760
  %v1983 = vsub.f32 %v1649, %v1982
  %v1984 = vand.u32 %v1983, 4294901760
  %1985 = vmatpush1.xpose.msra.mxu0 %v1984
  %1986 = vmatprep.subr.mxu0 0.0
  %1987 = vmatpush2.xpose.msra.mxu0 0.0
  %1988 = vmatprep.subr.mxu0 0.0
  %1989 = vmatpush2.xpose.msra.mxu0 0.0
  %1990 = vmatprep.subr.mxu0 0.0
  %1991 = vmatpush2.xpose.msra.mxu0 0.0
  %1992 = vmatprep.subr.mxu0 0.0
  %1993 = vmatpush2.xpose.msra.mxu0 0.0
  %1994 = vmatprep.subr.mxu0 0.0
  %1995 = vmatpush2.xpose.msra.mxu0 0.0
  %1996 = vmatprep.subr.mxu0 0.0
  %1997 = vmatpush2.xpose.msra.mxu0 0.0
  %1998 = vmatprep.subr.mxu0 0.0
  %1999 = vmatpush2.xpose.msra.mxu0 0.0
  %2000 = vmatprep.subr.mxu0 0.0
  %2001 = vmatpush2.xpose.msra.mxu0 0.0
  %2002 = vmatprep.subr.mxu0 0.0
  %2003 = vmatpush2.xpose.msra.mxu0 0.0
  %2004 = vmatprep.subr.mxu0 0.0
  %2005 = vmatpush2.xpose.msra.mxu0 0.0
  %2006 = vmatprep.subr.mxu0 0.0
  %2007 = vmatpush2.xpose.msra.mxu0 0.0
  %2008 = vmatprep.subr.mxu0 0.0
  %2009 = vmatpush2.xpose.msra.mxu0 0.0
  %2010 = vmatprep.subr.mxu0 0.0
  %2011 = vmatpush2.xpose.msra.mxu0 0.0
  %2012 = vmatprep.subr.mxu0 0.0
  %2013 = vmatpush2.xpose.msra.mxu0 0.0
  %2014 = vmatprep.subr.mxu0 0.0
  %2015 = vmatpush2.xpose.msra.mxu0 0.0
  %2016 = vmatprep.subr.mxu0 0.0
  %2017 = vmatpush2.xpose.msra.mxu0 0.0
  %2018 = vmatprep.mubr.f32.mxu0 0.0
  %v2019 = vand.u32 %v1646, 4294901760
  %2020 = vmatmul.mubr.f32.gmra.mxu0 %v2019
  %v2021 = vpop.f32.mrf.mxu0
  %v2022 = vadd.f32 %v1948, %v2021
  %v2023 = vpop.f32.mrf.mxu0
  %2024 = vdwg.mxu0
  %2025 = vmatprep.subr.mxu0 0.0
  %2026 = vmatpush1.xpose.msra.mxu0 0.0
  %2027 = vmatprep.subr.mxu0 0.0
  %2028 = vmatpush1.xpose.msra.mxu0 0.0
  %2029 = vmatprep.subr.mxu0 0.0
  %2030 = vmatpush1.xpose.msra.mxu0 0.0
  %2031 = vmatprep.subr.mxu0 0.0
  %2032 = vmatpush1.xpose.msra.mxu0 0.0
  %2033 = vmatprep.subr.mxu0 0.0
  %2034 = vmatpush1.xpose.msra.mxu0 0.0
  %2035 = vmatprep.subr.mxu0 0.0
  %2036 = vmatpush1.xpose.msra.mxu0 0.0
  %2037 = vmatprep.subr.mxu0 0.0
  %2038 = vmatpush1.xpose.msra.mxu0 0.0
  %2039 = vmatprep.subr.mxu0 0.0
  %2040 = vmatpush1.xpose.msra.mxu0 0.0
  %2041 = vmatprep.subr.mxu0 0.0
  %2042 = vmatpush1.xpose.msra.mxu0 0.0
  %2043 = vmatprep.subr.mxu0 0.0
  %2044 = vmatpush1.xpose.msra.mxu0 0.0
  %2045 = vmatprep.subr.mxu0 0.0
  %2046 = vmatpush1.xpose.msra.mxu0 0.0
  %2047 = vmatprep.subr.mxu0 0.0
  %2048 = vmatpush1.xpose.msra.mxu0 0.0
  %2049 = vmatprep.subr.mxu0 0.0
  %2050 = vmatpush1.xpose.msra.mxu0 0.0
  %2051 = vmatprep.subr.mxu0 0.0
  %2052 = vmatpush1.xpose.msra.mxu0 0.0
  %2053 = vmatprep.subr.mxu0 0.0
  %2054 = vmatpush1.xpose.msra.mxu0 0.0
  %2055 = vmatprep.subr.mxu0 0.0
  %v2056 = vand.u32 %v1649, 4294901760
  %2057 = vmatpush1.xpose.msra.mxu0 %v2056
  %2058 = vmatprep.subr.mxu0 0.0
  %2059 = vmatpush2.xpose.msra.mxu0 0.0
  %2060 = vmatprep.subr.mxu0 0.0
  %2061 = vmatpush2.xpose.msra.mxu0 0.0
  %2062 = vmatprep.subr.mxu0 0.0
  %2063 = vmatpush2.xpose.msra.mxu0 0.0
  %2064 = vmatprep.subr.mxu0 0.0
  %2065 = vmatpush2.xpose.msra.mxu0 0.0
  %2066 = vmatprep.subr.mxu0 0.0
  %2067 = vmatpush2.xpose.msra.mxu0 0.0
  %2068 = vmatprep.subr.mxu0 0.0
  %2069 = vmatpush2.xpose.msra.mxu0 0.0
  %2070 = vmatprep.subr.mxu0 0.0
  %2071 = vmatpush2.xpose.msra.mxu0 0.0
  %2072 = vmatprep.subr.mxu0 0.0
  %2073 = vmatpush2.xpose.msra.mxu0 0.0
  %2074 = vmatprep.subr.mxu0 0.0
  %2075 = vmatpush2.xpose.msra.mxu0 0.0
  %2076 = vmatprep.subr.mxu0 0.0
  %2077 = vmatpush2.xpose.msra.mxu0 0.0
  %2078 = vmatprep.subr.mxu0 0.0
  %2079 = vmatpush2.xpose.msra.mxu0 0.0
  %2080 = vmatprep.subr.mxu0 0.0
  %2081 = vmatpush2.xpose.msra.mxu0 0.0
  %2082 = vmatprep.subr.mxu0 0.0
  %2083 = vmatpush2.xpose.msra.mxu0 0.0
  %2084 = vmatprep.subr.mxu0 0.0
  %2085 = vmatpush2.xpose.msra.mxu0 0.0
  %2086 = vmatprep.subr.mxu0 0.0
  %2087 = vmatpush2.xpose.msra.mxu0 0.0
  %2088 = vmatprep.subr.mxu0 0.0
  %2089 = vmatpush2.xpose.msra.mxu0 0.0
  %2090 = vmatprep.mubr.f32.mxu0 0.0
  %v2091 = vand.u32 %v1646, 4294901760
  %2092 = vmatmul.mubr.f32.gmra.mxu0 %v2091
  %v2093 = vpop.f32.mrf.mxu0
  %v2094 = vadd.f32 %v2022, %v2093
  %v2095 = vpop.f32.mrf.mxu0
  %2096 = vdwg.mxu0
  %2097 = vrot.lane.b32.xlu0 %v585, 120
  %v2098 = vpop.permute.xlu0 %2097
  %2099 = vrot.lane.b32.xlu0 %v585, 88
  %v2100 = vpop.permute.xlu0 %2099
  %v2101 = vsel %vm1182, %v2098, 0
  %v2103 = vsel %vm1182, %v2100, 0
  %2105 = vmatprep.subr.mxu0 0.0
  %2106 = vmatpush1.xpose.msra.mxu0 0.0
  %2107 = vmatprep.subr.mxu0 0.0
  %2108 = vmatpush1.xpose.msra.mxu0 0.0
  %2109 = vmatprep.subr.mxu0 0.0
  %2110 = vmatpush1.xpose.msra.mxu0 0.0
  %2111 = vmatprep.subr.mxu0 0.0
  %2112 = vmatpush1.xpose.msra.mxu0 0.0
  %2113 = vmatprep.subr.mxu0 0.0
  %2114 = vmatpush1.xpose.msra.mxu0 0.0
  %2115 = vmatprep.subr.mxu0 0.0
  %2116 = vmatpush1.xpose.msra.mxu0 0.0
  %2117 = vmatprep.subr.mxu0 0.0
  %2118 = vmatpush1.xpose.msra.mxu0 0.0
  %2119 = vmatprep.subr.mxu0 0.0
  %2120 = vmatpush1.xpose.msra.mxu0 0.0
  %2121 = vmatprep.subr.mxu0 0.0
  %2122 = vmatpush1.xpose.msra.mxu0 0.0
  %2123 = vmatprep.subr.mxu0 0.0
  %2124 = vmatpush1.xpose.msra.mxu0 0.0
  %2125 = vmatprep.subr.mxu0 0.0
  %2126 = vmatpush1.xpose.msra.mxu0 0.0
  %2127 = vmatprep.subr.mxu0 0.0
  %2128 = vmatpush1.xpose.msra.mxu0 0.0
  %2129 = vmatprep.subr.mxu0 0.0
  %2130 = vmatpush1.xpose.msra.mxu0 0.0
  %2131 = vmatprep.subr.mxu0 0.0
  %2132 = vmatpush1.xpose.msra.mxu0 0.0
  %2133 = vmatprep.subr.mxu0 0.0
  %2134 = vmatpush1.xpose.msra.mxu0 0.0
  %2135 = vmatprep.subr.mxu0 0.0
  %v2136 = vand.u32 %v2103, 4294901760
  %2137 = vmatpush1.xpose.msra.mxu0 %v2136
  %2138 = vmatprep.subr.mxu0 0.0
  %2139 = vmatpush2.xpose.msra.mxu0 0.0
  %2140 = vmatprep.subr.mxu0 0.0
  %2141 = vmatpush2.xpose.msra.mxu0 0.0
  %2142 = vmatprep.subr.mxu0 0.0
  %2143 = vmatpush2.xpose.msra.mxu0 0.0
  %2144 = vmatprep.subr.mxu0 0.0
  %2145 = vmatpush2.xpose.msra.mxu0 0.0
  %2146 = vmatprep.subr.mxu0 0.0
  %2147 = vmatpush2.xpose.msra.mxu0 0.0
  %2148 = vmatprep.subr.mxu0 0.0
  %2149 = vmatpush2.xpose.msra.mxu0 0.0
  %2150 = vmatprep.subr.mxu0 0.0
  %2151 = vmatpush2.xpose.msra.mxu0 0.0
  %2152 = vmatprep.subr.mxu0 0.0
  %2153 = vmatpush2.xpose.msra.mxu0 0.0
  %2154 = vmatprep.subr.mxu0 0.0
  %2155 = vmatpush2.xpose.msra.mxu0 0.0
  %2156 = vmatprep.subr.mxu0 0.0
  %2157 = vmatpush2.xpose.msra.mxu0 0.0
  %2158 = vmatprep.subr.mxu0 0.0
  %2159 = vmatpush2.xpose.msra.mxu0 0.0
  %2160 = vmatprep.subr.mxu0 0.0
  %2161 = vmatpush2.xpose.msra.mxu0 0.0
  %2162 = vmatprep.subr.mxu0 0.0
  %2163 = vmatpush2.xpose.msra.mxu0 0.0
  %2164 = vmatprep.subr.mxu0 0.0
  %2165 = vmatpush2.xpose.msra.mxu0 0.0
  %2166 = vmatprep.subr.mxu0 0.0
  %2167 = vmatpush2.xpose.msra.mxu0 0.0
  %2168 = vmatprep.subr.mxu0 0.0
  %2169 = vmatpush2.xpose.msra.mxu0 0.0
  %2170 = vmatprep.mubr.f32.mxu0 0.0
  %v2171 = vand.u32 %v2101, 4294901760
  %v2172 = vsub.f32 %v2101, %v2171
  %v2173 = vand.u32 %v2172, 4294901760
  %v2174 = vsub.f32 %v2172, %v2173
  %v2175 = vand.u32 %v2174, 4294901760
  %2176 = vmatmul.mubr.f32.gmra.mxu0 %v2175
  %v2177 = vpop.f32.mrf.mxu0
  %v2178 = vadd.f32 0.0, %v2177
  %v2179 = vpop.f32.mrf.mxu0
  %2180 = vdwg.mxu0
  %2181 = vmatprep.subr.mxu0 0.0
  %2182 = vmatpush1.xpose.msra.mxu0 0.0
  %2183 = vmatprep.subr.mxu0 0.0
  %2184 = vmatpush1.xpose.msra.mxu0 0.0
  %2185 = vmatprep.subr.mxu0 0.0
  %2186 = vmatpush1.xpose.msra.mxu0 0.0
  %2187 = vmatprep.subr.mxu0 0.0
  %2188 = vmatpush1.xpose.msra.mxu0 0.0
  %2189 = vmatprep.subr.mxu0 0.0
  %2190 = vmatpush1.xpose.msra.mxu0 0.0
  %2191 = vmatprep.subr.mxu0 0.0
  %2192 = vmatpush1.xpose.msra.mxu0 0.0
  %2193 = vmatprep.subr.mxu0 0.0
  %2194 = vmatpush1.xpose.msra.mxu0 0.0
  %2195 = vmatprep.subr.mxu0 0.0
  %2196 = vmatpush1.xpose.msra.mxu0 0.0
  %2197 = vmatprep.subr.mxu0 0.0
  %2198 = vmatpush1.xpose.msra.mxu0 0.0
  %2199 = vmatprep.subr.mxu0 0.0
  %2200 = vmatpush1.xpose.msra.mxu0 0.0
  %2201 = vmatprep.subr.mxu0 0.0
  %2202 = vmatpush1.xpose.msra.mxu0 0.0
  %2203 = vmatprep.subr.mxu0 0.0
  %2204 = vmatpush1.xpose.msra.mxu0 0.0
  %2205 = vmatprep.subr.mxu0 0.0
  %2206 = vmatpush1.xpose.msra.mxu0 0.0
  %2207 = vmatprep.subr.mxu0 0.0
  %2208 = vmatpush1.xpose.msra.mxu0 0.0
  %2209 = vmatprep.subr.mxu0 0.0
  %2210 = vmatpush1.xpose.msra.mxu0 0.0
  %2211 = vmatprep.subr.mxu0 0.0
  %v2212 = vand.u32 %v2103, 4294901760
  %v2213 = vsub.f32 %v2103, %v2212
  %v2214 = vand.u32 %v2213, 4294901760
  %v2215 = vsub.f32 %v2213, %v2214
  %v2216 = vand.u32 %v2215, 4294901760
  %2217 = vmatpush1.xpose.msra.mxu0 %v2216
  %2218 = vmatprep.subr.mxu0 0.0
  %2219 = vmatpush2.xpose.msra.mxu0 0.0
  %2220 = vmatprep.subr.mxu0 0.0
  %2221 = vmatpush2.xpose.msra.mxu0 0.0
  %2222 = vmatprep.subr.mxu0 0.0
  %2223 = vmatpush2.xpose.msra.mxu0 0.0
  %2224 = vmatprep.subr.mxu0 0.0
  %2225 = vmatpush2.xpose.msra.mxu0 0.0
  %2226 = vmatprep.subr.mxu0 0.0
  %2227 = vmatpush2.xpose.msra.mxu0 0.0
  %2228 = vmatprep.subr.mxu0 0.0
  %2229 = vmatpush2.xpose.msra.mxu0 0.0
  %2230 = vmatprep.subr.mxu0 0.0
  %2231 = vmatpush2.xpose.msra.mxu0 0.0
  %2232 = vmatprep.subr.mxu0 0.0
  %2233 = vmatpush2.xpose.msra.mxu0 0.0
  %2234 = vmatprep.subr.mxu0 0.0
  %2235 = vmatpush2.xpose.msra.mxu0 0.0
  %2236 = vmatprep.subr.mxu0 0.0
  %2237 = vmatpush2.xpose.msra.mxu0 0.0
  %2238 = vmatprep.subr.mxu0 0.0
  %2239 = vmatpush2.xpose.msra.mxu0 0.0
  %2240 = vmatprep.subr.mxu0 0.0
  %2241 = vmatpush2.xpose.msra.mxu0 0.0
  %2242 = vmatprep.subr.mxu0 0.0
  %2243 = vmatpush2.xpose.msra.mxu0 0.0
  %2244 = vmatprep.subr.mxu0 0.0
  %2245 = vmatpush2.xpose.msra.mxu0 0.0
  %2246 = vmatprep.subr.mxu0 0.0
  %2247 = vmatpush2.xpose.msra.mxu0 0.0
  %2248 = vmatprep.subr.mxu0 0.0
  %2249 = vmatpush2.xpose.msra.mxu0 0.0
  %2250 = vmatprep.mubr.f32.mxu0 0.0
  %v2251 = vand.u32 %v2101, 4294901760
  %2252 = vmatmul.mubr.f32.gmra.mxu0 %v2251
  %v2253 = vpop.f32.mrf.mxu0
  %v2254 = vadd.f32 %v2178, %v2253
  %v2255 = vpop.f32.mrf.mxu0
  %2256 = vdwg.mxu0
  %2257 = vmatprep.subr.mxu0 0.0
  %2258 = vmatpush1.xpose.msra.mxu0 0.0
  %2259 = vmatprep.subr.mxu0 0.0
  %2260 = vmatpush1.xpose.msra.mxu0 0.0
  %2261 = vmatprep.subr.mxu0 0.0
  %2262 = vmatpush1.xpose.msra.mxu0 0.0
  %2263 = vmatprep.subr.mxu0 0.0
  %2264 = vmatpush1.xpose.msra.mxu0 0.0
  %2265 = vmatprep.subr.mxu0 0.0
  %2266 = vmatpush1.xpose.msra.mxu0 0.0
  %2267 = vmatprep.subr.mxu0 0.0
  %2268 = vmatpush1.xpose.msra.mxu0 0.0
  %2269 = vmatprep.subr.mxu0 0.0
  %2270 = vmatpush1.xpose.msra.mxu0 0.0
  %2271 = vmatprep.subr.mxu0 0.0
  %2272 = vmatpush1.xpose.msra.mxu0 0.0
  %2273 = vmatprep.subr.mxu0 0.0
  %2274 = vmatpush1.xpose.msra.mxu0 0.0
  %2275 = vmatprep.subr.mxu0 0.0
  %2276 = vmatpush1.xpose.msra.mxu0 0.0
  %2277 = vmatprep.subr.mxu0 0.0
  %2278 = vmatpush1.xpose.msra.mxu0 0.0
  %2279 = vmatprep.subr.mxu0 0.0
  %2280 = vmatpush1.xpose.msra.mxu0 0.0
  %2281 = vmatprep.subr.mxu0 0.0
  %2282 = vmatpush1.xpose.msra.mxu0 0.0
  %2283 = vmatprep.subr.mxu0 0.0
  %2284 = vmatpush1.xpose.msra.mxu0 0.0
  %2285 = vmatprep.subr.mxu0 0.0
  %2286 = vmatpush1.xpose.msra.mxu0 0.0
  %2287 = vmatprep.subr.mxu0 0.0
  %v2288 = vand.u32 %v2103, 4294901760
  %v2289 = vsub.f32 %v2103, %v2288
  %2290 = vmatpush1.xpose.msra.mxu0 %v2289
  %2291 = vmatprep.subr.mxu0 0.0
  %2292 = vmatpush2.xpose.msra.mxu0 0.0
  %2293 = vmatprep.subr.mxu0 0.0
  %2294 = vmatpush2.xpose.msra.mxu0 0.0
  %2295 = vmatprep.subr.mxu0 0.0
  %2296 = vmatpush2.xpose.msra.mxu0 0.0
  %2297 = vmatprep.subr.mxu0 0.0
  %2298 = vmatpush2.xpose.msra.mxu0 0.0
  %2299 = vmatprep.subr.mxu0 0.0
  %2300 = vmatpush2.xpose.msra.mxu0 0.0
  %2301 = vmatprep.subr.mxu0 0.0
  %2302 = vmatpush2.xpose.msra.mxu0 0.0
  %2303 = vmatprep.subr.mxu0 0.0
  %2304 = vmatpush2.xpose.msra.mxu0 0.0
  %2305 = vmatprep.subr.mxu0 0.0
  %2306 = vmatpush2.xpose.msra.mxu0 0.0
  %2307 = vmatprep.subr.mxu0 0.0
  %2308 = vmatpush2.xpose.msra.mxu0 0.0
  %2309 = vmatprep.subr.mxu0 0.0
  %2310 = vmatpush2.xpose.msra.mxu0 0.0
  %2311 = vmatprep.subr.mxu0 0.0
  %2312 = vmatpush2.xpose.msra.mxu0 0.0
  %2313 = vmatprep.subr.mxu0 0.0
  %2314 = vmatpush2.xpose.msra.mxu0 0.0
  %2315 = vmatprep.subr.mxu0 0.0
  %2316 = vmatpush2.xpose.msra.mxu0 0.0
  %2317 = vmatprep.subr.mxu0 0.0
  %2318 = vmatpush2.xpose.msra.mxu0 0.0
  %2319 = vmatprep.subr.mxu0 0.0
  %2320 = vmatpush2.xpose.msra.mxu0 0.0
  %2321 = vmatprep.subr.mxu0 0.0
  %2322 = vmatpush2.xpose.msra.mxu0 0.0
  %2323 = vmatprep.mubr.f32.mxu0 0.0
  %v2324 = vand.u32 %v2101, 4294901760
  %v2325 = vsub.f32 %v2101, %v2324
  %2326 = vmatmul.mubr.f32.gmra.mxu0 %v2325
  %v2327 = vpop.f32.mrf.mxu0
  %v2328 = vadd.f32 %v2254, %v2327
  %v2329 = vpop.f32.mrf.mxu0
  %2330 = vdwg.mxu0
  %2331 = vmatprep.subr.mxu0 0.0
  %2332 = vmatpush1.xpose.msra.mxu0 0.0
  %2333 = vmatprep.subr.mxu0 0.0
  %2334 = vmatpush1.xpose.msra.mxu0 0.0
  %2335 = vmatprep.subr.mxu0 0.0
  %2336 = vmatpush1.xpose.msra.mxu0 0.0
  %2337 = vmatprep.subr.mxu0 0.0
  %2338 = vmatpush1.xpose.msra.mxu0 0.0
  %2339 = vmatprep.subr.mxu0 0.0
  %2340 = vmatpush1.xpose.msra.mxu0 0.0
  %2341 = vmatprep.subr.mxu0 0.0
  %2342 = vmatpush1.xpose.msra.mxu0 0.0
  %2343 = vmatprep.subr.mxu0 0.0
  %2344 = vmatpush1.xpose.msra.mxu0 0.0
  %2345 = vmatprep.subr.mxu0 0.0
  %2346 = vmatpush1.xpose.msra.mxu0 0.0
  %2347 = vmatprep.subr.mxu0 0.0
  %2348 = vmatpush1.xpose.msra.mxu0 0.0
  %2349 = vmatprep.subr.mxu0 0.0
  %2350 = vmatpush1.xpose.msra.mxu0 0.0
  %2351 = vmatprep.subr.mxu0 0.0
  %2352 = vmatpush1.xpose.msra.mxu0 0.0
  %2353 = vmatprep.subr.mxu0 0.0
  %2354 = vmatpush1.xpose.msra.mxu0 0.0
  %2355 = vmatprep.subr.mxu0 0.0
  %2356 = vmatpush1.xpose.msra.mxu0 0.0
  %2357 = vmatprep.subr.mxu0 0.0
  %2358 = vmatpush1.xpose.msra.mxu0 0.0
  %2359 = vmatprep.subr.mxu0 0.0
  %2360 = vmatpush1.xpose.msra.mxu0 0.0
  %2361 = vmatprep.subr.mxu0 0.0
  %v2362 = vand.u32 %v2103, 4294901760
  %2363 = vmatpush1.xpose.msra.mxu0 %v2362
  %2364 = vmatprep.subr.mxu0 0.0
  %2365 = vmatpush2.xpose.msra.mxu0 0.0
  %2366 = vmatprep.subr.mxu0 0.0
  %2367 = vmatpush2.xpose.msra.mxu0 0.0
  %2368 = vmatprep.subr.mxu0 0.0
  %2369 = vmatpush2.xpose.msra.mxu0 0.0
  %2370 = vmatprep.subr.mxu0 0.0
  %2371 = vmatpush2.xpose.msra.mxu0 0.0
  %2372 = vmatprep.subr.mxu0 0.0
  %2373 = vmatpush2.xpose.msra.mxu0 0.0
  %2374 = vmatprep.subr.mxu0 0.0
  %2375 = vmatpush2.xpose.msra.mxu0 0.0
  %2376 = vmatprep.subr.mxu0 0.0
  %2377 = vmatpush2.xpose.msra.mxu0 0.0
  %2378 = vmatprep.subr.mxu0 0.0
  %2379 = vmatpush2.xpose.msra.mxu0 0.0
  %2380 = vmatprep.subr.mxu0 0.0
  %2381 = vmatpush2.xpose.msra.mxu0 0.0
  %2382 = vmatprep.subr.mxu0 0.0
  %2383 = vmatpush2.xpose.msra.mxu0 0.0
  %2384 = vmatprep.subr.mxu0 0.0
  %2385 = vmatpush2.xpose.msra.mxu0 0.0
  %2386 = vmatprep.subr.mxu0 0.0
  %2387 = vmatpush2.xpose.msra.mxu0 0.0
  %2388 = vmatprep.subr.mxu0 0.0
  %2389 = vmatpush2.xpose.msra.mxu0 0.0
  %2390 = vmatprep.subr.mxu0 0.0
  %2391 = vmatpush2.xpose.msra.mxu0 0.0
  %2392 = vmatprep.subr.mxu0 0.0
  %2393 = vmatpush2.xpose.msra.mxu0 0.0
  %2394 = vmatprep.subr.mxu0 0.0
  %2395 = vmatpush2.xpose.msra.mxu0 0.0
  %2396 = vmatprep.mubr.f32.mxu0 0.0
  %v2397 = vand.u32 %v2101, 4294901760
  %v2398 = vsub.f32 %v2101, %v2397
  %v2399 = vand.u32 %v2398, 4294901760
  %2400 = vmatmul.mubr.f32.gmra.mxu0 %v2399
  %v2401 = vpop.f32.mrf.mxu0
  %v2402 = vadd.f32 %v2328, %v2401
  %v2403 = vpop.f32.mrf.mxu0
  %2404 = vdwg.mxu0
  %2405 = vmatprep.subr.mxu0 0.0
  %2406 = vmatpush1.xpose.msra.mxu0 0.0
  %2407 = vmatprep.subr.mxu0 0.0
  %2408 = vmatpush1.xpose.msra.mxu0 0.0
  %2409 = vmatprep.subr.mxu0 0.0
  %2410 = vmatpush1.xpose.msra.mxu0 0.0
  %2411 = vmatprep.subr.mxu0 0.0
  %2412 = vmatpush1.xpose.msra.mxu0 0.0
  %2413 = vmatprep.subr.mxu0 0.0
  %2414 = vmatpush1.xpose.msra.mxu0 0.0
  %2415 = vmatprep.subr.mxu0 0.0
  %2416 = vmatpush1.xpose.msra.mxu0 0.0
  %2417 = vmatprep.subr.mxu0 0.0
  %2418 = vmatpush1.xpose.msra.mxu0 0.0
  %2419 = vmatprep.subr.mxu0 0.0
  %2420 = vmatpush1.xpose.msra.mxu0 0.0
  %2421 = vmatprep.subr.mxu0 0.0
  %2422 = vmatpush1.xpose.msra.mxu0 0.0
  %2423 = vmatprep.subr.mxu0 0.0
  %2424 = vmatpush1.xpose.msra.mxu0 0.0
  %2425 = vmatprep.subr.mxu0 0.0
  %2426 = vmatpush1.xpose.msra.mxu0 0.0
  %2427 = vmatprep.subr.mxu0 0.0
  %2428 = vmatpush1.xpose.msra.mxu0 0.0
  %2429 = vmatprep.subr.mxu0 0.0
  %2430 = vmatpush1.xpose.msra.mxu0 0.0
  %2431 = vmatprep.subr.mxu0 0.0
  %2432 = vmatpush1.xpose.msra.mxu0 0.0
  %2433 = vmatprep.subr.mxu0 0.0
  %2434 = vmatpush1.xpose.msra.mxu0 0.0
  %2435 = vmatprep.subr.mxu0 0.0
  %v2436 = vand.u32 %v2103, 4294901760
  %v2437 = vsub.f32 %v2103, %v2436
  %v2438 = vand.u32 %v2437, 4294901760
  %2439 = vmatpush1.xpose.msra.mxu0 %v2438
  %2440 = vmatprep.subr.mxu0 0.0
  %2441 = vmatpush2.xpose.msra.mxu0 0.0
  %2442 = vmatprep.subr.mxu0 0.0
  %2443 = vmatpush2.xpose.msra.mxu0 0.0
  %2444 = vmatprep.subr.mxu0 0.0
  %2445 = vmatpush2.xpose.msra.mxu0 0.0
  %2446 = vmatprep.subr.mxu0 0.0
  %2447 = vmatpush2.xpose.msra.mxu0 0.0
  %2448 = vmatprep.subr.mxu0 0.0
  %2449 = vmatpush2.xpose.msra.mxu0 0.0
  %2450 = vmatprep.subr.mxu0 0.0
  %2451 = vmatpush2.xpose.msra.mxu0 0.0
  %2452 = vmatprep.subr.mxu0 0.0
  %2453 = vmatpush2.xpose.msra.mxu0 0.0
  %2454 = vmatprep.subr.mxu0 0.0
  %2455 = vmatpush2.xpose.msra.mxu0 0.0
  %2456 = vmatprep.subr.mxu0 0.0
  %2457 = vmatpush2.xpose.msra.mxu0 0.0
  %2458 = vmatprep.subr.mxu0 0.0
  %2459 = vmatpush2.xpose.msra.mxu0 0.0
  %2460 = vmatprep.subr.mxu0 0.0
  %2461 = vmatpush2.xpose.msra.mxu0 0.0
  %2462 = vmatprep.subr.mxu0 0.0
  %2463 = vmatpush2.xpose.msra.mxu0 0.0
  %2464 = vmatprep.subr.mxu0 0.0
  %2465 = vmatpush2.xpose.msra.mxu0 0.0
  %2466 = vmatprep.subr.mxu0 0.0
  %2467 = vmatpush2.xpose.msra.mxu0 0.0
  %2468 = vmatprep.subr.mxu0 0.0
  %2469 = vmatpush2.xpose.msra.mxu0 0.0
  %2470 = vmatprep.subr.mxu0 0.0
  %2471 = vmatpush2.xpose.msra.mxu0 0.0
  %2472 = vmatprep.mubr.f32.mxu0 0.0
  %v2473 = vand.u32 %v2101, 4294901760
  %2474 = vmatmul.mubr.f32.gmra.mxu0 %v2473
  %v2475 = vpop.f32.mrf.mxu0
  %v2476 = vadd.f32 %v2402, %v2475
  %v2477 = vpop.f32.mrf.mxu0
  %2478 = vdwg.mxu0
  %2479 = vmatprep.subr.mxu0 0.0
  %2480 = vmatpush1.xpose.msra.mxu0 0.0
  %2481 = vmatprep.subr.mxu0 0.0
  %2482 = vmatpush1.xpose.msra.mxu0 0.0
  %2483 = vmatprep.subr.mxu0 0.0
  %2484 = vmatpush1.xpose.msra.mxu0 0.0
  %2485 = vmatprep.subr.mxu0 0.0
  %2486 = vmatpush1.xpose.msra.mxu0 0.0
  %2487 = vmatprep.subr.mxu0 0.0
  %2488 = vmatpush1.xpose.msra.mxu0 0.0
  %2489 = vmatprep.subr.mxu0 0.0
  %2490 = vmatpush1.xpose.msra.mxu0 0.0
  %2491 = vmatprep.subr.mxu0 0.0
  %2492 = vmatpush1.xpose.msra.mxu0 0.0
  %2493 = vmatprep.subr.mxu0 0.0
  %2494 = vmatpush1.xpose.msra.mxu0 0.0
  %2495 = vmatprep.subr.mxu0 0.0
  %2496 = vmatpush1.xpose.msra.mxu0 0.0
  %2497 = vmatprep.subr.mxu0 0.0
  %2498 = vmatpush1.xpose.msra.mxu0 0.0
  %2499 = vmatprep.subr.mxu0 0.0
  %2500 = vmatpush1.xpose.msra.mxu0 0.0
  %2501 = vmatprep.subr.mxu0 0.0
  %2502 = vmatpush1.xpose.msra.mxu0 0.0
  %2503 = vmatprep.subr.mxu0 0.0
  %2504 = vmatpush1.xpose.msra.mxu0 0.0
  %2505 = vmatprep.subr.mxu0 0.0
  %2506 = vmatpush1.xpose.msra.mxu0 0.0
  %2507 = vmatprep.subr.mxu0 0.0
  %2508 = vmatpush1.xpose.msra.mxu0 0.0
  %2509 = vmatprep.subr.mxu0 0.0
  %v2510 = vand.u32 %v2103, 4294901760
  %2511 = vmatpush1.xpose.msra.mxu0 %v2510
  %2512 = vmatprep.subr.mxu0 0.0
  %2513 = vmatpush2.xpose.msra.mxu0 0.0
  %2514 = vmatprep.subr.mxu0 0.0
  %2515 = vmatpush2.xpose.msra.mxu0 0.0
  %2516 = vmatprep.subr.mxu0 0.0
  %2517 = vmatpush2.xpose.msra.mxu0 0.0
  %2518 = vmatprep.subr.mxu0 0.0
  %2519 = vmatpush2.xpose.msra.mxu0 0.0
  %2520 = vmatprep.subr.mxu0 0.0
  %2521 = vmatpush2.xpose.msra.mxu0 0.0
  %2522 = vmatprep.subr.mxu0 0.0
  %2523 = vmatpush2.xpose.msra.mxu0 0.0
  %2524 = vmatprep.subr.mxu0 0.0
  %2525 = vmatpush2.xpose.msra.mxu0 0.0
  %2526 = vmatprep.subr.mxu0 0.0
  %2527 = vmatpush2.xpose.msra.mxu0 0.0
  %2528 = vmatprep.subr.mxu0 0.0
  %2529 = vmatpush2.xpose.msra.mxu0 0.0
  %2530 = vmatprep.subr.mxu0 0.0
  %2531 = vmatpush2.xpose.msra.mxu0 0.0
  %2532 = vmatprep.subr.mxu0 0.0
  %2533 = vmatpush2.xpose.msra.mxu0 0.0
  %2534 = vmatprep.subr.mxu0 0.0
  %2535 = vmatpush2.xpose.msra.mxu0 0.0
  %2536 = vmatprep.subr.mxu0 0.0
  %2537 = vmatpush2.xpose.msra.mxu0 0.0
  %2538 = vmatprep.subr.mxu0 0.0
  %2539 = vmatpush2.xpose.msra.mxu0 0.0
  %2540 = vmatprep.subr.mxu0 0.0
  %2541 = vmatpush2.xpose.msra.mxu0 0.0
  %2542 = vmatprep.subr.mxu0 0.0
  %2543 = vmatpush2.xpose.msra.mxu0 0.0
  %2544 = vmatprep.mubr.f32.mxu0 0.0
  %v2545 = vand.u32 %v2101, 4294901760
  %2546 = vmatmul.mubr.f32.gmra.mxu0 %v2545
  %v2547 = vpop.f32.mrf.mxu0
  %v2548 = vadd.f32 %v2476, %v2547
  %v2549 = vpop.f32.mrf.mxu0
  %2550 = vdwg.mxu0
  %v2551 = vmul.f32 %v2548, 0.35355338
  %v2552 = vsel %vm1182, %v2551, -inf
  %2553 = vmax.xlane.f32.xlu0 %v2552
  %v2554 = vpop.xlane.xlu0 %2553
  %v2555 = vsub.f32 %v2551, %v2554
  %v2556 = vmul.f32 %v2555, 1.442695
  %v2557 = vpow.pop %v2556
  %v2558 = vsel %vm1182, %v2557, 0.0
  %2559 = vadd.xlane.f32.xlu0 %v2558
  %v2560 = vpop.xlane.xlu0 %2559
  %v2561 = vrcp.pop %v2560
  %v2562 = vmul.f32 %v2557, %v2561
  %v2564 = vsel %vm1182, %v1164, 0
  %v2567 = vsel %vm1182, %v2562, 0
  %2569 = vmatprep.subr.mxu0 0.0
  %2570 = vmatpush1.xpose.msra.mxu0 0.0
  %2571 = vmatprep.subr.mxu0 0.0
  %2572 = vmatpush1.xpose.msra.mxu0 0.0
  %2573 = vmatprep.subr.mxu0 0.0
  %2574 = vmatpush1.xpose.msra.mxu0 0.0
  %2575 = vmatprep.subr.mxu0 0.0
  %2576 = vmatpush1.xpose.msra.mxu0 0.0
  %2577 = vmatprep.subr.mxu0 0.0
  %2578 = vmatpush1.xpose.msra.mxu0 0.0
  %2579 = vmatprep.subr.mxu0 0.0
  %2580 = vmatpush1.xpose.msra.mxu0 0.0
  %2581 = vmatprep.subr.mxu0 0.0
  %2582 = vmatpush1.xpose.msra.mxu0 0.0
  %2583 = vmatprep.subr.mxu0 0.0
  %2584 = vmatpush1.xpose.msra.mxu0 0.0
  %2585 = vmatprep.subr.mxu0 0.0
  %2586 = vmatpush1.xpose.msra.mxu0 0.0
  %2587 = vmatprep.subr.mxu0 0.0
  %2588 = vmatpush1.xpose.msra.mxu0 0.0
  %2589 = vmatprep.subr.mxu0 0.0
  %2590 = vmatpush1.xpose.msra.mxu0 0.0
  %2591 = vmatprep.subr.mxu0 0.0
  %2592 = vmatpush1.xpose.msra.mxu0 0.0
  %2593 = vmatprep.subr.mxu0 0.0
  %2594 = vmatpush1.xpose.msra.mxu0 0.0
  %2595 = vmatprep.subr.mxu0 0.0
  %2596 = vmatpush1.xpose.msra.mxu0 0.0
  %2597 = vmatprep.subr.mxu0 0.0
  %2598 = vmatpush1.xpose.msra.mxu0 0.0
  %2599 = vmatprep.subr.mxu0 0.0
  %v2600 = vand.u32 %v2567, 4294901760
  %2601 = vmatpush1.xpose.msra.mxu0 %v2600
  %2602 = vmatprep.subr.mxu0 0.0
  %2603 = vmatpush2.xpose.msra.mxu0 0.0
  %2604 = vmatprep.subr.mxu0 0.0
  %2605 = vmatpush2.xpose.msra.mxu0 0.0
  %2606 = vmatprep.subr.mxu0 0.0
  %2607 = vmatpush2.xpose.msra.mxu0 0.0
  %2608 = vmatprep.subr.mxu0 0.0
  %2609 = vmatpush2.xpose.msra.mxu0 0.0
  %2610 = vmatprep.subr.mxu0 0.0
  %2611 = vmatpush2.xpose.msra.mxu0 0.0
  %2612 = vmatprep.subr.mxu0 0.0
  %2613 = vmatpush2.xpose.msra.mxu0 0.0
  %2614 = vmatprep.subr.mxu0 0.0
  %2615 = vmatpush2.xpose.msra.mxu0 0.0
  %2616 = vmatprep.subr.mxu0 0.0
  %2617 = vmatpush2.xpose.msra.mxu0 0.0
  %2618 = vmatprep.subr.mxu0 0.0
  %2619 = vmatpush2.xpose.msra.mxu0 0.0
  %2620 = vmatprep.subr.mxu0 0.0
  %2621 = vmatpush2.xpose.msra.mxu0 0.0
  %2622 = vmatprep.subr.mxu0 0.0
  %2623 = vmatpush2.xpose.msra.mxu0 0.0
  %2624 = vmatprep.subr.mxu0 0.0
  %2625 = vmatpush2.xpose.msra.mxu0 0.0
  %2626 = vmatprep.subr.mxu0 0.0
  %2627 = vmatpush2.xpose.msra.mxu0 0.0
  %2628 = vmatprep.subr.mxu0 0.0
  %2629 = vmatpush2.xpose.msra.mxu0 0.0
  %2630 = vmatprep.subr.mxu0 0.0
  %2631 = vmatpush2.xpose.msra.mxu0 0.0
  %2632 = vmatprep.subr.mxu0 0.0
  %2633 = vmatpush2.xpose.msra.mxu0 0.0
  %2634 = vmatprep.mubr.f32.mxu0 0.0
  %v2635 = vand.u32 %v2564, 4294901760
  %v2636 = vsub.f32 %v2564, %v2635
  %v2637 = vand.u32 %v2636, 4294901760
  %v2638 = vsub.f32 %v2636, %v2637
  %v2639 = vand.u32 %v2638, 4294901760
  %2640 = vmatmul.mubr.f32.gmra.mxu0 %v2639
  %v2641 = vpop.f32.mrf.mxu0
  %v2642 = vadd.f32 0.0, %v2641
  %v2643 = vpop.f32.mrf.mxu0
  %2644 = vdwg.mxu0
  %2645 = vmatprep.subr.mxu0 0.0
  %2646 = vmatpush1.xpose.msra.mxu0 0.0
  %2647 = vmatprep.subr.mxu0 0.0
  %2648 = vmatpush1.xpose.msra.mxu0 0.0
  %2649 = vmatprep.subr.mxu0 0.0
  %2650 = vmatpush1.xpose.msra.mxu0 0.0
  %2651 = vmatprep.subr.mxu0 0.0
  %2652 = vmatpush1.xpose.msra.mxu0 0.0
  %2653 = vmatprep.subr.mxu0 0.0
  %2654 = vmatpush1.xpose.msra.mxu0 0.0
  %2655 = vmatprep.subr.mxu0 0.0
  %2656 = vmatpush1.xpose.msra.mxu0 0.0
  %2657 = vmatprep.subr.mxu0 0.0
  %2658 = vmatpush1.xpose.msra.mxu0 0.0
  %2659 = vmatprep.subr.mxu0 0.0
  %2660 = vmatpush1.xpose.msra.mxu0 0.0
  %2661 = vmatprep.subr.mxu0 0.0
  %2662 = vmatpush1.xpose.msra.mxu0 0.0
  %2663 = vmatprep.subr.mxu0 0.0
  %2664 = vmatpush1.xpose.msra.mxu0 0.0
  %2665 = vmatprep.subr.mxu0 0.0
  %2666 = vmatpush1.xpose.msra.mxu0 0.0
  %2667 = vmatprep.subr.mxu0 0.0
  %2668 = vmatpush1.xpose.msra.mxu0 0.0
  %2669 = vmatprep.subr.mxu0 0.0
  %2670 = vmatpush1.xpose.msra.mxu0 0.0
  %2671 = vmatprep.subr.mxu0 0.0
  %2672 = vmatpush1.xpose.msra.mxu0 0.0
  %2673 = vmatprep.subr.mxu0 0.0
  %2674 = vmatpush1.xpose.msra.mxu0 0.0
  %2675 = vmatprep.subr.mxu0 0.0
  %v2676 = vand.u32 %v2567, 4294901760
  %v2677 = vsub.f32 %v2567, %v2676
  %v2678 = vand.u32 %v2677, 4294901760
  %v2679 = vsub.f32 %v2677, %v2678
  %v2680 = vand.u32 %v2679, 4294901760
  %2681 = vmatpush1.xpose.msra.mxu0 %v2680
  %2682 = vmatprep.subr.mxu0 0.0
  %2683 = vmatpush2.xpose.msra.mxu0 0.0
  %2684 = vmatprep.subr.mxu0 0.0
  %2685 = vmatpush2.xpose.msra.mxu0 0.0
  %2686 = vmatprep.subr.mxu0 0.0
  %2687 = vmatpush2.xpose.msra.mxu0 0.0
  %2688 = vmatprep.subr.mxu0 0.0
  %2689 = vmatpush2.xpose.msra.mxu0 0.0
  %2690 = vmatprep.subr.mxu0 0.0
  %2691 = vmatpush2.xpose.msra.mxu0 0.0
  %2692 = vmatprep.subr.mxu0 0.0
  %2693 = vmatpush2.xpose.msra.mxu0 0.0
  %2694 = vmatprep.subr.mxu0 0.0
  %2695 = vmatpush2.xpose.msra.mxu0 0.0
  %2696 = vmatprep.subr.mxu0 0.0
  %2697 = vmatpush2.xpose.msra.mxu0 0.0
  %2698 = vmatprep.subr.mxu0 0.0
  %2699 = vmatpush2.xpose.msra.mxu0 0.0
  %2700 = vmatprep.subr.mxu0 0.0
  %2701 = vmatpush2.xpose.msra.mxu0 0.0
  %2702 = vmatprep.subr.mxu0 0.0
  %2703 = vmatpush2.xpose.msra.mxu0 0.0
  %2704 = vmatprep.subr.mxu0 0.0
  %2705 = vmatpush2.xpose.msra.mxu0 0.0
  %2706 = vmatprep.subr.mxu0 0.0
  %2707 = vmatpush2.xpose.msra.mxu0 0.0
  %2708 = vmatprep.subr.mxu0 0.0
  %2709 = vmatpush2.xpose.msra.mxu0 0.0
  %2710 = vmatprep.subr.mxu0 0.0
  %2711 = vmatpush2.xpose.msra.mxu0 0.0
  %2712 = vmatprep.subr.mxu0 0.0
  %2713 = vmatpush2.xpose.msra.mxu0 0.0
  %2714 = vmatprep.mubr.f32.mxu0 0.0
  %v2715 = vand.u32 %v2564, 4294901760
  %2716 = vmatmul.mubr.f32.gmra.mxu0 %v2715
  %v2717 = vpop.f32.mrf.mxu0
  %v2718 = vadd.f32 %v2642, %v2717
  %v2719 = vpop.f32.mrf.mxu0
  %2720 = vdwg.mxu0
  %2721 = vmatprep.subr.mxu0 0.0
  %2722 = vmatpush1.xpose.msra.mxu0 0.0
  %2723 = vmatprep.subr.mxu0 0.0
  %2724 = vmatpush1.xpose.msra.mxu0 0.0
  %2725 = vmatprep.subr.mxu0 0.0
  %2726 = vmatpush1.xpose.msra.mxu0 0.0
  %2727 = vmatprep.subr.mxu0 0.0
  %2728 = vmatpush1.xpose.msra.mxu0 0.0
  %2729 = vmatprep.subr.mxu0 0.0
  %2730 = vmatpush1.xpose.msra.mxu0 0.0
  %2731 = vmatprep.subr.mxu0 0.0
  %2732 = vmatpush1.xpose.msra.mxu0 0.0
  %2733 = vmatprep.subr.mxu0 0.0
  %2734 = vmatpush1.xpose.msra.mxu0 0.0
  %2735 = vmatprep.subr.mxu0 0.0
  %2736 = vmatpush1.xpose.msra.mxu0 0.0
  %2737 = vmatprep.subr.mxu0 0.0
  %2738 = vmatpush1.xpose.msra.mxu0 0.0
  %2739 = vmatprep.subr.mxu0 0.0
  %2740 = vmatpush1.xpose.msra.mxu0 0.0
  %2741 = vmatprep.subr.mxu0 0.0
  %2742 = vmatpush1.xpose.msra.mxu0 0.0
  %2743 = vmatprep.subr.mxu0 0.0
  %2744 = vmatpush1.xpose.msra.mxu0 0.0
  %2745 = vmatprep.subr.mxu0 0.0
  %2746 = vmatpush1.xpose.msra.mxu0 0.0
  %2747 = vmatprep.subr.mxu0 0.0
  %2748 = vmatpush1.xpose.msra.mxu0 0.0
  %2749 = vmatprep.subr.mxu0 0.0
  %2750 = vmatpush1.xpose.msra.mxu0 0.0
  %2751 = vmatprep.subr.mxu0 0.0
  %v2752 = vand.u32 %v2567, 4294901760
  %v2753 = vsub.f32 %v2567, %v2752
  %2754 = vmatpush1.xpose.msra.mxu0 %v2753
  %2755 = vmatprep.subr.mxu0 0.0
  %2756 = vmatpush2.xpose.msra.mxu0 0.0
  %2757 = vmatprep.subr.mxu0 0.0
  %2758 = vmatpush2.xpose.msra.mxu0 0.0
  %2759 = vmatprep.subr.mxu0 0.0
  %2760 = vmatpush2.xpose.msra.mxu0 0.0
  %2761 = vmatprep.subr.mxu0 0.0
  %2762 = vmatpush2.xpose.msra.mxu0 0.0
  %2763 = vmatprep.subr.mxu0 0.0
  %2764 = vmatpush2.xpose.msra.mxu0 0.0
  %2765 = vmatprep.subr.mxu0 0.0
  %2766 = vmatpush2.xpose.msra.mxu0 0.0
  %2767 = vmatprep.subr.mxu0 0.0
  %2768 = vmatpush2.xpose.msra.mxu0 0.0
  %2769 = vmatprep.subr.mxu0 0.0
  %2770 = vmatpush2.xpose.msra.mxu0 0.0
  %2771 = vmatprep.subr.mxu0 0.0
  %2772 = vmatpush2.xpose.msra.mxu0 0.0
  %2773 = vmatprep.subr.mxu0 0.0
  %2774 = vmatpush2.xpose.msra.mxu0 0.0
  %2775 = vmatprep.subr.mxu0 0.0
  %2776 = vmatpush2.xpose.msra.mxu0 0.0
  %2777 = vmatprep.subr.mxu0 0.0
  %2778 = vmatpush2.xpose.msra.mxu0 0.0
  %2779 = vmatprep.subr.mxu0 0.0
  %2780 = vmatpush2.xpose.msra.mxu0 0.0
  %2781 = vmatprep.subr.mxu0 0.0
  %2782 = vmatpush2.xpose.msra.mxu0 0.0
  %2783 = vmatprep.subr.mxu0 0.0
  %2784 = vmatpush2.xpose.msra.mxu0 0.0
  %2785 = vmatprep.subr.mxu0 0.0
  %2786 = vmatpush2.xpose.msra.mxu0 0.0
  %2787 = vmatprep.mubr.f32.mxu0 0.0
  %v2788 = vand.u32 %v2564, 4294901760
  %v2789 = vsub.f32 %v2564, %v2788
  %2790 = vmatmul.mubr.f32.gmra.mxu0 %v2789
  %v2791 = vpop.f32.mrf.mxu0
  %v2792 = vadd.f32 %v2718, %v2791
  %v2793 = vpop.f32.mrf.mxu0
  %2794 = vdwg.mxu0
  %2795 = vmatprep.subr.mxu0 0.0
  %2796 = vmatpush1.xpose.msra.mxu0 0.0
  %2797 = vmatprep.subr.mxu0 0.0
  %2798 = vmatpush1.xpose.msra.mxu0 0.0
  %2799 = vmatprep.subr.mxu0 0.0
  %2800 = vmatpush1.xpose.msra.mxu0 0.0
  %2801 = vmatprep.subr.mxu0 0.0
  %2802 = vmatpush1.xpose.msra.mxu0 0.0
  %2803 = vmatprep.subr.mxu0 0.0
  %2804 = vmatpush1.xpose.msra.mxu0 0.0
  %2805 = vmatprep.subr.mxu0 0.0
  %2806 = vmatpush1.xpose.msra.mxu0 0.0
  %2807 = vmatprep.subr.mxu0 0.0
  %2808 = vmatpush1.xpose.msra.mxu0 0.0
  %2809 = vmatprep.subr.mxu0 0.0
  %2810 = vmatpush1.xpose.msra.mxu0 0.0
  %2811 = vmatprep.subr.mxu0 0.0
  %2812 = vmatpush1.xpose.msra.mxu0 0.0
  %2813 = vmatprep.subr.mxu0 0.0
  %2814 = vmatpush1.xpose.msra.mxu0 0.0
  %2815 = vmatprep.subr.mxu0 0.0
  %2816 = vmatpush1.xpose.msra.mxu0 0.0
  %2817 = vmatprep.subr.mxu0 0.0
  %2818 = vmatpush1.xpose.msra.mxu0 0.0
  %2819 = vmatprep.subr.mxu0 0.0
  %2820 = vmatpush1.xpose.msra.mxu0 0.0
  %2821 = vmatprep.subr.mxu0 0.0
  %2822 = vmatpush1.xpose.msra.mxu0 0.0
  %2823 = vmatprep.subr.mxu0 0.0
  %2824 = vmatpush1.xpose.msra.mxu0 0.0
  %2825 = vmatprep.subr.mxu0 0.0
  %v2826 = vand.u32 %v2567, 4294901760
  %2827 = vmatpush1.xpose.msra.mxu0 %v2826
  %2828 = vmatprep.subr.mxu0 0.0
  %2829 = vmatpush2.xpose.msra.mxu0 0.0
  %2830 = vmatprep.subr.mxu0 0.0
  %2831 = vmatpush2.xpose.msra.mxu0 0.0
  %2832 = vmatprep.subr.mxu0 0.0
  %2833 = vmatpush2.xpose.msra.mxu0 0.0
  %2834 = vmatprep.subr.mxu0 0.0
  %2835 = vmatpush2.xpose.msra.mxu0 0.0
  %2836 = vmatprep.subr.mxu0 0.0
  %2837 = vmatpush2.xpose.msra.mxu0 0.0
  %2838 = vmatprep.subr.mxu0 0.0
  %2839 = vmatpush2.xpose.msra.mxu0 0.0
  %2840 = vmatprep.subr.mxu0 0.0
  %2841 = vmatpush2.xpose.msra.mxu0 0.0
  %2842 = vmatprep.subr.mxu0 0.0
  %2843 = vmatpush2.xpose.msra.mxu0 0.0
  %2844 = vmatprep.subr.mxu0 0.0
  %2845 = vmatpush2.xpose.msra.mxu0 0.0
  %2846 = vmatprep.subr.mxu0 0.0
  %2847 = vmatpush2.xpose.msra.mxu0 0.0
  %2848 = vmatprep.subr.mxu0 0.0
  %2849 = vmatpush2.xpose.msra.mxu0 0.0
  %2850 = vmatprep.subr.mxu0 0.0
  %2851 = vmatpush2.xpose.msra.mxu0 0.0
  %2852 = vmatprep.subr.mxu0 0.0
  %2853 = vmatpush2.xpose.msra.mxu0 0.0
  %2854 = vmatprep.subr.mxu0 0.0
  %2855 = vmatpush2.xpose.msra.mxu0 0.0
  %2856 = vmatprep.subr.mxu0 0.0
  %2857 = vmatpush2.xpose.msra.mxu0 0.0
  %2858 = vmatprep.subr.mxu0 0.0
  %2859 = vmatpush2.xpose.msra.mxu0 0.0
  %2860 = vmatprep.mubr.f32.mxu0 0.0
  %v2861 = vand.u32 %v2564, 4294901760
  %v2862 = vsub.f32 %v2564, %v2861
  %v2863 = vand.u32 %v2862, 4294901760
  %2864 = vmatmul.mubr.f32.gmra.mxu0 %v2863
  %v2865 = vpop.f32.mrf.mxu0
  %v2866 = vadd.f32 %v2792, %v2865
  %v2867 = vpop.f32.mrf.mxu0
  %2868 = vdwg.mxu0
  %2869 = vmatprep.subr.mxu0 0.0
  %2870 = vmatpush1.xpose.msra.mxu0 0.0
  %2871 = vmatprep.subr.mxu0 0.0
  %2872 = vmatpush1.xpose.msra.mxu0 0.0
  %2873 = vmatprep.subr.mxu0 0.0
  %2874 = vmatpush1.xpose.msra.mxu0 0.0
  %2875 = vmatprep.subr.mxu0 0.0
  %2876 = vmatpush1.xpose.msra.mxu0 0.0
  %2877 = vmatprep.subr.mxu0 0.0
  %2878 = vmatpush1.xpose.msra.mxu0 0.0
  %2879 = vmatprep.subr.mxu0 0.0
  %2880 = vmatpush1.xpose.msra.mxu0 0.0
  %2881 = vmatprep.subr.mxu0 0.0
  %2882 = vmatpush1.xpose.msra.mxu0 0.0
  %2883 = vmatprep.subr.mxu0 0.0
  %2884 = vmatpush1.xpose.msra.mxu0 0.0
  %2885 = vmatprep.subr.mxu0 0.0
  %2886 = vmatpush1.xpose.msra.mxu0 0.0
  %2887 = vmatprep.subr.mxu0 0.0
  %2888 = vmatpush1.xpose.msra.mxu0 0.0
  %2889 = vmatprep.subr.mxu0 0.0
  %2890 = vmatpush1.xpose.msra.mxu0 0.0
  %2891 = vmatprep.subr.mxu0 0.0
  %2892 = vmatpush1.xpose.msra.mxu0 0.0
  %2893 = vmatprep.subr.mxu0 0.0
  %2894 = vmatpush1.xpose.msra.mxu0 0.0
  %2895 = vmatprep.subr.mxu0 0.0
  %2896 = vmatpush1.xpose.msra.mxu0 0.0
  %2897 = vmatprep.subr.mxu0 0.0
  %2898 = vmatpush1.xpose.msra.mxu0 0.0
  %2899 = vmatprep.subr.mxu0 0.0
  %v2900 = vand.u32 %v2567, 4294901760
  %v2901 = vsub.f32 %v2567, %v2900
  %v2902 = vand.u32 %v2901, 4294901760
  %2903 = vmatpush1.xpose.msra.mxu0 %v2902
  %2904 = vmatprep.subr.mxu0 0.0
  %2905 = vmatpush2.xpose.msra.mxu0 0.0
  %2906 = vmatprep.subr.mxu0 0.0
  %2907 = vmatpush2.xpose.msra.mxu0 0.0
  %2908 = vmatprep.subr.mxu0 0.0
  %2909 = vmatpush2.xpose.msra.mxu0 0.0
  %2910 = vmatprep.subr.mxu0 0.0
  %2911 = vmatpush2.xpose.msra.mxu0 0.0
  %2912 = vmatprep.subr.mxu0 0.0
  %2913 = vmatpush2.xpose.msra.mxu0 0.0
  %2914 = vmatprep.subr.mxu0 0.0
  %2915 = vmatpush2.xpose.msra.mxu0 0.0
  %2916 = vmatprep.subr.mxu0 0.0
  %2917 = vmatpush2.xpose.msra.mxu0 0.0
  %2918 = vmatprep.subr.mxu0 0.0
  %2919 = vmatpush2.xpose.msra.mxu0 0.0
  %2920 = vmatprep.subr.mxu0 0.0
  %2921 = vmatpush2.xpose.msra.mxu0 0.0
  %2922 = vmatprep.subr.mxu0 0.0
  %2923 = vmatpush2.xpose.msra.mxu0 0.0
  %2924 = vmatprep.subr.mxu0 0.0
  %2925 = vmatpush2.xpose.msra.mxu0 0.0
  %2926 = vmatprep.subr.mxu0 0.0
  %2927 = vmatpush2.xpose.msra.mxu0 0.0
  %2928 = vmatprep.subr.mxu0 0.0
  %2929 = vmatpush2.xpose.msra.mxu0 0.0
  %2930 = vmatprep.subr.mxu0 0.0
  %2931 = vmatpush2.xpose.msra.mxu0 0.0
  %2932 = vmatprep.subr.mxu0 0.0
  %2933 = vmatpush2.xpose.msra.mxu0 0.0
  %2934 = vmatprep.subr.mxu0 0.0
  %2935 = vmatpush2.xpose.msra.mxu0 0.0
  %2936 = vmatprep.mubr.f32.mxu0 0.0
  %v2937 = vand.u32 %v2564, 4294901760
  %2938 = vmatmul.mubr.f32.gmra.mxu0 %v2937
  %v2939 = vpop.f32.mrf.mxu0
  %v2940 = vadd.f32 %v2866, %v2939
  %v2941 = vpop.f32.mrf.mxu0
  %2942 = vdwg.mxu0
  %2943 = vmatprep.subr.mxu0 0.0
  %2944 = vmatpush1.xpose.msra.mxu0 0.0
  %2945 = vmatprep.subr.mxu0 0.0
  %2946 = vmatpush1.xpose.msra.mxu0 0.0
  %2947 = vmatprep.subr.mxu0 0.0
  %2948 = vmatpush1.xpose.msra.mxu0 0.0
  %2949 = vmatprep.subr.mxu0 0.0
  %2950 = vmatpush1.xpose.msra.mxu0 0.0
  %2951 = vmatprep.subr.mxu0 0.0
  %2952 = vmatpush1.xpose.msra.mxu0 0.0
  %2953 = vmatprep.subr.mxu0 0.0
  %2954 = vmatpush1.xpose.msra.mxu0 0.0
  %2955 = vmatprep.subr.mxu0 0.0
  %2956 = vmatpush1.xpose.msra.mxu0 0.0
  %2957 = vmatprep.subr.mxu0 0.0
  %2958 = vmatpush1.xpose.msra.mxu0 0.0
  %2959 = vmatprep.subr.mxu0 0.0
  %2960 = vmatpush1.xpose.msra.mxu0 0.0
  %2961 = vmatprep.subr.mxu0 0.0
  %2962 = vmatpush1.xpose.msra.mxu0 0.0
  %2963 = vmatprep.subr.mxu0 0.0
  %2964 = vmatpush1.xpose.msra.mxu0 0.0
  %2965 = vmatprep.subr.mxu0 0.0
  %2966 = vmatpush1.xpose.msra.mxu0 0.0
  %2967 = vmatprep.subr.mxu0 0.0
  %2968 = vmatpush1.xpose.msra.mxu0 0.0
  %2969 = vmatprep.subr.mxu0 0.0
  %2970 = vmatpush1.xpose.msra.mxu0 0.0
  %2971 = vmatprep.subr.mxu0 0.0
  %2972 = vmatpush1.xpose.msra.mxu0 0.0
  %2973 = vmatprep.subr.mxu0 0.0
  %v2974 = vand.u32 %v2567, 4294901760
  %2975 = vmatpush1.xpose.msra.mxu0 %v2974
  %2976 = vmatprep.subr.mxu0 0.0
  %2977 = vmatpush2.xpose.msra.mxu0 0.0
  %2978 = vmatprep.subr.mxu0 0.0
  %2979 = vmatpush2.xpose.msra.mxu0 0.0
  %2980 = vmatprep.subr.mxu0 0.0
  %2981 = vmatpush2.xpose.msra.mxu0 0.0
  %2982 = vmatprep.subr.mxu0 0.0
  %2983 = vmatpush2.xpose.msra.mxu0 0.0
  %2984 = vmatprep.subr.mxu0 0.0
  %2985 = vmatpush2.xpose.msra.mxu0 0.0
  %2986 = vmatprep.subr.mxu0 0.0
  %2987 = vmatpush2.xpose.msra.mxu0 0.0
  %2988 = vmatprep.subr.mxu0 0.0
  %2989 = vmatpush2.xpose.msra.mxu0 0.0
  %2990 = vmatprep.subr.mxu0 0.0
  %2991 = vmatpush2.xpose.msra.mxu0 0.0
  %2992 = vmatprep.subr.mxu0 0.0
  %2993 = vmatpush2.xpose.msra.mxu0 0.0
  %2994 = vmatprep.subr.mxu0 0.0
  %2995 = vmatpush2.xpose.msra.mxu0 0.0
  %2996 = vmatprep.subr.mxu0 0.0
  %2997 = vmatpush2.xpose.msra.mxu0 0.0
  %2998 = vmatprep.subr.mxu0 0.0
  %2999 = vmatpush2.xpose.msra.mxu0 0.0
  %3000 = vmatprep.subr.mxu0 0.0
  %3001 = vmatpush2.xpose.msra.mxu0 0.0
  %3002 = vmatprep.subr.mxu0 0.0
  %3003 = vmatpush2.xpose.msra.mxu0 0.0
  %3004 = vmatprep.subr.mxu0 0.0
  %3005 = vmatpush2.xpose.msra.mxu0 0.0
  %3006 = vmatprep.subr.mxu0 0.0
  %3007 = vmatpush2.xpose.msra.mxu0 0.0
  %3008 = vmatprep.mubr.f32.mxu0 0.0
  %v3009 = vand.u32 %v2564, 4294901760
  %3010 = vmatmul.mubr.f32.gmra.mxu0 %v3009
  %v3011 = vpop.f32.mrf.mxu0
  %v3012 = vadd.f32 %v2940, %v3011
  %v3013 = vpop.f32.mrf.mxu0
  %3014 = vdwg.mxu0
  %3015 = vrot.lane.b32.xlu0 %v585, 112
  %v3016 = vpop.permute.xlu0 %3015
  %3017 = vrot.lane.b32.xlu0 %v585, 80
  %v3018 = vpop.permute.xlu0 %3017
  %v3019 = vsel %vm1182, %v3016, 0
  %v3021 = vsel %vm1182, %v3018, 0
  %3023 = vmatprep.subr.mxu0 0.0
  %3024 = vmatpush1.xpose.msra.mxu0 0.0
  %3025 = vmatprep.subr.mxu0 0.0
  %3026 = vmatpush1.xpose.msra.mxu0 0.0
  %3027 = vmatprep.subr.mxu0 0.0
  %3028 = vmatpush1.xpose.msra.mxu0 0.0
  %3029 = vmatprep.subr.mxu0 0.0
  %3030 = vmatpush1.xpose.msra.mxu0 0.0
  %3031 = vmatprep.subr.mxu0 0.0
  %3032 = vmatpush1.xpose.msra.mxu0 0.0
  %3033 = vmatprep.subr.mxu0 0.0
  %3034 = vmatpush1.xpose.msra.mxu0 0.0
  %3035 = vmatprep.subr.mxu0 0.0
  %3036 = vmatpush1.xpose.msra.mxu0 0.0
  %3037 = vmatprep.subr.mxu0 0.0
  %3038 = vmatpush1.xpose.msra.mxu0 0.0
  %3039 = vmatprep.subr.mxu0 0.0
  %3040 = vmatpush1.xpose.msra.mxu0 0.0
  %3041 = vmatprep.subr.mxu0 0.0
  %3042 = vmatpush1.xpose.msra.mxu0 0.0
  %3043 = vmatprep.subr.mxu0 0.0
  %3044 = vmatpush1.xpose.msra.mxu0 0.0
  %3045 = vmatprep.subr.mxu0 0.0
  %3046 = vmatpush1.xpose.msra.mxu0 0.0
  %3047 = vmatprep.subr.mxu0 0.0
  %3048 = vmatpush1.xpose.msra.mxu0 0.0
  %3049 = vmatprep.subr.mxu0 0.0
  %3050 = vmatpush1.xpose.msra.mxu0 0.0
  %3051 = vmatprep.subr.mxu0 0.0
  %3052 = vmatpush1.xpose.msra.mxu0 0.0
  %3053 = vmatprep.subr.mxu0 0.0
  %v3054 = vand.u32 %v3021, 4294901760
  %3055 = vmatpush1.xpose.msra.mxu0 %v3054
  %3056 = vmatprep.subr.mxu0 0.0
  %3057 = vmatpush2.xpose.msra.mxu0 0.0
  %3058 = vmatprep.subr.mxu0 0.0
  %3059 = vmatpush2.xpose.msra.mxu0 0.0
  %3060 = vmatprep.subr.mxu0 0.0
  %3061 = vmatpush2.xpose.msra.mxu0 0.0
  %3062 = vmatprep.subr.mxu0 0.0
  %3063 = vmatpush2.xpose.msra.mxu0 0.0
  %3064 = vmatprep.subr.mxu0 0.0
  %3065 = vmatpush2.xpose.msra.mxu0 0.0
  %3066 = vmatprep.subr.mxu0 0.0
  %3067 = vmatpush2.xpose.msra.mxu0 0.0
  %3068 = vmatprep.subr.mxu0 0.0
  %3069 = vmatpush2.xpose.msra.mxu0 0.0
  %3070 = vmatprep.subr.mxu0 0.0
  %3071 = vmatpush2.xpose.msra.mxu0 0.0
  %3072 = vmatprep.subr.mxu0 0.0
  %3073 = vmatpush2.xpose.msra.mxu0 0.0
  %3074 = vmatprep.subr.mxu0 0.0
  %3075 = vmatpush2.xpose.msra.mxu0 0.0
  %3076 = vmatprep.subr.mxu0 0.0
  %3077 = vmatpush2.xpose.msra.mxu0 0.0
  %3078 = vmatprep.subr.mxu0 0.0
  %3079 = vmatpush2.xpose.msra.mxu0 0.0
  %3080 = vmatprep.subr.mxu0 0.0
  %3081 = vmatpush2.xpose.msra.mxu0 0.0
  %3082 = vmatprep.subr.mxu0 0.0
  %3083 = vmatpush2.xpose.msra.mxu0 0.0
  %3084 = vmatprep.subr.mxu0 0.0
  %3085 = vmatpush2.xpose.msra.mxu0 0.0
  %3086 = vmatprep.subr.mxu0 0.0
  %3087 = vmatpush2.xpose.msra.mxu0 0.0
  %3088 = vmatprep.mubr.f32.mxu0 0.0
  %v3089 = vand.u32 %v3019, 4294901760
  %v3090 = vsub.f32 %v3019, %v3089
  %v3091 = vand.u32 %v3090, 4294901760
  %v3092 = vsub.f32 %v3090, %v3091
  %v3093 = vand.u32 %v3092, 4294901760
  %3094 = vmatmul.mubr.f32.gmra.mxu0 %v3093
  %v3095 = vpop.f32.mrf.mxu0
  %v3096 = vadd.f32 0.0, %v3095
  %v3097 = vpop.f32.mrf.mxu0
  %3098 = vdwg.mxu0
  %3099 = vmatprep.subr.mxu0 0.0
  %3100 = vmatpush1.xpose.msra.mxu0 0.0
  %3101 = vmatprep.subr.mxu0 0.0
  %3102 = vmatpush1.xpose.msra.mxu0 0.0
  %3103 = vmatprep.subr.mxu0 0.0
  %3104 = vmatpush1.xpose.msra.mxu0 0.0
  %3105 = vmatprep.subr.mxu0 0.0
  %3106 = vmatpush1.xpose.msra.mxu0 0.0
  %3107 = vmatprep.subr.mxu0 0.0
  %3108 = vmatpush1.xpose.msra.mxu0 0.0
  %3109 = vmatprep.subr.mxu0 0.0
  %3110 = vmatpush1.xpose.msra.mxu0 0.0
  %3111 = vmatprep.subr.mxu0 0.0
  %3112 = vmatpush1.xpose.msra.mxu0 0.0
  %3113 = vmatprep.subr.mxu0 0.0
  %3114 = vmatpush1.xpose.msra.mxu0 0.0
  %3115 = vmatprep.subr.mxu0 0.0
  %3116 = vmatpush1.xpose.msra.mxu0 0.0
  %3117 = vmatprep.subr.mxu0 0.0
  %3118 = vmatpush1.xpose.msra.mxu0 0.0
  %3119 = vmatprep.subr.mxu0 0.0
  %3120 = vmatpush1.xpose.msra.mxu0 0.0
  %3121 = vmatprep.subr.mxu0 0.0
  %3122 = vmatpush1.xpose.msra.mxu0 0.0
  %3123 = vmatprep.subr.mxu0 0.0
  %3124 = vmatpush1.xpose.msra.mxu0 0.0
  %3125 = vmatprep.subr.mxu0 0.0
  %3126 = vmatpush1.xpose.msra.mxu0 0.0
  %3127 = vmatprep.subr.mxu0 0.0
  %3128 = vmatpush1.xpose.msra.mxu0 0.0
  %3129 = vmatprep.subr.mxu0 0.0
  %v3130 = vand.u32 %v3021, 4294901760
  %v3131 = vsub.f32 %v3021, %v3130
  %v3132 = vand.u32 %v3131, 4294901760
  %v3133 = vsub.f32 %v3131, %v3132
  %v3134 = vand.u32 %v3133, 4294901760
  %3135 = vmatpush1.xpose.msra.mxu0 %v3134
  %3136 = vmatprep.subr.mxu0 0.0
  %3137 = vmatpush2.xpose.msra.mxu0 0.0
  %3138 = vmatprep.subr.mxu0 0.0
  %3139 = vmatpush2.xpose.msra.mxu0 0.0
  %3140 = vmatprep.subr.mxu0 0.0
  %3141 = vmatpush2.xpose.msra.mxu0 0.0
  %3142 = vmatprep.subr.mxu0 0.0
  %3143 = vmatpush2.xpose.msra.mxu0 0.0
  %3144 = vmatprep.subr.mxu0 0.0
  %3145 = vmatpush2.xpose.msra.mxu0 0.0
  %3146 = vmatprep.subr.mxu0 0.0
  %3147 = vmatpush2.xpose.msra.mxu0 0.0
  %3148 = vmatprep.subr.mxu0 0.0
  %3149 = vmatpush2.xpose.msra.mxu0 0.0
  %3150 = vmatprep.subr.mxu0 0.0
  %3151 = vmatpush2.xpose.msra.mxu0 0.0
  %3152 = vmatprep.subr.mxu0 0.0
  %3153 = vmatpush2.xpose.msra.mxu0 0.0
  %3154 = vmatprep.subr.mxu0 0.0
  %3155 = vmatpush2.xpose.msra.mxu0 0.0
  %3156 = vmatprep.subr.mxu0 0.0
  %3157 = vmatpush2.xpose.msra.mxu0 0.0
  %3158 = vmatprep.subr.mxu0 0.0
  %3159 = vmatpush2.xpose.msra.mxu0 0.0
  %3160 = vmatprep.subr.mxu0 0.0
  %3161 = vmatpush2.xpose.msra.mxu0 0.0
  %3162 = vmatprep.subr.mxu0 0.0
  %3163 = vmatpush2.xpose.msra.mxu0 0.0
  %3164 = vmatprep.subr.mxu0 0.0
  %3165 = vmatpush2.xpose.msra.mxu0 0.0
  %3166 = vmatprep.subr.mxu0 0.0
  %3167 = vmatpush2.xpose.msra.mxu0 0.0
  %3168 = vmatprep.mubr.f32.mxu0 0.0
  %v3169 = vand.u32 %v3019, 4294901760
  %3170 = vmatmul.mubr.f32.gmra.mxu0 %v3169
  %v3171 = vpop.f32.mrf.mxu0
  %v3172 = vadd.f32 %v3096, %v3171
  %v3173 = vpop.f32.mrf.mxu0
  %3174 = vdwg.mxu0
  %3175 = vmatprep.subr.mxu0 0.0
  %3176 = vmatpush1.xpose.msra.mxu0 0.0
  %3177 = vmatprep.subr.mxu0 0.0
  %3178 = vmatpush1.xpose.msra.mxu0 0.0
  %3179 = vmatprep.subr.mxu0 0.0
  %3180 = vmatpush1.xpose.msra.mxu0 0.0
  %3181 = vmatprep.subr.mxu0 0.0
  %3182 = vmatpush1.xpose.msra.mxu0 0.0
  %3183 = vmatprep.subr.mxu0 0.0
  %3184 = vmatpush1.xpose.msra.mxu0 0.0
  %3185 = vmatprep.subr.mxu0 0.0
  %3186 = vmatpush1.xpose.msra.mxu0 0.0
  %3187 = vmatprep.subr.mxu0 0.0
  %3188 = vmatpush1.xpose.msra.mxu0 0.0
  %3189 = vmatprep.subr.mxu0 0.0
  %3190 = vmatpush1.xpose.msra.mxu0 0.0
  %3191 = vmatprep.subr.mxu0 0.0
  %3192 = vmatpush1.xpose.msra.mxu0 0.0
  %3193 = vmatprep.subr.mxu0 0.0
  %3194 = vmatpush1.xpose.msra.mxu0 0.0
  %3195 = vmatprep.subr.mxu0 0.0
  %3196 = vmatpush1.xpose.msra.mxu0 0.0
  %3197 = vmatprep.subr.mxu0 0.0
  %3198 = vmatpush1.xpose.msra.mxu0 0.0
  %3199 = vmatprep.subr.mxu0 0.0
  %3200 = vmatpush1.xpose.msra.mxu0 0.0
  %3201 = vmatprep.subr.mxu0 0.0
  %3202 = vmatpush1.xpose.msra.mxu0 0.0
  %3203 = vmatprep.subr.mxu0 0.0
  %3204 = vmatpush1.xpose.msra.mxu0 0.0
  %3205 = vmatprep.subr.mxu0 0.0
  %v3206 = vand.u32 %v3021, 4294901760
  %v3207 = vsub.f32 %v3021, %v3206
  %3208 = vmatpush1.xpose.msra.mxu0 %v3207
  %3209 = vmatprep.subr.mxu0 0.0
  %3210 = vmatpush2.xpose.msra.mxu0 0.0
  %3211 = vmatprep.subr.mxu0 0.0
  %3212 = vmatpush2.xpose.msra.mxu0 0.0
  %3213 = vmatprep.subr.mxu0 0.0
  %3214 = vmatpush2.xpose.msra.mxu0 0.0
  %3215 = vmatprep.subr.mxu0 0.0
  %3216 = vmatpush2.xpose.msra.mxu0 0.0
  %3217 = vmatprep.subr.mxu0 0.0
  %3218 = vmatpush2.xpose.msra.mxu0 0.0
  %3219 = vmatprep.subr.mxu0 0.0
  %3220 = vmatpush2.xpose.msra.mxu0 0.0
  %3221 = vmatprep.subr.mxu0 0.0
  %3222 = vmatpush2.xpose.msra.mxu0 0.0
  %3223 = vmatprep.subr.mxu0 0.0
  %3224 = vmatpush2.xpose.msra.mxu0 0.0
  %3225 = vmatprep.subr.mxu0 0.0
  %3226 = vmatpush2.xpose.msra.mxu0 0.0
  %3227 = vmatprep.subr.mxu0 0.0
  %3228 = vmatpush2.xpose.msra.mxu0 0.0
  %3229 = vmatprep.subr.mxu0 0.0
  %3230 = vmatpush2.xpose.msra.mxu0 0.0
  %3231 = vmatprep.subr.mxu0 0.0
  %3232 = vmatpush2.xpose.msra.mxu0 0.0
  %3233 = vmatprep.subr.mxu0 0.0
  %3234 = vmatpush2.xpose.msra.mxu0 0.0
  %3235 = vmatprep.subr.mxu0 0.0
  %3236 = vmatpush2.xpose.msra.mxu0 0.0
  %3237 = vmatprep.subr.mxu0 0.0
  %3238 = vmatpush2.xpose.msra.mxu0 0.0
  %3239 = vmatprep.subr.mxu0 0.0
  %3240 = vmatpush2.xpose.msra.mxu0 0.0
  %3241 = vmatprep.mubr.f32.mxu0 0.0
  %v3242 = vand.u32 %v3019, 4294901760
  %v3243 = vsub.f32 %v3019, %v3242
  %3244 = vmatmul.mubr.f32.gmra.mxu0 %v3243
  %v3245 = vpop.f32.mrf.mxu0
  %v3246 = vadd.f32 %v3172, %v3245
  %v3247 = vpop.f32.mrf.mxu0
  %3248 = vdwg.mxu0
  %3249 = vmatprep.subr.mxu0 0.0
  %3250 = vmatpush1.xpose.msra.mxu0 0.0
  %3251 = vmatprep.subr.mxu0 0.0
  %3252 = vmatpush1.xpose.msra.mxu0 0.0
  %3253 = vmatprep.subr.mxu0 0.0
  %3254 = vmatpush1.xpose.msra.mxu0 0.0
  %3255 = vmatprep.subr.mxu0 0.0
  %3256 = vmatpush1.xpose.msra.mxu0 0.0
  %3257 = vmatprep.subr.mxu0 0.0
  %3258 = vmatpush1.xpose.msra.mxu0 0.0
  %3259 = vmatprep.subr.mxu0 0.0
  %3260 = vmatpush1.xpose.msra.mxu0 0.0
  %3261 = vmatprep.subr.mxu0 0.0
  %3262 = vmatpush1.xpose.msra.mxu0 0.0
  %3263 = vmatprep.subr.mxu0 0.0
  %3264 = vmatpush1.xpose.msra.mxu0 0.0
  %3265 = vmatprep.subr.mxu0 0.0
  %3266 = vmatpush1.xpose.msra.mxu0 0.0
  %3267 = vmatprep.subr.mxu0 0.0
  %3268 = vmatpush1.xpose.msra.mxu0 0.0
  %3269 = vmatprep.subr.mxu0 0.0
  %3270 = vmatpush1.xpose.msra.mxu0 0.0
  %3271 = vmatprep.subr.mxu0 0.0
  %3272 = vmatpush1.xpose.msra.mxu0 0.0
  %3273 = vmatprep.subr.mxu0 0.0
  %3274 = vmatpush1.xpose.msra.mxu0 0.0
  %3275 = vmatprep.subr.mxu0 0.0
  %3276 = vmatpush1.xpose.msra.mxu0 0.0
  %3277 = vmatprep.subr.mxu0 0.0
  %3278 = vmatpush1.xpose.msra.mxu0 0.0
  %3279 = vmatprep.subr.mxu0 0.0
  %v3280 = vand.u32 %v3021, 4294901760
  %3281 = vmatpush1.xpose.msra.mxu0 %v3280
  %3282 = vmatprep.subr.mxu0 0.0
  %3283 = vmatpush2.xpose.msra.mxu0 0.0
  %3284 = vmatprep.subr.mxu0 0.0
  %3285 = vmatpush2.xpose.msra.mxu0 0.0
  %3286 = vmatprep.subr.mxu0 0.0
  %3287 = vmatpush2.xpose.msra.mxu0 0.0
  %3288 = vmatprep.subr.mxu0 0.0
  %3289 = vmatpush2.xpose.msra.mxu0 0.0
  %3290 = vmatprep.subr.mxu0 0.0
  %3291 = vmatpush2.xpose.msra.mxu0 0.0
  %3292 = vmatprep.subr.mxu0 0.0
  %3293 = vmatpush2.xpose.msra.mxu0 0.0
  %3294 = vmatprep.subr.mxu0 0.0
  %3295 = vmatpush2.xpose.msra.mxu0 0.0
  %3296 = vmatprep.subr.mxu0 0.0
  %3297 = vmatpush2.xpose.msra.mxu0 0.0
  %3298 = vmatprep.subr.mxu0 0.0
  %3299 = vmatpush2.xpose.msra.mxu0 0.0
  %3300 = vmatprep.subr.mxu0 0.0
  %3301 = vmatpush2.xpose.msra.mxu0 0.0
  %3302 = vmatprep.subr.mxu0 0.0
  %3303 = vmatpush2.xpose.msra.mxu0 0.0
  %3304 = vmatprep.subr.mxu0 0.0
  %3305 = vmatpush2.xpose.msra.mxu0 0.0
  %3306 = vmatprep.subr.mxu0 0.0
  %3307 = vmatpush2.xpose.msra.mxu0 0.0
  %3308 = vmatprep.subr.mxu0 0.0
  %3309 = vmatpush2.xpose.msra.mxu0 0.0
  %3310 = vmatprep.subr.mxu0 0.0
  %3311 = vmatpush2.xpose.msra.mxu0 0.0
  %3312 = vmatprep.subr.mxu0 0.0
  %3313 = vmatpush2.xpose.msra.mxu0 0.0
  %3314 = vmatprep.mubr.f32.mxu0 0.0
  %v3315 = vand.u32 %v3019, 4294901760
  %v3316 = vsub.f32 %v3019, %v3315
  %v3317 = vand.u32 %v3316, 4294901760
  %3318 = vmatmul.mubr.f32.gmra.mxu0 %v3317
  %v3319 = vpop.f32.mrf.mxu0
  %v3320 = vadd.f32 %v3246, %v3319
  %v3321 = vpop.f32.mrf.mxu0
  %3322 = vdwg.mxu0
  %3323 = vmatprep.subr.mxu0 0.0
  %3324 = vmatpush1.xpose.msra.mxu0 0.0
  %3325 = vmatprep.subr.mxu0 0.0
  %3326 = vmatpush1.xpose.msra.mxu0 0.0
  %3327 = vmatprep.subr.mxu0 0.0
  %3328 = vmatpush1.xpose.msra.mxu0 0.0
  %3329 = vmatprep.subr.mxu0 0.0
  %3330 = vmatpush1.xpose.msra.mxu0 0.0
  %3331 = vmatprep.subr.mxu0 0.0
  %3332 = vmatpush1.xpose.msra.mxu0 0.0
  %3333 = vmatprep.subr.mxu0 0.0
  %3334 = vmatpush1.xpose.msra.mxu0 0.0
  %3335 = vmatprep.subr.mxu0 0.0
  %3336 = vmatpush1.xpose.msra.mxu0 0.0
  %3337 = vmatprep.subr.mxu0 0.0
  %3338 = vmatpush1.xpose.msra.mxu0 0.0
  %3339 = vmatprep.subr.mxu0 0.0
  %3340 = vmatpush1.xpose.msra.mxu0 0.0
  %3341 = vmatprep.subr.mxu0 0.0
  %3342 = vmatpush1.xpose.msra.mxu0 0.0
  %3343 = vmatprep.subr.mxu0 0.0
  %3344 = vmatpush1.xpose.msra.mxu0 0.0
  %3345 = vmatprep.subr.mxu0 0.0
  %3346 = vmatpush1.xpose.msra.mxu0 0.0
  %3347 = vmatprep.subr.mxu0 0.0
  %3348 = vmatpush1.xpose.msra.mxu0 0.0
  %3349 = vmatprep.subr.mxu0 0.0
  %3350 = vmatpush1.xpose.msra.mxu0 0.0
  %3351 = vmatprep.subr.mxu0 0.0
  %3352 = vmatpush1.xpose.msra.mxu0 0.0
  %3353 = vmatprep.subr.mxu0 0.0
  %v3354 = vand.u32 %v3021, 4294901760
  %v3355 = vsub.f32 %v3021, %v3354
  %v3356 = vand.u32 %v3355, 4294901760
  %3357 = vmatpush1.xpose.msra.mxu0 %v3356
  %3358 = vmatprep.subr.mxu0 0.0
  %3359 = vmatpush2.xpose.msra.mxu0 0.0
  %3360 = vmatprep.subr.mxu0 0.0
  %3361 = vmatpush2.xpose.msra.mxu0 0.0
  %3362 = vmatprep.subr.mxu0 0.0
  %3363 = vmatpush2.xpose.msra.mxu0 0.0
  %3364 = vmatprep.subr.mxu0 0.0
  %3365 = vmatpush2.xpose.msra.mxu0 0.0
  %3366 = vmatprep.subr.mxu0 0.0
  %3367 = vmatpush2.xpose.msra.mxu0 0.0
  %3368 = vmatprep.subr.mxu0 0.0
  %3369 = vmatpush2.xpose.msra.mxu0 0.0
  %3370 = vmatprep.subr.mxu0 0.0
  %3371 = vmatpush2.xpose.msra.mxu0 0.0
  %3372 = vmatprep.subr.mxu0 0.0
  %3373 = vmatpush2.xpose.msra.mxu0 0.0
  %3374 = vmatprep.subr.mxu0 0.0
  %3375 = vmatpush2.xpose.msra.mxu0 0.0
  %3376 = vmatprep.subr.mxu0 0.0
  %3377 = vmatpush2.xpose.msra.mxu0 0.0
  %3378 = vmatprep.subr.mxu0 0.0
  %3379 = vmatpush2.xpose.msra.mxu0 0.0
  %3380 = vmatprep.subr.mxu0 0.0
  %3381 = vmatpush2.xpose.msra.mxu0 0.0
  %3382 = vmatprep.subr.mxu0 0.0
  %3383 = vmatpush2.xpose.msra.mxu0 0.0
  %3384 = vmatprep.subr.mxu0 0.0
  %3385 = vmatpush2.xpose.msra.mxu0 0.0
  %3386 = vmatprep.subr.mxu0 0.0
  %3387 = vmatpush2.xpose.msra.mxu0 0.0
  %3388 = vmatprep.subr.mxu0 0.0
  %3389 = vmatpush2.xpose.msra.mxu0 0.0
  %3390 = vmatprep.mubr.f32.mxu0 0.0
  %v3391 = vand.u32 %v3019, 4294901760
  %3392 = vmatmul.mubr.f32.gmra.mxu0 %v3391
  %v3393 = vpop.f32.mrf.mxu0
  %v3394 = vadd.f32 %v3320, %v3393
  %v3395 = vpop.f32.mrf.mxu0
  %3396 = vdwg.mxu0
  %3397 = vmatprep.subr.mxu0 0.0
  %3398 = vmatpush1.xpose.msra.mxu0 0.0
  %3399 = vmatprep.subr.mxu0 0.0
  %3400 = vmatpush1.xpose.msra.mxu0 0.0
  %3401 = vmatprep.subr.mxu0 0.0
  %3402 = vmatpush1.xpose.msra.mxu0 0.0
  %3403 = vmatprep.subr.mxu0 0.0
  %3404 = vmatpush1.xpose.msra.mxu0 0.0
  %3405 = vmatprep.subr.mxu0 0.0
  %3406 = vmatpush1.xpose.msra.mxu0 0.0
  %3407 = vmatprep.subr.mxu0 0.0
  %3408 = vmatpush1.xpose.msra.mxu0 0.0
  %3409 = vmatprep.subr.mxu0 0.0
  %3410 = vmatpush1.xpose.msra.mxu0 0.0
  %3411 = vmatprep.subr.mxu0 0.0
  %3412 = vmatpush1.xpose.msra.mxu0 0.0
  %3413 = vmatprep.subr.mxu0 0.0
  %3414 = vmatpush1.xpose.msra.mxu0 0.0
  %3415 = vmatprep.subr.mxu0 0.0
  %3416 = vmatpush1.xpose.msra.mxu0 0.0
  %3417 = vmatprep.subr.mxu0 0.0
  %3418 = vmatpush1.xpose.msra.mxu0 0.0
  %3419 = vmatprep.subr.mxu0 0.0
  %3420 = vmatpush1.xpose.msra.mxu0 0.0
  %3421 = vmatprep.subr.mxu0 0.0
  %3422 = vmatpush1.xpose.msra.mxu0 0.0
  %3423 = vmatprep.subr.mxu0 0.0
  %3424 = vmatpush1.xpose.msra.mxu0 0.0
  %3425 = vmatprep.subr.mxu0 0.0
  %3426 = vmatpush1.xpose.msra.mxu0 0.0
  %3427 = vmatprep.subr.mxu0 0.0
  %v3428 = vand.u32 %v3021, 4294901760
  %3429 = vmatpush1.xpose.msra.mxu0 %v3428
  %3430 = vmatprep.subr.mxu0 0.0
  %3431 = vmatpush2.xpose.msra.mxu0 0.0
  %3432 = vmatprep.subr.mxu0 0.0
  %3433 = vmatpush2.xpose.msra.mxu0 0.0
  %3434 = vmatprep.subr.mxu0 0.0
  %3435 = vmatpush2.xpose.msra.mxu0 0.0
  %3436 = vmatprep.subr.mxu0 0.0
  %3437 = vmatpush2.xpose.msra.mxu0 0.0
  %3438 = vmatprep.subr.mxu0 0.0
  %3439 = vmatpush2.xpose.msra.mxu0 0.0
  %3440 = vmatprep.subr.mxu0 0.0
  %3441 = vmatpush2.xpose.msra.mxu0 0.0
  %3442 = vmatprep.subr.mxu0 0.0
  %3443 = vmatpush2.xpose.msra.mxu0 0.0
  %3444 = vmatprep.subr.mxu0 0.0
  %3445 = vmatpush2.xpose.msra.mxu0 0.0
  %3446 = vmatprep.subr.mxu0 0.0
  %3447 = vmatpush2.xpose.msra.mxu0 0.0
  %3448 = vmatprep.subr.mxu0 0.0
  %3449 = vmatpush2.xpose.msra.mxu0 0.0
  %3450 = vmatprep.subr.mxu0 0.0
  %3451 = vmatpush2.xpose.msra.mxu0 0.0
  %3452 = vmatprep.subr.mxu0 0.0
  %3453 = vmatpush2.xpose.msra.mxu0 0.0
  %3454 = vmatprep.subr.mxu0 0.0
  %3455 = vmatpush2.xpose.msra.mxu0 0.0
  %3456 = vmatprep.subr.mxu0 0.0
  %3457 = vmatpush2.xpose.msra.mxu0 0.0
  %3458 = vmatprep.subr.mxu0 0.0
  %3459 = vmatpush2.xpose.msra.mxu0 0.0
  %3460 = vmatprep.subr.mxu0 0.0
  %3461 = vmatpush2.xpose.msra.mxu0 0.0
  %3462 = vmatprep.mubr.f32.mxu0 0.0
  %v3463 = vand.u32 %v3019, 4294901760
  %3464 = vmatmul.mubr.f32.gmra.mxu0 %v3463
  %v3465 = vpop.f32.mrf.mxu0
  %v3466 = vadd.f32 %v3394, %v3465
  %v3467 = vpop.f32.mrf.mxu0
  %3468 = vdwg.mxu0
  %v3469 = vmul.f32 %v3466, 0.35355338
  %v3470 = vsel %vm1182, %v3469, -inf
  %3471 = vmax.xlane.f32.xlu0 %v3470
  %v3472 = vpop.xlane.xlu0 %3471
  %v3473 = vsub.f32 %v3469, %v3472
  %v3474 = vmul.f32 %v3473, 1.442695
  %v3475 = vpow.pop %v3474
  %v3476 = vsel %vm1182, %v3475, 0.0
  %3477 = vadd.xlane.f32.xlu0 %v3476
  %v3478 = vpop.xlane.xlu0 %3477
  %v3479 = vrcp.pop %v3478
  %v3480 = vmul.f32 %v3475, %v3479
  %v3482 = vsel %vm1182, %v1170, 0
  %v3485 = vsel %vm1182, %v3480, 0
  %3487 = vmatprep.subr.mxu0 0.0
  %3488 = vmatpush1.xpose.msra.mxu0 0.0
  %3489 = vmatprep.subr.mxu0 0.0
  %3490 = vmatpush1.xpose.msra.mxu0 0.0
  %3491 = vmatprep.subr.mxu0 0.0
  %3492 = vmatpush1.xpose.msra.mxu0 0.0
  %3493 = vmatprep.subr.mxu0 0.0
  %3494 = vmatpush1.xpose.msra.mxu0 0.0
  %3495 = vmatprep.subr.mxu0 0.0
  %3496 = vmatpush1.xpose.msra.mxu0 0.0
  %3497 = vmatprep.subr.mxu0 0.0
  %3498 = vmatpush1.xpose.msra.mxu0 0.0
  %3499 = vmatprep.subr.mxu0 0.0
  %3500 = vmatpush1.xpose.msra.mxu0 0.0
  %3501 = vmatprep.subr.mxu0 0.0
  %3502 = vmatpush1.xpose.msra.mxu0 0.0
  %3503 = vmatprep.subr.mxu0 0.0
  %3504 = vmatpush1.xpose.msra.mxu0 0.0
  %3505 = vmatprep.subr.mxu0 0.0
  %3506 = vmatpush1.xpose.msra.mxu0 0.0
  %3507 = vmatprep.subr.mxu0 0.0
  %3508 = vmatpush1.xpose.msra.mxu0 0.0
  %3509 = vmatprep.subr.mxu0 0.0
  %3510 = vmatpush1.xpose.msra.mxu0 0.0
  %3511 = vmatprep.subr.mxu0 0.0
  %3512 = vmatpush1.xpose.msra.mxu0 0.0
  %3513 = vmatprep.subr.mxu0 0.0
  %3514 = vmatpush1.xpose.msra.mxu0 0.0
  %3515 = vmatprep.subr.mxu0 0.0
  %3516 = vmatpush1.xpose.msra.mxu0 0.0
  %3517 = vmatprep.subr.mxu0 0.0
  %v3518 = vand.u32 %v3485, 4294901760
  %3519 = vmatpush1.xpose.msra.mxu0 %v3518
  %3520 = vmatprep.subr.mxu0 0.0
  %3521 = vmatpush2.xpose.msra.mxu0 0.0
  %3522 = vmatprep.subr.mxu0 0.0
  %3523 = vmatpush2.xpose.msra.mxu0 0.0
  %3524 = vmatprep.subr.mxu0 0.0
  %3525 = vmatpush2.xpose.msra.mxu0 0.0
  %3526 = vmatprep.subr.mxu0 0.0
  %3527 = vmatpush2.xpose.msra.mxu0 0.0
  %3528 = vmatprep.subr.mxu0 0.0
  %3529 = vmatpush2.xpose.msra.mxu0 0.0
  %3530 = vmatprep.subr.mxu0 0.0
  %3531 = vmatpush2.xpose.msra.mxu0 0.0
  %3532 = vmatprep.subr.mxu0 0.0
  %3533 = vmatpush2.xpose.msra.mxu0 0.0
  %3534 = vmatprep.subr.mxu0 0.0
  %3535 = vmatpush2.xpose.msra.mxu0 0.0
  %3536 = vmatprep.subr.mxu0 0.0
  %3537 = vmatpush2.xpose.msra.mxu0 0.0
  %3538 = vmatprep.subr.mxu0 0.0
  %3539 = vmatpush2.xpose.msra.mxu0 0.0
  %3540 = vmatprep.subr.mxu0 0.0
  %3541 = vmatpush2.xpose.msra.mxu0 0.0
  %3542 = vmatprep.subr.mxu0 0.0
  %3543 = vmatpush2.xpose.msra.mxu0 0.0
  %3544 = vmatprep.subr.mxu0 0.0
  %3545 = vmatpush2.xpose.msra.mxu0 0.0
  %3546 = vmatprep.subr.mxu0 0.0
  %3547 = vmatpush2.xpose.msra.mxu0 0.0
  %3548 = vmatprep.subr.mxu0 0.0
  %3549 = vmatpush2.xpose.msra.mxu0 0.0
  %3550 = vmatprep.subr.mxu0 0.0
  %3551 = vmatpush2.xpose.msra.mxu0 0.0
  %3552 = vmatprep.mubr.f32.mxu0 0.0
  %v3553 = vand.u32 %v3482, 4294901760
  %v3554 = vsub.f32 %v3482, %v3553
  %v3555 = vand.u32 %v3554, 4294901760
  %v3556 = vsub.f32 %v3554, %v3555
  %v3557 = vand.u32 %v3556, 4294901760
  %3558 = vmatmul.mubr.f32.gmra.mxu0 %v3557
  %v3559 = vpop.f32.mrf.mxu0
  %v3560 = vadd.f32 0.0, %v3559
  %v3561 = vpop.f32.mrf.mxu0
  %3562 = vdwg.mxu0
  %3563 = vmatprep.subr.mxu0 0.0
  %3564 = vmatpush1.xpose.msra.mxu0 0.0
  %3565 = vmatprep.subr.mxu0 0.0
  %3566 = vmatpush1.xpose.msra.mxu0 0.0
  %3567 = vmatprep.subr.mxu0 0.0
  %3568 = vmatpush1.xpose.msra.mxu0 0.0
  %3569 = vmatprep.subr.mxu0 0.0
  %3570 = vmatpush1.xpose.msra.mxu0 0.0
  %3571 = vmatprep.subr.mxu0 0.0
  %3572 = vmatpush1.xpose.msra.mxu0 0.0
  %3573 = vmatprep.subr.mxu0 0.0
  %3574 = vmatpush1.xpose.msra.mxu0 0.0
  %3575 = vmatprep.subr.mxu0 0.0
  %3576 = vmatpush1.xpose.msra.mxu0 0.0
  %3577 = vmatprep.subr.mxu0 0.0
  %3578 = vmatpush1.xpose.msra.mxu0 0.0
  %3579 = vmatprep.subr.mxu0 0.0
  %3580 = vmatpush1.xpose.msra.mxu0 0.0
  %3581 = vmatprep.subr.mxu0 0.0
  %3582 = vmatpush1.xpose.msra.mxu0 0.0
  %3583 = vmatprep.subr.mxu0 0.0
  %3584 = vmatpush1.xpose.msra.mxu0 0.0
  %3585 = vmatprep.subr.mxu0 0.0
  %3586 = vmatpush1.xpose.msra.mxu0 0.0
  %3587 = vmatprep.subr.mxu0 0.0
  %3588 = vmatpush1.xpose.msra.mxu0 0.0
  %3589 = vmatprep.subr.mxu0 0.0
  %3590 = vmatpush1.xpose.msra.mxu0 0.0
  %3591 = vmatprep.subr.mxu0 0.0
  %3592 = vmatpush1.xpose.msra.mxu0 0.0
  %3593 = vmatprep.subr.mxu0 0.0
  %v3594 = vand.u32 %v3485, 4294901760
  %v3595 = vsub.f32 %v3485, %v3594
  %v3596 = vand.u32 %v3595, 4294901760
  %v3597 = vsub.f32 %v3595, %v3596
  %v3598 = vand.u32 %v3597, 4294901760
  %3599 = vmatpush1.xpose.msra.mxu0 %v3598
  %3600 = vmatprep.subr.mxu0 0.0
  %3601 = vmatpush2.xpose.msra.mxu0 0.0
  %3602 = vmatprep.subr.mxu0 0.0
  %3603 = vmatpush2.xpose.msra.mxu0 0.0
  %3604 = vmatprep.subr.mxu0 0.0
  %3605 = vmatpush2.xpose.msra.mxu0 0.0
  %3606 = vmatprep.subr.mxu0 0.0
  %3607 = vmatpush2.xpose.msra.mxu0 0.0
  %3608 = vmatprep.subr.mxu0 0.0
  %3609 = vmatpush2.xpose.msra.mxu0 0.0
  %3610 = vmatprep.subr.mxu0 0.0
  %3611 = vmatpush2.xpose.msra.mxu0 0.0
  %3612 = vmatprep.subr.mxu0 0.0
  %3613 = vmatpush2.xpose.msra.mxu0 0.0
  %3614 = vmatprep.subr.mxu0 0.0
  %3615 = vmatpush2.xpose.msra.mxu0 0.0
  %3616 = vmatprep.subr.mxu0 0.0
  %3617 = vmatpush2.xpose.msra.mxu0 0.0
  %3618 = vmatprep.subr.mxu0 0.0
  %3619 = vmatpush2.xpose.msra.mxu0 0.0
  %3620 = vmatprep.subr.mxu0 0.0
  %3621 = vmatpush2.xpose.msra.mxu0 0.0
  %3622 = vmatprep.subr.mxu0 0.0
  %3623 = vmatpush2.xpose.msra.mxu0 0.0
  %3624 = vmatprep.subr.mxu0 0.0
  %3625 = vmatpush2.xpose.msra.mxu0 0.0
  %3626 = vmatprep.subr.mxu0 0.0
  %3627 = vmatpush2.xpose.msra.mxu0 0.0
  %3628 = vmatprep.subr.mxu0 0.0
  %3629 = vmatpush2.xpose.msra.mxu0 0.0
  %3630 = vmatprep.subr.mxu0 0.0
  %3631 = vmatpush2.xpose.msra.mxu0 0.0
  %3632 = vmatprep.mubr.f32.mxu0 0.0
  %v3633 = vand.u32 %v3482, 4294901760
  %3634 = vmatmul.mubr.f32.gmra.mxu0 %v3633
  %v3635 = vpop.f32.mrf.mxu0
  %v3636 = vadd.f32 %v3560, %v3635
  %v3637 = vpop.f32.mrf.mxu0
  %3638 = vdwg.mxu0
  %3639 = vmatprep.subr.mxu0 0.0
  %3640 = vmatpush1.xpose.msra.mxu0 0.0
  %3641 = vmatprep.subr.mxu0 0.0
  %3642 = vmatpush1.xpose.msra.mxu0 0.0
  %3643 = vmatprep.subr.mxu0 0.0
  %3644 = vmatpush1.xpose.msra.mxu0 0.0
  %3645 = vmatprep.subr.mxu0 0.0
  %3646 = vmatpush1.xpose.msra.mxu0 0.0
  %3647 = vmatprep.subr.mxu0 0.0
  %3648 = vmatpush1.xpose.msra.mxu0 0.0
  %3649 = vmatprep.subr.mxu0 0.0
  %3650 = vmatpush1.xpose.msra.mxu0 0.0
  %3651 = vmatprep.subr.mxu0 0.0
  %3652 = vmatpush1.xpose.msra.mxu0 0.0
  %3653 = vmatprep.subr.mxu0 0.0
  %3654 = vmatpush1.xpose.msra.mxu0 0.0
  %3655 = vmatprep.subr.mxu0 0.0
  %3656 = vmatpush1.xpose.msra.mxu0 0.0
  %3657 = vmatprep.subr.mxu0 0.0
  %3658 = vmatpush1.xpose.msra.mxu0 0.0
  %3659 = vmatprep.subr.mxu0 0.0
  %3660 = vmatpush1.xpose.msra.mxu0 0.0
  %3661 = vmatprep.subr.mxu0 0.0
  %3662 = vmatpush1.xpose.msra.mxu0 0.0
  %3663 = vmatprep.subr.mxu0 0.0
  %3664 = vmatpush1.xpose.msra.mxu0 0.0
  %3665 = vmatprep.subr.mxu0 0.0
  %3666 = vmatpush1.xpose.msra.mxu0 0.0
  %3667 = vmatprep.subr.mxu0 0.0
  %3668 = vmatpush1.xpose.msra.mxu0 0.0
  %3669 = vmatprep.subr.mxu0 0.0
  %v3670 = vand.u32 %v3485, 4294901760
  %v3671 = vsub.f32 %v3485, %v3670
  %3672 = vmatpush1.xpose.msra.mxu0 %v3671
  %3673 = vmatprep.subr.mxu0 0.0
  %3674 = vmatpush2.xpose.msra.mxu0 0.0
  %3675 = vmatprep.subr.mxu0 0.0
  %3676 = vmatpush2.xpose.msra.mxu0 0.0
  %3677 = vmatprep.subr.mxu0 0.0
  %3678 = vmatpush2.xpose.msra.mxu0 0.0
  %3679 = vmatprep.subr.mxu0 0.0
  %3680 = vmatpush2.xpose.msra.mxu0 0.0
  %3681 = vmatprep.subr.mxu0 0.0
  %3682 = vmatpush2.xpose.msra.mxu0 0.0
  %3683 = vmatprep.subr.mxu0 0.0
  %3684 = vmatpush2.xpose.msra.mxu0 0.0
  %3685 = vmatprep.subr.mxu0 0.0
  %3686 = vmatpush2.xpose.msra.mxu0 0.0
  %3687 = vmatprep.subr.mxu0 0.0
  %3688 = vmatpush2.xpose.msra.mxu0 0.0
  %3689 = vmatprep.subr.mxu0 0.0
  %3690 = vmatpush2.xpose.msra.mxu0 0.0
  %3691 = vmatprep.subr.mxu0 0.0
  %3692 = vmatpush2.xpose.msra.mxu0 0.0
  %3693 = vmatprep.subr.mxu0 0.0
  %3694 = vmatpush2.xpose.msra.mxu0 0.0
  %3695 = vmatprep.subr.mxu0 0.0
  %3696 = vmatpush2.xpose.msra.mxu0 0.0
  %3697 = vmatprep.subr.mxu0 0.0
  %3698 = vmatpush2.xpose.msra.mxu0 0.0
  %3699 = vmatprep.subr.mxu0 0.0
  %3700 = vmatpush2.xpose.msra.mxu0 0.0
  %3701 = vmatprep.subr.mxu0 0.0
  %3702 = vmatpush2.xpose.msra.mxu0 0.0
  %3703 = vmatprep.subr.mxu0 0.0
  %3704 = vmatpush2.xpose.msra.mxu0 0.0
  %3705 = vmatprep.mubr.f32.mxu0 0.0
  %v3706 = vand.u32 %v3482, 4294901760
  %v3707 = vsub.f32 %v3482, %v3706
  %3708 = vmatmul.mubr.f32.gmra.mxu0 %v3707
  %v3709 = vpop.f32.mrf.mxu0
  %v3710 = vadd.f32 %v3636, %v3709
  %v3711 = vpop.f32.mrf.mxu0
  %3712 = vdwg.mxu0
  %3713 = vmatprep.subr.mxu0 0.0
  %3714 = vmatpush1.xpose.msra.mxu0 0.0
  %3715 = vmatprep.subr.mxu0 0.0
  %3716 = vmatpush1.xpose.msra.mxu0 0.0
  %3717 = vmatprep.subr.mxu0 0.0
  %3718 = vmatpush1.xpose.msra.mxu0 0.0
  %3719 = vmatprep.subr.mxu0 0.0
  %3720 = vmatpush1.xpose.msra.mxu0 0.0
  %3721 = vmatprep.subr.mxu0 0.0
  %3722 = vmatpush1.xpose.msra.mxu0 0.0
  %3723 = vmatprep.subr.mxu0 0.0
  %3724 = vmatpush1.xpose.msra.mxu0 0.0
  %3725 = vmatprep.subr.mxu0 0.0
  %3726 = vmatpush1.xpose.msra.mxu0 0.0
  %3727 = vmatprep.subr.mxu0 0.0
  %3728 = vmatpush1.xpose.msra.mxu0 0.0
  %3729 = vmatprep.subr.mxu0 0.0
  %3730 = vmatpush1.xpose.msra.mxu0 0.0
  %3731 = vmatprep.subr.mxu0 0.0
  %3732 = vmatpush1.xpose.msra.mxu0 0.0
  %3733 = vmatprep.subr.mxu0 0.0
  %3734 = vmatpush1.xpose.msra.mxu0 0.0
  %3735 = vmatprep.subr.mxu0 0.0
  %3736 = vmatpush1.xpose.msra.mxu0 0.0
  %3737 = vmatprep.subr.mxu0 0.0
  %3738 = vmatpush1.xpose.msra.mxu0 0.0
  %3739 = vmatprep.subr.mxu0 0.0
  %3740 = vmatpush1.xpose.msra.mxu0 0.0
  %3741 = vmatprep.subr.mxu0 0.0
  %3742 = vmatpush1.xpose.msra.mxu0 0.0
  %3743 = vmatprep.subr.mxu0 0.0
  %v3744 = vand.u32 %v3485, 4294901760
  %3745 = vmatpush1.xpose.msra.mxu0 %v3744
  %3746 = vmatprep.subr.mxu0 0.0
  %3747 = vmatpush2.xpose.msra.mxu0 0.0
  %3748 = vmatprep.subr.mxu0 0.0
  %3749 = vmatpush2.xpose.msra.mxu0 0.0
  %3750 = vmatprep.subr.mxu0 0.0
  %3751 = vmatpush2.xpose.msra.mxu0 0.0
  %3752 = vmatprep.subr.mxu0 0.0
  %3753 = vmatpush2.xpose.msra.mxu0 0.0
  %3754 = vmatprep.subr.mxu0 0.0
  %3755 = vmatpush2.xpose.msra.mxu0 0.0
  %3756 = vmatprep.subr.mxu0 0.0
  %3757 = vmatpush2.xpose.msra.mxu0 0.0
  %3758 = vmatprep.subr.mxu0 0.0
  %3759 = vmatpush2.xpose.msra.mxu0 0.0
  %3760 = vmatprep.subr.mxu0 0.0
  %3761 = vmatpush2.xpose.msra.mxu0 0.0
  %3762 = vmatprep.subr.mxu0 0.0
  %3763 = vmatpush2.xpose.msra.mxu0 0.0
  %3764 = vmatprep.subr.mxu0 0.0
  %3765 = vmatpush2.xpose.msra.mxu0 0.0
  %3766 = vmatprep.subr.mxu0 0.0
  %3767 = vmatpush2.xpose.msra.mxu0 0.0
  %3768 = vmatprep.subr.mxu0 0.0
  %3769 = vmatpush2.xpose.msra.mxu0 0.0
  %3770 = vmatprep.subr.mxu0 0.0
  %3771 = vmatpush2.xpose.msra.mxu0 0.0
  %3772 = vmatprep.subr.mxu0 0.0
  %3773 = vmatpush2.xpose.msra.mxu0 0.0
  %3774 = vmatprep.subr.mxu0 0.0
  %3775 = vmatpush2.xpose.msra.mxu0 0.0
  %3776 = vmatprep.subr.mxu0 0.0
  %3777 = vmatpush2.xpose.msra.mxu0 0.0
  %3778 = vmatprep.mubr.f32.mxu0 0.0
  %v3779 = vand.u32 %v3482, 4294901760
  %v3780 = vsub.f32 %v3482, %v3779
  %v3781 = vand.u32 %v3780, 4294901760
  %3782 = vmatmul.mubr.f32.gmra.mxu0 %v3781
  %v3783 = vpop.f32.mrf.mxu0
  %v3784 = vadd.f32 %v3710, %v3783
  %v3785 = vpop.f32.mrf.mxu0
  %3786 = vdwg.mxu0
  %3787 = vmatprep.subr.mxu0 0.0
  %3788 = vmatpush1.xpose.msra.mxu0 0.0
  %3789 = vmatprep.subr.mxu0 0.0
  %3790 = vmatpush1.xpose.msra.mxu0 0.0
  %3791 = vmatprep.subr.mxu0 0.0
  %3792 = vmatpush1.xpose.msra.mxu0 0.0
  %3793 = vmatprep.subr.mxu0 0.0
  %3794 = vmatpush1.xpose.msra.mxu0 0.0
  %3795 = vmatprep.subr.mxu0 0.0
  %3796 = vmatpush1.xpose.msra.mxu0 0.0
  %3797 = vmatprep.subr.mxu0 0.0
  %3798 = vmatpush1.xpose.msra.mxu0 0.0
  %3799 = vmatprep.subr.mxu0 0.0
  %3800 = vmatpush1.xpose.msra.mxu0 0.0
  %3801 = vmatprep.subr.mxu0 0.0
  %3802 = vmatpush1.xpose.msra.mxu0 0.0
  %3803 = vmatprep.subr.mxu0 0.0
  %3804 = vmatpush1.xpose.msra.mxu0 0.0
  %3805 = vmatprep.subr.mxu0 0.0
  %3806 = vmatpush1.xpose.msra.mxu0 0.0
  %3807 = vmatprep.subr.mxu0 0.0
  %3808 = vmatpush1.xpose.msra.mxu0 0.0
  %3809 = vmatprep.subr.mxu0 0.0
  %3810 = vmatpush1.xpose.msra.mxu0 0.0
  %3811 = vmatprep.subr.mxu0 0.0
  %3812 = vmatpush1.xpose.msra.mxu0 0.0
  %3813 = vmatprep.subr.mxu0 0.0
  %3814 = vmatpush1.xpose.msra.mxu0 0.0
  %3815 = vmatprep.subr.mxu0 0.0
  %3816 = vmatpush1.xpose.msra.mxu0 0.0
  %3817 = vmatprep.subr.mxu0 0.0
  %v3818 = vand.u32 %v3485, 4294901760
  %v3819 = vsub.f32 %v3485, %v3818
  %v3820 = vand.u32 %v3819, 4294901760
  %3821 = vmatpush1.xpose.msra.mxu0 %v3820
  %3822 = vmatprep.subr.mxu0 0.0
  %3823 = vmatpush2.xpose.msra.mxu0 0.0
  %3824 = vmatprep.subr.mxu0 0.0
  %3825 = vmatpush2.xpose.msra.mxu0 0.0
  %3826 = vmatprep.subr.mxu0 0.0
  %3827 = vmatpush2.xpose.msra.mxu0 0.0
  %3828 = vmatprep.subr.mxu0 0.0
  %3829 = vmatpush2.xpose.msra.mxu0 0.0
  %3830 = vmatprep.subr.mxu0 0.0
  %3831 = vmatpush2.xpose.msra.mxu0 0.0
  %3832 = vmatprep.subr.mxu0 0.0
  %3833 = vmatpush2.xpose.msra.mxu0 0.0
  %3834 = vmatprep.subr.mxu0 0.0
  %3835 = vmatpush2.xpose.msra.mxu0 0.0
  %3836 = vmatprep.subr.mxu0 0.0
  %3837 = vmatpush2.xpose.msra.mxu0 0.0
  %3838 = vmatprep.subr.mxu0 0.0
  %3839 = vmatpush2.xpose.msra.mxu0 0.0
  %3840 = vmatprep.subr.mxu0 0.0
  %3841 = vmatpush2.xpose.msra.mxu0 0.0
  %3842 = vmatprep.subr.mxu0 0.0
  %3843 = vmatpush2.xpose.msra.mxu0 0.0
  %3844 = vmatprep.subr.mxu0 0.0
  %3845 = vmatpush2.xpose.msra.mxu0 0.0
  %3846 = vmatprep.subr.mxu0 0.0
  %3847 = vmatpush2.xpose.msra.mxu0 0.0
  %3848 = vmatprep.subr.mxu0 0.0
  %3849 = vmatpush2.xpose.msra.mxu0 0.0
  %3850 = vmatprep.subr.mxu0 0.0
  %3851 = vmatpush2.xpose.msra.mxu0 0.0
  %3852 = vmatprep.subr.mxu0 0.0
  %3853 = vmatpush2.xpose.msra.mxu0 0.0
  %3854 = vmatprep.mubr.f32.mxu0 0.0
  %v3855 = vand.u32 %v3482, 4294901760
  %3856 = vmatmul.mubr.f32.gmra.mxu0 %v3855
  %v3857 = vpop.f32.mrf.mxu0
  %v3858 = vadd.f32 %v3784, %v3857
  %v3859 = vpop.f32.mrf.mxu0
  %3860 = vdwg.mxu0
  %3861 = vmatprep.subr.mxu0 0.0
  %3862 = vmatpush1.xpose.msra.mxu0 0.0
  %3863 = vmatprep.subr.mxu0 0.0
  %3864 = vmatpush1.xpose.msra.mxu0 0.0
  %3865 = vmatprep.subr.mxu0 0.0
  %3866 = vmatpush1.xpose.msra.mxu0 0.0
  %3867 = vmatprep.subr.mxu0 0.0
  %3868 = vmatpush1.xpose.msra.mxu0 0.0
  %3869 = vmatprep.subr.mxu0 0.0
  %3870 = vmatpush1.xpose.msra.mxu0 0.0
  %3871 = vmatprep.subr.mxu0 0.0
  %3872 = vmatpush1.xpose.msra.mxu0 0.0
  %3873 = vmatprep.subr.mxu0 0.0
  %3874 = vmatpush1.xpose.msra.mxu0 0.0
  %3875 = vmatprep.subr.mxu0 0.0
  %3876 = vmatpush1.xpose.msra.mxu0 0.0
  %3877 = vmatprep.subr.mxu0 0.0
  %3878 = vmatpush1.xpose.msra.mxu0 0.0
  %3879 = vmatprep.subr.mxu0 0.0
  %3880 = vmatpush1.xpose.msra.mxu0 0.0
  %3881 = vmatprep.subr.mxu0 0.0
  %3882 = vmatpush1.xpose.msra.mxu0 0.0
  %3883 = vmatprep.subr.mxu0 0.0
  %3884 = vmatpush1.xpose.msra.mxu0 0.0
  %3885 = vmatprep.subr.mxu0 0.0
  %3886 = vmatpush1.xpose.msra.mxu0 0.0
  %3887 = vmatprep.subr.mxu0 0.0
  %3888 = vmatpush1.xpose.msra.mxu0 0.0
  %3889 = vmatprep.subr.mxu0 0.0
  %3890 = vmatpush1.xpose.msra.mxu0 0.0
  %3891 = vmatprep.subr.mxu0 0.0
  %v3892 = vand.u32 %v3485, 4294901760
  %3893 = vmatpush1.xpose.msra.mxu0 %v3892
  %3894 = vmatprep.subr.mxu0 0.0
  %3895 = vmatpush2.xpose.msra.mxu0 0.0
  %3896 = vmatprep.subr.mxu0 0.0
  %3897 = vmatpush2.xpose.msra.mxu0 0.0
  %3898 = vmatprep.subr.mxu0 0.0
  %3899 = vmatpush2.xpose.msra.mxu0 0.0
  %3900 = vmatprep.subr.mxu0 0.0
  %3901 = vmatpush2.xpose.msra.mxu0 0.0
  %3902 = vmatprep.subr.mxu0 0.0
  %3903 = vmatpush2.xpose.msra.mxu0 0.0
  %3904 = vmatprep.subr.mxu0 0.0
  %3905 = vmatpush2.xpose.msra.mxu0 0.0
  %3906 = vmatprep.subr.mxu0 0.0
  %3907 = vmatpush2.xpose.msra.mxu0 0.0
  %3908 = vmatprep.subr.mxu0 0.0
  %3909 = vmatpush2.xpose.msra.mxu0 0.0
  %3910 = vmatprep.subr.mxu0 0.0
  %3911 = vmatpush2.xpose.msra.mxu0 0.0
  %3912 = vmatprep.subr.mxu0 0.0
  %3913 = vmatpush2.xpose.msra.mxu0 0.0
  %3914 = vmatprep.subr.mxu0 0.0
  %3915 = vmatpush2.xpose.msra.mxu0 0.0
  %3916 = vmatprep.subr.mxu0 0.0
  %3917 = vmatpush2.xpose.msra.mxu0 0.0
  %3918 = vmatprep.subr.mxu0 0.0
  %3919 = vmatpush2.xpose.msra.mxu0 0.0
  %3920 = vmatprep.subr.mxu0 0.0
  %3921 = vmatpush2.xpose.msra.mxu0 0.0
  %3922 = vmatprep.subr.mxu0 0.0
  %3923 = vmatpush2.xpose.msra.mxu0 0.0
  %3924 = vmatprep.subr.mxu0 0.0
  %3925 = vmatpush2.xpose.msra.mxu0 0.0
  %3926 = vmatprep.mubr.f32.mxu0 0.0
  %v3927 = vand.u32 %v3482, 4294901760
  %3928 = vmatmul.mubr.f32.gmra.mxu0 %v3927
  %v3929 = vpop.f32.mrf.mxu0
  %v3930 = vadd.f32 %v3858, %v3929
  %v3931 = vpop.f32.mrf.mxu0
  %3932 = vdwg.mxu0
  %3933 = vrot.lane.b32.xlu0 %v585, 104
  %v3934 = vpop.permute.xlu0 %3933
  %3935 = vrot.lane.b32.xlu0 %v585, 72
  %v3936 = vpop.permute.xlu0 %3935
  %v3937 = vsel %vm1182, %v3934, 0
  %v3939 = vsel %vm1182, %v3936, 0
  %3941 = vmatprep.subr.mxu0 0.0
  %3942 = vmatpush1.xpose.msra.mxu0 0.0
  %3943 = vmatprep.subr.mxu0 0.0
  %3944 = vmatpush1.xpose.msra.mxu0 0.0
  %3945 = vmatprep.subr.mxu0 0.0
  %3946 = vmatpush1.xpose.msra.mxu0 0.0
  %3947 = vmatprep.subr.mxu0 0.0
  %3948 = vmatpush1.xpose.msra.mxu0 0.0
  %3949 = vmatprep.subr.mxu0 0.0
  %3950 = vmatpush1.xpose.msra.mxu0 0.0
  %3951 = vmatprep.subr.mxu0 0.0
  %3952 = vmatpush1.xpose.msra.mxu0 0.0
  %3953 = vmatprep.subr.mxu0 0.0
  %3954 = vmatpush1.xpose.msra.mxu0 0.0
  %3955 = vmatprep.subr.mxu0 0.0
  %3956 = vmatpush1.xpose.msra.mxu0 0.0
  %3957 = vmatprep.subr.mxu0 0.0
  %3958 = vmatpush1.xpose.msra.mxu0 0.0
  %3959 = vmatprep.subr.mxu0 0.0
  %3960 = vmatpush1.xpose.msra.mxu0 0.0
  %3961 = vmatprep.subr.mxu0 0.0
  %3962 = vmatpush1.xpose.msra.mxu0 0.0
  %3963 = vmatprep.subr.mxu0 0.0
  %3964 = vmatpush1.xpose.msra.mxu0 0.0
  %3965 = vmatprep.subr.mxu0 0.0
  %3966 = vmatpush1.xpose.msra.mxu0 0.0
  %3967 = vmatprep.subr.mxu0 0.0
  %3968 = vmatpush1.xpose.msra.mxu0 0.0
  %3969 = vmatprep.subr.mxu0 0.0
  %3970 = vmatpush1.xpose.msra.mxu0 0.0
  %3971 = vmatprep.subr.mxu0 0.0
  %v3972 = vand.u32 %v3939, 4294901760
  %3973 = vmatpush1.xpose.msra.mxu0 %v3972
  %3974 = vmatprep.subr.mxu0 0.0
  %3975 = vmatpush2.xpose.msra.mxu0 0.0
  %3976 = vmatprep.subr.mxu0 0.0
  %3977 = vmatpush2.xpose.msra.mxu0 0.0
  %3978 = vmatprep.subr.mxu0 0.0
  %3979 = vmatpush2.xpose.msra.mxu0 0.0
  %3980 = vmatprep.subr.mxu0 0.0
  %3981 = vmatpush2.xpose.msra.mxu0 0.0
  %3982 = vmatprep.subr.mxu0 0.0
  %3983 = vmatpush2.xpose.msra.mxu0 0.0
  %3984 = vmatprep.subr.mxu0 0.0
  %3985 = vmatpush2.xpose.msra.mxu0 0.0
  %3986 = vmatprep.subr.mxu0 0.0
  %3987 = vmatpush2.xpose.msra.mxu0 0.0
  %3988 = vmatprep.subr.mxu0 0.0
  %3989 = vmatpush2.xpose.msra.mxu0 0.0
  %3990 = vmatprep.subr.mxu0 0.0
  %3991 = vmatpush2.xpose.msra.mxu0 0.0
  %3992 = vmatprep.subr.mxu0 0.0
  %3993 = vmatpush2.xpose.msra.mxu0 0.0
  %3994 = vmatprep.subr.mxu0 0.0
  %3995 = vmatpush2.xpose.msra.mxu0 0.0
  %3996 = vmatprep.subr.mxu0 0.0
  %3997 = vmatpush2.xpose.msra.mxu0 0.0
  %3998 = vmatprep.subr.mxu0 0.0
  %3999 = vmatpush2.xpose.msra.mxu0 0.0
  %4000 = vmatprep.subr.mxu0 0.0
  %4001 = vmatpush2.xpose.msra.mxu0 0.0
  %4002 = vmatprep.subr.mxu0 0.0
  %4003 = vmatpush2.xpose.msra.mxu0 0.0
  %4004 = vmatprep.subr.mxu0 0.0
  %4005 = vmatpush2.xpose.msra.mxu0 0.0
  %4006 = vmatprep.mubr.f32.mxu0 0.0
  %v4007 = vand.u32 %v3937, 4294901760
  %v4008 = vsub.f32 %v3937, %v4007
  %v4009 = vand.u32 %v4008, 4294901760
  %v4010 = vsub.f32 %v4008, %v4009
  %v4011 = vand.u32 %v4010, 4294901760
  %4012 = vmatmul.mubr.f32.gmra.mxu0 %v4011
  %v4013 = vpop.f32.mrf.mxu0
  %v4014 = vadd.f32 0.0, %v4013
  %v4015 = vpop.f32.mrf.mxu0
  %4016 = vdwg.mxu0
  %4017 = vmatprep.subr.mxu0 0.0
  %4018 = vmatpush1.xpose.msra.mxu0 0.0
  %4019 = vmatprep.subr.mxu0 0.0
  %4020 = vmatpush1.xpose.msra.mxu0 0.0
  %4021 = vmatprep.subr.mxu0 0.0
  %4022 = vmatpush1.xpose.msra.mxu0 0.0
  %4023 = vmatprep.subr.mxu0 0.0
  %4024 = vmatpush1.xpose.msra.mxu0 0.0
  %4025 = vmatprep.subr.mxu0 0.0
  %4026 = vmatpush1.xpose.msra.mxu0 0.0
  %4027 = vmatprep.subr.mxu0 0.0
  %4028 = vmatpush1.xpose.msra.mxu0 0.0
  %4029 = vmatprep.subr.mxu0 0.0
  %4030 = vmatpush1.xpose.msra.mxu0 0.0
  %4031 = vmatprep.subr.mxu0 0.0
  %4032 = vmatpush1.xpose.msra.mxu0 0.0
  %4033 = vmatprep.subr.mxu0 0.0
  %4034 = vmatpush1.xpose.msra.mxu0 0.0
  %4035 = vmatprep.subr.mxu0 0.0
  %4036 = vmatpush1.xpose.msra.mxu0 0.0
  %4037 = vmatprep.subr.mxu0 0.0
  %4038 = vmatpush1.xpose.msra.mxu0 0.0
  %4039 = vmatprep.subr.mxu0 0.0
  %4040 = vmatpush1.xpose.msra.mxu0 0.0
  %4041 = vmatprep.subr.mxu0 0.0
  %4042 = vmatpush1.xpose.msra.mxu0 0.0
  %4043 = vmatprep.subr.mxu0 0.0
  %4044 = vmatpush1.xpose.msra.mxu0 0.0
  %4045 = vmatprep.subr.mxu0 0.0
  %4046 = vmatpush1.xpose.msra.mxu0 0.0
  %4047 = vmatprep.subr.mxu0 0.0
  %v4048 = vand.u32 %v3939, 4294901760
  %v4049 = vsub.f32 %v3939, %v4048
  %v4050 = vand.u32 %v4049, 4294901760
  %v4051 = vsub.f32 %v4049, %v4050
  %v4052 = vand.u32 %v4051, 4294901760
  %4053 = vmatpush1.xpose.msra.mxu0 %v4052
  %4054 = vmatprep.subr.mxu0 0.0
  %4055 = vmatpush2.xpose.msra.mxu0 0.0
  %4056 = vmatprep.subr.mxu0 0.0
  %4057 = vmatpush2.xpose.msra.mxu0 0.0
  %4058 = vmatprep.subr.mxu0 0.0
  %4059 = vmatpush2.xpose.msra.mxu0 0.0
  %4060 = vmatprep.subr.mxu0 0.0
  %4061 = vmatpush2.xpose.msra.mxu0 0.0
  %4062 = vmatprep.subr.mxu0 0.0
  %4063 = vmatpush2.xpose.msra.mxu0 0.0
  %4064 = vmatprep.subr.mxu0 0.0
  %4065 = vmatpush2.xpose.msra.mxu0 0.0
  %4066 = vmatprep.subr.mxu0 0.0
  %4067 = vmatpush2.xpose.msra.mxu0 0.0
  %4068 = vmatprep.subr.mxu0 0.0
  %4069 = vmatpush2.xpose.msra.mxu0 0.0
  %4070 = vmatprep.subr.mxu0 0.0
  %4071 = vmatpush2.xpose.msra.mxu0 0.0
  %4072 = vmatprep.subr.mxu0 0.0
  %4073 = vmatpush2.xpose.msra.mxu0 0.0
  %4074 = vmatprep.subr.mxu0 0.0
  %4075 = vmatpush2.xpose.msra.mxu0 0.0
  %4076 = vmatprep.subr.mxu0 0.0
  %4077 = vmatpush2.xpose.msra.mxu0 0.0
  %4078 = vmatprep.subr.mxu0 0.0
  %4079 = vmatpush2.xpose.msra.mxu0 0.0
  %4080 = vmatprep.subr.mxu0 0.0
  %4081 = vmatpush2.xpose.msra.mxu0 0.0
  %4082 = vmatprep.subr.mxu0 0.0
  %4083 = vmatpush2.xpose.msra.mxu0 0.0
  %4084 = vmatprep.subr.mxu0 0.0
  %4085 = vmatpush2.xpose.msra.mxu0 0.0
  %4086 = vmatprep.mubr.f32.mxu0 0.0
  %v4087 = vand.u32 %v3937, 4294901760
  %4088 = vmatmul.mubr.f32.gmra.mxu0 %v4087
  %v4089 = vpop.f32.mrf.mxu0
  %v4090 = vadd.f32 %v4014, %v4089
  %v4091 = vpop.f32.mrf.mxu0
  %4092 = vdwg.mxu0
  %4093 = vmatprep.subr.mxu0 0.0
  %4094 = vmatpush1.xpose.msra.mxu0 0.0
  %4095 = vmatprep.subr.mxu0 0.0
  %4096 = vmatpush1.xpose.msra.mxu0 0.0
  %4097 = vmatprep.subr.mxu0 0.0
  %4098 = vmatpush1.xpose.msra.mxu0 0.0
  %4099 = vmatprep.subr.mxu0 0.0
  %4100 = vmatpush1.xpose.msra.mxu0 0.0
  %4101 = vmatprep.subr.mxu0 0.0
  %4102 = vmatpush1.xpose.msra.mxu0 0.0
  %4103 = vmatprep.subr.mxu0 0.0
  %4104 = vmatpush1.xpose.msra.mxu0 0.0
  %4105 = vmatprep.subr.mxu0 0.0
  %4106 = vmatpush1.xpose.msra.mxu0 0.0
  %4107 = vmatprep.subr.mxu0 0.0
  %4108 = vmatpush1.xpose.msra.mxu0 0.0
  %4109 = vmatprep.subr.mxu0 0.0
  %4110 = vmatpush1.xpose.msra.mxu0 0.0
  %4111 = vmatprep.subr.mxu0 0.0
  %4112 = vmatpush1.xpose.msra.mxu0 0.0
  %4113 = vmatprep.subr.mxu0 0.0
  %4114 = vmatpush1.xpose.msra.mxu0 0.0
  %4115 = vmatprep.subr.mxu0 0.0
  %4116 = vmatpush1.xpose.msra.mxu0 0.0
  %4117 = vmatprep.subr.mxu0 0.0
  %4118 = vmatpush1.xpose.msra.mxu0 0.0
  %4119 = vmatprep.subr.mxu0 0.0
  %4120 = vmatpush1.xpose.msra.mxu0 0.0
  %4121 = vmatprep.subr.mxu0 0.0
  %4122 = vmatpush1.xpose.msra.mxu0 0.0
  %4123 = vmatprep.subr.mxu0 0.0
  %v4124 = vand.u32 %v3939, 4294901760
  %v4125 = vsub.f32 %v3939, %v4124
  %4126 = vmatpush1.xpose.msra.mxu0 %v4125
  %4127 = vmatprep.subr.mxu0 0.0
  %4128 = vmatpush2.xpose.msra.mxu0 0.0
  %4129 = vmatprep.subr.mxu0 0.0
  %4130 = vmatpush2.xpose.msra.mxu0 0.0
  %4131 = vmatprep.subr.mxu0 0.0
  %4132 = vmatpush2.xpose.msra.mxu0 0.0
  %4133 = vmatprep.subr.mxu0 0.0
  %4134 = vmatpush2.xpose.msra.mxu0 0.0
  %4135 = vmatprep.subr.mxu0 0.0
  %4136 = vmatpush2.xpose.msra.mxu0 0.0
  %4137 = vmatprep.subr.mxu0 0.0
  %4138 = vmatpush2.xpose.msra.mxu0 0.0
  %4139 = vmatprep.subr.mxu0 0.0
  %4140 = vmatpush2.xpose.msra.mxu0 0.0
  %4141 = vmatprep.subr.mxu0 0.0
  %4142 = vmatpush2.xpose.msra.mxu0 0.0
  %4143 = vmatprep.subr.mxu0 0.0
  %4144 = vmatpush2.xpose.msra.mxu0 0.0
  %4145 = vmatprep.subr.mxu0 0.0
  %4146 = vmatpush2.xpose.msra.mxu0 0.0
  %4147 = vmatprep.subr.mxu0 0.0
  %4148 = vmatpush2.xpose.msra.mxu0 0.0
  %4149 = vmatprep.subr.mxu0 0.0
  %4150 = vmatpush2.xpose.msra.mxu0 0.0
  %4151 = vmatprep.subr.mxu0 0.0
  %4152 = vmatpush2.xpose.msra.mxu0 0.0
  %4153 = vmatprep.subr.mxu0 0.0
  %4154 = vmatpush2.xpose.msra.mxu0 0.0
  %4155 = vmatprep.subr.mxu0 0.0
  %4156 = vmatpush2.xpose.msra.mxu0 0.0
  %4157 = vmatprep.subr.mxu0 0.0
  %4158 = vmatpush2.xpose.msra.mxu0 0.0
  %4159 = vmatprep.mubr.f32.mxu0 0.0
  %v4160 = vand.u32 %v3937, 4294901760
  %v4161 = vsub.f32 %v3937, %v4160
  %4162 = vmatmul.mubr.f32.gmra.mxu0 %v4161
  %v4163 = vpop.f32.mrf.mxu0
  %v4164 = vadd.f32 %v4090, %v4163
  %v4165 = vpop.f32.mrf.mxu0
  %4166 = vdwg.mxu0
  %4167 = vmatprep.subr.mxu0 0.0
  %4168 = vmatpush1.xpose.msra.mxu0 0.0
  %4169 = vmatprep.subr.mxu0 0.0
  %4170 = vmatpush1.xpose.msra.mxu0 0.0
  %4171 = vmatprep.subr.mxu0 0.0
  %4172 = vmatpush1.xpose.msra.mxu0 0.0
  %4173 = vmatprep.subr.mxu0 0.0
  %4174 = vmatpush1.xpose.msra.mxu0 0.0
  %4175 = vmatprep.subr.mxu0 0.0
  %4176 = vmatpush1.xpose.msra.mxu0 0.0
  %4177 = vmatprep.subr.mxu0 0.0
  %4178 = vmatpush1.xpose.msra.mxu0 0.0
  %4179 = vmatprep.subr.mxu0 0.0
  %4180 = vmatpush1.xpose.msra.mxu0 0.0
  %4181 = vmatprep.subr.mxu0 0.0
  %4182 = vmatpush1.xpose.msra.mxu0 0.0
  %4183 = vmatprep.subr.mxu0 0.0
  %4184 = vmatpush1.xpose.msra.mxu0 0.0
  %4185 = vmatprep.subr.mxu0 0.0
  %4186 = vmatpush1.xpose.msra.mxu0 0.0
  %4187 = vmatprep.subr.mxu0 0.0
  %4188 = vmatpush1.xpose.msra.mxu0 0.0
  %4189 = vmatprep.subr.mxu0 0.0
  %4190 = vmatpush1.xpose.msra.mxu0 0.0
  %4191 = vmatprep.subr.mxu0 0.0
  %4192 = vmatpush1.xpose.msra.mxu0 0.0
  %4193 = vmatprep.subr.mxu0 0.0
  %4194 = vmatpush1.xpose.msra.mxu0 0.0
  %4195 = vmatprep.subr.mxu0 0.0
  %4196 = vmatpush1.xpose.msra.mxu0 0.0
  %4197 = vmatprep.subr.mxu0 0.0
  %v4198 = vand.u32 %v3939, 4294901760
  %4199 = vmatpush1.xpose.msra.mxu0 %v4198
  %4200 = vmatprep.subr.mxu0 0.0
  %4201 = vmatpush2.xpose.msra.mxu0 0.0
  %4202 = vmatprep.subr.mxu0 0.0
  %4203 = vmatpush2.xpose.msra.mxu0 0.0
  %4204 = vmatprep.subr.mxu0 0.0
  %4205 = vmatpush2.xpose.msra.mxu0 0.0
  %4206 = vmatprep.subr.mxu0 0.0
  %4207 = vmatpush2.xpose.msra.mxu0 0.0
  %4208 = vmatprep.subr.mxu0 0.0
  %4209 = vmatpush2.xpose.msra.mxu0 0.0
  %4210 = vmatprep.subr.mxu0 0.0
  %4211 = vmatpush2.xpose.msra.mxu0 0.0
  %4212 = vmatprep.subr.mxu0 0.0
  %4213 = vmatpush2.xpose.msra.mxu0 0.0
  %4214 = vmatprep.subr.mxu0 0.0
  %4215 = vmatpush2.xpose.msra.mxu0 0.0
  %4216 = vmatprep.subr.mxu0 0.0
  %4217 = vmatpush2.xpose.msra.mxu0 0.0
  %4218 = vmatprep.subr.mxu0 0.0
  %4219 = vmatpush2.xpose.msra.mxu0 0.0
  %4220 = vmatprep.subr.mxu0 0.0
  %4221 = vmatpush2.xpose.msra.mxu0 0.0
  %4222 = vmatprep.subr.mxu0 0.0
  %4223 = vmatpush2.xpose.msra.mxu0 0.0
  %4224 = vmatprep.subr.mxu0 0.0
  %4225 = vmatpush2.xpose.msra.mxu0 0.0
  %4226 = vmatprep.subr.mxu0 0.0
  %4227 = vmatpush2.xpose.msra.mxu0 0.0
  %4228 = vmatprep.subr.mxu0 0.0
  %4229 = vmatpush2.xpose.msra.mxu0 0.0
  %4230 = vmatprep.subr.mxu0 0.0
  %4231 = vmatpush2.xpose.msra.mxu0 0.0
  %4232 = vmatprep.mubr.f32.mxu0 0.0
  %v4233 = vand.u32 %v3937, 4294901760
  %v4234 = vsub.f32 %v3937, %v4233
  %v4235 = vand.u32 %v4234, 4294901760
  %4236 = vmatmul.mubr.f32.gmra.mxu0 %v4235
  %v4237 = vpop.f32.mrf.mxu0
  %v4238 = vadd.f32 %v4164, %v4237
  %v4239 = vpop.f32.mrf.mxu0
  %4240 = vdwg.mxu0
  %4241 = vmatprep.subr.mxu0 0.0
  %4242 = vmatpush1.xpose.msra.mxu0 0.0
  %4243 = vmatprep.subr.mxu0 0.0
  %4244 = vmatpush1.xpose.msra.mxu0 0.0
  %4245 = vmatprep.subr.mxu0 0.0
  %4246 = vmatpush1.xpose.msra.mxu0 0.0
  %4247 = vmatprep.subr.mxu0 0.0
  %4248 = vmatpush1.xpose.msra.mxu0 0.0
  %4249 = vmatprep.subr.mxu0 0.0
  %4250 = vmatpush1.xpose.msra.mxu0 0.0
  %4251 = vmatprep.subr.mxu0 0.0
  %4252 = vmatpush1.xpose.msra.mxu0 0.0
  %4253 = vmatprep.subr.mxu0 0.0
  %4254 = vmatpush1.xpose.msra.mxu0 0.0
  %4255 = vmatprep.subr.mxu0 0.0
  %4256 = vmatpush1.xpose.msra.mxu0 0.0
  %4257 = vmatprep.subr.mxu0 0.0
  %4258 = vmatpush1.xpose.msra.mxu0 0.0
  %4259 = vmatprep.subr.mxu0 0.0
  %4260 = vmatpush1.xpose.msra.mxu0 0.0
  %4261 = vmatprep.subr.mxu0 0.0
  %4262 = vmatpush1.xpose.msra.mxu0 0.0
  %4263 = vmatprep.subr.mxu0 0.0
  %4264 = vmatpush1.xpose.msra.mxu0 0.0
  %4265 = vmatprep.subr.mxu0 0.0
  %4266 = vmatpush1.xpose.msra.mxu0 0.0
  %4267 = vmatprep.subr.mxu0 0.0
  %4268 = vmatpush1.xpose.msra.mxu0 0.0
  %4269 = vmatprep.subr.mxu0 0.0
  %4270 = vmatpush1.xpose.msra.mxu0 0.0
  %4271 = vmatprep.subr.mxu0 0.0
  %v4272 = vand.u32 %v3939, 4294901760
  %v4273 = vsub.f32 %v3939, %v4272
  %v4274 = vand.u32 %v4273, 4294901760
  %4275 = vmatpush1.xpose.msra.mxu0 %v4274
  %4276 = vmatprep.subr.mxu0 0.0
  %4277 = vmatpush2.xpose.msra.mxu0 0.0
  %4278 = vmatprep.subr.mxu0 0.0
  %4279 = vmatpush2.xpose.msra.mxu0 0.0
  %4280 = vmatprep.subr.mxu0 0.0
  %4281 = vmatpush2.xpose.msra.mxu0 0.0
  %4282 = vmatprep.subr.mxu0 0.0
  %4283 = vmatpush2.xpose.msra.mxu0 0.0
  %4284 = vmatprep.subr.mxu0 0.0
  %4285 = vmatpush2.xpose.msra.mxu0 0.0
  %4286 = vmatprep.subr.mxu0 0.0
  %4287 = vmatpush2.xpose.msra.mxu0 0.0
  %4288 = vmatprep.subr.mxu0 0.0
  %4289 = vmatpush2.xpose.msra.mxu0 0.0
  %4290 = vmatprep.subr.mxu0 0.0
  %4291 = vmatpush2.xpose.msra.mxu0 0.0
  %4292 = vmatprep.subr.mxu0 0.0
  %4293 = vmatpush2.xpose.msra.mxu0 0.0
  %4294 = vmatprep.subr.mxu0 0.0
  %4295 = vmatpush2.xpose.msra.mxu0 0.0
  %4296 = vmatprep.subr.mxu0 0.0
  %4297 = vmatpush2.xpose.msra.mxu0 0.0
  %4298 = vmatprep.subr.mxu0 0.0
  %4299 = vmatpush2.xpose.msra.mxu0 0.0
  %4300 = vmatprep.subr.mxu0 0.0
  %4301 = vmatpush2.xpose.msra.mxu0 0.0
  %4302 = vmatprep.subr.mxu0 0.0
  %4303 = vmatpush2.xpose.msra.mxu0 0.0
  %4304 = vmatprep.subr.mxu0 0.0
  %4305 = vmatpush2.xpose.msra.mxu0 0.0
  %4306 = vmatprep.subr.mxu0 0.0
  %4307 = vmatpush2.xpose.msra.mxu0 0.0
  %4308 = vmatprep.mubr.f32.mxu0 0.0
  %v4309 = vand.u32 %v3937, 4294901760
  %4310 = vmatmul.mubr.f32.gmra.mxu0 %v4309
  %v4311 = vpop.f32.mrf.mxu0
  %v4312 = vadd.f32 %v4238, %v4311
  %v4313 = vpop.f32.mrf.mxu0
  %4314 = vdwg.mxu0
  %4315 = vmatprep.subr.mxu0 0.0
  %4316 = vmatpush1.xpose.msra.mxu0 0.0
  %4317 = vmatprep.subr.mxu0 0.0
  %4318 = vmatpush1.xpose.msra.mxu0 0.0
  %4319 = vmatprep.subr.mxu0 0.0
  %4320 = vmatpush1.xpose.msra.mxu0 0.0
  %4321 = vmatprep.subr.mxu0 0.0
  %4322 = vmatpush1.xpose.msra.mxu0 0.0
  %4323 = vmatprep.subr.mxu0 0.0
  %4324 = vmatpush1.xpose.msra.mxu0 0.0
  %4325 = vmatprep.subr.mxu0 0.0
  %4326 = vmatpush1.xpose.msra.mxu0 0.0
  %4327 = vmatprep.subr.mxu0 0.0
  %4328 = vmatpush1.xpose.msra.mxu0 0.0
  %4329 = vmatprep.subr.mxu0 0.0
  %4330 = vmatpush1.xpose.msra.mxu0 0.0
  %4331 = vmatprep.subr.mxu0 0.0
  %4332 = vmatpush1.xpose.msra.mxu0 0.0
  %4333 = vmatprep.subr.mxu0 0.0
  %4334 = vmatpush1.xpose.msra.mxu0 0.0
  %4335 = vmatprep.subr.mxu0 0.0
  %4336 = vmatpush1.xpose.msra.mxu0 0.0
  %4337 = vmatprep.subr.mxu0 0.0
  %4338 = vmatpush1.xpose.msra.mxu0 0.0
  %4339 = vmatprep.subr.mxu0 0.0
  %4340 = vmatpush1.xpose.msra.mxu0 0.0
  %4341 = vmatprep.subr.mxu0 0.0
  %4342 = vmatpush1.xpose.msra.mxu0 0.0
  %4343 = vmatprep.subr.mxu0 0.0
  %4344 = vmatpush1.xpose.msra.mxu0 0.0
  %4345 = vmatprep.subr.mxu0 0.0
  %v4346 = vand.u32 %v3939, 4294901760
  %4347 = vmatpush1.xpose.msra.mxu0 %v4346
  %4348 = vmatprep.subr.mxu0 0.0
  %4349 = vmatpush2.xpose.msra.mxu0 0.0
  %4350 = vmatprep.subr.mxu0 0.0
  %4351 = vmatpush2.xpose.msra.mxu0 0.0
  %4352 = vmatprep.subr.mxu0 0.0
  %4353 = vmatpush2.xpose.msra.mxu0 0.0
  %4354 = vmatprep.subr.mxu0 0.0
  %4355 = vmatpush2.xpose.msra.mxu0 0.0
  %4356 = vmatprep.subr.mxu0 0.0
  %4357 = vmatpush2.xpose.msra.mxu0 0.0
  %4358 = vmatprep.subr.mxu0 0.0
  %4359 = vmatpush2.xpose.msra.mxu0 0.0
  %4360 = vmatprep.subr.mxu0 0.0
  %4361 = vmatpush2.xpose.msra.mxu0 0.0
  %4362 = vmatprep.subr.mxu0 0.0
  %4363 = vmatpush2.xpose.msra.mxu0 0.0
  %4364 = vmatprep.subr.mxu0 0.0
  %4365 = vmatpush2.xpose.msra.mxu0 0.0
  %4366 = vmatprep.subr.mxu0 0.0
  %4367 = vmatpush2.xpose.msra.mxu0 0.0
  %4368 = vmatprep.subr.mxu0 0.0
  %4369 = vmatpush2.xpose.msra.mxu0 0.0
  %4370 = vmatprep.subr.mxu0 0.0
  %4371 = vmatpush2.xpose.msra.mxu0 0.0
  %4372 = vmatprep.subr.mxu0 0.0
  %4373 = vmatpush2.xpose.msra.mxu0 0.0
  %4374 = vmatprep.subr.mxu0 0.0
  %4375 = vmatpush2.xpose.msra.mxu0 0.0
  %4376 = vmatprep.subr.mxu0 0.0
  %4377 = vmatpush2.xpose.msra.mxu0 0.0
  %4378 = vmatprep.subr.mxu0 0.0
  %4379 = vmatpush2.xpose.msra.mxu0 0.0
  %4380 = vmatprep.mubr.f32.mxu0 0.0
  %v4381 = vand.u32 %v3937, 4294901760
  %4382 = vmatmul.mubr.f32.gmra.mxu0 %v4381
  %v4383 = vpop.f32.mrf.mxu0
  %v4384 = vadd.f32 %v4312, %v4383
  %v4385 = vpop.f32.mrf.mxu0
  %4386 = vdwg.mxu0
  %v4387 = vmul.f32 %v4384, 0.35355338
  %v4388 = vsel %vm1182, %v4387, -inf
  %4389 = vmax.xlane.f32.xlu0 %v4388
  %v4390 = vpop.xlane.xlu0 %4389
  %v4391 = vsub.f32 %v4387, %v4390
  %v4392 = vmul.f32 %v4391, 1.442695
  %v4393 = vpow.pop %v4392
  %v4394 = vsel %vm1182, %v4393, 0.0
  %4395 = vadd.xlane.f32.xlu0 %v4394
  %v4396 = vpop.xlane.xlu0 %4395
  %v4397 = vrcp.pop %v4396
  %v4398 = vmul.f32 %v4393, %v4397
  %v4400 = vsel %vm1182, %v1176, 0
  %v4403 = vsel %vm1182, %v4398, 0
  %4405 = vmatprep.subr.mxu0 0.0
  %4406 = vmatpush1.xpose.msra.mxu0 0.0
  %4407 = vmatprep.subr.mxu0 0.0
  %4408 = vmatpush1.xpose.msra.mxu0 0.0
  %4409 = vmatprep.subr.mxu0 0.0
  %4410 = vmatpush1.xpose.msra.mxu0 0.0
  %4411 = vmatprep.subr.mxu0 0.0
  %4412 = vmatpush1.xpose.msra.mxu0 0.0
  %4413 = vmatprep.subr.mxu0 0.0
  %4414 = vmatpush1.xpose.msra.mxu0 0.0
  %4415 = vmatprep.subr.mxu0 0.0
  %4416 = vmatpush1.xpose.msra.mxu0 0.0
  %4417 = vmatprep.subr.mxu0 0.0
  %4418 = vmatpush1.xpose.msra.mxu0 0.0
  %4419 = vmatprep.subr.mxu0 0.0
  %4420 = vmatpush1.xpose.msra.mxu0 0.0
  %4421 = vmatprep.subr.mxu0 0.0
  %4422 = vmatpush1.xpose.msra.mxu0 0.0
  %4423 = vmatprep.subr.mxu0 0.0
  %4424 = vmatpush1.xpose.msra.mxu0 0.0
  %4425 = vmatprep.subr.mxu0 0.0
  %4426 = vmatpush1.xpose.msra.mxu0 0.0
  %4427 = vmatprep.subr.mxu0 0.0
  %4428 = vmatpush1.xpose.msra.mxu0 0.0
  %4429 = vmatprep.subr.mxu0 0.0
  %4430 = vmatpush1.xpose.msra.mxu0 0.0
  %4431 = vmatprep.subr.mxu0 0.0
  %4432 = vmatpush1.xpose.msra.mxu0 0.0
  %4433 = vmatprep.subr.mxu0 0.0
  %4434 = vmatpush1.xpose.msra.mxu0 0.0
  %4435 = vmatprep.subr.mxu0 0.0
  %v4436 = vand.u32 %v4403, 4294901760
  %4437 = vmatpush1.xpose.msra.mxu0 %v4436
  %4438 = vmatprep.subr.mxu0 0.0
  %4439 = vmatpush2.xpose.msra.mxu0 0.0
  %4440 = vmatprep.subr.mxu0 0.0
  %4441 = vmatpush2.xpose.msra.mxu0 0.0
  %4442 = vmatprep.subr.mxu0 0.0
  %4443 = vmatpush2.xpose.msra.mxu0 0.0
  %4444 = vmatprep.subr.mxu0 0.0
  %4445 = vmatpush2.xpose.msra.mxu0 0.0
  %4446 = vmatprep.subr.mxu0 0.0
  %4447 = vmatpush2.xpose.msra.mxu0 0.0
  %4448 = vmatprep.subr.mxu0 0.0
  %4449 = vmatpush2.xpose.msra.mxu0 0.0
  %4450 = vmatprep.subr.mxu0 0.0
  %4451 = vmatpush2.xpose.msra.mxu0 0.0
  %4452 = vmatprep.subr.mxu0 0.0
  %4453 = vmatpush2.xpose.msra.mxu0 0.0
  %4454 = vmatprep.subr.mxu0 0.0
  %4455 = vmatpush2.xpose.msra.mxu0 0.0
  %4456 = vmatprep.subr.mxu0 0.0
  %4457 = vmatpush2.xpose.msra.mxu0 0.0
  %4458 = vmatprep.subr.mxu0 0.0
  %4459 = vmatpush2.xpose.msra.mxu0 0.0
  %4460 = vmatprep.subr.mxu0 0.0
  %4461 = vmatpush2.xpose.msra.mxu0 0.0
  %4462 = vmatprep.subr.mxu0 0.0
  %4463 = vmatpush2.xpose.msra.mxu0 0.0
  %4464 = vmatprep.subr.mxu0 0.0
  %4465 = vmatpush2.xpose.msra.mxu0 0.0
  %4466 = vmatprep.subr.mxu0 0.0
  %4467 = vmatpush2.xpose.msra.mxu0 0.0
  %4468 = vmatprep.subr.mxu0 0.0
  %4469 = vmatpush2.xpose.msra.mxu0 0.0
  %4470 = vmatprep.mubr.f32.mxu0 0.0
  %v4471 = vand.u32 %v4400, 4294901760
  %v4472 = vsub.f32 %v4400, %v4471
  %v4473 = vand.u32 %v4472, 4294901760
  %v4474 = vsub.f32 %v4472, %v4473
  %v4475 = vand.u32 %v4474, 4294901760
  %4476 = vmatmul.mubr.f32.gmra.mxu0 %v4475
  %v4477 = vpop.f32.mrf.mxu0
  %v4478 = vadd.f32 0.0, %v4477
  %v4479 = vpop.f32.mrf.mxu0
  %4480 = vdwg.mxu0
  %4481 = vmatprep.subr.mxu0 0.0
  %4482 = vmatpush1.xpose.msra.mxu0 0.0
  %4483 = vmatprep.subr.mxu0 0.0
  %4484 = vmatpush1.xpose.msra.mxu0 0.0
  %4485 = vmatprep.subr.mxu0 0.0
  %4486 = vmatpush1.xpose.msra.mxu0 0.0
  %4487 = vmatprep.subr.mxu0 0.0
  %4488 = vmatpush1.xpose.msra.mxu0 0.0
  %4489 = vmatprep.subr.mxu0 0.0
  %4490 = vmatpush1.xpose.msra.mxu0 0.0
  %4491 = vmatprep.subr.mxu0 0.0
  %4492 = vmatpush1.xpose.msra.mxu0 0.0
  %4493 = vmatprep.subr.mxu0 0.0
  %4494 = vmatpush1.xpose.msra.mxu0 0.0
  %4495 = vmatprep.subr.mxu0 0.0
  %4496 = vmatpush1.xpose.msra.mxu0 0.0
  %4497 = vmatprep.subr.mxu0 0.0
  %4498 = vmatpush1.xpose.msra.mxu0 0.0
  %4499 = vmatprep.subr.mxu0 0.0
  %4500 = vmatpush1.xpose.msra.mxu0 0.0
  %4501 = vmatprep.subr.mxu0 0.0
  %4502 = vmatpush1.xpose.msra.mxu0 0.0
  %4503 = vmatprep.subr.mxu0 0.0
  %4504 = vmatpush1.xpose.msra.mxu0 0.0
  %4505 = vmatprep.subr.mxu0 0.0
  %4506 = vmatpush1.xpose.msra.mxu0 0.0
  %4507 = vmatprep.subr.mxu0 0.0
  %4508 = vmatpush1.xpose.msra.mxu0 0.0
  %4509 = vmatprep.subr.mxu0 0.0
  %4510 = vmatpush1.xpose.msra.mxu0 0.0
  %4511 = vmatprep.subr.mxu0 0.0
  %v4512 = vand.u32 %v4403, 4294901760
  %v4513 = vsub.f32 %v4403, %v4512
  %v4514 = vand.u32 %v4513, 4294901760
  %v4515 = vsub.f32 %v4513, %v4514
  %v4516 = vand.u32 %v4515, 4294901760
  %4517 = vmatpush1.xpose.msra.mxu0 %v4516
  %4518 = vmatprep.subr.mxu0 0.0
  %4519 = vmatpush2.xpose.msra.mxu0 0.0
  %4520 = vmatprep.subr.mxu0 0.0
  %4521 = vmatpush2.xpose.msra.mxu0 0.0
  %4522 = vmatprep.subr.mxu0 0.0
  %4523 = vmatpush2.xpose.msra.mxu0 0.0
  %4524 = vmatprep.subr.mxu0 0.0
  %4525 = vmatpush2.xpose.msra.mxu0 0.0
  %4526 = vmatprep.subr.mxu0 0.0
  %4527 = vmatpush2.xpose.msra.mxu0 0.0
  %4528 = vmatprep.subr.mxu0 0.0
  %4529 = vmatpush2.xpose.msra.mxu0 0.0
  %4530 = vmatprep.subr.mxu0 0.0
  %4531 = vmatpush2.xpose.msra.mxu0 0.0
  %4532 = vmatprep.subr.mxu0 0.0
  %4533 = vmatpush2.xpose.msra.mxu0 0.0
  %4534 = vmatprep.subr.mxu0 0.0
  %4535 = vmatpush2.xpose.msra.mxu0 0.0
  %4536 = vmatprep.subr.mxu0 0.0
  %4537 = vmatpush2.xpose.msra.mxu0 0.0
  %4538 = vmatprep.subr.mxu0 0.0
  %4539 = vmatpush2.xpose.msra.mxu0 0.0
  %4540 = vmatprep.subr.mxu0 0.0
  %4541 = vmatpush2.xpose.msra.mxu0 0.0
  %4542 = vmatprep.subr.mxu0 0.0
  %4543 = vmatpush2.xpose.msra.mxu0 0.0
  %4544 = vmatprep.subr.mxu0 0.0
  %4545 = vmatpush2.xpose.msra.mxu0 0.0
  %4546 = vmatprep.subr.mxu0 0.0
  %4547 = vmatpush2.xpose.msra.mxu0 0.0
  %4548 = vmatprep.subr.mxu0 0.0
  %4549 = vmatpush2.xpose.msra.mxu0 0.0
  %4550 = vmatprep.mubr.f32.mxu0 0.0
  %v4551 = vand.u32 %v4400, 4294901760
  %4552 = vmatmul.mubr.f32.gmra.mxu0 %v4551
  %v4553 = vpop.f32.mrf.mxu0
  %v4554 = vadd.f32 %v4478, %v4553
  %v4555 = vpop.f32.mrf.mxu0
  %4556 = vdwg.mxu0
  %4557 = vmatprep.subr.mxu0 0.0
  %4558 = vmatpush1.xpose.msra.mxu0 0.0
  %4559 = vmatprep.subr.mxu0 0.0
  %4560 = vmatpush1.xpose.msra.mxu0 0.0
  %4561 = vmatprep.subr.mxu0 0.0
  %4562 = vmatpush1.xpose.msra.mxu0 0.0
  %4563 = vmatprep.subr.mxu0 0.0
  %4564 = vmatpush1.xpose.msra.mxu0 0.0
  %4565 = vmatprep.subr.mxu0 0.0
  %4566 = vmatpush1.xpose.msra.mxu0 0.0
  %4567 = vmatprep.subr.mxu0 0.0
  %4568 = vmatpush1.xpose.msra.mxu0 0.0
  %4569 = vmatprep.subr.mxu0 0.0
  %4570 = vmatpush1.xpose.msra.mxu0 0.0
  %4571 = vmatprep.subr.mxu0 0.0
  %4572 = vmatpush1.xpose.msra.mxu0 0.0
  %4573 = vmatprep.subr.mxu0 0.0
  %4574 = vmatpush1.xpose.msra.mxu0 0.0
  %4575 = vmatprep.subr.mxu0 0.0
  %4576 = vmatpush1.xpose.msra.mxu0 0.0
  %4577 = vmatprep.subr.mxu0 0.0
  %4578 = vmatpush1.xpose.msra.mxu0 0.0
  %4579 = vmatprep.subr.mxu0 0.0
  %4580 = vmatpush1.xpose.msra.mxu0 0.0
  %4581 = vmatprep.subr.mxu0 0.0
  %4582 = vmatpush1.xpose.msra.mxu0 0.0
  %4583 = vmatprep.subr.mxu0 0.0
  %4584 = vmatpush1.xpose.msra.mxu0 0.0
  %4585 = vmatprep.subr.mxu0 0.0
  %4586 = vmatpush1.xpose.msra.mxu0 0.0
  %4587 = vmatprep.subr.mxu0 0.0
  %v4588 = vand.u32 %v4403, 4294901760
  %v4589 = vsub.f32 %v4403, %v4588
  %4590 = vmatpush1.xpose.msra.mxu0 %v4589
  %4591 = vmatprep.subr.mxu0 0.0
  %4592 = vmatpush2.xpose.msra.mxu0 0.0
  %4593 = vmatprep.subr.mxu0 0.0
  %4594 = vmatpush2.xpose.msra.mxu0 0.0
  %4595 = vmatprep.subr.mxu0 0.0
  %4596 = vmatpush2.xpose.msra.mxu0 0.0
  %4597 = vmatprep.subr.mxu0 0.0
  %4598 = vmatpush2.xpose.msra.mxu0 0.0
  %4599 = vmatprep.subr.mxu0 0.0
  %4600 = vmatpush2.xpose.msra.mxu0 0.0
  %4601 = vmatprep.subr.mxu0 0.0
  %4602 = vmatpush2.xpose.msra.mxu0 0.0
  %4603 = vmatprep.subr.mxu0 0.0
  %4604 = vmatpush2.xpose.msra.mxu0 0.0
  %4605 = vmatprep.subr.mxu0 0.0
  %4606 = vmatpush2.xpose.msra.mxu0 0.0
  %4607 = vmatprep.subr.mxu0 0.0
  %4608 = vmatpush2.xpose.msra.mxu0 0.0
  %4609 = vmatprep.subr.mxu0 0.0
  %4610 = vmatpush2.xpose.msra.mxu0 0.0
  %4611 = vmatprep.subr.mxu0 0.0
  %4612 = vmatpush2.xpose.msra.mxu0 0.0
  %4613 = vmatprep.subr.mxu0 0.0
  %4614 = vmatpush2.xpose.msra.mxu0 0.0
  %4615 = vmatprep.subr.mxu0 0.0
  %4616 = vmatpush2.xpose.msra.mxu0 0.0
  %4617 = vmatprep.subr.mxu0 0.0
  %4618 = vmatpush2.xpose.msra.mxu0 0.0
  %4619 = vmatprep.subr.mxu0 0.0
  %4620 = vmatpush2.xpose.msra.mxu0 0.0
  %4621 = vmatprep.subr.mxu0 0.0
  %4622 = vmatpush2.xpose.msra.mxu0 0.0
  %4623 = vmatprep.mubr.f32.mxu0 0.0
  %v4624 = vand.u32 %v4400, 4294901760
  %v4625 = vsub.f32 %v4400, %v4624
  %4626 = vmatmul.mubr.f32.gmra.mxu0 %v4625
  %v4627 = vpop.f32.mrf.mxu0
  %v4628 = vadd.f32 %v4554, %v4627
  %v4629 = vpop.f32.mrf.mxu0
  %4630 = vdwg.mxu0
  %4631 = vmatprep.subr.mxu0 0.0
  %4632 = vmatpush1.xpose.msra.mxu0 0.0
  %4633 = vmatprep.subr.mxu0 0.0
  %4634 = vmatpush1.xpose.msra.mxu0 0.0
  %4635 = vmatprep.subr.mxu0 0.0
  %4636 = vmatpush1.xpose.msra.mxu0 0.0
  %4637 = vmatprep.subr.mxu0 0.0
  %4638 = vmatpush1.xpose.msra.mxu0 0.0
  %4639 = vmatprep.subr.mxu0 0.0
  %4640 = vmatpush1.xpose.msra.mxu0 0.0
  %4641 = vmatprep.subr.mxu0 0.0
  %4642 = vmatpush1.xpose.msra.mxu0 0.0
  %4643 = vmatprep.subr.mxu0 0.0
  %4644 = vmatpush1.xpose.msra.mxu0 0.0
  %4645 = vmatprep.subr.mxu0 0.0
  %4646 = vmatpush1.xpose.msra.mxu0 0.0
  %4647 = vmatprep.subr.mxu0 0.0
  %4648 = vmatpush1.xpose.msra.mxu0 0.0
  %4649 = vmatprep.subr.mxu0 0.0
  %4650 = vmatpush1.xpose.msra.mxu0 0.0
  %4651 = vmatprep.subr.mxu0 0.0
  %4652 = vmatpush1.xpose.msra.mxu0 0.0
  %4653 = vmatprep.subr.mxu0 0.0
  %4654 = vmatpush1.xpose.msra.mxu0 0.0
  %4655 = vmatprep.subr.mxu0 0.0
  %4656 = vmatpush1.xpose.msra.mxu0 0.0
  %4657 = vmatprep.subr.mxu0 0.0
  %4658 = vmatpush1.xpose.msra.mxu0 0.0
  %4659 = vmatprep.subr.mxu0 0.0
  %4660 = vmatpush1.xpose.msra.mxu0 0.0
  %4661 = vmatprep.subr.mxu0 0.0
  %v4662 = vand.u32 %v4403, 4294901760
  %4663 = vmatpush1.xpose.msra.mxu0 %v4662
  %4664 = vmatprep.subr.mxu0 0.0
  %4665 = vmatpush2.xpose.msra.mxu0 0.0
  %4666 = vmatprep.subr.mxu0 0.0
  %4667 = vmatpush2.xpose.msra.mxu0 0.0
  %4668 = vmatprep.subr.mxu0 0.0
  %4669 = vmatpush2.xpose.msra.mxu0 0.0
  %4670 = vmatprep.subr.mxu0 0.0
  %4671 = vmatpush2.xpose.msra.mxu0 0.0
  %4672 = vmatprep.subr.mxu0 0.0
  %4673 = vmatpush2.xpose.msra.mxu0 0.0
  %4674 = vmatprep.subr.mxu0 0.0
  %4675 = vmatpush2.xpose.msra.mxu0 0.0
  %4676 = vmatprep.subr.mxu0 0.0
  %4677 = vmatpush2.xpose.msra.mxu0 0.0
  %4678 = vmatprep.subr.mxu0 0.0
  %4679 = vmatpush2.xpose.msra.mxu0 0.0
  %4680 = vmatprep.subr.mxu0 0.0
  %4681 = vmatpush2.xpose.msra.mxu0 0.0
  %4682 = vmatprep.subr.mxu0 0.0
  %4683 = vmatpush2.xpose.msra.mxu0 0.0
  %4684 = vmatprep.subr.mxu0 0.0
  %4685 = vmatpush2.xpose.msra.mxu0 0.0
  %4686 = vmatprep.subr.mxu0 0.0
  %4687 = vmatpush2.xpose.msra.mxu0 0.0
  %4688 = vmatprep.subr.mxu0 0.0
  %4689 = vmatpush2.xpose.msra.mxu0 0.0
  %4690 = vmatprep.subr.mxu0 0.0
  %4691 = vmatpush2.xpose.msra.mxu0 0.0
  %4692 = vmatprep.subr.mxu0 0.0
  %4693 = vmatpush2.xpose.msra.mxu0 0.0
  %4694 = vmatprep.subr.mxu0 0.0
  %4695 = vmatpush2.xpose.msra.mxu0 0.0
  %4696 = vmatprep.mubr.f32.mxu0 0.0
  %v4697 = vand.u32 %v4400, 4294901760
  %v4698 = vsub.f32 %v4400, %v4697
  %v4699 = vand.u32 %v4698, 4294901760
  %4700 = vmatmul.mubr.f32.gmra.mxu0 %v4699
  %v4701 = vpop.f32.mrf.mxu0
  %v4702 = vadd.f32 %v4628, %v4701
  %v4703 = vpop.f32.mrf.mxu0
  %4704 = vdwg.mxu0
  %4705 = vmatprep.subr.mxu0 0.0
  %4706 = vmatpush1.xpose.msra.mxu0 0.0
  %4707 = vmatprep.subr.mxu0 0.0
  %4708 = vmatpush1.xpose.msra.mxu0 0.0
  %4709 = vmatprep.subr.mxu0 0.0
  %4710 = vmatpush1.xpose.msra.mxu0 0.0
  %4711 = vmatprep.subr.mxu0 0.0
  %4712 = vmatpush1.xpose.msra.mxu0 0.0
  %4713 = vmatprep.subr.mxu0 0.0
  %4714 = vmatpush1.xpose.msra.mxu0 0.0
  %4715 = vmatprep.subr.mxu0 0.0
  %4716 = vmatpush1.xpose.msra.mxu0 0.0
  %4717 = vmatprep.subr.mxu0 0.0
  %4718 = vmatpush1.xpose.msra.mxu0 0.0
  %4719 = vmatprep.subr.mxu0 0.0
  %4720 = vmatpush1.xpose.msra.mxu0 0.0
  %4721 = vmatprep.subr.mxu0 0.0
  %4722 = vmatpush1.xpose.msra.mxu0 0.0
  %4723 = vmatprep.subr.mxu0 0.0
  %4724 = vmatpush1.xpose.msra.mxu0 0.0
  %4725 = vmatprep.subr.mxu0 0.0
  %4726 = vmatpush1.xpose.msra.mxu0 0.0
  %4727 = vmatprep.subr.mxu0 0.0
  %4728 = vmatpush1.xpose.msra.mxu0 0.0
  %4729 = vmatprep.subr.mxu0 0.0
  %4730 = vmatpush1.xpose.msra.mxu0 0.0
  %4731 = vmatprep.subr.mxu0 0.0
  %4732 = vmatpush1.xpose.msra.mxu0 0.0
  %4733 = vmatprep.subr.mxu0 0.0
  %4734 = vmatpush1.xpose.msra.mxu0 0.0
  %4735 = vmatprep.subr.mxu0 0.0
  %v4736 = vand.u32 %v4403, 4294901760
  %v4737 = vsub.f32 %v4403, %v4736
  %v4738 = vand.u32 %v4737, 4294901760
  %4739 = vmatpush1.xpose.msra.mxu0 %v4738
  %4740 = vmatprep.subr.mxu0 0.0
  %4741 = vmatpush2.xpose.msra.mxu0 0.0
  %4742 = vmatprep.subr.mxu0 0.0
  %4743 = vmatpush2.xpose.msra.mxu0 0.0
  %4744 = vmatprep.subr.mxu0 0.0
  %4745 = vmatpush2.xpose.msra.mxu0 0.0
  %4746 = vmatprep.subr.mxu0 0.0
  %4747 = vmatpush2.xpose.msra.mxu0 0.0
  %4748 = vmatprep.subr.mxu0 0.0
  %4749 = vmatpush2.xpose.msra.mxu0 0.0
  %4750 = vmatprep.subr.mxu0 0.0
  %4751 = vmatpush2.xpose.msra.mxu0 0.0
  %4752 = vmatprep.subr.mxu0 0.0
  %4753 = vmatpush2.xpose.msra.mxu0 0.0
  %4754 = vmatprep.subr.mxu0 0.0
  %4755 = vmatpush2.xpose.msra.mxu0 0.0
  %4756 = vmatprep.subr.mxu0 0.0
  %4757 = vmatpush2.xpose.msra.mxu0 0.0
  %4758 = vmatprep.subr.mxu0 0.0
  %4759 = vmatpush2.xpose.msra.mxu0 0.0
  %4760 = vmatprep.subr.mxu0 0.0
  %4761 = vmatpush2.xpose.msra.mxu0 0.0
  %4762 = vmatprep.subr.mxu0 0.0
  %4763 = vmatpush2.xpose.msra.mxu0 0.0
  %4764 = vmatprep.subr.mxu0 0.0
  %4765 = vmatpush2.xpose.msra.mxu0 0.0
  %4766 = vmatprep.subr.mxu0 0.0
  %4767 = vmatpush2.xpose.msra.mxu0 0.0
  %4768 = vmatprep.subr.mxu0 0.0
  %4769 = vmatpush2.xpose.msra.mxu0 0.0
  %4770 = vmatprep.subr.mxu0 0.0
  %4771 = vmatpush2.xpose.msra.mxu0 0.0
  %4772 = vmatprep.mubr.f32.mxu0 0.0
  %v4773 = vand.u32 %v4400, 4294901760
  %4774 = vmatmul.mubr.f32.gmra.mxu0 %v4773
  %v4775 = vpop.f32.mrf.mxu0
  %v4776 = vadd.f32 %v4702, %v4775
  %v4777 = vpop.f32.mrf.mxu0
  %4778 = vdwg.mxu0
  %4779 = vmatprep.subr.mxu0 0.0
  %4780 = vmatpush1.xpose.msra.mxu0 0.0
  %4781 = vmatprep.subr.mxu0 0.0
  %4782 = vmatpush1.xpose.msra.mxu0 0.0
  %4783 = vmatprep.subr.mxu0 0.0
  %4784 = vmatpush1.xpose.msra.mxu0 0.0
  %4785 = vmatprep.subr.mxu0 0.0
  %4786 = vmatpush1.xpose.msra.mxu0 0.0
  %4787 = vmatprep.subr.mxu0 0.0
  %4788 = vmatpush1.xpose.msra.mxu0 0.0
  %4789 = vmatprep.subr.mxu0 0.0
  %4790 = vmatpush1.xpose.msra.mxu0 0.0
  %4791 = vmatprep.subr.mxu0 0.0
  %4792 = vmatpush1.xpose.msra.mxu0 0.0
  %4793 = vmatprep.subr.mxu0 0.0
  %4794 = vmatpush1.xpose.msra.mxu0 0.0
  %4795 = vmatprep.subr.mxu0 0.0
  %4796 = vmatpush1.xpose.msra.mxu0 0.0
  %4797 = vmatprep.subr.mxu0 0.0
  %4798 = vmatpush1.xpose.msra.mxu0 0.0
  %4799 = vmatprep.subr.mxu0 0.0
  %4800 = vmatpush1.xpose.msra.mxu0 0.0
  %4801 = vmatprep.subr.mxu0 0.0
  %4802 = vmatpush1.xpose.msra.mxu0 0.0
  %4803 = vmatprep.subr.mxu0 0.0
  %4804 = vmatpush1.xpose.msra.mxu0 0.0
  %4805 = vmatprep.subr.mxu0 0.0
  %4806 = vmatpush1.xpose.msra.mxu0 0.0
  %4807 = vmatprep.subr.mxu0 0.0
  %4808 = vmatpush1.xpose.msra.mxu0 0.0
  %4809 = vmatprep.subr.mxu0 0.0
  %v4810 = vand.u32 %v4403, 4294901760
  %4811 = vmatpush1.xpose.msra.mxu0 %v4810
  %4812 = vmatprep.subr.mxu0 0.0
  %4813 = vmatpush2.xpose.msra.mxu0 0.0
  %4814 = vmatprep.subr.mxu0 0.0
  %4815 = vmatpush2.xpose.msra.mxu0 0.0
  %4816 = vmatprep.subr.mxu0 0.0
  %4817 = vmatpush2.xpose.msra.mxu0 0.0
  %4818 = vmatprep.subr.mxu0 0.0
  %4819 = vmatpush2.xpose.msra.mxu0 0.0
  %4820 = vmatprep.subr.mxu0 0.0
  %4821 = vmatpush2.xpose.msra.mxu0 0.0
  %4822 = vmatprep.subr.mxu0 0.0
  %4823 = vmatpush2.xpose.msra.mxu0 0.0
  %4824 = vmatprep.subr.mxu0 0.0
  %4825 = vmatpush2.xpose.msra.mxu0 0.0
  %4826 = vmatprep.subr.mxu0 0.0
  %4827 = vmatpush2.xpose.msra.mxu0 0.0
  %4828 = vmatprep.subr.mxu0 0.0
  %4829 = vmatpush2.xpose.msra.mxu0 0.0
  %4830 = vmatprep.subr.mxu0 0.0
  %4831 = vmatpush2.xpose.msra.mxu0 0.0
  %4832 = vmatprep.subr.mxu0 0.0
  %4833 = vmatpush2.xpose.msra.mxu0 0.0
  %4834 = vmatprep.subr.mxu0 0.0
  %4835 = vmatpush2.xpose.msra.mxu0 0.0
  %4836 = vmatprep.subr.mxu0 0.0
  %4837 = vmatpush2.xpose.msra.mxu0 0.0
  %4838 = vmatprep.subr.mxu0 0.0
  %4839 = vmatpush2.xpose.msra.mxu0 0.0
  %4840 = vmatprep.subr.mxu0 0.0
  %4841 = vmatpush2.xpose.msra.mxu0 0.0
  %4842 = vmatprep.subr.mxu0 0.0
  %4843 = vmatpush2.xpose.msra.mxu0 0.0
  %4844 = vmatprep.mubr.f32.mxu0 0.0
  %v4845 = vand.u32 %v4400, 4294901760
  %4846 = vmatmul.mubr.f32.gmra.mxu0 %v4845
  %v4847 = vpop.f32.mrf.mxu0
  %v4848 = vadd.f32 %v4776, %v4847
  %v4849 = vpop.f32.mrf.mxu0
  %4850 = vdwg.mxu0
  %4851 = vst.msk [vmem:[%s3] sm:$0xff] %vm1182, %v2094
  %4852 = vst.msk [vmem:[%s3 + $0x8] sm:$0xff] %vm1182, %v3012
  %4853 = vst.msk [vmem:[%s3 + $0x10] sm:$0xff] %vm1182, %v3930
  %4854 = vst.msk [vmem:[%s3 + $0x18] sm:$0xff] %vm1182, %v4848
  // Predicated region
  $region14: #{encoder_layer.2} parent=0 // pred_check
    _
  $region15: #{encoder_layer.2} parent=0 // pred_check_branch
    %4856 = sbr.rel (0) target = $region17
  $region16: #{encoder_layer.2} parent=0 // pred_region
    _
  $region17: #{encoder_layer.2} parent=0 // pred_fallthru
    _
  // Predicated region
  $region18: #{encoder_layer.2} parent=0 // pred_check
    _
  $region19: #{encoder_layer.2} parent=0 // pred_check_branch
    %4858 = sbr.rel (0) target = $region21
  $region20: #{encoder_layer.2} parent=0 // pred_region
    _
  $region21: #{encoder_layer.2} parent=0 // pred_fallthru
    _

</llo_original>
